<compile_context>
chip_gen: v6e
topology: v6e:2x2x1
jax: 0.10.0
libtpu: 0.0.40
codegen_flags: <defaults>
</compile_context>

<pallas_src>
import math
import jax
import jax.numpy as jnp
from jax.experimental import pallas as pl
from jax.experimental.pallas import tpu as pltpu

# ---------------- model configuration (small, consistent with the module) ----------------
VOCAB = 16
D_MODEL = 32
N_HEADS = 4
D_K = D_MODEL // N_HEADS
D_FF = 64
N_LAYERS = 2
EPS = 1e-6
LANES = 128


# ---------------------------------- helpers (host side) ----------------------------------

def positional_encoding(max_len, d_model):
    pos = jnp.arange(max_len, dtype=jnp.float32)[:, None]
    div = jnp.exp(jnp.arange(0, d_model, 2, dtype=jnp.float32)
                  * (-math.log(10000.0) / d_model))
    pe = jnp.zeros((max_len, d_model), jnp.float32)
    pe = pe.at[:, 0::2].set(jnp.sin(pos * div))
    pe = pe.at[:, 1::2].set(jnp.cos(pos * div))
    return pe


def _round_up(x, m):
    return -(-x // m) * m


def pack_params(params, pe):
    """Pack every forward-pass parameter (plus pe) into one [R, 128] f32 VMEM slab.

    Each leaf occupies a contiguous, 8-row-aligned block; returns (slab, offsets) where
    offsets[name] = (row_offset, rows, cols) are static Python ints used for free static
    slices inside the kernel.  The 1/sqrt(d_k) query scale is folded into the Q projection
    weights/biases here so the kernel never multiplies Q.
    """
    scale = 1.0 / math.sqrt(D_K)
    enc, dec = params['enc'], params['dec']

    entries = []

    def add(name, arr):
        arr = jnp.asarray(arr, jnp.float32)
        assert arr.ndim == 2 and arr.shape[1] <= LANES
        entries.append((name, arr))

    add('pe', pe)
    add('src_emb', params['src_emb'])
    add('tgt_emb', params['tgt_emb'])
    add('enc_norm_g', params['enc_norm_g'])
    add('enc_norm_b', params['enc_norm_b'])
    add('dec_norm_g', params['dec_norm_g'])
    add('dec_norm_b', params['dec_norm_b'])

    for l in range(N_LAYERS):
        p = f'enc{l}_'
        add(p + 'wqkv', enc['wqkv'][l].at[:, :D_MODEL].multiply(scale))
        add(p + 'bqkv', enc['bqkv'][l].at[:, :D_MODEL].multiply(scale))
        add(p + 'wo', enc['wo'][l]);   add(p + 'bo', enc['bo'][l])
        add(p + 'w1', enc['w1'][l]);   add(p + 'b1', enc['b1'][l])
        add(p + 'w2', enc['w2'][l]);   add(p + 'b2', enc['b2'][l])
        add(p + 'ln1_g', enc['ln1_g'][l]); add(p + 'ln1_b', enc['ln1_b'][l])
        add(p + 'ln2_g', enc['ln2_g'][l]); add(p + 'ln2_b', enc['ln2_b'][l])

    for l in range(N_LAYERS):
        p = f'dec{l}_'
        add(p + 'wqkv', dec['wqkv'][l].at[:, :D_MODEL].multiply(scale))
        add(p + 'bqkv', dec['bqkv'][l].at[:, :D_MODEL].multiply(scale))
        add(p + 'wo_self', dec['wo_self'][l]); add(p + 'bo_self', dec['bo_self'][l])
        add(p + 'wq_src', dec['wq_src'][l] * scale)
        add(p + 'bq_src', dec['bq_src'][l] * scale)
        add(p + 'wkv_src', dec['wkv_src'][l]); add(p + 'bkv_src', dec['bkv_src'][l])
        add(p + 'wo_src', dec['wo_src'][l]);   add(p + 'bo_src', dec['bo_src'][l])
        add(p + 'w1', dec['w1'][l]);   add(p + 'b1', dec['b1'][l])
        add(p + 'w2', dec['w2'][l]);   add(p + 'b2', dec['b2'][l])
        add(p + 'ln1_g', dec['ln1_g'][l]); add(p + 'ln1_b', dec['ln1_b'][l])
        add(p + 'ln2_g', dec['ln2_g'][l]); add(p + 'ln2_b', dec['ln2_b'][l])
        add(p + 'ln3_g', dec['ln3_g'][l]); add(p + 'ln3_b', dec['ln3_b'][l])

    offsets = {}
    blocks = []
    row = 0
    for name, arr in entries:
        r, c = arr.shape
        rp = _round_up(r, 8)
        blocks.append(jnp.zeros((rp, LANES), jnp.float32).at[:r, :c].set(arr))
        offsets[name] = (row, r, c)
        row += rp
    slab = jnp.concatenate(blocks, axis=0)
    return slab, offsets


# ---------------------------------- fused Pallas kernel ----------------------------------

def _make_fused_kernel(offsets, S_src, S_tgt):
    """One grid step = the full encoder-decoder forward for a single batch element."""

    def kernel(src_ref, tgt_ref, sbias_ref, tbias_ref, slab_ref, out_ref):
        def get(name):
            off, r, c = offsets[name]
            return slab_ref[off:off + r, 0:c]          # static slice of the resident slab

        pe = get('pe')                                  # [S_max, D]
        sbias = sbias_ref[...].reshape(1, S_src)        # additive bias, broadcast over queries
        tbias = tbias_ref[...].reshape(S_tgt, S_tgt)    # additive causal/pad bias

        def embed(tok_ref, table, S):
            # One-hot x table MXU matmul instead of a gather (VOCAB=16 table is in the slab).
            tok = tok_ref[...].reshape(S, 1)
            oh = (jax.lax.broadcasted_iota(jnp.int32, (S, VOCAB), 1) == tok
                  ).astype(jnp.float32)
            x = jnp.dot(oh, table, preferred_element_type=jnp.float32) * math.sqrt(D_MODEL)
            return x + pe[:S, :]                        # [S, D]

        def layer_norm(x, g, b):
            mean = jnp.mean(x, axis=-1, keepdims=True)
            # Annotated-Transformer LayerNorm: unbiased std (ddof=1), eps added to std.
            var = jnp.sum((x - mean) ** 2, axis=-1, keepdims=True) / (D_MODEL - 1)
            std = jnp.sqrt(var)
            return g * (x - mean) * pl.reciprocal(std + EPS) + b

        def linear(x, w, b):
            return jnp.dot(x, w, preferred_element_type=jnp.float32) + b

        def mha(q, k, v, bias, wo, bo, Sq, Sk):
            # q [Sq, D] (query scale already folded into the weights), k/v [Sk, D],
            # bias additive and broadcastable to [Sq, Sk].
            qs = [q[:, h * D_K:(h + 1) * D_K] for h in range(N_HEADS)]
            ks = [k[:, h * D_K:(h + 1) * D_K] for h in range(N_HEADS)]
            vs = [v[:, h * D_K:(h + 1) * D_K] for h in range(N_HEADS)]
            # Per-head QK^T (unavoidable MXU pushes), stacked on a new leading axis so the
            # masked softmax (max/exp/sum/reciprocal) runs ONCE over all heads.
            s = jnp.stack(
                [jnp.einsum('qd,kd->qk', qs[h], ks[h],
                            preferred_element_type=jnp.float32)
                 for h in range(N_HEADS)], axis=0)                       # [H, Sq, Sk]
            s = s + bias[None, :, :]
            s = s - jnp.max(s, axis=-1, keepdims=True)
            e = jnp.exp(s)
            p = e * pl.reciprocal(jnp.sum(e, axis=-1, keepdims=True))
            # Per-head P@V, lane-concat heads, ONE output projection.
            o = jnp.concatenate(
                [jnp.dot(p[h], vs[h], preferred_element_type=jnp.float32)
                 for h in range(N_HEADS)], axis=-1)                      # [Sq, D]
            return jnp.dot(o, wo, preferred_element_type=jnp.float32) + bo

        # ----------------------------- encoder -----------------------------
        x = embed(src_ref, get('src_emb'), S_src)
        for l in range(N_LAYERS):
            p = f'enc{l}_'
            # self-attention sublayer (pre-LN, residual add; dropout == identity)
            y = layer_norm(x, get(p + 'ln1_g'), get(p + 'ln1_b'))
            qkv = linear(y, get(p + 'wqkv'), get(p + 'bqkv'))            # fused Q|K|V
            x = x + mha(qkv[:, 0:D_MODEL], qkv[:, D_MODEL:2 * D_MODEL],
                        qkv[:, 2 * D_MODEL:3 * D_MODEL],
                        sbias, get(p + 'wo'), get(p + 'bo'), S_src, S_src)
            # feed-forward sublayer
            y = layer_norm(x, get(p + 'ln2_g'), get(p + 'ln2_b'))
            h1 = jnp.maximum(linear(y, get(p + 'w1'), get(p + 'b1')), 0.0)
            x = x + linear(h1, get(p + 'w2'), get(p + 'b2'))
        memory = layer_norm(x, get('enc_norm_g'), get('enc_norm_b'))

        # ----------------------------- decoder -----------------------------
        x = embed(tgt_ref, get('tgt_emb'), S_tgt)
        for l in range(N_LAYERS):
            p = f'dec{l}_'
            # masked self-attention
            y = layer_norm(x, get(p + 'ln1_g'), get(p + 'ln1_b'))
            qkv = linear(y, get(p + 'wqkv'), get(p + 'bqkv'))
            x = x + mha(qkv[:, 0:D_MODEL], qkv[:, D_MODEL:2 * D_MODEL],
                        qkv[:, 2 * D_MODEL:3 * D_MODEL],
                        tbias, get(p + 'wo_self'), get(p + 'bo_self'), S_tgt, S_tgt)
            # cross-attention (query from x, key/value from encoder memory)
            y = layer_norm(x, get(p + 'ln2_g'), get(p + 'ln2_b'))
            q = linear(y, get(p + 'wq_src'), get(p + 'bq_src'))
            kv = linear(memory, get(p + 'wkv_src'), get(p + 'bkv_src'))  # fused K|V
            x = x + mha(q, kv[:, 0:D_MODEL], kv[:, D_MODEL:2 * D_MODEL],
                        sbias, get(p + 'wo_src'), get(p + 'bo_src'), S_tgt, S_src)
            # feed-forward
            y = layer_norm(x, get(p + 'ln3_g'), get(p + 'ln3_b'))
            h1 = jnp.maximum(linear(y, get(p + 'w1'), get(p + 'b1')), 0.0)
            x = x + linear(h1, get(p + 'w2'), get(p + 'b2'))
        x = layer_norm(x, get('dec_norm_g'), get('dec_norm_b'))

        out_ref[...] = x.reshape(1, S_tgt, D_MODEL)

    return kernel


def encoder_decoder_forward(params, source, target, source_mask, target_mask):
    B, S_src = source.shape
    S_tgt = target.shape[1]
    pe = positional_encoding(max(S_src, S_tgt), D_MODEL)

    # generator params are defined in __init__ but unused by forward(); not packed.
    slab, offsets = pack_params(params, pe)
    R = slab.shape[0]

    src_tok = source.astype(jnp.int32).reshape(B, 1, S_src)
    tgt_tok = target.astype(jnp.int32).reshape(B, 1, S_tgt)
    # Additive attention biases precomputed host-side (1 = keep -> 0, 0 = mask -> -1e9).
    src_bias = (source_mask.astype(jnp.float32) - 1.0) * 1e9             # [B, 1, S_src]
    tgt_bias = (target_mask.astype(jnp.float32) - 1.0) * 1e9             # [B, S_tgt, S_tgt]

    out = pl.pallas_call(
        _make_fused_kernel(offsets, S_src, S_tgt),
        out_shape=jax.ShapeDtypeStruct((B, S_tgt, D_MODEL), jnp.float32),
        grid=(B,),
        in_specs=[
            pl.BlockSpec((1, 1, S_src), lambda b: (b, 0, 0)),
            pl.BlockSpec((1, 1, S_tgt), lambda b: (b, 0, 0)),
            pl.BlockSpec((1, 1, S_src), lambda b: (b, 0, 0)),
            pl.BlockSpec((1, S_tgt, S_tgt), lambda b: (b, 0, 0)),
            pl.BlockSpec((R, LANES), lambda b: (0, 0)),                  # one resident slab
        ],
        out_specs=pl.BlockSpec((1, S_tgt, D_MODEL), lambda b: (b, 0, 0)),
        compiler_params=pltpu.CompilerParams(dimension_semantics=("parallel",)),
    )(src_tok, tgt_tok, src_bias, tgt_bias, slab)
    return out


# ---------------------------------- deterministic parameter init ----------------------------------

def init_params(key):
    keys = iter(jax.random.split(key, 64))

    def nrm(shape, scale):
        return (jax.random.normal(next(keys), shape) * scale).astype(jnp.float32)

    def lin_w(din, dout):
        return nrm((din, dout), 1.0 / math.sqrt(din))

    def zeros(shape):
        return jnp.zeros(shape, jnp.float32)

    def ones(shape):
        return jnp.ones(shape, jnp.float32)

    L = N_LAYERS

    def stack(make_one):
        return jnp.stack([make_one() for _ in range(L)], axis=0)

    enc = dict(
        wqkv=stack(lambda: jnp.concatenate([lin_w(D_MODEL, D_MODEL) for _ in range(3)], axis=1)),
        bqkv=zeros((L, 1, 3 * D_MODEL)),
        wo=stack(lambda: lin_w(D_MODEL, D_MODEL)), bo=zeros((L, 1, D_MODEL)),
        w1=stack(lambda: lin_w(D_MODEL, D_FF)), b1=zeros((L, 1, D_FF)),
        w2=stack(lambda: lin_w(D_FF, D_MODEL)), b2=zeros((L, 1, D_MODEL)),
        ln1_g=ones((L, 1, D_MODEL)), ln1_b=zeros((L, 1, D_MODEL)),
        ln2_g=ones((L, 1, D_MODEL)), ln2_b=zeros((L, 1, D_MODEL)),
    )
    dec = dict(
        wqkv=stack(lambda: jnp.concatenate([lin_w(D_MODEL, D_MODEL) for _ in range(3)], axis=1)),
        bqkv=zeros((L, 1, 3 * D_MODEL)),
        wo_self=stack(lambda: lin_w(D_MODEL, D_MODEL)), bo_self=zeros((L, 1, D_MODEL)),
        wq_src=stack(lambda: lin_w(D_MODEL, D_MODEL)), bq_src=zeros((L, 1, D_MODEL)),
        wkv_src=stack(lambda: jnp.concatenate([lin_w(D_MODEL, D_MODEL) for _ in range(2)], axis=1)),
        bkv_src=zeros((L, 1, 2 * D_MODEL)),
        wo_src=stack(lambda: lin_w(D_MODEL, D_MODEL)), bo_src=zeros((L, 1, D_MODEL)),
        w1=stack(lambda: lin_w(D_MODEL, D_FF)), b1=zeros((L, 1, D_FF)),
        w2=stack(lambda: lin_w(D_FF, D_MODEL)), b2=zeros((L, 1, D_MODEL)),
        ln1_g=ones((L, 1, D_MODEL)), ln1_b=zeros((L, 1, D_MODEL)),
        ln2_g=ones((L, 1, D_MODEL)), ln2_b=zeros((L, 1, D_MODEL)),
        ln3_g=ones((L, 1, D_MODEL)), ln3_b=zeros((L, 1, D_MODEL)),
    )
    return dict(
        src_emb=nrm((VOCAB, D_MODEL), 1.0),
        tgt_emb=nrm((VOCAB, D_MODEL), 1.0),
        enc=enc,
        enc_norm_g=ones((1, D_MODEL)), enc_norm_b=zeros((1, D_MODEL)),
        dec=dec,
        dec_norm_g=ones((1, D_MODEL)), dec_norm_b=zeros((1, D_MODEL)),
        gen_w=lin_w(D_MODEL, VOCAB),   # generator: defined (as in __init__) but unused by forward()
        gen_b=zeros((VOCAB,)),
    )


# ---------------------------------- main ----------------------------------

if __name__ == "__main__":
    key = jax.random.PRNGKey(0)
    pkey, skey, tkey = jax.random.split(key, 3)
    params = init_params(pkey)

    B, S_SRC, S_TGT, PAD = 2, 8, 8, 0
    source = jax.random.randint(skey, (B, S_SRC), 1, VOCAB).astype(jnp.int32)
    target = jax.random.randint(tkey, (B, S_TGT), 1, VOCAB).astype(jnp.int32)
    source = source.at[:, -1].set(PAD)   # exercise the padding mask

    source_mask = (source != PAD).astype(jnp.float32)[:, None, :]                 # [B, 1, S_src]
    subsequent = jnp.tril(jnp.ones((S_TGT, S_TGT), jnp.float32))
    target_mask = (target != PAD).astype(jnp.float32)[:, None, :] * subsequent[None, :, :]  # [B, S_tgt, S_tgt]

    fwd = jax.jit(encoder_decoder_forward)
    out = fwd(params, source, target, source_mask, target_mask)
    out = jax.block_until_ready(out)
    assert out.shape == (B, S_TGT, D_MODEL) and out.dtype == jnp.float32
    assert bool(jnp.all(jnp.isfinite(out)))
    print("KERNEL_OK")
</pallas_src>

<mosaic_0001>
module attributes {stable_mosaic.version = 11 : i64} {
  func.func @kernel(%arg0: i32, %arg1: memref<1x1x8xi32, #tpu.memory_space<vmem>>, %arg2: memref<1x1x8xi32, #tpu.memory_space<vmem>>, %arg3: memref<1x1x8xf32, #tpu.memory_space<vmem>>, %arg4: memref<1x8x8xf32, #tpu.memory_space<vmem>>, %arg5: memref<1240x128xf32, #tpu.memory_space<vmem>>, %arg6: memref<1x8x32xf32, #tpu.memory_space<vmem>>) attributes {dimension_semantics = [#tpu.dimension_semantics<parallel>], iteration_bounds = array<i64: 2>, scalar_prefetch = 0 : i64, scratch_operands = 0 : i64, tpu.core_type = #tpu.core_type<tc>, window_params = [{transform_indices = @transform_0, window_bounds = array<i64: 1, 1, 8>}, {transform_indices = @transform_1, window_bounds = array<i64: 1, 1, 8>}, {transform_indices = @transform_2, window_bounds = array<i64: 1, 1, 8>}, {transform_indices = @transform_3, window_bounds = array<i64: 1, 8, 8>}, {pipeline_mode = #tpu.pipeline_mode<synchronous>, transform_indices = @transform_4, window_bounds = array<i64: 1240, 128>}, {transform_indices = @transform_5, window_bounds = array<i64: 1, 8, 32>}]} {
    %c0 = arith.constant 0 : index
    %c0_0 = arith.constant 0 : index
    %0 = vector.load %arg5[%c0, %c0_0] : memref<1240x128xf32, #tpu.memory_space<vmem>>, vector<8x32xf32>
    %c0_1 = arith.constant 0 : index
    %c0_2 = arith.constant 0 : index
    %c0_3 = arith.constant 0 : index
    %1 = vector.load %arg3[%c0_1, %c0_2, %c0_3] : memref<1x1x8xf32, #tpu.memory_space<vmem>>, vector<1x1x8xf32>
    %2 = vector.shape_cast %1 : vector<1x1x8xf32> to vector<1x8xf32>
    %c0_4 = arith.constant 0 : index
    %c0_5 = arith.constant 0 : index
    %c0_6 = arith.constant 0 : index
    %3 = vector.load %arg4[%c0_4, %c0_5, %c0_6] : memref<1x8x8xf32, #tpu.memory_space<vmem>>, vector<1x8x8xf32>
    %4 = vector.shape_cast %3 : vector<1x8x8xf32> to vector<8x8xf32>
    %c8 = arith.constant 8 : index
    %c0_7 = arith.constant 0 : index
    %5 = vector.load %arg5[%c8, %c0_7] : memref<1240x128xf32, #tpu.memory_space<vmem>>, vector<16x32xf32>
    %c0_8 = arith.constant 0 : index
    %c0_9 = arith.constant 0 : index
    %c0_10 = arith.constant 0 : index
    %6 = vector.load %arg1[%c0_8, %c0_9, %c0_10] : memref<1x1x8xi32, #tpu.memory_space<vmem>>, vector<1x1x8xi32>
    %7 = vector.shape_cast %6 : vector<1x1x8xi32> to vector<8x1xi32>
    %8 = tpu.iota {dimensions = array<i32: 1>} : vector<8x16xi32>
    %9 = vector.broadcast %7 : vector<8x1xi32> to vector<8x16xi32>
    %10 = arith.cmpi eq, %8, %9 : vector<8x16xi32>
    %11 = arith.extui %10 : vector<8x16xi1> to vector<8x16xi32>
    %12 = arith.sitofp %11 : vector<8x16xi32> to vector<8x16xf32>
    %cst = arith.constant dense<0.000000e+00> : vector<8x32xf32>
    %13 = tpu.matmul %12, %5, %cst {dimension_numbers = #tpu.dot_dimension_numbers<[1], [0], [0], [1], [0, 0, 1, 1], [], []>} : vector<8x16xf32>, vector<16x32xf32>, vector<8x32xf32> -> vector<8x32xf32>
    %cst_11 = arith.constant 5.65685415 : f32
    %14 = vector.broadcast %cst_11 : f32 to vector<8x32xf32>
    %15 = arith.mulf %13, %14 : vector<8x32xf32>
    %16 = arith.addf %15, %0 : vector<8x32xf32>
    %c264 = arith.constant 264 : index
    %c0_12 = arith.constant 0 : index
    %17 = vector.load %arg5[%c264, %c0_12] : memref<1240x128xf32, #tpu.memory_space<vmem>>, vector<1x32xf32>
    %c272 = arith.constant 272 : index
    %c0_13 = arith.constant 0 : index
    %18 = vector.load %arg5[%c272, %c0_13] : memref<1240x128xf32, #tpu.memory_space<vmem>>, vector<1x32xf32>
    %cst_14 = arith.constant dense<0.000000e+00> : vector<8xf32>
    %19 = vector.multi_reduction <add>, %16, %cst_14 [1] : vector<8x32xf32> to vector<8xf32>
    %20 = vector.shape_cast %19 : vector<8xf32> to vector<8x1xf32>
    %cst_15 = arith.constant 3.200000e+01 : f32
    %21 = vector.broadcast %cst_15 : f32 to vector<8x1xf32>
    %22 = arith.divf %20, %21 : vector<8x1xf32>
    %23 = vector.broadcast %22 : vector<8x1xf32> to vector<8x32xf32>
    %24 = arith.subf %16, %23 : vector<8x32xf32>
    %25 = arith.mulf %24, %24 : vector<8x32xf32>
    %cst_16 = arith.constant dense<0.000000e+00> : vector<8xf32>
    %26 = vector.multi_reduction <add>, %25, %cst_16 [1] : vector<8x32xf32> to vector<8xf32>
    %27 = vector.shape_cast %26 : vector<8xf32> to vector<8x1xf32>
    %cst_17 = arith.constant 3.100000e+01 : f32
    %28 = vector.broadcast %cst_17 : f32 to vector<8x1xf32>
    %29 = arith.divf %27, %28 : vector<8x1xf32>
    %30 = math.sqrt %29 : vector<8x1xf32>
    %31 = vector.broadcast %22 : vector<8x1xf32> to vector<8x32xf32>
    %32 = arith.subf %16, %31 : vector<8x32xf32>
    %33 = vector.broadcast %17 : vector<1x32xf32> to vector<8x32xf32>
    %34 = arith.mulf %33, %32 : vector<8x32xf32>
    %cst_18 = arith.constant 9.99999997E-7 : f32
    %35 = vector.broadcast %cst_18 : f32 to vector<8x1xf32>
    %36 = arith.addf %30, %35 : vector<8x1xf32>
    %37 = tpu.reciprocal %36 : vector<8x1xf32> -> vector<8x1xf32>
    %38 = vector.broadcast %37 : vector<8x1xf32> to vector<8x32xf32>
    %39 = arith.mulf %34, %38 : vector<8x32xf32>
    %40 = vector.broadcast %18 : vector<1x32xf32> to vector<8x32xf32>
    %41 = arith.addf %39, %40 : vector<8x32xf32>
    %c72 = arith.constant 72 : index
    %c0_19 = arith.constant 0 : index
    %42 = vector.load %arg5[%c72, %c0_19] : memref<1240x128xf32, #tpu.memory_space<vmem>>, vector<32x96xf32>
    %c104 = arith.constant 104 : index
    %c0_20 = arith.constant 0 : index
    %43 = vector.load %arg5[%c104, %c0_20] : memref<1240x128xf32, #tpu.memory_space<vmem>>, vector<1x96xf32>
    %cst_21 = arith.constant dense<0.000000e+00> : vector<8x96xf32>
    %44 = tpu.matmul %41, %42, %cst_21 {dimension_numbers = #tpu.dot_dimension_numbers<[1], [0], [0], [1], [0, 0, 1, 1], [], []>} : vector<8x32xf32>, vector<32x96xf32>, vector<8x96xf32> -> vector<8x96xf32>
    %45 = vector.broadcast %43 : vector<1x96xf32> to vector<8x96xf32>
    %46 = arith.addf %44, %45 : vector<8x96xf32>
    %47 = vector.extract_strided_slice %46 {offsets = [0, 0], sizes = [8, 32], strides = [1, 1]} : vector<8x96xf32> to vector<8x32xf32>
    %48 = vector.extract_strided_slice %46 {offsets = [0, 32], sizes = [8, 32], strides = [1, 1]} : vector<8x96xf32> to vector<8x32xf32>
    %49 = vector.extract_strided_slice %46 {offsets = [0, 64], sizes = [8, 32], strides = [1, 1]} : vector<8x96xf32> to vector<8x32xf32>
    %c112 = arith.constant 112 : index
    %c0_22 = arith.constant 0 : index
    %50 = vector.load %arg5[%c112, %c0_22] : memref<1240x128xf32, #tpu.memory_space<vmem>>, vector<32x32xf32>
    %c144 = arith.constant 144 : index
    %c0_23 = arith.constant 0 : index
    %51 = vector.load %arg5[%c144, %c0_23] : memref<1240x128xf32, #tpu.memory_space<vmem>>, vector<1x32xf32>
    %52 = vector.extract_strided_slice %47 {offsets = [0, 0], sizes = [8, 8], strides = [1, 1]} : vector<8x32xf32> to vector<8x8xf32>
    %53 = vector.extract_strided_slice %47 {offsets = [0, 8], sizes = [8, 8], strides = [1, 1]} : vector<8x32xf32> to vector<8x8xf32>
    %54 = vector.extract_strided_slice %47 {offsets = [0, 16], sizes = [8, 8], strides = [1, 1]} : vector<8x32xf32> to vector<8x8xf32>
    %55 = vector.extract_strided_slice %47 {offsets = [0, 24], sizes = [8, 8], strides = [1, 1]} : vector<8x32xf32> to vector<8x8xf32>
    %56 = vector.extract_strided_slice %48 {offsets = [0, 0], sizes = [8, 8], strides = [1, 1]} : vector<8x32xf32> to vector<8x8xf32>
    %57 = vector.extract_strided_slice %48 {offsets = [0, 8], sizes = [8, 8], strides = [1, 1]} : vector<8x32xf32> to vector<8x8xf32>
    %58 = vector.extract_strided_slice %48 {offsets = [0, 16], sizes = [8, 8], strides = [1, 1]} : vector<8x32xf32> to vector<8x8xf32>
    %59 = vector.extract_strided_slice %48 {offsets = [0, 24], sizes = [8, 8], strides = [1, 1]} : vector<8x32xf32> to vector<8x8xf32>
    %60 = vector.extract_strided_slice %49 {offsets = [0, 0], sizes = [8, 8], strides = [1, 1]} : vector<8x32xf32> to vector<8x8xf32>
    %61 = vector.extract_strided_slice %49 {offsets = [0, 8], sizes = [8, 8], strides = [1, 1]} : vector<8x32xf32> to vector<8x8xf32>
    %62 = vector.extract_strided_slice %49 {offsets = [0, 16], sizes = [8, 8], strides = [1, 1]} : vector<8x32xf32> to vector<8x8xf32>
    %63 = vector.extract_strided_slice %49 {offsets = [0, 24], sizes = [8, 8], strides = [1, 1]} : vector<8x32xf32> to vector<8x8xf32>
    "tpu.trace_start"() <{level = 10 : i32, message = "qd,kd->qk"}> : () -> ()
    %cst_24 = arith.constant dense<0.000000e+00> : vector<8x8xf32>
    %64 = tpu.matmul %52, %56, %cst_24 {dimension_numbers = #tpu.dot_dimension_numbers<[1], [1], [0], [0], [0, 0, 1, 0], [], []>} : vector<8x8xf32>, vector<8x8xf32>, vector<8x8xf32> -> vector<8x8xf32>
    %cst_25 = arith.constant dense<0.000000e+00> : vector<8x8xf32>
    %65 = tpu.matmul %53, %57, %cst_25 {dimension_numbers = #tpu.dot_dimension_numbers<[1], [1], [0], [0], [0, 0, 1, 0], [], []>} : vector<8x8xf32>, vector<8x8xf32>, vector<8x8xf32> -> vector<8x8xf32>
    %cst_26 = arith.constant dense<0.000000e+00> : vector<8x8xf32>
    %66 = tpu.matmul %54, %58, %cst_26 {dimension_numbers = #tpu.dot_dimension_numbers<[1], [1], [0], [0], [0, 0, 1, 0], [], []>} : vector<8x8xf32>, vector<8x8xf32>, vector<8x8xf32> -> vector<8x8xf32>
    %cst_27 = arith.constant dense<0.000000e+00> : vector<8x8xf32>
    %67 = tpu.matmul %55, %59, %cst_27 {dimension_numbers = #tpu.dot_dimension_numbers<[1], [1], [0], [0], [0, 0, 1, 0], [], []>} : vector<8x8xf32>, vector<8x8xf32>, vector<8x8xf32> -> vector<8x8xf32>
    "tpu.trace_stop"() : () -> ()
    %68 = vector.shape_cast %64 : vector<8x8xf32> to vector<1x8x8xf32>
    %69 = vector.shape_cast %65 : vector<8x8xf32> to vector<1x8x8xf32>
    %70 = vector.shape_cast %66 : vector<8x8xf32> to vector<1x8x8xf32>
    %71 = vector.shape_cast %67 : vector<8x8xf32> to vector<1x8x8xf32>
    %72 = tpu.concatenate %68, %69, %70, %71 in 0 : vector<1x8x8xf32>, vector<1x8x8xf32>, vector<1x8x8xf32>, vector<1x8x8xf32> -> vector<4x8x8xf32>
    %73 = vector.shape_cast %2 : vector<1x8xf32> to vector<1x1x8xf32>
    %74 = vector.broadcast %73 : vector<1x1x8xf32> to vector<4x8x8xf32>
    %75 = arith.addf %72, %74 : vector<4x8x8xf32>
    %cst_28 = arith.constant dense<0xFF800000> : vector<4x8xf32>
    %76 = vector.multi_reduction <maximumf>, %75, %cst_28 [2] : vector<4x8x8xf32> to vector<4x8xf32>
    %77 = vector.shape_cast %76 : vector<4x8xf32> to vector<4x8x1xf32>
    %78 = vector.broadcast %77 : vector<4x8x1xf32> to vector<4x8x8xf32>
    %79 = arith.subf %75, %78 : vector<4x8x8xf32>
    %80 = math.exp %79 : vector<4x8x8xf32>
    %cst_29 = arith.constant dense<0.000000e+00> : vector<4x8xf32>
    %81 = vector.multi_reduction <add>, %80, %cst_29 [2] : vector<4x8x8xf32> to vector<4x8xf32>
    %82 = vector.shape_cast %81 : vector<4x8xf32> to vector<4x8x1xf32>
    %83 = tpu.reciprocal %82 : vector<4x8x1xf32> -> vector<4x8x1xf32>
    %84 = vector.broadcast %83 : vector<4x8x1xf32> to vector<4x8x8xf32>
    %85 = arith.mulf %80, %84 : vector<4x8x8xf32>
    %86 = vector.extract_strided_slice %85 {offsets = [0, 0, 0], sizes = [1, 8, 8], strides = [1, 1, 1]} : vector<4x8x8xf32> to vector<1x8x8xf32>
    %87 = vector.shape_cast %86 : vector<1x8x8xf32> to vector<8x8xf32>
    %cst_30 = arith.constant dense<0.000000e+00> : vector<8x8xf32>
    %88 = tpu.matmul %87, %60, %cst_30 {dimension_numbers = #tpu.dot_dimension_numbers<[1], [0], [0], [1], [0, 0, 1, 1], [], []>} : vector<8x8xf32>, vector<8x8xf32>, vector<8x8xf32> -> vector<8x8xf32>
    %89 = vector.extract_strided_slice %85 {offsets = [1, 0, 0], sizes = [1, 8, 8], strides = [1, 1, 1]} : vector<4x8x8xf32> to vector<1x8x8xf32>
    %90 = vector.shape_cast %89 : vector<1x8x8xf32> to vector<8x8xf32>
    %cst_31 = arith.constant dense<0.000000e+00> : vector<8x8xf32>
    %91 = tpu.matmul %90, %61, %cst_31 {dimension_numbers = #tpu.dot_dimension_numbers<[1], [0], [0], [1], [0, 0, 1, 1], [], []>} : vector<8x8xf32>, vector<8x8xf32>, vector<8x8xf32> -> vector<8x8xf32>
    %92 = vector.extract_strided_slice %85 {offsets = [2, 0, 0], sizes = [1, 8, 8], strides = [1, 1, 1]} : vector<4x8x8xf32> to vector<1x8x8xf32>
    %93 = vector.shape_cast %92 : vector<1x8x8xf32> to vector<8x8xf32>
    %cst_32 = arith.constant dense<0.000000e+00> : vector<8x8xf32>
    %94 = tpu.matmul %93, %62, %cst_32 {dimension_numbers = #tpu.dot_dimension_numbers<[1], [0], [0], [1], [0, 0, 1, 1], [], []>} : vector<8x8xf32>, vector<8x8xf32>, vector<8x8xf32> -> vector<8x8xf32>
    %95 = vector.extract_strided_slice %85 {offsets = [3, 0, 0], sizes = [1, 8, 8], strides = [1, 1, 1]} : vector<4x8x8xf32> to vector<1x8x8xf32>
    %96 = vector.shape_cast %95 : vector<1x8x8xf32> to vector<8x8xf32>
    %cst_33 = arith.constant dense<0.000000e+00> : vector<8x8xf32>
    %97 = tpu.matmul %96, %63, %cst_33 {dimension_numbers = #tpu.dot_dimension_numbers<[1], [0], [0], [1], [0, 0, 1, 1], [], []>} : vector<8x8xf32>, vector<8x8xf32>, vector<8x8xf32> -> vector<8x8xf32>
    %98 = tpu.concatenate %88, %91, %94, %97 in 1 : vector<8x8xf32>, vector<8x8xf32>, vector<8x8xf32>, vector<8x8xf32> -> vector<8x32xf32>
    %cst_34 = arith.constant dense<0.000000e+00> : vector<8x32xf32>
    %99 = tpu.matmul %98, %50, %cst_34 {dimension_numbers = #tpu.dot_dimension_numbers<[1], [0], [0], [1], [0, 0, 1, 1], [], []>} : vector<8x32xf32>, vector<32x32xf32>, vector<8x32xf32> -> vector<8x32xf32>
    %100 = vector.broadcast %51 : vector<1x32xf32> to vector<8x32xf32>
    %101 = arith.addf %99, %100 : vector<8x32xf32>
    %102 = arith.addf %16, %101 : vector<8x32xf32>
    %c280 = arith.constant 280 : index
    %c0_35 = arith.constant 0 : index
    %103 = vector.load %arg5[%c280, %c0_35] : memref<1240x128xf32, #tpu.memory_space<vmem>>, vector<1x32xf32>
    %c288 = arith.constant 288 : index
    %c0_36 = arith.constant 0 : index
    %104 = vector.load %arg5[%c288, %c0_36] : memref<1240x128xf32, #tpu.memory_space<vmem>>, vector<1x32xf32>
    %cst_37 = arith.constant dense<0.000000e+00> : vector<8xf32>
    %105 = vector.multi_reduction <add>, %102, %cst_37 [1] : vector<8x32xf32> to vector<8xf32>
    %106 = vector.shape_cast %105 : vector<8xf32> to vector<8x1xf32>
    %cst_38 = arith.constant 3.200000e+01 : f32
    %107 = vector.broadcast %cst_38 : f32 to vector<8x1xf32>
    %108 = arith.divf %106, %107 : vector<8x1xf32>
    %109 = vector.broadcast %108 : vector<8x1xf32> to vector<8x32xf32>
    %110 = arith.subf %102, %109 : vector<8x32xf32>
    %111 = arith.mulf %110, %110 : vector<8x32xf32>
    %cst_39 = arith.constant dense<0.000000e+00> : vector<8xf32>
    %112 = vector.multi_reduction <add>, %111, %cst_39 [1] : vector<8x32xf32> to vector<8xf32>
    %113 = vector.shape_cast %112 : vector<8xf32> to vector<8x1xf32>
    %cst_40 = arith.constant 3.100000e+01 : f32
    %114 = vector.broadcast %cst_40 : f32 to vector<8x1xf32>
    %115 = arith.divf %113, %114 : vector<8x1xf32>
    %116 = math.sqrt %115 : vector<8x1xf32>
    %117 = vector.broadcast %108 : vector<8x1xf32> to vector<8x32xf32>
    %118 = arith.subf %102, %117 : vector<8x32xf32>
    %119 = vector.broadcast %103 : vector<1x32xf32> to vector<8x32xf32>
    %120 = arith.mulf %119, %118 : vector<8x32xf32>
    %cst_41 = arith.constant 9.99999997E-7 : f32
    %121 = vector.broadcast %cst_41 : f32 to vector<8x1xf32>
    %122 = arith.addf %116, %121 : vector<8x1xf32>
    %123 = tpu.reciprocal %122 : vector<8x1xf32> -> vector<8x1xf32>
    %124 = vector.broadcast %123 : vector<8x1xf32> to vector<8x32xf32>
    %125 = arith.mulf %120, %124 : vector<8x32xf32>
    %126 = vector.broadcast %104 : vector<1x32xf32> to vector<8x32xf32>
    %127 = arith.addf %125, %126 : vector<8x32xf32>
    %c152 = arith.constant 152 : index
    %c0_42 = arith.constant 0 : index
    %128 = vector.load %arg5[%c152, %c0_42] : memref<1240x128xf32, #tpu.memory_space<vmem>>, vector<32x64xf32>
    %c184 = arith.constant 184 : index
    %c0_43 = arith.constant 0 : index
    %129 = vector.load %arg5[%c184, %c0_43] : memref<1240x128xf32, #tpu.memory_space<vmem>>, vector<1x64xf32>
    %cst_44 = arith.constant dense<0.000000e+00> : vector<8x64xf32>
    %130 = tpu.matmul %127, %128, %cst_44 {dimension_numbers = #tpu.dot_dimension_numbers<[1], [0], [0], [1], [0, 0, 1, 1], [], []>} : vector<8x32xf32>, vector<32x64xf32>, vector<8x64xf32> -> vector<8x64xf32>
    %131 = vector.broadcast %129 : vector<1x64xf32> to vector<8x64xf32>
    %132 = arith.addf %130, %131 : vector<8x64xf32>
    %cst_45 = arith.constant 0.000000e+00 : f32
    %133 = vector.broadcast %cst_45 : f32 to vector<8x64xf32>
    %134 = arith.maximumf %132, %133 : vector<8x64xf32>
    %c192 = arith.constant 192 : index
    %c0_46 = arith.constant 0 : index
    %135 = vector.load %arg5[%c192, %c0_46] : memref<1240x128xf32, #tpu.memory_space<vmem>>, vector<64x32xf32>
    %c256 = arith.constant 256 : index
    %c0_47 = arith.constant 0 : index
    %136 = vector.load %arg5[%c256, %c0_47] : memref<1240x128xf32, #tpu.memory_space<vmem>>, vector<1x32xf32>
    %cst_48 = arith.constant dense<0.000000e+00> : vector<8x32xf32>
    %137 = tpu.matmul %134, %135, %cst_48 {dimension_numbers = #tpu.dot_dimension_numbers<[1], [0], [0], [1], [0, 0, 1, 1], [], []>} : vector<8x64xf32>, vector<64x32xf32>, vector<8x32xf32> -> vector<8x32xf32>
    %138 = vector.broadcast %136 : vector<1x32xf32> to vector<8x32xf32>
    %139 = arith.addf %137, %138 : vector<8x32xf32>
    %140 = arith.addf %102, %139 : vector<8x32xf32>
    %c488 = arith.constant 488 : index
    %c0_49 = arith.constant 0 : index
    %141 = vector.load %arg5[%c488, %c0_49] : memref<1240x128xf32, #tpu.memory_space<vmem>>, vector<1x32xf32>
    %c496 = arith.constant 496 : index
    %c0_50 = arith.constant 0 : index
    %142 = vector.load %arg5[%c496, %c0_50] : memref<1240x128xf32, #tpu.memory_space<vmem>>, vector<1x32xf32>
    %cst_51 = arith.constant dense<0.000000e+00> : vector<8xf32>
    %143 = vector.multi_reduction <add>, %140, %cst_51 [1] : vector<8x32xf32> to vector<8xf32>
    %144 = vector.shape_cast %143 : vector<8xf32> to vector<8x1xf32>
    %cst_52 = arith.constant 3.200000e+01 : f32
    %145 = vector.broadcast %cst_52 : f32 to vector<8x1xf32>
    %146 = arith.divf %144, %145 : vector<8x1xf32>
    %147 = vector.broadcast %146 : vector<8x1xf32> to vector<8x32xf32>
    %148 = arith.subf %140, %147 : vector<8x32xf32>
    %149 = arith.mulf %148, %148 : vector<8x32xf32>
    %cst_53 = arith.constant dense<0.000000e+00> : vector<8xf32>
    %150 = vector.multi_reduction <add>, %149, %cst_53 [1] : vector<8x32xf32> to vector<8xf32>
    %151 = vector.shape_cast %150 : vector<8xf32> to vector<8x1xf32>
    %cst_54 = arith.constant 3.100000e+01 : f32
    %152 = vector.broadcast %cst_54 : f32 to vector<8x1xf32>
    %153 = arith.divf %151, %152 : vector<8x1xf32>
    %154 = math.sqrt %153 : vector<8x1xf32>
    %155 = vector.broadcast %146 : vector<8x1xf32> to vector<8x32xf32>
    %156 = arith.subf %140, %155 : vector<8x32xf32>
    %157 = vector.broadcast %141 : vector<1x32xf32> to vector<8x32xf32>
    %158 = arith.mulf %157, %156 : vector<8x32xf32>
    %cst_55 = arith.constant 9.99999997E-7 : f32
    %159 = vector.broadcast %cst_55 : f32 to vector<8x1xf32>
    %160 = arith.addf %154, %159 : vector<8x1xf32>
    %161 = tpu.reciprocal %160 : vector<8x1xf32> -> vector<8x1xf32>
    %162 = vector.broadcast %161 : vector<8x1xf32> to vector<8x32xf32>
    %163 = arith.mulf %158, %162 : vector<8x32xf32>
    %164 = vector.broadcast %142 : vector<1x32xf32> to vector<8x32xf32>
    %165 = arith.addf %163, %164 : vector<8x32xf32>
    %c296 = arith.constant 296 : index
    %c0_56 = arith.constant 0 : index
    %166 = vector.load %arg5[%c296, %c0_56] : memref<1240x128xf32, #tpu.memory_space<vmem>>, vector<32x96xf32>
    %c328 = arith.constant 328 : index
    %c0_57 = arith.constant 0 : index
    %167 = vector.load %arg5[%c328, %c0_57] : memref<1240x128xf32, #tpu.memory_space<vmem>>, vector<1x96xf32>
    %cst_58 = arith.constant dense<0.000000e+00> : vector<8x96xf32>
    %168 = tpu.matmul %165, %166, %cst_58 {dimension_numbers = #tpu.dot_dimension_numbers<[1], [0], [0], [1], [0, 0, 1, 1], [], []>} : vector<8x32xf32>, vector<32x96xf32>, vector<8x96xf32> -> vector<8x96xf32>
    %169 = vector.broadcast %167 : vector<1x96xf32> to vector<8x96xf32>
    %170 = arith.addf %168, %169 : vector<8x96xf32>
    %171 = vector.extract_strided_slice %170 {offsets = [0, 0], sizes = [8, 32], strides = [1, 1]} : vector<8x96xf32> to vector<8x32xf32>
    %172 = vector.extract_strided_slice %170 {offsets = [0, 32], sizes = [8, 32], strides = [1, 1]} : vector<8x96xf32> to vector<8x32xf32>
    %173 = vector.extract_strided_slice %170 {offsets = [0, 64], sizes = [8, 32], strides = [1, 1]} : vector<8x96xf32> to vector<8x32xf32>
    %c336 = arith.constant 336 : index
    %c0_59 = arith.constant 0 : index
    %174 = vector.load %arg5[%c336, %c0_59] : memref<1240x128xf32, #tpu.memory_space<vmem>>, vector<32x32xf32>
    %c368 = arith.constant 368 : index
    %c0_60 = arith.constant 0 : index
    %175 = vector.load %arg5[%c368, %c0_60] : memref<1240x128xf32, #tpu.memory_space<vmem>>, vector<1x32xf32>
    %176 = vector.extract_strided_slice %171 {offsets = [0, 0], sizes = [8, 8], strides = [1, 1]} : vector<8x32xf32> to vector<8x8xf32>
    %177 = vector.extract_strided_slice %171 {offsets = [0, 8], sizes = [8, 8], strides = [1, 1]} : vector<8x32xf32> to vector<8x8xf32>
    %178 = vector.extract_strided_slice %171 {offsets = [0, 16], sizes = [8, 8], strides = [1, 1]} : vector<8x32xf32> to vector<8x8xf32>
    %179 = vector.extract_strided_slice %171 {offsets = [0, 24], sizes = [8, 8], strides = [1, 1]} : vector<8x32xf32> to vector<8x8xf32>
    %180 = vector.extract_strided_slice %172 {offsets = [0, 0], sizes = [8, 8], strides = [1, 1]} : vector<8x32xf32> to vector<8x8xf32>
    %181 = vector.extract_strided_slice %172 {offsets = [0, 8], sizes = [8, 8], strides = [1, 1]} : vector<8x32xf32> to vector<8x8xf32>
    %182 = vector.extract_strided_slice %172 {offsets = [0, 16], sizes = [8, 8], strides = [1, 1]} : vector<8x32xf32> to vector<8x8xf32>
    %183 = vector.extract_strided_slice %172 {offsets = [0, 24], sizes = [8, 8], strides = [1, 1]} : vector<8x32xf32> to vector<8x8xf32>
    %184 = vector.extract_strided_slice %173 {offsets = [0, 0], sizes = [8, 8], strides = [1, 1]} : vector<8x32xf32> to vector<8x8xf32>
    %185 = vector.extract_strided_slice %173 {offsets = [0, 8], sizes = [8, 8], strides = [1, 1]} : vector<8x32xf32> to vector<8x8xf32>
    %186 = vector.extract_strided_slice %173 {offsets = [0, 16], sizes = [8, 8], strides = [1, 1]} : vector<8x32xf32> to vector<8x8xf32>
    %187 = vector.extract_strided_slice %173 {offsets = [0, 24], sizes = [8, 8], strides = [1, 1]} : vector<8x32xf32> to vector<8x8xf32>
    "tpu.trace_start"() <{level = 10 : i32, message = "qd,kd->qk"}> : () -> ()
    %cst_61 = arith.constant dense<0.000000e+00> : vector<8x8xf32>
    %188 = tpu.matmul %176, %180, %cst_61 {dimension_numbers = #tpu.dot_dimension_numbers<[1], [1], [0], [0], [0, 0, 1, 0], [], []>} : vector<8x8xf32>, vector<8x8xf32>, vector<8x8xf32> -> vector<8x8xf32>
    %cst_62 = arith.constant dense<0.000000e+00> : vector<8x8xf32>
    %189 = tpu.matmul %177, %181, %cst_62 {dimension_numbers = #tpu.dot_dimension_numbers<[1], [1], [0], [0], [0, 0, 1, 0], [], []>} : vector<8x8xf32>, vector<8x8xf32>, vector<8x8xf32> -> vector<8x8xf32>
    %cst_63 = arith.constant dense<0.000000e+00> : vector<8x8xf32>
    %190 = tpu.matmul %178, %182, %cst_63 {dimension_numbers = #tpu.dot_dimension_numbers<[1], [1], [0], [0], [0, 0, 1, 0], [], []>} : vector<8x8xf32>, vector<8x8xf32>, vector<8x8xf32> -> vector<8x8xf32>
    %cst_64 = arith.constant dense<0.000000e+00> : vector<8x8xf32>
    %191 = tpu.matmul %179, %183, %cst_64 {dimension_numbers = #tpu.dot_dimension_numbers<[1], [1], [0], [0], [0, 0, 1, 0], [], []>} : vector<8x8xf32>, vector<8x8xf32>, vector<8x8xf32> -> vector<8x8xf32>
    "tpu.trace_stop"() : () -> ()
    %192 = vector.shape_cast %188 : vector<8x8xf32> to vector<1x8x8xf32>
    %193 = vector.shape_cast %189 : vector<8x8xf32> to vector<1x8x8xf32>
    %194 = vector.shape_cast %190 : vector<8x8xf32> to vector<1x8x8xf32>
    %195 = vector.shape_cast %191 : vector<8x8xf32> to vector<1x8x8xf32>
    %196 = tpu.concatenate %192, %193, %194, %195 in 0 : vector<1x8x8xf32>, vector<1x8x8xf32>, vector<1x8x8xf32>, vector<1x8x8xf32> -> vector<4x8x8xf32>
    %197 = vector.shape_cast %2 : vector<1x8xf32> to vector<1x1x8xf32>
    %198 = vector.broadcast %197 : vector<1x1x8xf32> to vector<4x8x8xf32>
    %199 = arith.addf %196, %198 : vector<4x8x8xf32>
    %cst_65 = arith.constant dense<0xFF800000> : vector<4x8xf32>
    %200 = vector.multi_reduction <maximumf>, %199, %cst_65 [2] : vector<4x8x8xf32> to vector<4x8xf32>
    %201 = vector.shape_cast %200 : vector<4x8xf32> to vector<4x8x1xf32>
    %202 = vector.broadcast %201 : vector<4x8x1xf32> to vector<4x8x8xf32>
    %203 = arith.subf %199, %202 : vector<4x8x8xf32>
    %204 = math.exp %203 : vector<4x8x8xf32>
    %cst_66 = arith.constant dense<0.000000e+00> : vector<4x8xf32>
    %205 = vector.multi_reduction <add>, %204, %cst_66 [2] : vector<4x8x8xf32> to vector<4x8xf32>
    %206 = vector.shape_cast %205 : vector<4x8xf32> to vector<4x8x1xf32>
    %207 = tpu.reciprocal %206 : vector<4x8x1xf32> -> vector<4x8x1xf32>
    %208 = vector.broadcast %207 : vector<4x8x1xf32> to vector<4x8x8xf32>
    %209 = arith.mulf %204, %208 : vector<4x8x8xf32>
    %210 = vector.extract_strided_slice %209 {offsets = [0, 0, 0], sizes = [1, 8, 8], strides = [1, 1, 1]} : vector<4x8x8xf32> to vector<1x8x8xf32>
    %211 = vector.shape_cast %210 : vector<1x8x8xf32> to vector<8x8xf32>
    %cst_67 = arith.constant dense<0.000000e+00> : vector<8x8xf32>
    %212 = tpu.matmul %211, %184, %cst_67 {dimension_numbers = #tpu.dot_dimension_numbers<[1], [0], [0], [1], [0, 0, 1, 1], [], []>} : vector<8x8xf32>, vector<8x8xf32>, vector<8x8xf32> -> vector<8x8xf32>
    %213 = vector.extract_strided_slice %209 {offsets = [1, 0, 0], sizes = [1, 8, 8], strides = [1, 1, 1]} : vector<4x8x8xf32> to vector<1x8x8xf32>
    %214 = vector.shape_cast %213 : vector<1x8x8xf32> to vector<8x8xf32>
    %cst_68 = arith.constant dense<0.000000e+00> : vector<8x8xf32>
    %215 = tpu.matmul %214, %185, %cst_68 {dimension_numbers = #tpu.dot_dimension_numbers<[1], [0], [0], [1], [0, 0, 1, 1], [], []>} : vector<8x8xf32>, vector<8x8xf32>, vector<8x8xf32> -> vector<8x8xf32>
    %216 = vector.extract_strided_slice %209 {offsets = [2, 0, 0], sizes = [1, 8, 8], strides = [1, 1, 1]} : vector<4x8x8xf32> to vector<1x8x8xf32>
    %217 = vector.shape_cast %216 : vector<1x8x8xf32> to vector<8x8xf32>
    %cst_69 = arith.constant dense<0.000000e+00> : vector<8x8xf32>
    %218 = tpu.matmul %217, %186, %cst_69 {dimension_numbers = #tpu.dot_dimension_numbers<[1], [0], [0], [1], [0, 0, 1, 1], [], []>} : vector<8x8xf32>, vector<8x8xf32>, vector<8x8xf32> -> vector<8x8xf32>
    %219 = vector.extract_strided_slice %209 {offsets = [3, 0, 0], sizes = [1, 8, 8], strides = [1, 1, 1]} : vector<4x8x8xf32> to vector<1x8x8xf32>
    %220 = vector.shape_cast %219 : vector<1x8x8xf32> to vector<8x8xf32>
    %cst_70 = arith.constant dense<0.000000e+00> : vector<8x8xf32>
    %221 = tpu.matmul %220, %187, %cst_70 {dimension_numbers = #tpu.dot_dimension_numbers<[1], [0], [0], [1], [0, 0, 1, 1], [], []>} : vector<8x8xf32>, vector<8x8xf32>, vector<8x8xf32> -> vector<8x8xf32>
    %222 = tpu.concatenate %212, %215, %218, %221 in 1 : vector<8x8xf32>, vector<8x8xf32>, vector<8x8xf32>, vector<8x8xf32> -> vector<8x32xf32>
    %cst_71 = arith.constant dense<0.000000e+00> : vector<8x32xf32>
    %223 = tpu.matmul %222, %174, %cst_71 {dimension_numbers = #tpu.dot_dimension_numbers<[1], [0], [0], [1], [0, 0, 1, 1], [], []>} : vector<8x32xf32>, vector<32x32xf32>, vector<8x32xf32> -> vector<8x32xf32>
    %224 = vector.broadcast %175 : vector<1x32xf32> to vector<8x32xf32>
    %225 = arith.addf %223, %224 : vector<8x32xf32>
    %226 = arith.addf %140, %225 : vector<8x32xf32>
    %c504 = arith.constant 504 : index
    %c0_72 = arith.constant 0 : index
    %227 = vector.load %arg5[%c504, %c0_72] : memref<1240x128xf32, #tpu.memory_space<vmem>>, vector<1x32xf32>
    %c512 = arith.constant 512 : index
    %c0_73 = arith.constant 0 : index
    %228 = vector.load %arg5[%c512, %c0_73] : memref<1240x128xf32, #tpu.memory_space<vmem>>, vector<1x32xf32>
    %cst_74 = arith.constant dense<0.000000e+00> : vector<8xf32>
    %229 = vector.multi_reduction <add>, %226, %cst_74 [1] : vector<8x32xf32> to vector<8xf32>
    %230 = vector.shape_cast %229 : vector<8xf32> to vector<8x1xf32>
    %cst_75 = arith.constant 3.200000e+01 : f32
    %231 = vector.broadcast %cst_75 : f32 to vector<8x1xf32>
    %232 = arith.divf %230, %231 : vector<8x1xf32>
    %233 = vector.broadcast %232 : vector<8x1xf32> to vector<8x32xf32>
    %234 = arith.subf %226, %233 : vector<8x32xf32>
    %235 = arith.mulf %234, %234 : vector<8x32xf32>
    %cst_76 = arith.constant dense<0.000000e+00> : vector<8xf32>
    %236 = vector.multi_reduction <add>, %235, %cst_76 [1] : vector<8x32xf32> to vector<8xf32>
    %237 = vector.shape_cast %236 : vector<8xf32> to vector<8x1xf32>
    %cst_77 = arith.constant 3.100000e+01 : f32
    %238 = vector.broadcast %cst_77 : f32 to vector<8x1xf32>
    %239 = arith.divf %237, %238 : vector<8x1xf32>
    %240 = math.sqrt %239 : vector<8x1xf32>
    %241 = vector.broadcast %232 : vector<8x1xf32> to vector<8x32xf32>
    %242 = arith.subf %226, %241 : vector<8x32xf32>
    %243 = vector.broadcast %227 : vector<1x32xf32> to vector<8x32xf32>
    %244 = arith.mulf %243, %242 : vector<8x32xf32>
    %cst_78 = arith.constant 9.99999997E-7 : f32
    %245 = vector.broadcast %cst_78 : f32 to vector<8x1xf32>
    %246 = arith.addf %240, %245 : vector<8x1xf32>
    %247 = tpu.reciprocal %246 : vector<8x1xf32> -> vector<8x1xf32>
    %248 = vector.broadcast %247 : vector<8x1xf32> to vector<8x32xf32>
    %249 = arith.mulf %244, %248 : vector<8x32xf32>
    %250 = vector.broadcast %228 : vector<1x32xf32> to vector<8x32xf32>
    %251 = arith.addf %249, %250 : vector<8x32xf32>
    %c376 = arith.constant 376 : index
    %c0_79 = arith.constant 0 : index
    %252 = vector.load %arg5[%c376, %c0_79] : memref<1240x128xf32, #tpu.memory_space<vmem>>, vector<32x64xf32>
    %c408 = arith.constant 408 : index
    %c0_80 = arith.constant 0 : index
    %253 = vector.load %arg5[%c408, %c0_80] : memref<1240x128xf32, #tpu.memory_space<vmem>>, vector<1x64xf32>
    %cst_81 = arith.constant dense<0.000000e+00> : vector<8x64xf32>
    %254 = tpu.matmul %251, %252, %cst_81 {dimension_numbers = #tpu.dot_dimension_numbers<[1], [0], [0], [1], [0, 0, 1, 1], [], []>} : vector<8x32xf32>, vector<32x64xf32>, vector<8x64xf32> -> vector<8x64xf32>
    %255 = vector.broadcast %253 : vector<1x64xf32> to vector<8x64xf32>
    %256 = arith.addf %254, %255 : vector<8x64xf32>
    %cst_82 = arith.constant 0.000000e+00 : f32
    %257 = vector.broadcast %cst_82 : f32 to vector<8x64xf32>
    %258 = arith.maximumf %256, %257 : vector<8x64xf32>
    %c416 = arith.constant 416 : index
    %c0_83 = arith.constant 0 : index
    %259 = vector.load %arg5[%c416, %c0_83] : memref<1240x128xf32, #tpu.memory_space<vmem>>, vector<64x32xf32>
    %c480 = arith.constant 480 : index
    %c0_84 = arith.constant 0 : index
    %260 = vector.load %arg5[%c480, %c0_84] : memref<1240x128xf32, #tpu.memory_space<vmem>>, vector<1x32xf32>
    %cst_85 = arith.constant dense<0.000000e+00> : vector<8x32xf32>
    %261 = tpu.matmul %258, %259, %cst_85 {dimension_numbers = #tpu.dot_dimension_numbers<[1], [0], [0], [1], [0, 0, 1, 1], [], []>} : vector<8x64xf32>, vector<64x32xf32>, vector<8x32xf32> -> vector<8x32xf32>
    %262 = vector.broadcast %260 : vector<1x32xf32> to vector<8x32xf32>
    %263 = arith.addf %261, %262 : vector<8x32xf32>
    %264 = arith.addf %226, %263 : vector<8x32xf32>
    %c40 = arith.constant 40 : index
    %c0_86 = arith.constant 0 : index
    %265 = vector.load %arg5[%c40, %c0_86] : memref<1240x128xf32, #tpu.memory_space<vmem>>, vector<1x32xf32>
    %c48 = arith.constant 48 : index
    %c0_87 = arith.constant 0 : index
    %266 = vector.load %arg5[%c48, %c0_87] : memref<1240x128xf32, #tpu.memory_space<vmem>>, vector<1x32xf32>
    %cst_88 = arith.constant dense<0.000000e+00> : vector<8xf32>
    %267 = vector.multi_reduction <add>, %264, %cst_88 [1] : vector<8x32xf32> to vector<8xf32>
    %268 = vector.shape_cast %267 : vector<8xf32> to vector<8x1xf32>
    %cst_89 = arith.constant 3.200000e+01 : f32
    %269 = vector.broadcast %cst_89 : f32 to vector<8x1xf32>
    %270 = arith.divf %268, %269 : vector<8x1xf32>
    %271 = vector.broadcast %270 : vector<8x1xf32> to vector<8x32xf32>
    %272 = arith.subf %264, %271 : vector<8x32xf32>
    %273 = arith.mulf %272, %272 : vector<8x32xf32>
    %cst_90 = arith.constant dense<0.000000e+00> : vector<8xf32>
    %274 = vector.multi_reduction <add>, %273, %cst_90 [1] : vector<8x32xf32> to vector<8xf32>
    %275 = vector.shape_cast %274 : vector<8xf32> to vector<8x1xf32>
    %cst_91 = arith.constant 3.100000e+01 : f32
    %276 = vector.broadcast %cst_91 : f32 to vector<8x1xf32>
    %277 = arith.divf %275, %276 : vector<8x1xf32>
    %278 = math.sqrt %277 : vector<8x1xf32>
    %279 = vector.broadcast %270 : vector<8x1xf32> to vector<8x32xf32>
    %280 = arith.subf %264, %279 : vector<8x32xf32>
    %281 = vector.broadcast %265 : vector<1x32xf32> to vector<8x32xf32>
    %282 = arith.mulf %281, %280 : vector<8x32xf32>
    %cst_92 = arith.constant 9.99999997E-7 : f32
    %283 = vector.broadcast %cst_92 : f32 to vector<8x1xf32>
    %284 = arith.addf %278, %283 : vector<8x1xf32>
    %285 = tpu.reciprocal %284 : vector<8x1xf32> -> vector<8x1xf32>
    %286 = vector.broadcast %285 : vector<8x1xf32> to vector<8x32xf32>
    %287 = arith.mulf %282, %286 : vector<8x32xf32>
    %288 = vector.broadcast %266 : vector<1x32xf32> to vector<8x32xf32>
    %289 = arith.addf %287, %288 : vector<8x32xf32>
    %c24 = arith.constant 24 : index
    %c0_93 = arith.constant 0 : index
    %290 = vector.load %arg5[%c24, %c0_93] : memref<1240x128xf32, #tpu.memory_space<vmem>>, vector<16x32xf32>
    %c0_94 = arith.constant 0 : index
    %c0_95 = arith.constant 0 : index
    %c0_96 = arith.constant 0 : index
    %291 = vector.load %arg2[%c0_94, %c0_95, %c0_96] : memref<1x1x8xi32, #tpu.memory_space<vmem>>, vector<1x1x8xi32>
    %292 = vector.shape_cast %291 : vector<1x1x8xi32> to vector<8x1xi32>
    %293 = tpu.iota {dimensions = array<i32: 1>} : vector<8x16xi32>
    %294 = vector.broadcast %292 : vector<8x1xi32> to vector<8x16xi32>
    %295 = arith.cmpi eq, %293, %294 : vector<8x16xi32>
    %296 = arith.extui %295 : vector<8x16xi1> to vector<8x16xi32>
    %297 = arith.sitofp %296 : vector<8x16xi32> to vector<8x16xf32>
    %cst_97 = arith.constant dense<0.000000e+00> : vector<8x32xf32>
    %298 = tpu.matmul %297, %290, %cst_97 {dimension_numbers = #tpu.dot_dimension_numbers<[1], [0], [0], [1], [0, 0, 1, 1], [], []>} : vector<8x16xf32>, vector<16x32xf32>, vector<8x32xf32> -> vector<8x32xf32>
    %cst_98 = arith.constant 5.65685415 : f32
    %299 = vector.broadcast %cst_98 : f32 to vector<8x32xf32>
    %300 = arith.mulf %298, %299 : vector<8x32xf32>
    %301 = arith.addf %300, %0 : vector<8x32xf32>
    %c832 = arith.constant 832 : index
    %c0_99 = arith.constant 0 : index
    %302 = vector.load %arg5[%c832, %c0_99] : memref<1240x128xf32, #tpu.memory_space<vmem>>, vector<1x32xf32>
    %c840 = arith.constant 840 : index
    %c0_100 = arith.constant 0 : index
    %303 = vector.load %arg5[%c840, %c0_100] : memref<1240x128xf32, #tpu.memory_space<vmem>>, vector<1x32xf32>
    %cst_101 = arith.constant dense<0.000000e+00> : vector<8xf32>
    %304 = vector.multi_reduction <add>, %301, %cst_101 [1] : vector<8x32xf32> to vector<8xf32>
    %305 = vector.shape_cast %304 : vector<8xf32> to vector<8x1xf32>
    %cst_102 = arith.constant 3.200000e+01 : f32
    %306 = vector.broadcast %cst_102 : f32 to vector<8x1xf32>
    %307 = arith.divf %305, %306 : vector<8x1xf32>
    %308 = vector.broadcast %307 : vector<8x1xf32> to vector<8x32xf32>
    %309 = arith.subf %301, %308 : vector<8x32xf32>
    %310 = arith.mulf %309, %309 : vector<8x32xf32>
    %cst_103 = arith.constant dense<0.000000e+00> : vector<8xf32>
    %311 = vector.multi_reduction <add>, %310, %cst_103 [1] : vector<8x32xf32> to vector<8xf32>
    %312 = vector.shape_cast %311 : vector<8xf32> to vector<8x1xf32>
    %cst_104 = arith.constant 3.100000e+01 : f32
    %313 = vector.broadcast %cst_104 : f32 to vector<8x1xf32>
    %314 = arith.divf %312, %313 : vector<8x1xf32>
    %315 = math.sqrt %314 : vector<8x1xf32>
    %316 = vector.broadcast %307 : vector<8x1xf32> to vector<8x32xf32>
    %317 = arith.subf %301, %316 : vector<8x32xf32>
    %318 = vector.broadcast %302 : vector<1x32xf32> to vector<8x32xf32>
    %319 = arith.mulf %318, %317 : vector<8x32xf32>
    %cst_105 = arith.constant 9.99999997E-7 : f32
    %320 = vector.broadcast %cst_105 : f32 to vector<8x1xf32>
    %321 = arith.addf %315, %320 : vector<8x1xf32>
    %322 = tpu.reciprocal %321 : vector<8x1xf32> -> vector<8x1xf32>
    %323 = vector.broadcast %322 : vector<8x1xf32> to vector<8x32xf32>
    %324 = arith.mulf %319, %323 : vector<8x32xf32>
    %325 = vector.broadcast %303 : vector<1x32xf32> to vector<8x32xf32>
    %326 = arith.addf %324, %325 : vector<8x32xf32>
    %c520 = arith.constant 520 : index
    %c0_106 = arith.constant 0 : index
    %327 = vector.load %arg5[%c520, %c0_106] : memref<1240x128xf32, #tpu.memory_space<vmem>>, vector<32x96xf32>
    %c552 = arith.constant 552 : index
    %c0_107 = arith.constant 0 : index
    %328 = vector.load %arg5[%c552, %c0_107] : memref<1240x128xf32, #tpu.memory_space<vmem>>, vector<1x96xf32>
    %cst_108 = arith.constant dense<0.000000e+00> : vector<8x96xf32>
    %329 = tpu.matmul %326, %327, %cst_108 {dimension_numbers = #tpu.dot_dimension_numbers<[1], [0], [0], [1], [0, 0, 1, 1], [], []>} : vector<8x32xf32>, vector<32x96xf32>, vector<8x96xf32> -> vector<8x96xf32>
    %330 = vector.broadcast %328 : vector<1x96xf32> to vector<8x96xf32>
    %331 = arith.addf %329, %330 : vector<8x96xf32>
    %332 = vector.extract_strided_slice %331 {offsets = [0, 0], sizes = [8, 32], strides = [1, 1]} : vector<8x96xf32> to vector<8x32xf32>
    %333 = vector.extract_strided_slice %331 {offsets = [0, 32], sizes = [8, 32], strides = [1, 1]} : vector<8x96xf32> to vector<8x32xf32>
    %334 = vector.extract_strided_slice %331 {offsets = [0, 64], sizes = [8, 32], strides = [1, 1]} : vector<8x96xf32> to vector<8x32xf32>
    %c560 = arith.constant 560 : index
    %c0_109 = arith.constant 0 : index
    %335 = vector.load %arg5[%c560, %c0_109] : memref<1240x128xf32, #tpu.memory_space<vmem>>, vector<32x32xf32>
    %c592 = arith.constant 592 : index
    %c0_110 = arith.constant 0 : index
    %336 = vector.load %arg5[%c592, %c0_110] : memref<1240x128xf32, #tpu.memory_space<vmem>>, vector<1x32xf32>
    %337 = vector.extract_strided_slice %332 {offsets = [0, 0], sizes = [8, 8], strides = [1, 1]} : vector<8x32xf32> to vector<8x8xf32>
    %338 = vector.extract_strided_slice %332 {offsets = [0, 8], sizes = [8, 8], strides = [1, 1]} : vector<8x32xf32> to vector<8x8xf32>
    %339 = vector.extract_strided_slice %332 {offsets = [0, 16], sizes = [8, 8], strides = [1, 1]} : vector<8x32xf32> to vector<8x8xf32>
    %340 = vector.extract_strided_slice %332 {offsets = [0, 24], sizes = [8, 8], strides = [1, 1]} : vector<8x32xf32> to vector<8x8xf32>
    %341 = vector.extract_strided_slice %333 {offsets = [0, 0], sizes = [8, 8], strides = [1, 1]} : vector<8x32xf32> to vector<8x8xf32>
    %342 = vector.extract_strided_slice %333 {offsets = [0, 8], sizes = [8, 8], strides = [1, 1]} : vector<8x32xf32> to vector<8x8xf32>
    %343 = vector.extract_strided_slice %333 {offsets = [0, 16], sizes = [8, 8], strides = [1, 1]} : vector<8x32xf32> to vector<8x8xf32>
    %344 = vector.extract_strided_slice %333 {offsets = [0, 24], sizes = [8, 8], strides = [1, 1]} : vector<8x32xf32> to vector<8x8xf32>
    %345 = vector.extract_strided_slice %334 {offsets = [0, 0], sizes = [8, 8], strides = [1, 1]} : vector<8x32xf32> to vector<8x8xf32>
    %346 = vector.extract_strided_slice %334 {offsets = [0, 8], sizes = [8, 8], strides = [1, 1]} : vector<8x32xf32> to vector<8x8xf32>
    %347 = vector.extract_strided_slice %334 {offsets = [0, 16], sizes = [8, 8], strides = [1, 1]} : vector<8x32xf32> to vector<8x8xf32>
    %348 = vector.extract_strided_slice %334 {offsets = [0, 24], sizes = [8, 8], strides = [1, 1]} : vector<8x32xf32> to vector<8x8xf32>
    "tpu.trace_start"() <{level = 10 : i32, message = "qd,kd->qk"}> : () -> ()
    %cst_111 = arith.constant dense<0.000000e+00> : vector<8x8xf32>
    %349 = tpu.matmul %337, %341, %cst_111 {dimension_numbers = #tpu.dot_dimension_numbers<[1], [1], [0], [0], [0, 0, 1, 0], [], []>} : vector<8x8xf32>, vector<8x8xf32>, vector<8x8xf32> -> vector<8x8xf32>
    %cst_112 = arith.constant dense<0.000000e+00> : vector<8x8xf32>
    %350 = tpu.matmul %338, %342, %cst_112 {dimension_numbers = #tpu.dot_dimension_numbers<[1], [1], [0], [0], [0, 0, 1, 0], [], []>} : vector<8x8xf32>, vector<8x8xf32>, vector<8x8xf32> -> vector<8x8xf32>
    %cst_113 = arith.constant dense<0.000000e+00> : vector<8x8xf32>
    %351 = tpu.matmul %339, %343, %cst_113 {dimension_numbers = #tpu.dot_dimension_numbers<[1], [1], [0], [0], [0, 0, 1, 0], [], []>} : vector<8x8xf32>, vector<8x8xf32>, vector<8x8xf32> -> vector<8x8xf32>
    %cst_114 = arith.constant dense<0.000000e+00> : vector<8x8xf32>
    %352 = tpu.matmul %340, %344, %cst_114 {dimension_numbers = #tpu.dot_dimension_numbers<[1], [1], [0], [0], [0, 0, 1, 0], [], []>} : vector<8x8xf32>, vector<8x8xf32>, vector<8x8xf32> -> vector<8x8xf32>
    "tpu.trace_stop"() : () -> ()
    %353 = vector.shape_cast %349 : vector<8x8xf32> to vector<1x8x8xf32>
    %354 = vector.shape_cast %350 : vector<8x8xf32> to vector<1x8x8xf32>
    %355 = vector.shape_cast %351 : vector<8x8xf32> to vector<1x8x8xf32>
    %356 = vector.shape_cast %352 : vector<8x8xf32> to vector<1x8x8xf32>
    %357 = tpu.concatenate %353, %354, %355, %356 in 0 : vector<1x8x8xf32>, vector<1x8x8xf32>, vector<1x8x8xf32>, vector<1x8x8xf32> -> vector<4x8x8xf32>
    %358 = vector.shape_cast %4 : vector<8x8xf32> to vector<1x8x8xf32>
    %359 = vector.broadcast %358 : vector<1x8x8xf32> to vector<4x8x8xf32>
    %360 = arith.addf %357, %359 : vector<4x8x8xf32>
    %cst_115 = arith.constant dense<0xFF800000> : vector<4x8xf32>
    %361 = vector.multi_reduction <maximumf>, %360, %cst_115 [2] : vector<4x8x8xf32> to vector<4x8xf32>
    %362 = vector.shape_cast %361 : vector<4x8xf32> to vector<4x8x1xf32>
    %363 = vector.broadcast %362 : vector<4x8x1xf32> to vector<4x8x8xf32>
    %364 = arith.subf %360, %363 : vector<4x8x8xf32>
    %365 = math.exp %364 : vector<4x8x8xf32>
    %cst_116 = arith.constant dense<0.000000e+00> : vector<4x8xf32>
    %366 = vector.multi_reduction <add>, %365, %cst_116 [2] : vector<4x8x8xf32> to vector<4x8xf32>
    %367 = vector.shape_cast %366 : vector<4x8xf32> to vector<4x8x1xf32>
    %368 = tpu.reciprocal %367 : vector<4x8x1xf32> -> vector<4x8x1xf32>
    %369 = vector.broadcast %368 : vector<4x8x1xf32> to vector<4x8x8xf32>
    %370 = arith.mulf %365, %369 : vector<4x8x8xf32>
    %371 = vector.extract_strided_slice %370 {offsets = [0, 0, 0], sizes = [1, 8, 8], strides = [1, 1, 1]} : vector<4x8x8xf32> to vector<1x8x8xf32>
    %372 = vector.shape_cast %371 : vector<1x8x8xf32> to vector<8x8xf32>
    %cst_117 = arith.constant dense<0.000000e+00> : vector<8x8xf32>
    %373 = tpu.matmul %372, %345, %cst_117 {dimension_numbers = #tpu.dot_dimension_numbers<[1], [0], [0], [1], [0, 0, 1, 1], [], []>} : vector<8x8xf32>, vector<8x8xf32>, vector<8x8xf32> -> vector<8x8xf32>
    %374 = vector.extract_strided_slice %370 {offsets = [1, 0, 0], sizes = [1, 8, 8], strides = [1, 1, 1]} : vector<4x8x8xf32> to vector<1x8x8xf32>
    %375 = vector.shape_cast %374 : vector<1x8x8xf32> to vector<8x8xf32>
    %cst_118 = arith.constant dense<0.000000e+00> : vector<8x8xf32>
    %376 = tpu.matmul %375, %346, %cst_118 {dimension_numbers = #tpu.dot_dimension_numbers<[1], [0], [0], [1], [0, 0, 1, 1], [], []>} : vector<8x8xf32>, vector<8x8xf32>, vector<8x8xf32> -> vector<8x8xf32>
    %377 = vector.extract_strided_slice %370 {offsets = [2, 0, 0], sizes = [1, 8, 8], strides = [1, 1, 1]} : vector<4x8x8xf32> to vector<1x8x8xf32>
    %378 = vector.shape_cast %377 : vector<1x8x8xf32> to vector<8x8xf32>
    %cst_119 = arith.constant dense<0.000000e+00> : vector<8x8xf32>
    %379 = tpu.matmul %378, %347, %cst_119 {dimension_numbers = #tpu.dot_dimension_numbers<[1], [0], [0], [1], [0, 0, 1, 1], [], []>} : vector<8x8xf32>, vector<8x8xf32>, vector<8x8xf32> -> vector<8x8xf32>
    %380 = vector.extract_strided_slice %370 {offsets = [3, 0, 0], sizes = [1, 8, 8], strides = [1, 1, 1]} : vector<4x8x8xf32> to vector<1x8x8xf32>
    %381 = vector.shape_cast %380 : vector<1x8x8xf32> to vector<8x8xf32>
    %cst_120 = arith.constant dense<0.000000e+00> : vector<8x8xf32>
    %382 = tpu.matmul %381, %348, %cst_120 {dimension_numbers = #tpu.dot_dimension_numbers<[1], [0], [0], [1], [0, 0, 1, 1], [], []>} : vector<8x8xf32>, vector<8x8xf32>, vector<8x8xf32> -> vector<8x8xf32>
    %383 = tpu.concatenate %373, %376, %379, %382 in 1 : vector<8x8xf32>, vector<8x8xf32>, vector<8x8xf32>, vector<8x8xf32> -> vector<8x32xf32>
    %cst_121 = arith.constant dense<0.000000e+00> : vector<8x32xf32>
    %384 = tpu.matmul %383, %335, %cst_121 {dimension_numbers = #tpu.dot_dimension_numbers<[1], [0], [0], [1], [0, 0, 1, 1], [], []>} : vector<8x32xf32>, vector<32x32xf32>, vector<8x32xf32> -> vector<8x32xf32>
    %385 = vector.broadcast %336 : vector<1x32xf32> to vector<8x32xf32>
    %386 = arith.addf %384, %385 : vector<8x32xf32>
    %387 = arith.addf %301, %386 : vector<8x32xf32>
    %c848 = arith.constant 848 : index
    %c0_122 = arith.constant 0 : index
    %388 = vector.load %arg5[%c848, %c0_122] : memref<1240x128xf32, #tpu.memory_space<vmem>>, vector<1x32xf32>
    %c856 = arith.constant 856 : index
    %c0_123 = arith.constant 0 : index
    %389 = vector.load %arg5[%c856, %c0_123] : memref<1240x128xf32, #tpu.memory_space<vmem>>, vector<1x32xf32>
    %cst_124 = arith.constant dense<0.000000e+00> : vector<8xf32>
    %390 = vector.multi_reduction <add>, %387, %cst_124 [1] : vector<8x32xf32> to vector<8xf32>
    %391 = vector.shape_cast %390 : vector<8xf32> to vector<8x1xf32>
    %cst_125 = arith.constant 3.200000e+01 : f32
    %392 = vector.broadcast %cst_125 : f32 to vector<8x1xf32>
    %393 = arith.divf %391, %392 : vector<8x1xf32>
    %394 = vector.broadcast %393 : vector<8x1xf32> to vector<8x32xf32>
    %395 = arith.subf %387, %394 : vector<8x32xf32>
    %396 = arith.mulf %395, %395 : vector<8x32xf32>
    %cst_126 = arith.constant dense<0.000000e+00> : vector<8xf32>
    %397 = vector.multi_reduction <add>, %396, %cst_126 [1] : vector<8x32xf32> to vector<8xf32>
    %398 = vector.shape_cast %397 : vector<8xf32> to vector<8x1xf32>
    %cst_127 = arith.constant 3.100000e+01 : f32
    %399 = vector.broadcast %cst_127 : f32 to vector<8x1xf32>
    %400 = arith.divf %398, %399 : vector<8x1xf32>
    %401 = math.sqrt %400 : vector<8x1xf32>
    %402 = vector.broadcast %393 : vector<8x1xf32> to vector<8x32xf32>
    %403 = arith.subf %387, %402 : vector<8x32xf32>
    %404 = vector.broadcast %388 : vector<1x32xf32> to vector<8x32xf32>
    %405 = arith.mulf %404, %403 : vector<8x32xf32>
    %cst_128 = arith.constant 9.99999997E-7 : f32
    %406 = vector.broadcast %cst_128 : f32 to vector<8x1xf32>
    %407 = arith.addf %401, %406 : vector<8x1xf32>
    %408 = tpu.reciprocal %407 : vector<8x1xf32> -> vector<8x1xf32>
    %409 = vector.broadcast %408 : vector<8x1xf32> to vector<8x32xf32>
    %410 = arith.mulf %405, %409 : vector<8x32xf32>
    %411 = vector.broadcast %389 : vector<1x32xf32> to vector<8x32xf32>
    %412 = arith.addf %410, %411 : vector<8x32xf32>
    %c600 = arith.constant 600 : index
    %c0_129 = arith.constant 0 : index
    %413 = vector.load %arg5[%c600, %c0_129] : memref<1240x128xf32, #tpu.memory_space<vmem>>, vector<32x32xf32>
    %c632 = arith.constant 632 : index
    %c0_130 = arith.constant 0 : index
    %414 = vector.load %arg5[%c632, %c0_130] : memref<1240x128xf32, #tpu.memory_space<vmem>>, vector<1x32xf32>
    %cst_131 = arith.constant dense<0.000000e+00> : vector<8x32xf32>
    %415 = tpu.matmul %412, %413, %cst_131 {dimension_numbers = #tpu.dot_dimension_numbers<[1], [0], [0], [1], [0, 0, 1, 1], [], []>} : vector<8x32xf32>, vector<32x32xf32>, vector<8x32xf32> -> vector<8x32xf32>
    %416 = vector.broadcast %414 : vector<1x32xf32> to vector<8x32xf32>
    %417 = arith.addf %415, %416 : vector<8x32xf32>
    %c640 = arith.constant 640 : index
    %c0_132 = arith.constant 0 : index
    %418 = vector.load %arg5[%c640, %c0_132] : memref<1240x128xf32, #tpu.memory_space<vmem>>, vector<32x64xf32>
    %c672 = arith.constant 672 : index
    %c0_133 = arith.constant 0 : index
    %419 = vector.load %arg5[%c672, %c0_133] : memref<1240x128xf32, #tpu.memory_space<vmem>>, vector<1x64xf32>
    %cst_134 = arith.constant dense<0.000000e+00> : vector<8x64xf32>
    %420 = tpu.matmul %289, %418, %cst_134 {dimension_numbers = #tpu.dot_dimension_numbers<[1], [0], [0], [1], [0, 0, 1, 1], [], []>} : vector<8x32xf32>, vector<32x64xf32>, vector<8x64xf32> -> vector<8x64xf32>
    %421 = vector.broadcast %419 : vector<1x64xf32> to vector<8x64xf32>
    %422 = arith.addf %420, %421 : vector<8x64xf32>
    %423 = vector.extract_strided_slice %422 {offsets = [0, 0], sizes = [8, 32], strides = [1, 1]} : vector<8x64xf32> to vector<8x32xf32>
    %424 = vector.extract_strided_slice %422 {offsets = [0, 32], sizes = [8, 32], strides = [1, 1]} : vector<8x64xf32> to vector<8x32xf32>
    %c680 = arith.constant 680 : index
    %c0_135 = arith.constant 0 : index
    %425 = vector.load %arg5[%c680, %c0_135] : memref<1240x128xf32, #tpu.memory_space<vmem>>, vector<32x32xf32>
    %c712 = arith.constant 712 : index
    %c0_136 = arith.constant 0 : index
    %426 = vector.load %arg5[%c712, %c0_136] : memref<1240x128xf32, #tpu.memory_space<vmem>>, vector<1x32xf32>
    %427 = vector.extract_strided_slice %417 {offsets = [0, 0], sizes = [8, 8], strides = [1, 1]} : vector<8x32xf32> to vector<8x8xf32>
    %428 = vector.extract_strided_slice %417 {offsets = [0, 8], sizes = [8, 8], strides = [1, 1]} : vector<8x32xf32> to vector<8x8xf32>
    %429 = vector.extract_strided_slice %417 {offsets = [0, 16], sizes = [8, 8], strides = [1, 1]} : vector<8x32xf32> to vector<8x8xf32>
    %430 = vector.extract_strided_slice %417 {offsets = [0, 24], sizes = [8, 8], strides = [1, 1]} : vector<8x32xf32> to vector<8x8xf32>
    %431 = vector.extract_strided_slice %423 {offsets = [0, 0], sizes = [8, 8], strides = [1, 1]} : vector<8x32xf32> to vector<8x8xf32>
    %432 = vector.extract_strided_slice %423 {offsets = [0, 8], sizes = [8, 8], strides = [1, 1]} : vector<8x32xf32> to vector<8x8xf32>
    %433 = vector.extract_strided_slice %423 {offsets = [0, 16], sizes = [8, 8], strides = [1, 1]} : vector<8x32xf32> to vector<8x8xf32>
    %434 = vector.extract_strided_slice %423 {offsets = [0, 24], sizes = [8, 8], strides = [1, 1]} : vector<8x32xf32> to vector<8x8xf32>
    %435 = vector.extract_strided_slice %424 {offsets = [0, 0], sizes = [8, 8], strides = [1, 1]} : vector<8x32xf32> to vector<8x8xf32>
    %436 = vector.extract_strided_slice %424 {offsets = [0, 8], sizes = [8, 8], strides = [1, 1]} : vector<8x32xf32> to vector<8x8xf32>
    %437 = vector.extract_strided_slice %424 {offsets = [0, 16], sizes = [8, 8], strides = [1, 1]} : vector<8x32xf32> to vector<8x8xf32>
    %438 = vector.extract_strided_slice %424 {offsets = [0, 24], sizes = [8, 8], strides = [1, 1]} : vector<8x32xf32> to vector<8x8xf32>
    "tpu.trace_start"() <{level = 10 : i32, message = "qd,kd->qk"}> : () -> ()
    %cst_137 = arith.constant dense<0.000000e+00> : vector<8x8xf32>
    %439 = tpu.matmul %427, %431, %cst_137 {dimension_numbers = #tpu.dot_dimension_numbers<[1], [1], [0], [0], [0, 0, 1, 0], [], []>} : vector<8x8xf32>, vector<8x8xf32>, vector<8x8xf32> -> vector<8x8xf32>
    %cst_138 = arith.constant dense<0.000000e+00> : vector<8x8xf32>
    %440 = tpu.matmul %428, %432, %cst_138 {dimension_numbers = #tpu.dot_dimension_numbers<[1], [1], [0], [0], [0, 0, 1, 0], [], []>} : vector<8x8xf32>, vector<8x8xf32>, vector<8x8xf32> -> vector<8x8xf32>
    %cst_139 = arith.constant dense<0.000000e+00> : vector<8x8xf32>
    %441 = tpu.matmul %429, %433, %cst_139 {dimension_numbers = #tpu.dot_dimension_numbers<[1], [1], [0], [0], [0, 0, 1, 0], [], []>} : vector<8x8xf32>, vector<8x8xf32>, vector<8x8xf32> -> vector<8x8xf32>
    %cst_140 = arith.constant dense<0.000000e+00> : vector<8x8xf32>
    %442 = tpu.matmul %430, %434, %cst_140 {dimension_numbers = #tpu.dot_dimension_numbers<[1], [1], [0], [0], [0, 0, 1, 0], [], []>} : vector<8x8xf32>, vector<8x8xf32>, vector<8x8xf32> -> vector<8x8xf32>
    "tpu.trace_stop"() : () -> ()
    %443 = vector.shape_cast %439 : vector<8x8xf32> to vector<1x8x8xf32>
    %444 = vector.shape_cast %440 : vector<8x8xf32> to vector<1x8x8xf32>
    %445 = vector.shape_cast %441 : vector<8x8xf32> to vector<1x8x8xf32>
    %446 = vector.shape_cast %442 : vector<8x8xf32> to vector<1x8x8xf32>
    %447 = tpu.concatenate %443, %444, %445, %446 in 0 : vector<1x8x8xf32>, vector<1x8x8xf32>, vector<1x8x8xf32>, vector<1x8x8xf32> -> vector<4x8x8xf32>
    %448 = vector.shape_cast %2 : vector<1x8xf32> to vector<1x1x8xf32>
    %449 = vector.broadcast %448 : vector<1x1x8xf32> to vector<4x8x8xf32>
    %450 = arith.addf %447, %449 : vector<4x8x8xf32>
    %cst_141 = arith.constant dense<0xFF800000> : vector<4x8xf32>
    %451 = vector.multi_reduction <maximumf>, %450, %cst_141 [2] : vector<4x8x8xf32> to vector<4x8xf32>
    %452 = vector.shape_cast %451 : vector<4x8xf32> to vector<4x8x1xf32>
    %453 = vector.broadcast %452 : vector<4x8x1xf32> to vector<4x8x8xf32>
    %454 = arith.subf %450, %453 : vector<4x8x8xf32>
    %455 = math.exp %454 : vector<4x8x8xf32>
    %cst_142 = arith.constant dense<0.000000e+00> : vector<4x8xf32>
    %456 = vector.multi_reduction <add>, %455, %cst_142 [2] : vector<4x8x8xf32> to vector<4x8xf32>
    %457 = vector.shape_cast %456 : vector<4x8xf32> to vector<4x8x1xf32>
    %458 = tpu.reciprocal %457 : vector<4x8x1xf32> -> vector<4x8x1xf32>
    %459 = vector.broadcast %458 : vector<4x8x1xf32> to vector<4x8x8xf32>
    %460 = arith.mulf %455, %459 : vector<4x8x8xf32>
    %461 = vector.extract_strided_slice %460 {offsets = [0, 0, 0], sizes = [1, 8, 8], strides = [1, 1, 1]} : vector<4x8x8xf32> to vector<1x8x8xf32>
    %462 = vector.shape_cast %461 : vector<1x8x8xf32> to vector<8x8xf32>
    %cst_143 = arith.constant dense<0.000000e+00> : vector<8x8xf32>
    %463 = tpu.matmul %462, %435, %cst_143 {dimension_numbers = #tpu.dot_dimension_numbers<[1], [0], [0], [1], [0, 0, 1, 1], [], []>} : vector<8x8xf32>, vector<8x8xf32>, vector<8x8xf32> -> vector<8x8xf32>
    %464 = vector.extract_strided_slice %460 {offsets = [1, 0, 0], sizes = [1, 8, 8], strides = [1, 1, 1]} : vector<4x8x8xf32> to vector<1x8x8xf32>
    %465 = vector.shape_cast %464 : vector<1x8x8xf32> to vector<8x8xf32>
    %cst_144 = arith.constant dense<0.000000e+00> : vector<8x8xf32>
    %466 = tpu.matmul %465, %436, %cst_144 {dimension_numbers = #tpu.dot_dimension_numbers<[1], [0], [0], [1], [0, 0, 1, 1], [], []>} : vector<8x8xf32>, vector<8x8xf32>, vector<8x8xf32> -> vector<8x8xf32>
    %467 = vector.extract_strided_slice %460 {offsets = [2, 0, 0], sizes = [1, 8, 8], strides = [1, 1, 1]} : vector<4x8x8xf32> to vector<1x8x8xf32>
    %468 = vector.shape_cast %467 : vector<1x8x8xf32> to vector<8x8xf32>
    %cst_145 = arith.constant dense<0.000000e+00> : vector<8x8xf32>
    %469 = tpu.matmul %468, %437, %cst_145 {dimension_numbers = #tpu.dot_dimension_numbers<[1], [0], [0], [1], [0, 0, 1, 1], [], []>} : vector<8x8xf32>, vector<8x8xf32>, vector<8x8xf32> -> vector<8x8xf32>
    %470 = vector.extract_strided_slice %460 {offsets = [3, 0, 0], sizes = [1, 8, 8], strides = [1, 1, 1]} : vector<4x8x8xf32> to vector<1x8x8xf32>
    %471 = vector.shape_cast %470 : vector<1x8x8xf32> to vector<8x8xf32>
    %cst_146 = arith.constant dense<0.000000e+00> : vector<8x8xf32>
    %472 = tpu.matmul %471, %438, %cst_146 {dimension_numbers = #tpu.dot_dimension_numbers<[1], [0], [0], [1], [0, 0, 1, 1], [], []>} : vector<8x8xf32>, vector<8x8xf32>, vector<8x8xf32> -> vector<8x8xf32>
    %473 = tpu.concatenate %463, %466, %469, %472 in 1 : vector<8x8xf32>, vector<8x8xf32>, vector<8x8xf32>, vector<8x8xf32> -> vector<8x32xf32>
    %cst_147 = arith.constant dense<0.000000e+00> : vector<8x32xf32>
    %474 = tpu.matmul %473, %425, %cst_147 {dimension_numbers = #tpu.dot_dimension_numbers<[1], [0], [0], [1], [0, 0, 1, 1], [], []>} : vector<8x32xf32>, vector<32x32xf32>, vector<8x32xf32> -> vector<8x32xf32>
    %475 = vector.broadcast %426 : vector<1x32xf32> to vector<8x32xf32>
    %476 = arith.addf %474, %475 : vector<8x32xf32>
    %477 = arith.addf %387, %476 : vector<8x32xf32>
    %c864 = arith.constant 864 : index
    %c0_148 = arith.constant 0 : index
    %478 = vector.load %arg5[%c864, %c0_148] : memref<1240x128xf32, #tpu.memory_space<vmem>>, vector<1x32xf32>
    %c872 = arith.constant 872 : index
    %c0_149 = arith.constant 0 : index
    %479 = vector.load %arg5[%c872, %c0_149] : memref<1240x128xf32, #tpu.memory_space<vmem>>, vector<1x32xf32>
    %cst_150 = arith.constant dense<0.000000e+00> : vector<8xf32>
    %480 = vector.multi_reduction <add>, %477, %cst_150 [1] : vector<8x32xf32> to vector<8xf32>
    %481 = vector.shape_cast %480 : vector<8xf32> to vector<8x1xf32>
    %cst_151 = arith.constant 3.200000e+01 : f32
    %482 = vector.broadcast %cst_151 : f32 to vector<8x1xf32>
    %483 = arith.divf %481, %482 : vector<8x1xf32>
    %484 = vector.broadcast %483 : vector<8x1xf32> to vector<8x32xf32>
    %485 = arith.subf %477, %484 : vector<8x32xf32>
    %486 = arith.mulf %485, %485 : vector<8x32xf32>
    %cst_152 = arith.constant dense<0.000000e+00> : vector<8xf32>
    %487 = vector.multi_reduction <add>, %486, %cst_152 [1] : vector<8x32xf32> to vector<8xf32>
    %488 = vector.shape_cast %487 : vector<8xf32> to vector<8x1xf32>
    %cst_153 = arith.constant 3.100000e+01 : f32
    %489 = vector.broadcast %cst_153 : f32 to vector<8x1xf32>
    %490 = arith.divf %488, %489 : vector<8x1xf32>
    %491 = math.sqrt %490 : vector<8x1xf32>
    %492 = vector.broadcast %483 : vector<8x1xf32> to vector<8x32xf32>
    %493 = arith.subf %477, %492 : vector<8x32xf32>
    %494 = vector.broadcast %478 : vector<1x32xf32> to vector<8x32xf32>
    %495 = arith.mulf %494, %493 : vector<8x32xf32>
    %cst_154 = arith.constant 9.99999997E-7 : f32
    %496 = vector.broadcast %cst_154 : f32 to vector<8x1xf32>
    %497 = arith.addf %491, %496 : vector<8x1xf32>
    %498 = tpu.reciprocal %497 : vector<8x1xf32> -> vector<8x1xf32>
    %499 = vector.broadcast %498 : vector<8x1xf32> to vector<8x32xf32>
    %500 = arith.mulf %495, %499 : vector<8x32xf32>
    %501 = vector.broadcast %479 : vector<1x32xf32> to vector<8x32xf32>
    %502 = arith.addf %500, %501 : vector<8x32xf32>
    %c720 = arith.constant 720 : index
    %c0_155 = arith.constant 0 : index
    %503 = vector.load %arg5[%c720, %c0_155] : memref<1240x128xf32, #tpu.memory_space<vmem>>, vector<32x64xf32>
    %c752 = arith.constant 752 : index
    %c0_156 = arith.constant 0 : index
    %504 = vector.load %arg5[%c752, %c0_156] : memref<1240x128xf32, #tpu.memory_space<vmem>>, vector<1x64xf32>
    %cst_157 = arith.constant dense<0.000000e+00> : vector<8x64xf32>
    %505 = tpu.matmul %502, %503, %cst_157 {dimension_numbers = #tpu.dot_dimension_numbers<[1], [0], [0], [1], [0, 0, 1, 1], [], []>} : vector<8x32xf32>, vector<32x64xf32>, vector<8x64xf32> -> vector<8x64xf32>
    %506 = vector.broadcast %504 : vector<1x64xf32> to vector<8x64xf32>
    %507 = arith.addf %505, %506 : vector<8x64xf32>
    %cst_158 = arith.constant 0.000000e+00 : f32
    %508 = vector.broadcast %cst_158 : f32 to vector<8x64xf32>
    %509 = arith.maximumf %507, %508 : vector<8x64xf32>
    %c760 = arith.constant 760 : index
    %c0_159 = arith.constant 0 : index
    %510 = vector.load %arg5[%c760, %c0_159] : memref<1240x128xf32, #tpu.memory_space<vmem>>, vector<64x32xf32>
    %c824 = arith.constant 824 : index
    %c0_160 = arith.constant 0 : index
    %511 = vector.load %arg5[%c824, %c0_160] : memref<1240x128xf32, #tpu.memory_space<vmem>>, vector<1x32xf32>
    %cst_161 = arith.constant dense<0.000000e+00> : vector<8x32xf32>
    %512 = tpu.matmul %509, %510, %cst_161 {dimension_numbers = #tpu.dot_dimension_numbers<[1], [0], [0], [1], [0, 0, 1, 1], [], []>} : vector<8x64xf32>, vector<64x32xf32>, vector<8x32xf32> -> vector<8x32xf32>
    %513 = vector.broadcast %511 : vector<1x32xf32> to vector<8x32xf32>
    %514 = arith.addf %512, %513 : vector<8x32xf32>
    %515 = arith.addf %477, %514 : vector<8x32xf32>
    %c1192 = arith.constant 1192 : index
    %c0_162 = arith.constant 0 : index
    %516 = vector.load %arg5[%c1192, %c0_162] : memref<1240x128xf32, #tpu.memory_space<vmem>>, vector<1x32xf32>
    %c1200 = arith.constant 1200 : index
    %c0_163 = arith.constant 0 : index
    %517 = vector.load %arg5[%c1200, %c0_163] : memref<1240x128xf32, #tpu.memory_space<vmem>>, vector<1x32xf32>
    %cst_164 = arith.constant dense<0.000000e+00> : vector<8xf32>
    %518 = vector.multi_reduction <add>, %515, %cst_164 [1] : vector<8x32xf32> to vector<8xf32>
    %519 = vector.shape_cast %518 : vector<8xf32> to vector<8x1xf32>
    %cst_165 = arith.constant 3.200000e+01 : f32
    %520 = vector.broadcast %cst_165 : f32 to vector<8x1xf32>
    %521 = arith.divf %519, %520 : vector<8x1xf32>
    %522 = vector.broadcast %521 : vector<8x1xf32> to vector<8x32xf32>
    %523 = arith.subf %515, %522 : vector<8x32xf32>
    %524 = arith.mulf %523, %523 : vector<8x32xf32>
    %cst_166 = arith.constant dense<0.000000e+00> : vector<8xf32>
    %525 = vector.multi_reduction <add>, %524, %cst_166 [1] : vector<8x32xf32> to vector<8xf32>
    %526 = vector.shape_cast %525 : vector<8xf32> to vector<8x1xf32>
    %cst_167 = arith.constant 3.100000e+01 : f32
    %527 = vector.broadcast %cst_167 : f32 to vector<8x1xf32>
    %528 = arith.divf %526, %527 : vector<8x1xf32>
    %529 = math.sqrt %528 : vector<8x1xf32>
    %530 = vector.broadcast %521 : vector<8x1xf32> to vector<8x32xf32>
    %531 = arith.subf %515, %530 : vector<8x32xf32>
    %532 = vector.broadcast %516 : vector<1x32xf32> to vector<8x32xf32>
    %533 = arith.mulf %532, %531 : vector<8x32xf32>
    %cst_168 = arith.constant 9.99999997E-7 : f32
    %534 = vector.broadcast %cst_168 : f32 to vector<8x1xf32>
    %535 = arith.addf %529, %534 : vector<8x1xf32>
    %536 = tpu.reciprocal %535 : vector<8x1xf32> -> vector<8x1xf32>
    %537 = vector.broadcast %536 : vector<8x1xf32> to vector<8x32xf32>
    %538 = arith.mulf %533, %537 : vector<8x32xf32>
    %539 = vector.broadcast %517 : vector<1x32xf32> to vector<8x32xf32>
    %540 = arith.addf %538, %539 : vector<8x32xf32>
    %c880 = arith.constant 880 : index
    %c0_169 = arith.constant 0 : index
    %541 = vector.load %arg5[%c880, %c0_169] : memref<1240x128xf32, #tpu.memory_space<vmem>>, vector<32x96xf32>
    %c912 = arith.constant 912 : index
    %c0_170 = arith.constant 0 : index
    %542 = vector.load %arg5[%c912, %c0_170] : memref<1240x128xf32, #tpu.memory_space<vmem>>, vector<1x96xf32>
    %cst_171 = arith.constant dense<0.000000e+00> : vector<8x96xf32>
    %543 = tpu.matmul %540, %541, %cst_171 {dimension_numbers = #tpu.dot_dimension_numbers<[1], [0], [0], [1], [0, 0, 1, 1], [], []>} : vector<8x32xf32>, vector<32x96xf32>, vector<8x96xf32> -> vector<8x96xf32>
    %544 = vector.broadcast %542 : vector<1x96xf32> to vector<8x96xf32>
    %545 = arith.addf %543, %544 : vector<8x96xf32>
    %546 = vector.extract_strided_slice %545 {offsets = [0, 0], sizes = [8, 32], strides = [1, 1]} : vector<8x96xf32> to vector<8x32xf32>
    %547 = vector.extract_strided_slice %545 {offsets = [0, 32], sizes = [8, 32], strides = [1, 1]} : vector<8x96xf32> to vector<8x32xf32>
    %548 = vector.extract_strided_slice %545 {offsets = [0, 64], sizes = [8, 32], strides = [1, 1]} : vector<8x96xf32> to vector<8x32xf32>
    %c920 = arith.constant 920 : index
    %c0_172 = arith.constant 0 : index
    %549 = vector.load %arg5[%c920, %c0_172] : memref<1240x128xf32, #tpu.memory_space<vmem>>, vector<32x32xf32>
    %c952 = arith.constant 952 : index
    %c0_173 = arith.constant 0 : index
    %550 = vector.load %arg5[%c952, %c0_173] : memref<1240x128xf32, #tpu.memory_space<vmem>>, vector<1x32xf32>
    %551 = vector.extract_strided_slice %546 {offsets = [0, 0], sizes = [8, 8], strides = [1, 1]} : vector<8x32xf32> to vector<8x8xf32>
    %552 = vector.extract_strided_slice %546 {offsets = [0, 8], sizes = [8, 8], strides = [1, 1]} : vector<8x32xf32> to vector<8x8xf32>
    %553 = vector.extract_strided_slice %546 {offsets = [0, 16], sizes = [8, 8], strides = [1, 1]} : vector<8x32xf32> to vector<8x8xf32>
    %554 = vector.extract_strided_slice %546 {offsets = [0, 24], sizes = [8, 8], strides = [1, 1]} : vector<8x32xf32> to vector<8x8xf32>
    %555 = vector.extract_strided_slice %547 {offsets = [0, 0], sizes = [8, 8], strides = [1, 1]} : vector<8x32xf32> to vector<8x8xf32>
    %556 = vector.extract_strided_slice %547 {offsets = [0, 8], sizes = [8, 8], strides = [1, 1]} : vector<8x32xf32> to vector<8x8xf32>
    %557 = vector.extract_strided_slice %547 {offsets = [0, 16], sizes = [8, 8], strides = [1, 1]} : vector<8x32xf32> to vector<8x8xf32>
    %558 = vector.extract_strided_slice %547 {offsets = [0, 24], sizes = [8, 8], strides = [1, 1]} : vector<8x32xf32> to vector<8x8xf32>
    %559 = vector.extract_strided_slice %548 {offsets = [0, 0], sizes = [8, 8], strides = [1, 1]} : vector<8x32xf32> to vector<8x8xf32>
    %560 = vector.extract_strided_slice %548 {offsets = [0, 8], sizes = [8, 8], strides = [1, 1]} : vector<8x32xf32> to vector<8x8xf32>
    %561 = vector.extract_strided_slice %548 {offsets = [0, 16], sizes = [8, 8], strides = [1, 1]} : vector<8x32xf32> to vector<8x8xf32>
    %562 = vector.extract_strided_slice %548 {offsets = [0, 24], sizes = [8, 8], strides = [1, 1]} : vector<8x32xf32> to vector<8x8xf32>
    "tpu.trace_start"() <{level = 10 : i32, message = "qd,kd->qk"}> : () -> ()
    %cst_174 = arith.constant dense<0.000000e+00> : vector<8x8xf32>
    %563 = tpu.matmul %551, %555, %cst_174 {dimension_numbers = #tpu.dot_dimension_numbers<[1], [1], [0], [0], [0, 0, 1, 0], [], []>} : vector<8x8xf32>, vector<8x8xf32>, vector<8x8xf32> -> vector<8x8xf32>
    %cst_175 = arith.constant dense<0.000000e+00> : vector<8x8xf32>
    %564 = tpu.matmul %552, %556, %cst_175 {dimension_numbers = #tpu.dot_dimension_numbers<[1], [1], [0], [0], [0, 0, 1, 0], [], []>} : vector<8x8xf32>, vector<8x8xf32>, vector<8x8xf32> -> vector<8x8xf32>
    %cst_176 = arith.constant dense<0.000000e+00> : vector<8x8xf32>
    %565 = tpu.matmul %553, %557, %cst_176 {dimension_numbers = #tpu.dot_dimension_numbers<[1], [1], [0], [0], [0, 0, 1, 0], [], []>} : vector<8x8xf32>, vector<8x8xf32>, vector<8x8xf32> -> vector<8x8xf32>
    %cst_177 = arith.constant dense<0.000000e+00> : vector<8x8xf32>
    %566 = tpu.matmul %554, %558, %cst_177 {dimension_numbers = #tpu.dot_dimension_numbers<[1], [1], [0], [0], [0, 0, 1, 0], [], []>} : vector<8x8xf32>, vector<8x8xf32>, vector<8x8xf32> -> vector<8x8xf32>
    "tpu.trace_stop"() : () -> ()
    %567 = vector.shape_cast %563 : vector<8x8xf32> to vector<1x8x8xf32>
    %568 = vector.shape_cast %564 : vector<8x8xf32> to vector<1x8x8xf32>
    %569 = vector.shape_cast %565 : vector<8x8xf32> to vector<1x8x8xf32>
    %570 = vector.shape_cast %566 : vector<8x8xf32> to vector<1x8x8xf32>
    %571 = tpu.concatenate %567, %568, %569, %570 in 0 : vector<1x8x8xf32>, vector<1x8x8xf32>, vector<1x8x8xf32>, vector<1x8x8xf32> -> vector<4x8x8xf32>
    %572 = vector.shape_cast %4 : vector<8x8xf32> to vector<1x8x8xf32>
    %573 = vector.broadcast %572 : vector<1x8x8xf32> to vector<4x8x8xf32>
    %574 = arith.addf %571, %573 : vector<4x8x8xf32>
    %cst_178 = arith.constant dense<0xFF800000> : vector<4x8xf32>
    %575 = vector.multi_reduction <maximumf>, %574, %cst_178 [2] : vector<4x8x8xf32> to vector<4x8xf32>
    %576 = vector.shape_cast %575 : vector<4x8xf32> to vector<4x8x1xf32>
    %577 = vector.broadcast %576 : vector<4x8x1xf32> to vector<4x8x8xf32>
    %578 = arith.subf %574, %577 : vector<4x8x8xf32>
    %579 = math.exp %578 : vector<4x8x8xf32>
    %cst_179 = arith.constant dense<0.000000e+00> : vector<4x8xf32>
    %580 = vector.multi_reduction <add>, %579, %cst_179 [2] : vector<4x8x8xf32> to vector<4x8xf32>
    %581 = vector.shape_cast %580 : vector<4x8xf32> to vector<4x8x1xf32>
    %582 = tpu.reciprocal %581 : vector<4x8x1xf32> -> vector<4x8x1xf32>
    %583 = vector.broadcast %582 : vector<4x8x1xf32> to vector<4x8x8xf32>
    %584 = arith.mulf %579, %583 : vector<4x8x8xf32>
    %585 = vector.extract_strided_slice %584 {offsets = [0, 0, 0], sizes = [1, 8, 8], strides = [1, 1, 1]} : vector<4x8x8xf32> to vector<1x8x8xf32>
    %586 = vector.shape_cast %585 : vector<1x8x8xf32> to vector<8x8xf32>
    %cst_180 = arith.constant dense<0.000000e+00> : vector<8x8xf32>
    %587 = tpu.matmul %586, %559, %cst_180 {dimension_numbers = #tpu.dot_dimension_numbers<[1], [0], [0], [1], [0, 0, 1, 1], [], []>} : vector<8x8xf32>, vector<8x8xf32>, vector<8x8xf32> -> vector<8x8xf32>
    %588 = vector.extract_strided_slice %584 {offsets = [1, 0, 0], sizes = [1, 8, 8], strides = [1, 1, 1]} : vector<4x8x8xf32> to vector<1x8x8xf32>
    %589 = vector.shape_cast %588 : vector<1x8x8xf32> to vector<8x8xf32>
    %cst_181 = arith.constant dense<0.000000e+00> : vector<8x8xf32>
    %590 = tpu.matmul %589, %560, %cst_181 {dimension_numbers = #tpu.dot_dimension_numbers<[1], [0], [0], [1], [0, 0, 1, 1], [], []>} : vector<8x8xf32>, vector<8x8xf32>, vector<8x8xf32> -> vector<8x8xf32>
    %591 = vector.extract_strided_slice %584 {offsets = [2, 0, 0], sizes = [1, 8, 8], strides = [1, 1, 1]} : vector<4x8x8xf32> to vector<1x8x8xf32>
    %592 = vector.shape_cast %591 : vector<1x8x8xf32> to vector<8x8xf32>
    %cst_182 = arith.constant dense<0.000000e+00> : vector<8x8xf32>
    %593 = tpu.matmul %592, %561, %cst_182 {dimension_numbers = #tpu.dot_dimension_numbers<[1], [0], [0], [1], [0, 0, 1, 1], [], []>} : vector<8x8xf32>, vector<8x8xf32>, vector<8x8xf32> -> vector<8x8xf32>
    %594 = vector.extract_strided_slice %584 {offsets = [3, 0, 0], sizes = [1, 8, 8], strides = [1, 1, 1]} : vector<4x8x8xf32> to vector<1x8x8xf32>
    %595 = vector.shape_cast %594 : vector<1x8x8xf32> to vector<8x8xf32>
    %cst_183 = arith.constant dense<0.000000e+00> : vector<8x8xf32>
    %596 = tpu.matmul %595, %562, %cst_183 {dimension_numbers = #tpu.dot_dimension_numbers<[1], [0], [0], [1], [0, 0, 1, 1], [], []>} : vector<8x8xf32>, vector<8x8xf32>, vector<8x8xf32> -> vector<8x8xf32>
    %597 = tpu.concatenate %587, %590, %593, %596 in 1 : vector<8x8xf32>, vector<8x8xf32>, vector<8x8xf32>, vector<8x8xf32> -> vector<8x32xf32>
    %cst_184 = arith.constant dense<0.000000e+00> : vector<8x32xf32>
    %598 = tpu.matmul %597, %549, %cst_184 {dimension_numbers = #tpu.dot_dimension_numbers<[1], [0], [0], [1], [0, 0, 1, 1], [], []>} : vector<8x32xf32>, vector<32x32xf32>, vector<8x32xf32> -> vector<8x32xf32>
    %599 = vector.broadcast %550 : vector<1x32xf32> to vector<8x32xf32>
    %600 = arith.addf %598, %599 : vector<8x32xf32>
    %601 = arith.addf %515, %600 : vector<8x32xf32>
    %c1208 = arith.constant 1208 : index
    %c0_185 = arith.constant 0 : index
    %602 = vector.load %arg5[%c1208, %c0_185] : memref<1240x128xf32, #tpu.memory_space<vmem>>, vector<1x32xf32>
    %c1216 = arith.constant 1216 : index
    %c0_186 = arith.constant 0 : index
    %603 = vector.load %arg5[%c1216, %c0_186] : memref<1240x128xf32, #tpu.memory_space<vmem>>, vector<1x32xf32>
    %cst_187 = arith.constant dense<0.000000e+00> : vector<8xf32>
    %604 = vector.multi_reduction <add>, %601, %cst_187 [1] : vector<8x32xf32> to vector<8xf32>
    %605 = vector.shape_cast %604 : vector<8xf32> to vector<8x1xf32>
    %cst_188 = arith.constant 3.200000e+01 : f32
    %606 = vector.broadcast %cst_188 : f32 to vector<8x1xf32>
    %607 = arith.divf %605, %606 : vector<8x1xf32>
    %608 = vector.broadcast %607 : vector<8x1xf32> to vector<8x32xf32>
    %609 = arith.subf %601, %608 : vector<8x32xf32>
    %610 = arith.mulf %609, %609 : vector<8x32xf32>
    %cst_189 = arith.constant dense<0.000000e+00> : vector<8xf32>
    %611 = vector.multi_reduction <add>, %610, %cst_189 [1] : vector<8x32xf32> to vector<8xf32>
    %612 = vector.shape_cast %611 : vector<8xf32> to vector<8x1xf32>
    %cst_190 = arith.constant 3.100000e+01 : f32
    %613 = vector.broadcast %cst_190 : f32 to vector<8x1xf32>
    %614 = arith.divf %612, %613 : vector<8x1xf32>
    %615 = math.sqrt %614 : vector<8x1xf32>
    %616 = vector.broadcast %607 : vector<8x1xf32> to vector<8x32xf32>
    %617 = arith.subf %601, %616 : vector<8x32xf32>
    %618 = vector.broadcast %602 : vector<1x32xf32> to vector<8x32xf32>
    %619 = arith.mulf %618, %617 : vector<8x32xf32>
    %cst_191 = arith.constant 9.99999997E-7 : f32
    %620 = vector.broadcast %cst_191 : f32 to vector<8x1xf32>
    %621 = arith.addf %615, %620 : vector<8x1xf32>
    %622 = tpu.reciprocal %621 : vector<8x1xf32> -> vector<8x1xf32>
    %623 = vector.broadcast %622 : vector<8x1xf32> to vector<8x32xf32>
    %624 = arith.mulf %619, %623 : vector<8x32xf32>
    %625 = vector.broadcast %603 : vector<1x32xf32> to vector<8x32xf32>
    %626 = arith.addf %624, %625 : vector<8x32xf32>
    %c960 = arith.constant 960 : index
    %c0_192 = arith.constant 0 : index
    %627 = vector.load %arg5[%c960, %c0_192] : memref<1240x128xf32, #tpu.memory_space<vmem>>, vector<32x32xf32>
    %c992 = arith.constant 992 : index
    %c0_193 = arith.constant 0 : index
    %628 = vector.load %arg5[%c992, %c0_193] : memref<1240x128xf32, #tpu.memory_space<vmem>>, vector<1x32xf32>
    %cst_194 = arith.constant dense<0.000000e+00> : vector<8x32xf32>
    %629 = tpu.matmul %626, %627, %cst_194 {dimension_numbers = #tpu.dot_dimension_numbers<[1], [0], [0], [1], [0, 0, 1, 1], [], []>} : vector<8x32xf32>, vector<32x32xf32>, vector<8x32xf32> -> vector<8x32xf32>
    %630 = vector.broadcast %628 : vector<1x32xf32> to vector<8x32xf32>
    %631 = arith.addf %629, %630 : vector<8x32xf32>
    %c1000 = arith.constant 1000 : index
    %c0_195 = arith.constant 0 : index
    %632 = vector.load %arg5[%c1000, %c0_195] : memref<1240x128xf32, #tpu.memory_space<vmem>>, vector<32x64xf32>
    %c1032 = arith.constant 1032 : index
    %c0_196 = arith.constant 0 : index
    %633 = vector.load %arg5[%c1032, %c0_196] : memref<1240x128xf32, #tpu.memory_space<vmem>>, vector<1x64xf32>
    %cst_197 = arith.constant dense<0.000000e+00> : vector<8x64xf32>
    %634 = tpu.matmul %289, %632, %cst_197 {dimension_numbers = #tpu.dot_dimension_numbers<[1], [0], [0], [1], [0, 0, 1, 1], [], []>} : vector<8x32xf32>, vector<32x64xf32>, vector<8x64xf32> -> vector<8x64xf32>
    %635 = vector.broadcast %633 : vector<1x64xf32> to vector<8x64xf32>
    %636 = arith.addf %634, %635 : vector<8x64xf32>
    %637 = vector.extract_strided_slice %636 {offsets = [0, 0], sizes = [8, 32], strides = [1, 1]} : vector<8x64xf32> to vector<8x32xf32>
    %638 = vector.extract_strided_slice %636 {offsets = [0, 32], sizes = [8, 32], strides = [1, 1]} : vector<8x64xf32> to vector<8x32xf32>
    %c1040 = arith.constant 1040 : index
    %c0_198 = arith.constant 0 : index
    %639 = vector.load %arg5[%c1040, %c0_198] : memref<1240x128xf32, #tpu.memory_space<vmem>>, vector<32x32xf32>
    %c1072 = arith.constant 1072 : index
    %c0_199 = arith.constant 0 : index
    %640 = vector.load %arg5[%c1072, %c0_199] : memref<1240x128xf32, #tpu.memory_space<vmem>>, vector<1x32xf32>
    %641 = vector.extract_strided_slice %631 {offsets = [0, 0], sizes = [8, 8], strides = [1, 1]} : vector<8x32xf32> to vector<8x8xf32>
    %642 = vector.extract_strided_slice %631 {offsets = [0, 8], sizes = [8, 8], strides = [1, 1]} : vector<8x32xf32> to vector<8x8xf32>
    %643 = vector.extract_strided_slice %631 {offsets = [0, 16], sizes = [8, 8], strides = [1, 1]} : vector<8x32xf32> to vector<8x8xf32>
    %644 = vector.extract_strided_slice %631 {offsets = [0, 24], sizes = [8, 8], strides = [1, 1]} : vector<8x32xf32> to vector<8x8xf32>
    %645 = vector.extract_strided_slice %637 {offsets = [0, 0], sizes = [8, 8], strides = [1, 1]} : vector<8x32xf32> to vector<8x8xf32>
    %646 = vector.extract_strided_slice %637 {offsets = [0, 8], sizes = [8, 8], strides = [1, 1]} : vector<8x32xf32> to vector<8x8xf32>
    %647 = vector.extract_strided_slice %637 {offsets = [0, 16], sizes = [8, 8], strides = [1, 1]} : vector<8x32xf32> to vector<8x8xf32>
    %648 = vector.extract_strided_slice %637 {offsets = [0, 24], sizes = [8, 8], strides = [1, 1]} : vector<8x32xf32> to vector<8x8xf32>
    %649 = vector.extract_strided_slice %638 {offsets = [0, 0], sizes = [8, 8], strides = [1, 1]} : vector<8x32xf32> to vector<8x8xf32>
    %650 = vector.extract_strided_slice %638 {offsets = [0, 8], sizes = [8, 8], strides = [1, 1]} : vector<8x32xf32> to vector<8x8xf32>
    %651 = vector.extract_strided_slice %638 {offsets = [0, 16], sizes = [8, 8], strides = [1, 1]} : vector<8x32xf32> to vector<8x8xf32>
    %652 = vector.extract_strided_slice %638 {offsets = [0, 24], sizes = [8, 8], strides = [1, 1]} : vector<8x32xf32> to vector<8x8xf32>
    "tpu.trace_start"() <{level = 10 : i32, message = "qd,kd->qk"}> : () -> ()
    %cst_200 = arith.constant dense<0.000000e+00> : vector<8x8xf32>
    %653 = tpu.matmul %641, %645, %cst_200 {dimension_numbers = #tpu.dot_dimension_numbers<[1], [1], [0], [0], [0, 0, 1, 0], [], []>} : vector<8x8xf32>, vector<8x8xf32>, vector<8x8xf32> -> vector<8x8xf32>
    %cst_201 = arith.constant dense<0.000000e+00> : vector<8x8xf32>
    %654 = tpu.matmul %642, %646, %cst_201 {dimension_numbers = #tpu.dot_dimension_numbers<[1], [1], [0], [0], [0, 0, 1, 0], [], []>} : vector<8x8xf32>, vector<8x8xf32>, vector<8x8xf32> -> vector<8x8xf32>
    %cst_202 = arith.constant dense<0.000000e+00> : vector<8x8xf32>
    %655 = tpu.matmul %643, %647, %cst_202 {dimension_numbers = #tpu.dot_dimension_numbers<[1], [1], [0], [0], [0, 0, 1, 0], [], []>} : vector<8x8xf32>, vector<8x8xf32>, vector<8x8xf32> -> vector<8x8xf32>
    %cst_203 = arith.constant dense<0.000000e+00> : vector<8x8xf32>
    %656 = tpu.matmul %644, %648, %cst_203 {dimension_numbers = #tpu.dot_dimension_numbers<[1], [1], [0], [0], [0, 0, 1, 0], [], []>} : vector<8x8xf32>, vector<8x8xf32>, vector<8x8xf32> -> vector<8x8xf32>
    "tpu.trace_stop"() : () -> ()
    %657 = vector.shape_cast %653 : vector<8x8xf32> to vector<1x8x8xf32>
    %658 = vector.shape_cast %654 : vector<8x8xf32> to vector<1x8x8xf32>
    %659 = vector.shape_cast %655 : vector<8x8xf32> to vector<1x8x8xf32>
    %660 = vector.shape_cast %656 : vector<8x8xf32> to vector<1x8x8xf32>
    %661 = tpu.concatenate %657, %658, %659, %660 in 0 : vector<1x8x8xf32>, vector<1x8x8xf32>, vector<1x8x8xf32>, vector<1x8x8xf32> -> vector<4x8x8xf32>
    %662 = vector.shape_cast %2 : vector<1x8xf32> to vector<1x1x8xf32>
    %663 = vector.broadcast %662 : vector<1x1x8xf32> to vector<4x8x8xf32>
    %664 = arith.addf %661, %663 : vector<4x8x8xf32>
    %cst_204 = arith.constant dense<0xFF800000> : vector<4x8xf32>
    %665 = vector.multi_reduction <maximumf>, %664, %cst_204 [2] : vector<4x8x8xf32> to vector<4x8xf32>
    %666 = vector.shape_cast %665 : vector<4x8xf32> to vector<4x8x1xf32>
    %667 = vector.broadcast %666 : vector<4x8x1xf32> to vector<4x8x8xf32>
    %668 = arith.subf %664, %667 : vector<4x8x8xf32>
    %669 = math.exp %668 : vector<4x8x8xf32>
    %cst_205 = arith.constant dense<0.000000e+00> : vector<4x8xf32>
    %670 = vector.multi_reduction <add>, %669, %cst_205 [2] : vector<4x8x8xf32> to vector<4x8xf32>
    %671 = vector.shape_cast %670 : vector<4x8xf32> to vector<4x8x1xf32>
    %672 = tpu.reciprocal %671 : vector<4x8x1xf32> -> vector<4x8x1xf32>
    %673 = vector.broadcast %672 : vector<4x8x1xf32> to vector<4x8x8xf32>
    %674 = arith.mulf %669, %673 : vector<4x8x8xf32>
    %675 = vector.extract_strided_slice %674 {offsets = [0, 0, 0], sizes = [1, 8, 8], strides = [1, 1, 1]} : vector<4x8x8xf32> to vector<1x8x8xf32>
    %676 = vector.shape_cast %675 : vector<1x8x8xf32> to vector<8x8xf32>
    %cst_206 = arith.constant dense<0.000000e+00> : vector<8x8xf32>
    %677 = tpu.matmul %676, %649, %cst_206 {dimension_numbers = #tpu.dot_dimension_numbers<[1], [0], [0], [1], [0, 0, 1, 1], [], []>} : vector<8x8xf32>, vector<8x8xf32>, vector<8x8xf32> -> vector<8x8xf32>
    %678 = vector.extract_strided_slice %674 {offsets = [1, 0, 0], sizes = [1, 8, 8], strides = [1, 1, 1]} : vector<4x8x8xf32> to vector<1x8x8xf32>
    %679 = vector.shape_cast %678 : vector<1x8x8xf32> to vector<8x8xf32>
    %cst_207 = arith.constant dense<0.000000e+00> : vector<8x8xf32>
    %680 = tpu.matmul %679, %650, %cst_207 {dimension_numbers = #tpu.dot_dimension_numbers<[1], [0], [0], [1], [0, 0, 1, 1], [], []>} : vector<8x8xf32>, vector<8x8xf32>, vector<8x8xf32> -> vector<8x8xf32>
    %681 = vector.extract_strided_slice %674 {offsets = [2, 0, 0], sizes = [1, 8, 8], strides = [1, 1, 1]} : vector<4x8x8xf32> to vector<1x8x8xf32>
    %682 = vector.shape_cast %681 : vector<1x8x8xf32> to vector<8x8xf32>
    %cst_208 = arith.constant dense<0.000000e+00> : vector<8x8xf32>
    %683 = tpu.matmul %682, %651, %cst_208 {dimension_numbers = #tpu.dot_dimension_numbers<[1], [0], [0], [1], [0, 0, 1, 1], [], []>} : vector<8x8xf32>, vector<8x8xf32>, vector<8x8xf32> -> vector<8x8xf32>
    %684 = vector.extract_strided_slice %674 {offsets = [3, 0, 0], sizes = [1, 8, 8], strides = [1, 1, 1]} : vector<4x8x8xf32> to vector<1x8x8xf32>
    %685 = vector.shape_cast %684 : vector<1x8x8xf32> to vector<8x8xf32>
    %cst_209 = arith.constant dense<0.000000e+00> : vector<8x8xf32>
    %686 = tpu.matmul %685, %652, %cst_209 {dimension_numbers = #tpu.dot_dimension_numbers<[1], [0], [0], [1], [0, 0, 1, 1], [], []>} : vector<8x8xf32>, vector<8x8xf32>, vector<8x8xf32> -> vector<8x8xf32>
    %687 = tpu.concatenate %677, %680, %683, %686 in 1 : vector<8x8xf32>, vector<8x8xf32>, vector<8x8xf32>, vector<8x8xf32> -> vector<8x32xf32>
    %cst_210 = arith.constant dense<0.000000e+00> : vector<8x32xf32>
    %688 = tpu.matmul %687, %639, %cst_210 {dimension_numbers = #tpu.dot_dimension_numbers<[1], [0], [0], [1], [0, 0, 1, 1], [], []>} : vector<8x32xf32>, vector<32x32xf32>, vector<8x32xf32> -> vector<8x32xf32>
    %689 = vector.broadcast %640 : vector<1x32xf32> to vector<8x32xf32>
    %690 = arith.addf %688, %689 : vector<8x32xf32>
    %691 = arith.addf %601, %690 : vector<8x32xf32>
    %c1224 = arith.constant 1224 : index
    %c0_211 = arith.constant 0 : index
    %692 = vector.load %arg5[%c1224, %c0_211] : memref<1240x128xf32, #tpu.memory_space<vmem>>, vector<1x32xf32>
    %c1232 = arith.constant 1232 : index
    %c0_212 = arith.constant 0 : index
    %693 = vector.load %arg5[%c1232, %c0_212] : memref<1240x128xf32, #tpu.memory_space<vmem>>, vector<1x32xf32>
    %cst_213 = arith.constant dense<0.000000e+00> : vector<8xf32>
    %694 = vector.multi_reduction <add>, %691, %cst_213 [1] : vector<8x32xf32> to vector<8xf32>
    %695 = vector.shape_cast %694 : vector<8xf32> to vector<8x1xf32>
    %cst_214 = arith.constant 3.200000e+01 : f32
    %696 = vector.broadcast %cst_214 : f32 to vector<8x1xf32>
    %697 = arith.divf %695, %696 : vector<8x1xf32>
    %698 = vector.broadcast %697 : vector<8x1xf32> to vector<8x32xf32>
    %699 = arith.subf %691, %698 : vector<8x32xf32>
    %700 = arith.mulf %699, %699 : vector<8x32xf32>
    %cst_215 = arith.constant dense<0.000000e+00> : vector<8xf32>
    %701 = vector.multi_reduction <add>, %700, %cst_215 [1] : vector<8x32xf32> to vector<8xf32>
    %702 = vector.shape_cast %701 : vector<8xf32> to vector<8x1xf32>
    %cst_216 = arith.constant 3.100000e+01 : f32
    %703 = vector.broadcast %cst_216 : f32 to vector<8x1xf32>
    %704 = arith.divf %702, %703 : vector<8x1xf32>
    %705 = math.sqrt %704 : vector<8x1xf32>
    %706 = vector.broadcast %697 : vector<8x1xf32> to vector<8x32xf32>
    %707 = arith.subf %691, %706 : vector<8x32xf32>
    %708 = vector.broadcast %692 : vector<1x32xf32> to vector<8x32xf32>
    %709 = arith.mulf %708, %707 : vector<8x32xf32>
    %cst_217 = arith.constant 9.99999997E-7 : f32
    %710 = vector.broadcast %cst_217 : f32 to vector<8x1xf32>
    %711 = arith.addf %705, %710 : vector<8x1xf32>
    %712 = tpu.reciprocal %711 : vector<8x1xf32> -> vector<8x1xf32>
    %713 = vector.broadcast %712 : vector<8x1xf32> to vector<8x32xf32>
    %714 = arith.mulf %709, %713 : vector<8x32xf32>
    %715 = vector.broadcast %693 : vector<1x32xf32> to vector<8x32xf32>
    %716 = arith.addf %714, %715 : vector<8x32xf32>
    %c1080 = arith.constant 1080 : index
    %c0_218 = arith.constant 0 : index
    %717 = vector.load %arg5[%c1080, %c0_218] : memref<1240x128xf32, #tpu.memory_space<vmem>>, vector<32x64xf32>
    %c1112 = arith.constant 1112 : index
    %c0_219 = arith.constant 0 : index
    %718 = vector.load %arg5[%c1112, %c0_219] : memref<1240x128xf32, #tpu.memory_space<vmem>>, vector<1x64xf32>
    %cst_220 = arith.constant dense<0.000000e+00> : vector<8x64xf32>
    %719 = tpu.matmul %716, %717, %cst_220 {dimension_numbers = #tpu.dot_dimension_numbers<[1], [0], [0], [1], [0, 0, 1, 1], [], []>} : vector<8x32xf32>, vector<32x64xf32>, vector<8x64xf32> -> vector<8x64xf32>
    %720 = vector.broadcast %718 : vector<1x64xf32> to vector<8x64xf32>
    %721 = arith.addf %719, %720 : vector<8x64xf32>
    %cst_221 = arith.constant 0.000000e+00 : f32
    %722 = vector.broadcast %cst_221 : f32 to vector<8x64xf32>
    %723 = arith.maximumf %721, %722 : vector<8x64xf32>
    %c1120 = arith.constant 1120 : index
    %c0_222 = arith.constant 0 : index
    %724 = vector.load %arg5[%c1120, %c0_222] : memref<1240x128xf32, #tpu.memory_space<vmem>>, vector<64x32xf32>
    %c1184 = arith.constant 1184 : index
    %c0_223 = arith.constant 0 : index
    %725 = vector.load %arg5[%c1184, %c0_223] : memref<1240x128xf32, #tpu.memory_space<vmem>>, vector<1x32xf32>
    %cst_224 = arith.constant dense<0.000000e+00> : vector<8x32xf32>
    %726 = tpu.matmul %723, %724, %cst_224 {dimension_numbers = #tpu.dot_dimension_numbers<[1], [0], [0], [1], [0, 0, 1, 1], [], []>} : vector<8x64xf32>, vector<64x32xf32>, vector<8x32xf32> -> vector<8x32xf32>
    %727 = vector.broadcast %725 : vector<1x32xf32> to vector<8x32xf32>
    %728 = arith.addf %726, %727 : vector<8x32xf32>
    %729 = arith.addf %691, %728 : vector<8x32xf32>
    %c56 = arith.constant 56 : index
    %c0_225 = arith.constant 0 : index
    %730 = vector.load %arg5[%c56, %c0_225] : memref<1240x128xf32, #tpu.memory_space<vmem>>, vector<1x32xf32>
    %c64 = arith.constant 64 : index
    %c0_226 = arith.constant 0 : index
    %731 = vector.load %arg5[%c64, %c0_226] : memref<1240x128xf32, #tpu.memory_space<vmem>>, vector<1x32xf32>
    %cst_227 = arith.constant dense<0.000000e+00> : vector<8xf32>
    %732 = vector.multi_reduction <add>, %729, %cst_227 [1] : vector<8x32xf32> to vector<8xf32>
    %733 = vector.shape_cast %732 : vector<8xf32> to vector<8x1xf32>
    %cst_228 = arith.constant 3.200000e+01 : f32
    %734 = vector.broadcast %cst_228 : f32 to vector<8x1xf32>
    %735 = arith.divf %733, %734 : vector<8x1xf32>
    %736 = vector.broadcast %735 : vector<8x1xf32> to vector<8x32xf32>
    %737 = arith.subf %729, %736 : vector<8x32xf32>
    %738 = arith.mulf %737, %737 : vector<8x32xf32>
    %cst_229 = arith.constant dense<0.000000e+00> : vector<8xf32>
    %739 = vector.multi_reduction <add>, %738, %cst_229 [1] : vector<8x32xf32> to vector<8xf32>
    %740 = vector.shape_cast %739 : vector<8xf32> to vector<8x1xf32>
    %cst_230 = arith.constant 3.100000e+01 : f32
    %741 = vector.broadcast %cst_230 : f32 to vector<8x1xf32>
    %742 = arith.divf %740, %741 : vector<8x1xf32>
    %743 = math.sqrt %742 : vector<8x1xf32>
    %744 = vector.broadcast %735 : vector<8x1xf32> to vector<8x32xf32>
    %745 = arith.subf %729, %744 : vector<8x32xf32>
    %746 = vector.broadcast %730 : vector<1x32xf32> to vector<8x32xf32>
    %747 = arith.mulf %746, %745 : vector<8x32xf32>
    %cst_231 = arith.constant 9.99999997E-7 : f32
    %748 = vector.broadcast %cst_231 : f32 to vector<8x1xf32>
    %749 = arith.addf %743, %748 : vector<8x1xf32>
    %750 = tpu.reciprocal %749 : vector<8x1xf32> -> vector<8x1xf32>
    %751 = vector.broadcast %750 : vector<8x1xf32> to vector<8x32xf32>
    %752 = arith.mulf %747, %751 : vector<8x32xf32>
    %753 = vector.broadcast %731 : vector<1x32xf32> to vector<8x32xf32>
    %754 = arith.addf %752, %753 : vector<8x32xf32>
    %755 = vector.shape_cast %754 : vector<8x32xf32> to vector<1x8x32xf32>
    %c0_232 = arith.constant 0 : index
    %c0_233 = arith.constant 0 : index
    %c0_234 = arith.constant 0 : index
    %756 = vector.load %arg6[%c0_232, %c0_233, %c0_234] : memref<1x8x32xf32, #tpu.memory_space<vmem>>, vector<1x8x32xf32>
    tpu.vector_store %arg6[%c0_232, %c0_233, %c0_234], %755 {strides = array<i32>} : memref<1x8x32xf32, #tpu.memory_space<vmem>>, vector<1x8x32xf32>,
    return
  }
  func.func @transform_0(%arg0: i32) -> (i32, i32, i32) {
    %c0_i32 = arith.constant 0 : i32
    %c0_i32_0 = arith.constant 0 : i32
    %c0_i32_1 = arith.constant 0 : i32
    return %arg0, %c0_i32, %c0_i32_0 : i32, i32, i32
  }
  func.func @transform_1(%arg0: i32) -> (i32, i32, i32) {
    %c0_i32 = arith.constant 0 : i32
    %c0_i32_0 = arith.constant 0 : i32
    %c0_i32_1 = arith.constant 0 : i32
    return %arg0, %c0_i32, %c0_i32_0 : i32, i32, i32
  }
  func.func @transform_2(%arg0: i32) -> (i32, i32, i32) {
    %c0_i32 = arith.constant 0 : i32
    %c0_i32_0 = arith.constant 0 : i32
    %c0_i32_1 = arith.constant 0 : i32
    return %arg0, %c0_i32, %c0_i32_0 : i32, i32, i32
  }
  func.func @transform_3(%arg0: i32) -> (i32, i32, i32) {
    %c0_i32 = arith.constant 0 : i32
    %c0_i32_0 = arith.constant 0 : i32
    %c0_i32_1 = arith.constant 0 : i32
    return %arg0, %c0_i32, %c0_i32_0 : i32, i32, i32
  }
  func.func @transform_4(%arg0: i32) -> (i32, i32) {
    %c0_i32 = arith.constant 0 : i32
    %c0_i32_0 = arith.constant 0 : i32
    %c0_i32_1 = arith.constant 0 : i32
    return %c0_i32, %c0_i32_0 : i32, i32
  }
  func.func @transform_5(%arg0: i32) -> (i32, i32, i32) {
    %c0_i32 = arith.constant 0 : i32
    %c0_i32_0 = arith.constant 0 : i32
    %c0_i32_1 = arith.constant 0 : i32
    return %arg0, %c0_i32, %c0_i32_0 : i32, i32, i32
  }
}

</mosaic_0001>

<llo_original>
// kernel: encoder_decoder_forward.1
$region0: #{encoder_decoder_forward.1}
  #allocation0 [shape = 'u32[]', space=smem, size = 0x4, offset = 0x4, fixed_abs, tag = 'smem constant byte address 0x4 - core index']
  #allocation1 [shape = 'u32[144,128]{1,0:T(1,128)}', space=vmem, size = 0x12000, scoped, tag = 'internal scratch']
  %s0 = inlined_call_operand.vmem [shape: s32[2,1,8], index: 0, kind: input, shape index: {}]
  %s1 = inlined_call_operand.vmem [shape: s32[2,1,8], index: 1, kind: input, shape index: {}]
  %s2 = inlined_call_operand.vmem [shape: f32[2,1,8], index: 2, kind: input, shape index: {}]
  %s3 = inlined_call_operand.vmem [shape: f32[2,8,8], index: 3, kind: input, shape index: {}]
  %s4 = inlined_call_operand.vmem [shape: f32[1240,128], index: 4, kind: input, shape index: {}]
  %s5 = inlined_call_operand.hbm [shape: f32[2,8,32], index: 5, kind: output, shape index: {}]
  %s6 = sld [smem:[#allocation0]]
  $region53: #{encoder_decoder_forward.1} parent=0
    _
  %s8 = ssub.s32 1, %s6
  %s9 = scalar_select 0, %s8, %s6
  $region1: #{encoder_decoder_forward.1} parent=0
    #allocation2 [shape = 'u8[8192]{0}', space=vmem, size = 0x2000, scoped, tag = 'output window, operand 0']
    #allocation3 [shape = 's32[2]{0}', space=sflag, size = 0x8, scoped, tag = 'scoped memory for encoder_decoder_forward.1']
    %10 = vsyncpa [#allocation3], 0
    %s11 = scalar_lea.sflag [#allocation3], 1
    %12 = vsyncpa %s11, 0
    loop: start=0, step=1, limit=4
    $region2: #{encoder_decoder_forward.1} parent=1 // loop_pre_header
      _
    $region3: #{encoder_decoder_forward.1} parent=1 // loop_header
      %s14 = sphi 0, %s18
      %p15 = scmp.ge.s32.totalorder %s14, 4
      %s24 = sphi 0, %s26
      %s27 = sphi 0, %s24
      %s28 = sphi 0, %s27
      %s44 = sphi 0, %s28
      %s50 = sphi 0, %s52
      %s53 = sphi 0, %s50
      %s54 = sphi 0, %s53
      %s70 = sphi 0, %s54
      %s76 = sphi 0, %s78
      %s79 = sphi 0, %s76
      %s80 = sphi 0, %s79
      %s96 = sphi 0, %s80
      %s102 = sphi 0, %s104
      %s105 = sphi 0, %s102
      %s106 = sphi 0, %s105
      %s122 = sphi 0, %s106
      %s126 = sphi 0, %s126
      %s128 = sphi 0, %s126
      %s129 = sphi 0, %s128
      %s143 = sphi 0, %s129
      %s149 = sphi 0, %s151
      %s152 = sphi 0, %s149
      %s153 = sphi 0, %s152
      %s169 = sphi 0, %s153
    $region4: #{encoder_decoder_forward.1} parent=1 // loop_header_branch
      %17 = sbr.rel (%p15) target = $region8
    $region5: #{encoder_decoder_forward.1} parent=1 // loop_body
      %s19 = ssub.s32 %s14, 1
      %s20 = ssub.s32 %s14, 2
      %s21 = sadd.s32 %s14, 1
      %s22 = ssub.s32 %s14, %s21
      %p23 = scmp.eq.s32.totalorder %s22, 0
      %s25 = sadd.s32 %s24, 1
      %s26 = scalar_select %p23, %s24, %s25
      %p29 = pneg %p23
      %p30 = scmp.eq.s32.totalorder %s14, 1
      %p31 = por %p29, %p30
      %p32 = scmp.ne.s32.totalorder %s24, %s27
      %p33 = scmp.eq.s32.totalorder %s14, 0
      %p34 = por %p32, %p33
      %p35 = scmp.ne.s32.totalorder %s24, %s27
      %p36 = scmp.eq.s32.totalorder %s19, 1
      %p37 = por %p35, %p36
      %p38 = scmp.ne.s32.totalorder %s27, %s28
      %p39 = scmp.eq.s32.totalorder %s19, 0
      %p40 = por %p38, %p39
      %p41 = scmp.ne.s32.totalorder %s27, %s28
      %p42 = scmp.eq.s32.totalorder %s20, 1
      %p43 = por %p41, %p42
      %p45 = scmp.ne.s32.totalorder %s28, %s44
      %p46 = scmp.eq.s32.totalorder %s20, 0
      %p47 = por %p45, %p46
      %s48 = ssub.s32 %s14, %s21
      %p49 = scmp.eq.s32.totalorder %s48, 0
      %s51 = sadd.s32 %s50, 1
      %s52 = scalar_select %p49, %s50, %s51
      %p55 = pneg %p49
      %p56 = scmp.eq.s32.totalorder %s14, 1
      %p57 = por %p55, %p56
      %p58 = scmp.ne.s32.totalorder %s50, %s53
      %p59 = scmp.eq.s32.totalorder %s14, 0
      %p60 = por %p58, %p59
      %p61 = scmp.ne.s32.totalorder %s50, %s53
      %p62 = scmp.eq.s32.totalorder %s19, 1
      %p63 = por %p61, %p62
      %p64 = scmp.ne.s32.totalorder %s53, %s54
      %p65 = scmp.eq.s32.totalorder %s19, 0
      %p66 = por %p64, %p65
      %p67 = scmp.ne.s32.totalorder %s53, %s54
      %p68 = scmp.eq.s32.totalorder %s20, 1
      %p69 = por %p67, %p68
      %p71 = scmp.ne.s32.totalorder %s54, %s70
      %p72 = scmp.eq.s32.totalorder %s20, 0
      %p73 = por %p71, %p72
      %s74 = ssub.s32 %s14, %s21
      %p75 = scmp.eq.s32.totalorder %s74, 0
      %s77 = sadd.s32 %s76, 1
      %s78 = scalar_select %p75, %s76, %s77
      %p81 = pneg %p75
      %p82 = scmp.eq.s32.totalorder %s14, 1
      %p83 = por %p81, %p82
      %p84 = scmp.ne.s32.totalorder %s76, %s79
      %p85 = scmp.eq.s32.totalorder %s14, 0
      %p86 = por %p84, %p85
      %p87 = scmp.ne.s32.totalorder %s76, %s79
      %p88 = scmp.eq.s32.totalorder %s19, 1
      %p89 = por %p87, %p88
      %p90 = scmp.ne.s32.totalorder %s79, %s80
      %p91 = scmp.eq.s32.totalorder %s19, 0
      %p92 = por %p90, %p91
      %p93 = scmp.ne.s32.totalorder %s79, %s80
      %p94 = scmp.eq.s32.totalorder %s20, 1
      %p95 = por %p93, %p94
      %p97 = scmp.ne.s32.totalorder %s80, %s96
      %p98 = scmp.eq.s32.totalorder %s20, 0
      %p99 = por %p97, %p98
      %s100 = ssub.s32 %s14, %s21
      %p101 = scmp.eq.s32.totalorder %s100, 0
      %s103 = sadd.s32 %s102, 1
      %s104 = scalar_select %p101, %s102, %s103
      %p107 = pneg %p101
      %p108 = scmp.eq.s32.totalorder %s14, 1
      %p109 = por %p107, %p108
      %p110 = scmp.ne.s32.totalorder %s102, %s105
      %p111 = scmp.eq.s32.totalorder %s14, 0
      %p112 = por %p110, %p111
      %p113 = scmp.ne.s32.totalorder %s102, %s105
      %p114 = scmp.eq.s32.totalorder %s19, 1
      %p115 = por %p113, %p114
      %p116 = scmp.ne.s32.totalorder %s105, %s106
      %p117 = scmp.eq.s32.totalorder %s19, 0
      %p118 = por %p116, %p117
      %p119 = scmp.ne.s32.totalorder %s105, %s106
      %p120 = scmp.eq.s32.totalorder %s20, 1
      %p121 = por %p119, %p120
      %p123 = scmp.ne.s32.totalorder %s106, %s122
      %p124 = scmp.eq.s32.totalorder %s20, 0
      %p125 = por %p123, %p124
      %s127 = sadd.s32 %s126, 1
      %p130 = scmp.eq.s32.totalorder %s14, 1
      %p131 = scmp.ne.s32.totalorder %s126, %s128
      %p132 = scmp.eq.s32.totalorder %s14, 0
      %p133 = por %p131, %p132
      %p134 = scmp.ne.s32.totalorder %s126, %s128
      %p135 = scmp.eq.s32.totalorder %s19, 1
      %p136 = por %p134, %p135
      %p137 = scmp.ne.s32.totalorder %s128, %s129
      %p138 = scmp.eq.s32.totalorder %s19, 0
      %p139 = por %p137, %p138
      %p140 = scmp.ne.s32.totalorder %s128, %s129
      %p141 = scmp.eq.s32.totalorder %s20, 1
      %p142 = por %p140, %p141
      %p144 = scmp.ne.s32.totalorder %s129, %s143
      %p145 = scmp.eq.s32.totalorder %s20, 0
      %p146 = por %p144, %p145
      %s147 = ssub.s32 %s14, %s21
      %p148 = scmp.eq.s32.totalorder %s147, 0
      %s150 = sadd.s32 %s149, 1
      %s151 = scalar_select %p148, %s149, %s150
      %p154 = pneg %p148
      %p155 = scmp.eq.s32.totalorder %s14, 1
      %p156 = por %p154, %p155
      %p157 = scmp.ne.s32.totalorder %s149, %s152
      %p158 = scmp.eq.s32.totalorder %s14, 0
      %p159 = por %p157, %p158
      %p160 = scmp.ne.s32.totalorder %s149, %s152
      %p161 = scmp.eq.s32.totalorder %s19, 1
      %p162 = por %p160, %p161
      %p163 = scmp.ne.s32.totalorder %s152, %s153
      %p164 = scmp.eq.s32.totalorder %s19, 0
      %p165 = por %p163, %p164
      %p166 = scmp.ne.s32.totalorder %s152, %s153
      %p167 = scmp.eq.s32.totalorder %s20, 1
      %p168 = por %p166, %p167
      %p170 = scmp.ne.s32.totalorder %s153, %s169
      %p171 = scmp.eq.s32.totalorder %s20, 0
      %p172 = por %p170, %p171
      %p173 = scmp.le.s32.totalorder 1, %s14
      %p174 = scmp.lt.s32.totalorder %s14, 3
      %p175 = pnand %p173, %p174
      %p176 = pneg %p175
      // Predicated region
      $region9: #{encoder_decoder_forward.1} parent=5 // pred_check
        _
      $region10: #{encoder_decoder_forward.1} parent=5 // pred_check_branch
        %178 = sbr.rel (%p175) target = $region12
      $region11: #{encoder_decoder_forward.1} parent=5 // pred_region
        %s179 = ssub.s32 %s14, 1
        // Predicated region
        $region13: #{encoder_decoder_forward.1} parent=11 // pred_check
          %p180 = pneg %p139
        $region14: #{encoder_decoder_forward.1} parent=11 // pred_check_branch
          %182 = sbr.rel (%p180) target = $region16
        $region15: #{encoder_decoder_forward.1} parent=11 // pred_region
          _
        $region16: #{encoder_decoder_forward.1} parent=11 // pred_fallthru
          _
      $region12: #{encoder_decoder_forward.1} parent=5 // pred_fallthru
        _
      %p183 = scmp.lt.s32.totalorder %s14, 2
      // Predicated region
      $region17: #{encoder_decoder_forward.1} parent=5 // pred_check
        %p184 = pneg %p183
      $region18: #{encoder_decoder_forward.1} parent=5 // pred_check_branch
        %186 = sbr.rel (%p184) target = $region20
      $region19: #{encoder_decoder_forward.1} parent=5 // pred_region
        // Predicated region
        $region21: #{encoder_decoder_forward.1} parent=19 // pred_check
          %p187 = pneg %p34
        $region22: #{encoder_decoder_forward.1} parent=19 // pred_check_branch
          %189 = sbr.rel (%p187) target = $region24
        $region23: #{encoder_decoder_forward.1} parent=19 // pred_region
          %p190 = scmp.lt.s32.totalorder %s14, 1
          %s191 = scalar_select %p190, %s14, 1
          %s192 = scalar_lea.vmem %s0, %s191
        $region24: #{encoder_decoder_forward.1} parent=19 // pred_fallthru
          _
        // Predicated region
        $region25: #{encoder_decoder_forward.1} parent=19 // pred_check
          %p193 = pneg %p60
        $region26: #{encoder_decoder_forward.1} parent=19 // pred_check_branch
          %195 = sbr.rel (%p193) target = $region28
        $region27: #{encoder_decoder_forward.1} parent=19 // pred_region
          %p196 = scmp.lt.s32.totalorder %s14, 1
          %s197 = scalar_select %p196, %s14, 1
          %s198 = scalar_lea.vmem %s1, %s197
        $region28: #{encoder_decoder_forward.1} parent=19 // pred_fallthru
          _
        // Predicated region
        $region29: #{encoder_decoder_forward.1} parent=19 // pred_check
          %p199 = pneg %p86
        $region30: #{encoder_decoder_forward.1} parent=19 // pred_check_branch
          %201 = sbr.rel (%p199) target = $region32
        $region31: #{encoder_decoder_forward.1} parent=19 // pred_region
          %p202 = scmp.lt.s32.totalorder %s14, 1
          %s203 = scalar_select %p202, %s14, 1
          %s204 = scalar_lea.vmem %s2, %s203
        $region32: #{encoder_decoder_forward.1} parent=19 // pred_fallthru
          _
        // Predicated region
        $region33: #{encoder_decoder_forward.1} parent=19 // pred_check
          %p205 = pneg %p112
        $region34: #{encoder_decoder_forward.1} parent=19 // pred_check_branch
          %207 = sbr.rel (%p205) target = $region36
        $region35: #{encoder_decoder_forward.1} parent=19 // pred_region
          %p208 = scmp.lt.s32.totalorder %s14, 1
          %s209 = scalar_select %p208, %s14, 1
          %s210 = smul.addr %s209, 8
          %s211 = scalar_lea.vmem %s3, %s210
        $region36: #{encoder_decoder_forward.1} parent=19 // pred_fallthru
          _
      $region20: #{encoder_decoder_forward.1} parent=5 // pred_fallthru
        _
      %p212 = scmp.le.s32.totalorder 1, %s14
      %p213 = scmp.lt.s32.totalorder %s14, 3
      %p214 = pnand %p212, %p213
      %p215 = pneg %p214
      // Predicated region
      $region37: #{encoder_decoder_forward.1} parent=5 // pred_check
        _
      $region38: #{encoder_decoder_forward.1} parent=5 // pred_check_branch
        %217 = sbr.rel (%p214) target = $region40
      $region39: #{encoder_decoder_forward.1} parent=5 // pred_region
        %s218 = ssub.s32 %s14, 1
        %p219 = scmp.lt.s32.totalorder %s19, 1
        %s220 = scalar_select %p219, %s19, 1
        %s221 = scalar_lea.vmem %s0, %s220
        %p222 = pneg %p40
        %p223 = pneg %p37
        %p224 = scmp.lt.s32.totalorder %s19, 1
        %s225 = scalar_select %p224, %s19, 1
        %s226 = scalar_lea.vmem %s1, %s225
        %p227 = pneg %p66
        %p228 = pneg %p63
        %p229 = scmp.lt.s32.totalorder %s19, 1
        %s230 = scalar_select %p229, %s19, 1
        %s231 = scalar_lea.vmem %s2, %s230
        %p232 = pneg %p92
        %p233 = pneg %p89
        %p234 = scmp.lt.s32.totalorder %s19, 1
        %s235 = scalar_select %p234, %s19, 1
        %s236 = smul.addr %s235, 8
        %s237 = scalar_lea.vmem %s3, %s236
        %p238 = pneg %p118
        %p239 = pneg %p115
        %p240 = pneg %p139
        %p241 = pneg %p136
        %p242 = pneg %p165
        %p243 = pneg %p162
        %s244 = sand.u32 %s152, 1
        %s245 = scalar_lea.sflag [#allocation3], %s244
        %s246 = sand.u32 %s152, 1
        %s247 = smul.addr %s246, 8
        %s248 = scalar_lea.vmem [#allocation2], %s247
        %p249 = scmp.lt.s32.totalorder %s19, 1
        %s250 = scalar_select %p249, %s19, 1
        %s251 = scalar_lea.vmem %s0, %s250
        %p252 = scmp.lt.s32.totalorder %s19, 1
        %s253 = scalar_select %p252, %s19, 1
        %s254 = scalar_lea.vmem %s1, %s253
        %p255 = scmp.lt.s32.totalorder %s19, 1
        %s256 = scalar_select %p255, %s19, 1
        %s257 = scalar_lea.vmem %s2, %s256
        %p258 = scmp.lt.s32.totalorder %s19, 1
        %s259 = scalar_select %p258, %s19, 1
        %s260 = smul.addr %s259, 8
        %s261 = scalar_lea.vmem %s3, %s260
        %v262 = vld [vmem:[%s4] sm:$0xff]
        %v263 = vld [vmem:[%s257] sm:$0x1]
        %v264 = vld [vmem:[%s261] sm:$0xff]
        %v265 = vld [vmem:[%s4 + $0x8] sm:$0xff]
        %v266 = vld [vmem:[%s4 + $0x10] sm:$0xff]
        %v267 = vld [vmem:[%s251] sm:$0x1]
        %v268 = vlaneseq
        %v269 = vshrl.u32 %v268, 7
        %v270 = vsub.s32 0, %v269
        %v271 = vrot.slane %v267, %v270
        %273 = vbcast.lane.b32.xlu0 %v271, 256
        %v274 = vpop.permute.xlu0 %273
        %v275 = vlaneseq
        %v276 = vand.u32 %v275, 127
        %vm277 = vcmp.eq.s32.totalorder %v276, %v274
        %v278 = vsel %vm277, 1, 0
        %v279 = vcvt.s32.f32 %v278
        %vm280 = vcmask 130048
        %v282 = vsel %vm280, %v279, 0
        %284 = vmatprep.subr.mxu0 0.0
        %285 = vmatpush1.msra.mxu0 0.0
        %286 = vmatprep.subr.mxu0 0.0
        %287 = vmatpush1.msra.mxu0 0.0
        %288 = vmatprep.subr.mxu0 0.0
        %289 = vmatpush1.msra.mxu0 0.0
        %290 = vmatprep.subr.mxu0 0.0
        %291 = vmatpush1.msra.mxu0 0.0
        %292 = vmatprep.subr.mxu0 0.0
        %293 = vmatpush1.msra.mxu0 0.0
        %294 = vmatprep.subr.mxu0 0.0
        %295 = vmatpush1.msra.mxu0 0.0
        %296 = vmatprep.subr.mxu0 0.0
        %297 = vmatpush1.msra.mxu0 0.0
        %298 = vmatprep.subr.mxu0 0.0
        %299 = vmatpush1.msra.mxu0 0.0
        %300 = vmatprep.subr.mxu0 0.0
        %301 = vmatpush1.msra.mxu0 0.0
        %302 = vmatprep.subr.mxu0 0.0
        %303 = vmatpush1.msra.mxu0 0.0
        %304 = vmatprep.subr.mxu0 0.0
        %305 = vmatpush1.msra.mxu0 0.0
        %306 = vmatprep.subr.mxu0 0.0
        %307 = vmatpush1.msra.mxu0 0.0
        %308 = vmatprep.subr.mxu0 0.0
        %309 = vmatpush1.msra.mxu0 0.0
        %310 = vmatprep.subr.mxu0 0.0
        %311 = vmatpush1.msra.mxu0 0.0
        %312 = vmatprep.subr.mxu0 0.0
        %313 = vmatpush1.msra.mxu0 %v266
        %314 = vmatprep.subr.mxu0 0.0
        %315 = vmatpush1.msra.mxu0 %v265
        %316 = vmatprep.subr.mxu0 0.0
        %317 = vmatpush2.msra.mxu0 0.0
        %318 = vmatprep.subr.mxu0 0.0
        %319 = vmatpush2.msra.mxu0 0.0
        %320 = vmatprep.subr.mxu0 0.0
        %321 = vmatpush2.msra.mxu0 0.0
        %322 = vmatprep.subr.mxu0 0.0
        %323 = vmatpush2.msra.mxu0 0.0
        %324 = vmatprep.subr.mxu0 0.0
        %325 = vmatpush2.msra.mxu0 0.0
        %326 = vmatprep.subr.mxu0 0.0
        %327 = vmatpush2.msra.mxu0 0.0
        %328 = vmatprep.subr.mxu0 0.0
        %329 = vmatpush2.msra.mxu0 0.0
        %330 = vmatprep.subr.mxu0 0.0
        %331 = vmatpush2.msra.mxu0 0.0
        %332 = vmatprep.subr.mxu0 0.0
        %333 = vmatpush2.msra.mxu0 0.0
        %334 = vmatprep.subr.mxu0 0.0
        %335 = vmatpush2.msra.mxu0 0.0
        %336 = vmatprep.subr.mxu0 0.0
        %337 = vmatpush2.msra.mxu0 0.0
        %338 = vmatprep.subr.mxu0 0.0
        %339 = vmatpush2.msra.mxu0 0.0
        %340 = vmatprep.subr.mxu0 0.0
        %341 = vmatpush2.msra.mxu0 0.0
        %342 = vmatprep.subr.mxu0 0.0
        %343 = vmatpush2.msra.mxu0 0.0
        %344 = vmatprep.subr.mxu0 0.0
        %345 = vmatpush2.msra.mxu0 0.0
        %346 = vmatprep.subr.mxu0 0.0
        %347 = vmatpush2.msra.mxu0 0.0
        %348 = vmatprep.mubr.f32.mxu0 0.0
        %349 = vmatmul.mubr.f32.gmra.mxu0 %v282
        %v350 = vpop.f32.mrf.mxu0
        %v351 = vadd.f32 0.0, %v350
        %v352 = vpop.f32.mrf.mxu0
        %353 = vdwg.mxu0
        %v354 = vmul.f32 %v351, 5.656854
        %v355 = vadd.f32 %v354, %v262
        %v356 = vld [vmem:[%s4 + $0x108] sm:$0x1]
        %v357 = vld [vmem:[%s4 + $0x110] sm:$0x1]
        %vm358 = vcmask 261120
        %v359 = vsel %vm358, %v355, 0.0
        %360 = vadd.xlane.f32.xlu0 %v359
        %v361 = vpop.xlane.xlu0 %360
        %v362 = vrcp.pop 32.0
        %v363 = vmul.f32 %v361, %v362
        %v364 = vsub.f32 %v355, %v363
        %v365 = vmul.f32 %v364, %v364
        %v366 = vsel %vm358, %v365, 0.0
        %367 = vadd.xlane.f32.xlu0 %v366
        %v368 = vpop.xlane.xlu0 %367
        %v369 = vrcp.pop 31.0
        %v370 = vmul.f32 %v368, %v369
        %v371 = vrsqrt.pop %v370
        %v372 = vmul.f32 %v370, %v371
        %vm373 = vcmp.eq.f32.partialorder %v370, inf
        %v374 = vsel %vm373, %v370, %v372
        %vm375 = vcmp.eq.f32.partialorder %v370, 0.0
        %v376 = vand.u32 %v370, 2147483648
        %v377 = vsel %vm375, %v376, %v374
        %v378 = vlaneseq
        %v379 = vshrl.u32 %v378, 7
        %v380 = vsub.s32 0, %v379
        %v381 = vrot.slane %v356, %v380
        %v382 = vmul.f32 %v381, %v364
        %v383 = vadd.f32 %v377, 1e-06
        %v384 = vrcp.pop %v383
        %v385 = vmul.f32 %v382, %v384
        %v386 = vlaneseq
        %v387 = vshrl.u32 %v386, 7
        %v388 = vsub.s32 0, %v387
        %v389 = vrot.slane %v357, %v388
        %v390 = vadd.f32 %v385, %v389
        %v391 = vld [vmem:[%s4 + $0x48] sm:$0xff]
        %v392 = vld [vmem:[%s4 + $0x50] sm:$0xff]
        %v393 = vld [vmem:[%s4 + $0x58] sm:$0xff]
        %v394 = vld [vmem:[%s4 + $0x60] sm:$0xff]
        %v395 = vld [vmem:[%s4 + $0x68] sm:$0x1]
        %v396 = vlaneseq
        %v397 = vshrl.u32 %v396, 7
        %v398 = vsub.s32 0, %v397
        %v399 = vrot.slane %v395, %v398
        %v401 = vsel %vm358, %v390, 0
        %403 = vmatprep.subr.mxu0 0.0
        %404 = vmatpush1.msra.mxu0 0.0
        %405 = vmatprep.subr.mxu0 0.0
        %406 = vmatpush1.msra.mxu0 0.0
        %407 = vmatprep.subr.mxu0 0.0
        %408 = vmatpush1.msra.mxu0 0.0
        %409 = vmatprep.subr.mxu0 0.0
        %410 = vmatpush1.msra.mxu0 0.0
        %411 = vmatprep.subr.mxu0 0.0
        %412 = vmatpush1.msra.mxu0 0.0
        %413 = vmatprep.subr.mxu0 0.0
        %414 = vmatpush1.msra.mxu0 0.0
        %415 = vmatprep.subr.mxu0 0.0
        %416 = vmatpush1.msra.mxu0 0.0
        %417 = vmatprep.subr.mxu0 0.0
        %418 = vmatpush1.msra.mxu0 0.0
        %419 = vmatprep.subr.mxu0 0.0
        %420 = vmatpush1.msra.mxu0 0.0
        %421 = vmatprep.subr.mxu0 0.0
        %422 = vmatpush1.msra.mxu0 0.0
        %423 = vmatprep.subr.mxu0 0.0
        %424 = vmatpush1.msra.mxu0 0.0
        %425 = vmatprep.subr.mxu0 0.0
        %426 = vmatpush1.msra.mxu0 0.0
        %427 = vmatprep.subr.mxu0 0.0
        %428 = vmatpush1.msra.mxu0 %v394
        %429 = vmatprep.subr.mxu0 0.0
        %430 = vmatpush1.msra.mxu0 %v393
        %431 = vmatprep.subr.mxu0 0.0
        %432 = vmatpush1.msra.mxu0 %v392
        %433 = vmatprep.subr.mxu0 0.0
        %434 = vmatpush1.msra.mxu0 %v391
        %435 = vmatprep.subr.mxu0 0.0
        %436 = vmatpush2.msra.mxu0 0.0
        %437 = vmatprep.subr.mxu0 0.0
        %438 = vmatpush2.msra.mxu0 0.0
        %439 = vmatprep.subr.mxu0 0.0
        %440 = vmatpush2.msra.mxu0 0.0
        %441 = vmatprep.subr.mxu0 0.0
        %442 = vmatpush2.msra.mxu0 0.0
        %443 = vmatprep.subr.mxu0 0.0
        %444 = vmatpush2.msra.mxu0 0.0
        %445 = vmatprep.subr.mxu0 0.0
        %446 = vmatpush2.msra.mxu0 0.0
        %447 = vmatprep.subr.mxu0 0.0
        %448 = vmatpush2.msra.mxu0 0.0
        %449 = vmatprep.subr.mxu0 0.0
        %450 = vmatpush2.msra.mxu0 0.0
        %451 = vmatprep.subr.mxu0 0.0
        %452 = vmatpush2.msra.mxu0 0.0
        %453 = vmatprep.subr.mxu0 0.0
        %454 = vmatpush2.msra.mxu0 0.0
        %455 = vmatprep.subr.mxu0 0.0
        %456 = vmatpush2.msra.mxu0 0.0
        %457 = vmatprep.subr.mxu0 0.0
        %458 = vmatpush2.msra.mxu0 0.0
        %459 = vmatprep.subr.mxu0 0.0
        %460 = vmatpush2.msra.mxu0 0.0
        %461 = vmatprep.subr.mxu0 0.0
        %462 = vmatpush2.msra.mxu0 0.0
        %463 = vmatprep.subr.mxu0 0.0
        %464 = vmatpush2.msra.mxu0 0.0
        %465 = vmatprep.subr.mxu0 0.0
        %466 = vmatpush2.msra.mxu0 0.0
        %467 = vmatprep.mubr.f32.mxu0 0.0
        %468 = vmatmul.mubr.f32.gmra.mxu0 %v401
        %v469 = vpop.f32.mrf.mxu0
        %v470 = vadd.f32 %v399, %v469
        %v471 = vpop.f32.mrf.mxu0
        %472 = vdwg.mxu0
        %v473 = vld [vmem:[%s4 + $0x70] sm:$0xff]
        %v474 = vld [vmem:[%s4 + $0x78] sm:$0xff]
        %v475 = vld [vmem:[%s4 + $0x80] sm:$0xff]
        %v476 = vld [vmem:[%s4 + $0x88] sm:$0xff]
        %v477 = vld [vmem:[%s4 + $0x90] sm:$0x1]
        %479 = vrot.lane.b32.xlu0 %v470, 96
        %v480 = vpop.permute.xlu0 %479
        %vm481 = vcmask 64512
        %v482 = vsel %vm481, %v470, 0
        %v484 = vsel %vm481, %v480, 0
        %486 = vmatprep.subr.mxu0 0.0
        %487 = vmatpush1.xpose.msra.mxu0 0.0
        %488 = vmatprep.subr.mxu0 0.0
        %489 = vmatpush1.xpose.msra.mxu0 0.0
        %490 = vmatprep.subr.mxu0 0.0
        %491 = vmatpush1.xpose.msra.mxu0 0.0
        %492 = vmatprep.subr.mxu0 0.0
        %493 = vmatpush1.xpose.msra.mxu0 0.0
        %494 = vmatprep.subr.mxu0 0.0
        %495 = vmatpush1.xpose.msra.mxu0 0.0
        %496 = vmatprep.subr.mxu0 0.0
        %497 = vmatpush1.xpose.msra.mxu0 0.0
        %498 = vmatprep.subr.mxu0 0.0
        %499 = vmatpush1.xpose.msra.mxu0 0.0
        %500 = vmatprep.subr.mxu0 0.0
        %501 = vmatpush1.xpose.msra.mxu0 0.0
        %502 = vmatprep.subr.mxu0 0.0
        %503 = vmatpush1.xpose.msra.mxu0 0.0
        %504 = vmatprep.subr.mxu0 0.0
        %505 = vmatpush1.xpose.msra.mxu0 0.0
        %506 = vmatprep.subr.mxu0 0.0
        %507 = vmatpush1.xpose.msra.mxu0 0.0
        %508 = vmatprep.subr.mxu0 0.0
        %509 = vmatpush1.xpose.msra.mxu0 0.0
        %510 = vmatprep.subr.mxu0 0.0
        %511 = vmatpush1.xpose.msra.mxu0 0.0
        %512 = vmatprep.subr.mxu0 0.0
        %513 = vmatpush1.xpose.msra.mxu0 0.0
        %514 = vmatprep.subr.mxu0 0.0
        %515 = vmatpush1.xpose.msra.mxu0 0.0
        %516 = vmatprep.subr.mxu0 0.0
        %517 = vmatpush1.xpose.msra.mxu0 %v484
        %518 = vmatprep.subr.mxu0 0.0
        %519 = vmatpush2.xpose.msra.mxu0 0.0
        %520 = vmatprep.subr.mxu0 0.0
        %521 = vmatpush2.xpose.msra.mxu0 0.0
        %522 = vmatprep.subr.mxu0 0.0
        %523 = vmatpush2.xpose.msra.mxu0 0.0
        %524 = vmatprep.subr.mxu0 0.0
        %525 = vmatpush2.xpose.msra.mxu0 0.0
        %526 = vmatprep.subr.mxu0 0.0
        %527 = vmatpush2.xpose.msra.mxu0 0.0
        %528 = vmatprep.subr.mxu0 0.0
        %529 = vmatpush2.xpose.msra.mxu0 0.0
        %530 = vmatprep.subr.mxu0 0.0
        %531 = vmatpush2.xpose.msra.mxu0 0.0
        %532 = vmatprep.subr.mxu0 0.0
        %533 = vmatpush2.xpose.msra.mxu0 0.0
        %534 = vmatprep.subr.mxu0 0.0
        %535 = vmatpush2.xpose.msra.mxu0 0.0
        %536 = vmatprep.subr.mxu0 0.0
        %537 = vmatpush2.xpose.msra.mxu0 0.0
        %538 = vmatprep.subr.mxu0 0.0
        %539 = vmatpush2.xpose.msra.mxu0 0.0
        %540 = vmatprep.subr.mxu0 0.0
        %541 = vmatpush2.xpose.msra.mxu0 0.0
        %542 = vmatprep.subr.mxu0 0.0
        %543 = vmatpush2.xpose.msra.mxu0 0.0
        %544 = vmatprep.subr.mxu0 0.0
        %545 = vmatpush2.xpose.msra.mxu0 0.0
        %546 = vmatprep.subr.mxu0 0.0
        %547 = vmatpush2.xpose.msra.mxu0 0.0
        %548 = vmatprep.subr.mxu0 0.0
        %549 = vmatpush2.xpose.msra.mxu0 0.0
        %550 = vmatprep.mubr.f32.mxu0 0.0
        %551 = vmatmul.mubr.f32.gmra.mxu0 %v482
        %v552 = vpop.f32.mrf.mxu0
        %v553 = vadd.f32 0.0, %v552
        %v554 = vpop.f32.mrf.mxu0
        %555 = vdwg.mxu0
        %556 = vrot.lane.b32.xlu0 %v470, 120
        %v557 = vpop.permute.xlu0 %556
        %558 = vrot.lane.b32.xlu0 %v470, 88
        %v559 = vpop.permute.xlu0 %558
        %v560 = vsel %vm481, %v557, 0
        %v562 = vsel %vm481, %v559, 0
        %564 = vmatprep.subr.mxu0 0.0
        %565 = vmatpush1.xpose.msra.mxu0 0.0
        %566 = vmatprep.subr.mxu0 0.0
        %567 = vmatpush1.xpose.msra.mxu0 0.0
        %568 = vmatprep.subr.mxu0 0.0
        %569 = vmatpush1.xpose.msra.mxu0 0.0
        %570 = vmatprep.subr.mxu0 0.0
        %571 = vmatpush1.xpose.msra.mxu0 0.0
        %572 = vmatprep.subr.mxu0 0.0
        %573 = vmatpush1.xpose.msra.mxu0 0.0
        %574 = vmatprep.subr.mxu0 0.0
        %575 = vmatpush1.xpose.msra.mxu0 0.0
        %576 = vmatprep.subr.mxu0 0.0
        %577 = vmatpush1.xpose.msra.mxu0 0.0
        %578 = vmatprep.subr.mxu0 0.0
        %579 = vmatpush1.xpose.msra.mxu0 0.0
        %580 = vmatprep.subr.mxu0 0.0
        %581 = vmatpush1.xpose.msra.mxu0 0.0
        %582 = vmatprep.subr.mxu0 0.0
        %583 = vmatpush1.xpose.msra.mxu0 0.0
        %584 = vmatprep.subr.mxu0 0.0
        %585 = vmatpush1.xpose.msra.mxu0 0.0
        %586 = vmatprep.subr.mxu0 0.0
        %587 = vmatpush1.xpose.msra.mxu0 0.0
        %588 = vmatprep.subr.mxu0 0.0
        %589 = vmatpush1.xpose.msra.mxu0 0.0
        %590 = vmatprep.subr.mxu0 0.0
        %591 = vmatpush1.xpose.msra.mxu0 0.0
        %592 = vmatprep.subr.mxu0 0.0
        %593 = vmatpush1.xpose.msra.mxu0 0.0
        %594 = vmatprep.subr.mxu0 0.0
        %595 = vmatpush1.xpose.msra.mxu0 %v562
        %596 = vmatprep.subr.mxu0 0.0
        %597 = vmatpush2.xpose.msra.mxu0 0.0
        %598 = vmatprep.subr.mxu0 0.0
        %599 = vmatpush2.xpose.msra.mxu0 0.0
        %600 = vmatprep.subr.mxu0 0.0
        %601 = vmatpush2.xpose.msra.mxu0 0.0
        %602 = vmatprep.subr.mxu0 0.0
        %603 = vmatpush2.xpose.msra.mxu0 0.0
        %604 = vmatprep.subr.mxu0 0.0
        %605 = vmatpush2.xpose.msra.mxu0 0.0
        %606 = vmatprep.subr.mxu0 0.0
        %607 = vmatpush2.xpose.msra.mxu0 0.0
        %608 = vmatprep.subr.mxu0 0.0
        %609 = vmatpush2.xpose.msra.mxu0 0.0
        %610 = vmatprep.subr.mxu0 0.0
        %611 = vmatpush2.xpose.msra.mxu0 0.0
        %612 = vmatprep.subr.mxu0 0.0
        %613 = vmatpush2.xpose.msra.mxu0 0.0
        %614 = vmatprep.subr.mxu0 0.0
        %615 = vmatpush2.xpose.msra.mxu0 0.0
        %616 = vmatprep.subr.mxu0 0.0
        %617 = vmatpush2.xpose.msra.mxu0 0.0
        %618 = vmatprep.subr.mxu0 0.0
        %619 = vmatpush2.xpose.msra.mxu0 0.0
        %620 = vmatprep.subr.mxu0 0.0
        %621 = vmatpush2.xpose.msra.mxu0 0.0
        %622 = vmatprep.subr.mxu0 0.0
        %623 = vmatpush2.xpose.msra.mxu0 0.0
        %624 = vmatprep.subr.mxu0 0.0
        %625 = vmatpush2.xpose.msra.mxu0 0.0
        %626 = vmatprep.subr.mxu0 0.0
        %627 = vmatpush2.xpose.msra.mxu0 0.0
        %628 = vmatprep.mubr.f32.mxu0 0.0
        %629 = vmatmul.mubr.f32.gmra.mxu0 %v560
        %v630 = vpop.f32.mrf.mxu0
        %v631 = vadd.f32 0.0, %v630
        %v632 = vpop.f32.mrf.mxu0
        %633 = vdwg.mxu0
        %634 = vrot.lane.b32.xlu0 %v470, 112
        %v635 = vpop.permute.xlu0 %634
        %636 = vrot.lane.b32.xlu0 %v470, 80
        %v637 = vpop.permute.xlu0 %636
        %v638 = vsel %vm481, %v635, 0
        %v640 = vsel %vm481, %v637, 0
        %642 = vmatprep.subr.mxu0 0.0
        %643 = vmatpush1.xpose.msra.mxu0 0.0
        %644 = vmatprep.subr.mxu0 0.0
        %645 = vmatpush1.xpose.msra.mxu0 0.0
        %646 = vmatprep.subr.mxu0 0.0
        %647 = vmatpush1.xpose.msra.mxu0 0.0
        %648 = vmatprep.subr.mxu0 0.0
        %649 = vmatpush1.xpose.msra.mxu0 0.0
        %650 = vmatprep.subr.mxu0 0.0
        %651 = vmatpush1.xpose.msra.mxu0 0.0
        %652 = vmatprep.subr.mxu0 0.0
        %653 = vmatpush1.xpose.msra.mxu0 0.0
        %654 = vmatprep.subr.mxu0 0.0
        %655 = vmatpush1.xpose.msra.mxu0 0.0
        %656 = vmatprep.subr.mxu0 0.0
        %657 = vmatpush1.xpose.msra.mxu0 0.0
        %658 = vmatprep.subr.mxu0 0.0
        %659 = vmatpush1.xpose.msra.mxu0 0.0
        %660 = vmatprep.subr.mxu0 0.0
        %661 = vmatpush1.xpose.msra.mxu0 0.0
        %662 = vmatprep.subr.mxu0 0.0
        %663 = vmatpush1.xpose.msra.mxu0 0.0
        %664 = vmatprep.subr.mxu0 0.0
        %665 = vmatpush1.xpose.msra.mxu0 0.0
        %666 = vmatprep.subr.mxu0 0.0
        %667 = vmatpush1.xpose.msra.mxu0 0.0
        %668 = vmatprep.subr.mxu0 0.0
        %669 = vmatpush1.xpose.msra.mxu0 0.0
        %670 = vmatprep.subr.mxu0 0.0
        %671 = vmatpush1.xpose.msra.mxu0 0.0
        %672 = vmatprep.subr.mxu0 0.0
        %673 = vmatpush1.xpose.msra.mxu0 %v640
        %674 = vmatprep.subr.mxu0 0.0
        %675 = vmatpush2.xpose.msra.mxu0 0.0
        %676 = vmatprep.subr.mxu0 0.0
        %677 = vmatpush2.xpose.msra.mxu0 0.0
        %678 = vmatprep.subr.mxu0 0.0
        %679 = vmatpush2.xpose.msra.mxu0 0.0
        %680 = vmatprep.subr.mxu0 0.0
        %681 = vmatpush2.xpose.msra.mxu0 0.0
        %682 = vmatprep.subr.mxu0 0.0
        %683 = vmatpush2.xpose.msra.mxu0 0.0
        %684 = vmatprep.subr.mxu0 0.0
        %685 = vmatpush2.xpose.msra.mxu0 0.0
        %686 = vmatprep.subr.mxu0 0.0
        %687 = vmatpush2.xpose.msra.mxu0 0.0
        %688 = vmatprep.subr.mxu0 0.0
        %689 = vmatpush2.xpose.msra.mxu0 0.0
        %690 = vmatprep.subr.mxu0 0.0
        %691 = vmatpush2.xpose.msra.mxu0 0.0
        %692 = vmatprep.subr.mxu0 0.0
        %693 = vmatpush2.xpose.msra.mxu0 0.0
        %694 = vmatprep.subr.mxu0 0.0
        %695 = vmatpush2.xpose.msra.mxu0 0.0
        %696 = vmatprep.subr.mxu0 0.0
        %697 = vmatpush2.xpose.msra.mxu0 0.0
        %698 = vmatprep.subr.mxu0 0.0
        %699 = vmatpush2.xpose.msra.mxu0 0.0
        %700 = vmatprep.subr.mxu0 0.0
        %701 = vmatpush2.xpose.msra.mxu0 0.0
        %702 = vmatprep.subr.mxu0 0.0
        %703 = vmatpush2.xpose.msra.mxu0 0.0
        %704 = vmatprep.subr.mxu0 0.0
        %705 = vmatpush2.xpose.msra.mxu0 0.0
        %706 = vmatprep.mubr.f32.mxu0 0.0
        %707 = vmatmul.mubr.f32.gmra.mxu0 %v638
        %v708 = vpop.f32.mrf.mxu0
        %v709 = vadd.f32 0.0, %v708
        %v710 = vpop.f32.mrf.mxu0
        %711 = vdwg.mxu0
        %712 = vrot.lane.b32.xlu0 %v470, 104
        %v713 = vpop.permute.xlu0 %712
        %714 = vrot.lane.b32.xlu0 %v470, 72
        %v715 = vpop.permute.xlu0 %714
        %v716 = vsel %vm481, %v713, 0
        %v718 = vsel %vm481, %v715, 0
        %720 = vmatprep.subr.mxu0 0.0
        %721 = vmatpush1.xpose.msra.mxu0 0.0
        %722 = vmatprep.subr.mxu0 0.0
        %723 = vmatpush1.xpose.msra.mxu0 0.0
        %724 = vmatprep.subr.mxu0 0.0
        %725 = vmatpush1.xpose.msra.mxu0 0.0
        %726 = vmatprep.subr.mxu0 0.0
        %727 = vmatpush1.xpose.msra.mxu0 0.0
        %728 = vmatprep.subr.mxu0 0.0
        %729 = vmatpush1.xpose.msra.mxu0 0.0
        %730 = vmatprep.subr.mxu0 0.0
        %731 = vmatpush1.xpose.msra.mxu0 0.0
        %732 = vmatprep.subr.mxu0 0.0
        %733 = vmatpush1.xpose.msra.mxu0 0.0
        %734 = vmatprep.subr.mxu0 0.0
        %735 = vmatpush1.xpose.msra.mxu0 0.0
        %736 = vmatprep.subr.mxu0 0.0
        %737 = vmatpush1.xpose.msra.mxu0 0.0
        %738 = vmatprep.subr.mxu0 0.0
        %739 = vmatpush1.xpose.msra.mxu0 0.0
        %740 = vmatprep.subr.mxu0 0.0
        %741 = vmatpush1.xpose.msra.mxu0 0.0
        %742 = vmatprep.subr.mxu0 0.0
        %743 = vmatpush1.xpose.msra.mxu0 0.0
        %744 = vmatprep.subr.mxu0 0.0
        %745 = vmatpush1.xpose.msra.mxu0 0.0
        %746 = vmatprep.subr.mxu0 0.0
        %747 = vmatpush1.xpose.msra.mxu0 0.0
        %748 = vmatprep.subr.mxu0 0.0
        %749 = vmatpush1.xpose.msra.mxu0 0.0
        %750 = vmatprep.subr.mxu0 0.0
        %751 = vmatpush1.xpose.msra.mxu0 %v718
        %752 = vmatprep.subr.mxu0 0.0
        %753 = vmatpush2.xpose.msra.mxu0 0.0
        %754 = vmatprep.subr.mxu0 0.0
        %755 = vmatpush2.xpose.msra.mxu0 0.0
        %756 = vmatprep.subr.mxu0 0.0
        %757 = vmatpush2.xpose.msra.mxu0 0.0
        %758 = vmatprep.subr.mxu0 0.0
        %759 = vmatpush2.xpose.msra.mxu0 0.0
        %760 = vmatprep.subr.mxu0 0.0
        %761 = vmatpush2.xpose.msra.mxu0 0.0
        %762 = vmatprep.subr.mxu0 0.0
        %763 = vmatpush2.xpose.msra.mxu0 0.0
        %764 = vmatprep.subr.mxu0 0.0
        %765 = vmatpush2.xpose.msra.mxu0 0.0
        %766 = vmatprep.subr.mxu0 0.0
        %767 = vmatpush2.xpose.msra.mxu0 0.0
        %768 = vmatprep.subr.mxu0 0.0
        %769 = vmatpush2.xpose.msra.mxu0 0.0
        %770 = vmatprep.subr.mxu0 0.0
        %771 = vmatpush2.xpose.msra.mxu0 0.0
        %772 = vmatprep.subr.mxu0 0.0
        %773 = vmatpush2.xpose.msra.mxu0 0.0
        %774 = vmatprep.subr.mxu0 0.0
        %775 = vmatpush2.xpose.msra.mxu0 0.0
        %776 = vmatprep.subr.mxu0 0.0
        %777 = vmatpush2.xpose.msra.mxu0 0.0
        %778 = vmatprep.subr.mxu0 0.0
        %779 = vmatpush2.xpose.msra.mxu0 0.0
        %780 = vmatprep.subr.mxu0 0.0
        %781 = vmatpush2.xpose.msra.mxu0 0.0
        %782 = vmatprep.subr.mxu0 0.0
        %783 = vmatpush2.xpose.msra.mxu0 0.0
        %784 = vmatprep.mubr.f32.mxu0 0.0
        %785 = vmatmul.mubr.f32.gmra.mxu0 %v716
        %v786 = vpop.f32.mrf.mxu0
        %v787 = vadd.f32 0.0, %v786
        %v788 = vpop.f32.mrf.mxu0
        %789 = vdwg.mxu0
        %v791 = vlaneseq
        %v792 = vshrl.u32 %v791, 7
        %v793 = vsub.s32 0, %v792
        %v794 = vrot.slane %v263, %v793
        %v796 = vadd.f32 %v553, %v794
        %v797 = vadd.f32 %v631, %v794
        %v798 = vadd.f32 %v709, %v794
        %v799 = vadd.f32 %v787, %v794
        %v800 = vsel %vm481, %v796, -inf
        %801 = vmax.xlane.f32.xlu0 %v800
        %v802 = vpop.xlane.xlu0 %801
        %v803 = vsel %vm481, %v797, -inf
        %804 = vmax.xlane.f32.xlu0 %v803
        %v805 = vpop.xlane.xlu0 %804
        %v806 = vsel %vm481, %v798, -inf
        %807 = vmax.xlane.f32.xlu0 %v806
        %v808 = vpop.xlane.xlu0 %807
        %v809 = vsel %vm481, %v799, -inf
        %810 = vmax.xlane.f32.xlu0 %v809
        %v811 = vpop.xlane.xlu0 %810
        %v812 = vsub.f32 %v796, %v802
        %v813 = vsub.f32 %v797, %v805
        %v814 = vsub.f32 %v798, %v808
        %v815 = vsub.f32 %v799, %v811
        %v816 = vmul.f32 %v812, 1.442695
        %v817 = vpow.pop %v816
        %v818 = vmul.f32 %v813, 1.442695
        %v819 = vpow.pop %v818
        %v820 = vmul.f32 %v814, 1.442695
        %v821 = vpow.pop %v820
        %v822 = vmul.f32 %v815, 1.442695
        %v823 = vpow.pop %v822
        %v824 = vsel %vm481, %v817, 0.0
        %825 = vadd.xlane.f32.xlu0 %v824
        %v826 = vpop.xlane.xlu0 %825
        %v827 = vsel %vm481, %v819, 0.0
        %828 = vadd.xlane.f32.xlu0 %v827
        %v829 = vpop.xlane.xlu0 %828
        %v830 = vsel %vm481, %v821, 0.0
        %831 = vadd.xlane.f32.xlu0 %v830
        %v832 = vpop.xlane.xlu0 %831
        %v833 = vsel %vm481, %v823, 0.0
        %834 = vadd.xlane.f32.xlu0 %v833
        %v835 = vpop.xlane.xlu0 %834
        %v836 = vrcp.pop %v826
        %v837 = vrcp.pop %v829
        %v838 = vrcp.pop %v832
        %v839 = vrcp.pop %v835
        %v840 = vmul.f32 %v817, %v836
        %v841 = vmul.f32 %v819, %v837
        %v842 = vmul.f32 %v821, %v838
        %v843 = vmul.f32 %v823, %v839
        %844 = vrot.lane.b32.xlu0 %v470, 64
        %v845 = vpop.permute.xlu0 %844
        %v848 = vsel %vm481, %v840, 0
        %850 = vmatprep.subr.mxu0 0.0
        %851 = vmatpush1.msra.mxu0 0.0
        %852 = vmatprep.subr.mxu0 0.0
        %853 = vmatpush1.msra.mxu0 0.0
        %854 = vmatprep.subr.mxu0 0.0
        %855 = vmatpush1.msra.mxu0 0.0
        %856 = vmatprep.subr.mxu0 0.0
        %857 = vmatpush1.msra.mxu0 0.0
        %858 = vmatprep.subr.mxu0 0.0
        %859 = vmatpush1.msra.mxu0 0.0
        %860 = vmatprep.subr.mxu0 0.0
        %861 = vmatpush1.msra.mxu0 0.0
        %862 = vmatprep.subr.mxu0 0.0
        %863 = vmatpush1.msra.mxu0 0.0
        %864 = vmatprep.subr.mxu0 0.0
        %865 = vmatpush1.msra.mxu0 0.0
        %866 = vmatprep.subr.mxu0 0.0
        %867 = vmatpush1.msra.mxu0 0.0
        %868 = vmatprep.subr.mxu0 0.0
        %869 = vmatpush1.msra.mxu0 0.0
        %870 = vmatprep.subr.mxu0 0.0
        %871 = vmatpush1.msra.mxu0 0.0
        %872 = vmatprep.subr.mxu0 0.0
        %873 = vmatpush1.msra.mxu0 0.0
        %874 = vmatprep.subr.mxu0 0.0
        %875 = vmatpush1.msra.mxu0 0.0
        %876 = vmatprep.subr.mxu0 0.0
        %877 = vmatpush1.msra.mxu0 0.0
        %878 = vmatprep.subr.mxu0 0.0
        %879 = vmatpush1.msra.mxu0 0.0
        %880 = vmatprep.subr.mxu0 0.0
        %881 = vmatpush1.msra.mxu0 %v845
        %882 = vmatprep.subr.mxu0 0.0
        %883 = vmatpush2.msra.mxu0 0.0
        %884 = vmatprep.subr.mxu0 0.0
        %885 = vmatpush2.msra.mxu0 0.0
        %886 = vmatprep.subr.mxu0 0.0
        %887 = vmatpush2.msra.mxu0 0.0
        %888 = vmatprep.subr.mxu0 0.0
        %889 = vmatpush2.msra.mxu0 0.0
        %890 = vmatprep.subr.mxu0 0.0
        %891 = vmatpush2.msra.mxu0 0.0
        %892 = vmatprep.subr.mxu0 0.0
        %893 = vmatpush2.msra.mxu0 0.0
        %894 = vmatprep.subr.mxu0 0.0
        %895 = vmatpush2.msra.mxu0 0.0
        %896 = vmatprep.subr.mxu0 0.0
        %897 = vmatpush2.msra.mxu0 0.0
        %898 = vmatprep.subr.mxu0 0.0
        %899 = vmatpush2.msra.mxu0 0.0
        %900 = vmatprep.subr.mxu0 0.0
        %901 = vmatpush2.msra.mxu0 0.0
        %902 = vmatprep.subr.mxu0 0.0
        %903 = vmatpush2.msra.mxu0 0.0
        %904 = vmatprep.subr.mxu0 0.0
        %905 = vmatpush2.msra.mxu0 0.0
        %906 = vmatprep.subr.mxu0 0.0
        %907 = vmatpush2.msra.mxu0 0.0
        %908 = vmatprep.subr.mxu0 0.0
        %909 = vmatpush2.msra.mxu0 0.0
        %910 = vmatprep.subr.mxu0 0.0
        %911 = vmatpush2.msra.mxu0 0.0
        %912 = vmatprep.subr.mxu0 0.0
        %913 = vmatpush2.msra.mxu0 0.0
        %914 = vmatprep.mubr.f32.mxu0 0.0
        %915 = vmatmul.mubr.f32.gmra.mxu0 %v848
        %v916 = vpop.f32.mrf.mxu0
        %v917 = vadd.f32 0.0, %v916
        %v918 = vpop.f32.mrf.mxu0
        %919 = vdwg.mxu0
        %920 = vrot.lane.b32.xlu0 %v470, 56
        %v921 = vpop.permute.xlu0 %920
        %v924 = vsel %vm481, %v841, 0
        %926 = vmatprep.subr.mxu0 0.0
        %927 = vmatpush1.msra.mxu0 0.0
        %928 = vmatprep.subr.mxu0 0.0
        %929 = vmatpush1.msra.mxu0 0.0
        %930 = vmatprep.subr.mxu0 0.0
        %931 = vmatpush1.msra.mxu0 0.0
        %932 = vmatprep.subr.mxu0 0.0
        %933 = vmatpush1.msra.mxu0 0.0
        %934 = vmatprep.subr.mxu0 0.0
        %935 = vmatpush1.msra.mxu0 0.0
        %936 = vmatprep.subr.mxu0 0.0
        %937 = vmatpush1.msra.mxu0 0.0
        %938 = vmatprep.subr.mxu0 0.0
        %939 = vmatpush1.msra.mxu0 0.0
        %940 = vmatprep.subr.mxu0 0.0
        %941 = vmatpush1.msra.mxu0 0.0
        %942 = vmatprep.subr.mxu0 0.0
        %943 = vmatpush1.msra.mxu0 0.0
        %944 = vmatprep.subr.mxu0 0.0
        %945 = vmatpush1.msra.mxu0 0.0
        %946 = vmatprep.subr.mxu0 0.0
        %947 = vmatpush1.msra.mxu0 0.0
        %948 = vmatprep.subr.mxu0 0.0
        %949 = vmatpush1.msra.mxu0 0.0
        %950 = vmatprep.subr.mxu0 0.0
        %951 = vmatpush1.msra.mxu0 0.0
        %952 = vmatprep.subr.mxu0 0.0
        %953 = vmatpush1.msra.mxu0 0.0
        %954 = vmatprep.subr.mxu0 0.0
        %955 = vmatpush1.msra.mxu0 0.0
        %956 = vmatprep.subr.mxu0 0.0
        %957 = vmatpush1.msra.mxu0 %v921
        %958 = vmatprep.subr.mxu0 0.0
        %959 = vmatpush2.msra.mxu0 0.0
        %960 = vmatprep.subr.mxu0 0.0
        %961 = vmatpush2.msra.mxu0 0.0
        %962 = vmatprep.subr.mxu0 0.0
        %963 = vmatpush2.msra.mxu0 0.0
        %964 = vmatprep.subr.mxu0 0.0
        %965 = vmatpush2.msra.mxu0 0.0
        %966 = vmatprep.subr.mxu0 0.0
        %967 = vmatpush2.msra.mxu0 0.0
        %968 = vmatprep.subr.mxu0 0.0
        %969 = vmatpush2.msra.mxu0 0.0
        %970 = vmatprep.subr.mxu0 0.0
        %971 = vmatpush2.msra.mxu0 0.0
        %972 = vmatprep.subr.mxu0 0.0
        %973 = vmatpush2.msra.mxu0 0.0
        %974 = vmatprep.subr.mxu0 0.0
        %975 = vmatpush2.msra.mxu0 0.0
        %976 = vmatprep.subr.mxu0 0.0
        %977 = vmatpush2.msra.mxu0 0.0
        %978 = vmatprep.subr.mxu0 0.0
        %979 = vmatpush2.msra.mxu0 0.0
        %980 = vmatprep.subr.mxu0 0.0
        %981 = vmatpush2.msra.mxu0 0.0
        %982 = vmatprep.subr.mxu0 0.0
        %983 = vmatpush2.msra.mxu0 0.0
        %984 = vmatprep.subr.mxu0 0.0
        %985 = vmatpush2.msra.mxu0 0.0
        %986 = vmatprep.subr.mxu0 0.0
        %987 = vmatpush2.msra.mxu0 0.0
        %988 = vmatprep.subr.mxu0 0.0
        %989 = vmatpush2.msra.mxu0 0.0
        %990 = vmatprep.mubr.f32.mxu0 0.0
        %991 = vmatmul.mubr.f32.gmra.mxu0 %v924
        %v992 = vpop.f32.mrf.mxu0
        %v993 = vadd.f32 0.0, %v992
        %v994 = vpop.f32.mrf.mxu0
        %995 = vdwg.mxu0
        %996 = vrot.lane.b32.xlu0 %v470, 48
        %v997 = vpop.permute.xlu0 %996
        %v1000 = vsel %vm481, %v842, 0
        %1002 = vmatprep.subr.mxu0 0.0
        %1003 = vmatpush1.msra.mxu0 0.0
        %1004 = vmatprep.subr.mxu0 0.0
        %1005 = vmatpush1.msra.mxu0 0.0
        %1006 = vmatprep.subr.mxu0 0.0
        %1007 = vmatpush1.msra.mxu0 0.0
        %1008 = vmatprep.subr.mxu0 0.0
        %1009 = vmatpush1.msra.mxu0 0.0
        %1010 = vmatprep.subr.mxu0 0.0
        %1011 = vmatpush1.msra.mxu0 0.0
        %1012 = vmatprep.subr.mxu0 0.0
        %1013 = vmatpush1.msra.mxu0 0.0
        %1014 = vmatprep.subr.mxu0 0.0
        %1015 = vmatpush1.msra.mxu0 0.0
        %1016 = vmatprep.subr.mxu0 0.0
        %1017 = vmatpush1.msra.mxu0 0.0
        %1018 = vmatprep.subr.mxu0 0.0
        %1019 = vmatpush1.msra.mxu0 0.0
        %1020 = vmatprep.subr.mxu0 0.0
        %1021 = vmatpush1.msra.mxu0 0.0
        %1022 = vmatprep.subr.mxu0 0.0
        %1023 = vmatpush1.msra.mxu0 0.0
        %1024 = vmatprep.subr.mxu0 0.0
        %1025 = vmatpush1.msra.mxu0 0.0
        %1026 = vmatprep.subr.mxu0 0.0
        %1027 = vmatpush1.msra.mxu0 0.0
        %1028 = vmatprep.subr.mxu0 0.0
        %1029 = vmatpush1.msra.mxu0 0.0
        %1030 = vmatprep.subr.mxu0 0.0
        %1031 = vmatpush1.msra.mxu0 0.0
        %1032 = vmatprep.subr.mxu0 0.0
        %1033 = vmatpush1.msra.mxu0 %v997
        %1034 = vmatprep.subr.mxu0 0.0
        %1035 = vmatpush2.msra.mxu0 0.0
        %1036 = vmatprep.subr.mxu0 0.0
        %1037 = vmatpush2.msra.mxu0 0.0
        %1038 = vmatprep.subr.mxu0 0.0
        %1039 = vmatpush2.msra.mxu0 0.0
        %1040 = vmatprep.subr.mxu0 0.0
        %1041 = vmatpush2.msra.mxu0 0.0
        %1042 = vmatprep.subr.mxu0 0.0
        %1043 = vmatpush2.msra.mxu0 0.0
        %1044 = vmatprep.subr.mxu0 0.0
        %1045 = vmatpush2.msra.mxu0 0.0
        %1046 = vmatprep.subr.mxu0 0.0
        %1047 = vmatpush2.msra.mxu0 0.0
        %1048 = vmatprep.subr.mxu0 0.0
        %1049 = vmatpush2.msra.mxu0 0.0
        %1050 = vmatprep.subr.mxu0 0.0
        %1051 = vmatpush2.msra.mxu0 0.0
        %1052 = vmatprep.subr.mxu0 0.0
        %1053 = vmatpush2.msra.mxu0 0.0
        %1054 = vmatprep.subr.mxu0 0.0
        %1055 = vmatpush2.msra.mxu0 0.0
        %1056 = vmatprep.subr.mxu0 0.0
        %1057 = vmatpush2.msra.mxu0 0.0
        %1058 = vmatprep.subr.mxu0 0.0
        %1059 = vmatpush2.msra.mxu0 0.0
        %1060 = vmatprep.subr.mxu0 0.0
        %1061 = vmatpush2.msra.mxu0 0.0
        %1062 = vmatprep.subr.mxu0 0.0
        %1063 = vmatpush2.msra.mxu0 0.0
        %1064 = vmatprep.subr.mxu0 0.0
        %1065 = vmatpush2.msra.mxu0 0.0
        %1066 = vmatprep.mubr.f32.mxu0 0.0
        %1067 = vmatmul.mubr.f32.gmra.mxu0 %v1000
        %v1068 = vpop.f32.mrf.mxu0
        %v1069 = vadd.f32 0.0, %v1068
        %v1070 = vpop.f32.mrf.mxu0
        %1071 = vdwg.mxu0
        %1072 = vrot.lane.b32.xlu0 %v470, 40
        %v1073 = vpop.permute.xlu0 %1072
        %v1076 = vsel %vm481, %v843, 0
        %1078 = vmatprep.subr.mxu0 0.0
        %1079 = vmatpush1.msra.mxu0 0.0
        %1080 = vmatprep.subr.mxu0 0.0
        %1081 = vmatpush1.msra.mxu0 0.0
        %1082 = vmatprep.subr.mxu0 0.0
        %1083 = vmatpush1.msra.mxu0 0.0
        %1084 = vmatprep.subr.mxu0 0.0
        %1085 = vmatpush1.msra.mxu0 0.0
        %1086 = vmatprep.subr.mxu0 0.0
        %1087 = vmatpush1.msra.mxu0 0.0
        %1088 = vmatprep.subr.mxu0 0.0
        %1089 = vmatpush1.msra.mxu0 0.0
        %1090 = vmatprep.subr.mxu0 0.0
        %1091 = vmatpush1.msra.mxu0 0.0
        %1092 = vmatprep.subr.mxu0 0.0
        %1093 = vmatpush1.msra.mxu0 0.0
        %1094 = vmatprep.subr.mxu0 0.0
        %1095 = vmatpush1.msra.mxu0 0.0
        %1096 = vmatprep.subr.mxu0 0.0
        %1097 = vmatpush1.msra.mxu0 0.0
        %1098 = vmatprep.subr.mxu0 0.0
        %1099 = vmatpush1.msra.mxu0 0.0
        %1100 = vmatprep.subr.mxu0 0.0
        %1101 = vmatpush1.msra.mxu0 0.0
        %1102 = vmatprep.subr.mxu0 0.0
        %1103 = vmatpush1.msra.mxu0 0.0
        %1104 = vmatprep.subr.mxu0 0.0
        %1105 = vmatpush1.msra.mxu0 0.0
        %1106 = vmatprep.subr.mxu0 0.0
        %1107 = vmatpush1.msra.mxu0 0.0
        %1108 = vmatprep.subr.mxu0 0.0
        %1109 = vmatpush1.msra.mxu0 %v1073
        %1110 = vmatprep.subr.mxu0 0.0
        %1111 = vmatpush2.msra.mxu0 0.0
        %1112 = vmatprep.subr.mxu0 0.0
        %1113 = vmatpush2.msra.mxu0 0.0
        %1114 = vmatprep.subr.mxu0 0.0
        %1115 = vmatpush2.msra.mxu0 0.0
        %1116 = vmatprep.subr.mxu0 0.0
        %1117 = vmatpush2.msra.mxu0 0.0
        %1118 = vmatprep.subr.mxu0 0.0
        %1119 = vmatpush2.msra.mxu0 0.0
        %1120 = vmatprep.subr.mxu0 0.0
        %1121 = vmatpush2.msra.mxu0 0.0
        %1122 = vmatprep.subr.mxu0 0.0
        %1123 = vmatpush2.msra.mxu0 0.0
        %1124 = vmatprep.subr.mxu0 0.0
        %1125 = vmatpush2.msra.mxu0 0.0
        %1126 = vmatprep.subr.mxu0 0.0
        %1127 = vmatpush2.msra.mxu0 0.0
        %1128 = vmatprep.subr.mxu0 0.0
        %1129 = vmatpush2.msra.mxu0 0.0
        %1130 = vmatprep.subr.mxu0 0.0
        %1131 = vmatpush2.msra.mxu0 0.0
        %1132 = vmatprep.subr.mxu0 0.0
        %1133 = vmatpush2.msra.mxu0 0.0
        %1134 = vmatprep.subr.mxu0 0.0
        %1135 = vmatpush2.msra.mxu0 0.0
        %1136 = vmatprep.subr.mxu0 0.0
        %1137 = vmatpush2.msra.mxu0 0.0
        %1138 = vmatprep.subr.mxu0 0.0
        %1139 = vmatpush2.msra.mxu0 0.0
        %1140 = vmatprep.subr.mxu0 0.0
        %1141 = vmatpush2.msra.mxu0 0.0
        %1142 = vmatprep.mubr.f32.mxu0 0.0
        %1143 = vmatmul.mubr.f32.gmra.mxu0 %v1076
        %v1144 = vpop.f32.mrf.mxu0
        %v1145 = vadd.f32 0.0, %v1144
        %v1146 = vpop.f32.mrf.mxu0
        %1147 = vdwg.mxu0
        %1149 = vrot.lane.b32.xlu0 %v993, 8
        %v1150 = vpop.permute.xlu0 %1149
        %1153 = vrot.lane.b32.xlu0 %v1069, 16
        %v1154 = vpop.permute.xlu0 %1153
        %1157 = vrot.lane.b32.xlu0 %v1145, 24
        %v1158 = vpop.permute.xlu0 %1157
        %v1160 = vsel %vm481, %v917, %v1150
        %v1161 = vsel %vm280, %v1160, %v1154
        %vm1162 = vcmask 195584
        %v1163 = vsel %vm1162, %v1161, %v1158
        %v1164 = vlaneseq
        %v1165 = vshrl.u32 %v1164, 7
        %v1166 = vsub.s32 0, %v1165
        %v1167 = vrot.slane %v477, %v1166
        %v1169 = vsel %vm358, %v1163, 0
        %1171 = vmatprep.subr.mxu0 0.0
        %1172 = vmatpush1.msra.mxu0 0.0
        %1173 = vmatprep.subr.mxu0 0.0
        %1174 = vmatpush1.msra.mxu0 0.0
        %1175 = vmatprep.subr.mxu0 0.0
        %1176 = vmatpush1.msra.mxu0 0.0
        %1177 = vmatprep.subr.mxu0 0.0
        %1178 = vmatpush1.msra.mxu0 0.0
        %1179 = vmatprep.subr.mxu0 0.0
        %1180 = vmatpush1.msra.mxu0 0.0
        %1181 = vmatprep.subr.mxu0 0.0
        %1182 = vmatpush1.msra.mxu0 0.0
        %1183 = vmatprep.subr.mxu0 0.0
        %1184 = vmatpush1.msra.mxu0 0.0
        %1185 = vmatprep.subr.mxu0 0.0
        %1186 = vmatpush1.msra.mxu0 0.0
        %1187 = vmatprep.subr.mxu0 0.0
        %1188 = vmatpush1.msra.mxu0 0.0
        %1189 = vmatprep.subr.mxu0 0.0
        %1190 = vmatpush1.msra.mxu0 0.0
        %1191 = vmatprep.subr.mxu0 0.0
        %1192 = vmatpush1.msra.mxu0 0.0
        %1193 = vmatprep.subr.mxu0 0.0
        %1194 = vmatpush1.msra.mxu0 0.0
        %1195 = vmatprep.subr.mxu0 0.0
        %1196 = vmatpush1.msra.mxu0 %v476
        %1197 = vmatprep.subr.mxu0 0.0
        %1198 = vmatpush1.msra.mxu0 %v475
        %1199 = vmatprep.subr.mxu0 0.0
        %1200 = vmatpush1.msra.mxu0 %v474
        %1201 = vmatprep.subr.mxu0 0.0
        %1202 = vmatpush1.msra.mxu0 %v473
        %1203 = vmatprep.subr.mxu0 0.0
        %1204 = vmatpush2.msra.mxu0 0.0
        %1205 = vmatprep.subr.mxu0 0.0
        %1206 = vmatpush2.msra.mxu0 0.0
        %1207 = vmatprep.subr.mxu0 0.0
        %1208 = vmatpush2.msra.mxu0 0.0
        %1209 = vmatprep.subr.mxu0 0.0
        %1210 = vmatpush2.msra.mxu0 0.0
        %1211 = vmatprep.subr.mxu0 0.0
        %1212 = vmatpush2.msra.mxu0 0.0
        %1213 = vmatprep.subr.mxu0 0.0
        %1214 = vmatpush2.msra.mxu0 0.0
        %1215 = vmatprep.subr.mxu0 0.0
        %1216 = vmatpush2.msra.mxu0 0.0
        %1217 = vmatprep.subr.mxu0 0.0
        %1218 = vmatpush2.msra.mxu0 0.0
        %1219 = vmatprep.subr.mxu0 0.0
        %1220 = vmatpush2.msra.mxu0 0.0
        %1221 = vmatprep.subr.mxu0 0.0
        %1222 = vmatpush2.msra.mxu0 0.0
        %1223 = vmatprep.subr.mxu0 0.0
        %1224 = vmatpush2.msra.mxu0 0.0
        %1225 = vmatprep.subr.mxu0 0.0
        %1226 = vmatpush2.msra.mxu0 0.0
        %1227 = vmatprep.subr.mxu0 0.0
        %1228 = vmatpush2.msra.mxu0 0.0
        %1229 = vmatprep.subr.mxu0 0.0
        %1230 = vmatpush2.msra.mxu0 0.0
        %1231 = vmatprep.subr.mxu0 0.0
        %1232 = vmatpush2.msra.mxu0 0.0
        %1233 = vmatprep.subr.mxu0 0.0
        %1234 = vmatpush2.msra.mxu0 0.0
        %1235 = vmatprep.mubr.f32.mxu0 0.0
        %1236 = vmatmul.mubr.f32.gmra.mxu0 %v1169
        %v1237 = vpop.f32.mrf.mxu0
        %v1238 = vadd.f32 %v1167, %v1237
        %v1239 = vpop.f32.mrf.mxu0
        %1240 = vdwg.mxu0
        %v1241 = vadd.f32 %v355, %v1238
        %v1242 = vld [vmem:[%s4 + $0x118] sm:$0x1]
        %v1243 = vld [vmem:[%s4 + $0x120] sm:$0x1]
        %v1244 = vsel %vm358, %v1241, 0.0
        %1245 = vadd.xlane.f32.xlu0 %v1244
        %v1246 = vpop.xlane.xlu0 %1245
        %v1247 = vmul.f32 %v1246, %v362
        %v1248 = vsub.f32 %v1241, %v1247
        %v1249 = vmul.f32 %v1248, %v1248
        %v1250 = vsel %vm358, %v1249, 0.0
        %1251 = vadd.xlane.f32.xlu0 %v1250
        %v1252 = vpop.xlane.xlu0 %1251
        %v1253 = vmul.f32 %v1252, %v369
        %v1254 = vrsqrt.pop %v1253
        %v1255 = vmul.f32 %v1253, %v1254
        %vm1256 = vcmp.eq.f32.partialorder %v1253, inf
        %v1257 = vsel %vm1256, %v1253, %v1255
        %vm1258 = vcmp.eq.f32.partialorder %v1253, 0.0
        %v1259 = vand.u32 %v1253, 2147483648
        %v1260 = vsel %vm1258, %v1259, %v1257
        %v1261 = vlaneseq
        %v1262 = vshrl.u32 %v1261, 7
        %v1263 = vsub.s32 0, %v1262
        %v1264 = vrot.slane %v1242, %v1263
        %v1265 = vmul.f32 %v1264, %v1248
        %v1266 = vadd.f32 %v1260, 1e-06
        %v1267 = vrcp.pop %v1266
        %v1268 = vmul.f32 %v1265, %v1267
        %v1269 = vlaneseq
        %v1270 = vshrl.u32 %v1269, 7
        %v1271 = vsub.s32 0, %v1270
        %v1272 = vrot.slane %v1243, %v1271
        %v1273 = vadd.f32 %v1268, %v1272
        %v1274 = vld [vmem:[%s4 + $0x98] sm:$0xff]
        %v1275 = vld [vmem:[%s4 + $0xa0] sm:$0xff]
        %v1276 = vld [vmem:[%s4 + $0xa8] sm:$0xff]
        %v1277 = vld [vmem:[%s4 + $0xb0] sm:$0xff]
        %v1278 = vld [vmem:[%s4 + $0xb8] sm:$0x1]
        %v1279 = vlaneseq
        %v1280 = vshrl.u32 %v1279, 7
        %v1281 = vsub.s32 0, %v1280
        %v1282 = vrot.slane %v1278, %v1281
        %v1284 = vsel %vm358, %v1273, 0
        %1286 = vmatprep.subr.mxu0 0.0
        %1287 = vmatpush1.msra.mxu0 0.0
        %1288 = vmatprep.subr.mxu0 0.0
        %1289 = vmatpush1.msra.mxu0 0.0
        %1290 = vmatprep.subr.mxu0 0.0
        %1291 = vmatpush1.msra.mxu0 0.0
        %1292 = vmatprep.subr.mxu0 0.0
        %1293 = vmatpush1.msra.mxu0 0.0
        %1294 = vmatprep.subr.mxu0 0.0
        %1295 = vmatpush1.msra.mxu0 0.0
        %1296 = vmatprep.subr.mxu0 0.0
        %1297 = vmatpush1.msra.mxu0 0.0
        %1298 = vmatprep.subr.mxu0 0.0
        %1299 = vmatpush1.msra.mxu0 0.0
        %1300 = vmatprep.subr.mxu0 0.0
        %1301 = vmatpush1.msra.mxu0 0.0
        %1302 = vmatprep.subr.mxu0 0.0
        %1303 = vmatpush1.msra.mxu0 0.0
        %1304 = vmatprep.subr.mxu0 0.0
        %1305 = vmatpush1.msra.mxu0 0.0
        %1306 = vmatprep.subr.mxu0 0.0
        %1307 = vmatpush1.msra.mxu0 0.0
        %1308 = vmatprep.subr.mxu0 0.0
        %1309 = vmatpush1.msra.mxu0 0.0
        %1310 = vmatprep.subr.mxu0 0.0
        %1311 = vmatpush1.msra.mxu0 %v1277
        %1312 = vmatprep.subr.mxu0 0.0
        %1313 = vmatpush1.msra.mxu0 %v1276
        %1314 = vmatprep.subr.mxu0 0.0
        %1315 = vmatpush1.msra.mxu0 %v1275
        %1316 = vmatprep.subr.mxu0 0.0
        %1317 = vmatpush1.msra.mxu0 %v1274
        %1318 = vmatprep.subr.mxu0 0.0
        %1319 = vmatpush2.msra.mxu0 0.0
        %1320 = vmatprep.subr.mxu0 0.0
        %1321 = vmatpush2.msra.mxu0 0.0
        %1322 = vmatprep.subr.mxu0 0.0
        %1323 = vmatpush2.msra.mxu0 0.0
        %1324 = vmatprep.subr.mxu0 0.0
        %1325 = vmatpush2.msra.mxu0 0.0
        %1326 = vmatprep.subr.mxu0 0.0
        %1327 = vmatpush2.msra.mxu0 0.0
        %1328 = vmatprep.subr.mxu0 0.0
        %1329 = vmatpush2.msra.mxu0 0.0
        %1330 = vmatprep.subr.mxu0 0.0
        %1331 = vmatpush2.msra.mxu0 0.0
        %1332 = vmatprep.subr.mxu0 0.0
        %1333 = vmatpush2.msra.mxu0 0.0
        %1334 = vmatprep.subr.mxu0 0.0
        %1335 = vmatpush2.msra.mxu0 0.0
        %1336 = vmatprep.subr.mxu0 0.0
        %1337 = vmatpush2.msra.mxu0 0.0
        %1338 = vmatprep.subr.mxu0 0.0
        %1339 = vmatpush2.msra.mxu0 0.0
        %1340 = vmatprep.subr.mxu0 0.0
        %1341 = vmatpush2.msra.mxu0 0.0
        %1342 = vmatprep.subr.mxu0 0.0
        %1343 = vmatpush2.msra.mxu0 0.0
        %1344 = vmatprep.subr.mxu0 0.0
        %1345 = vmatpush2.msra.mxu0 0.0
        %1346 = vmatprep.subr.mxu0 0.0
        %1347 = vmatpush2.msra.mxu0 0.0
        %1348 = vmatprep.subr.mxu0 0.0
        %1349 = vmatpush2.msra.mxu0 0.0
        %1350 = vmatprep.mubr.f32.mxu0 0.0
        %1351 = vmatmul.mubr.f32.gmra.mxu0 %v1284
        %v1352 = vpop.f32.mrf.mxu0
        %v1353 = vadd.f32 %v1282, %v1352
        %v1354 = vpop.f32.mrf.mxu0
        %1355 = vdwg.mxu0
        %v1356 = vmax.f32 %v1353, 0.0
        %v1357 = vld [vmem:[%s4 + $0xc0] sm:$0xff]
        %v1358 = vld [vmem:[%s4 + $0xc8] sm:$0xff]
        %v1359 = vld [vmem:[%s4 + $0xd0] sm:$0xff]
        %v1360 = vld [vmem:[%s4 + $0xd8] sm:$0xff]
        %v1361 = vld [vmem:[%s4 + $0xe0] sm:$0xff]
        %v1362 = vld [vmem:[%s4 + $0xe8] sm:$0xff]
        %v1363 = vld [vmem:[%s4 + $0xf0] sm:$0xff]
        %v1364 = vld [vmem:[%s4 + $0xf8] sm:$0xff]
        %v1365 = vld [vmem:[%s4 + $0x100] sm:$0x1]
        %v1366 = vlaneseq
        %v1367 = vshrl.u32 %v1366, 7
        %v1368 = vsub.s32 0, %v1367
        %v1369 = vrot.slane %v1365, %v1368
        %vm1370 = vcmask 523264
        %v1372 = vsel %vm1370, %v1356, 0
        %1374 = vmatprep.subr.mxu0 0.0
        %1375 = vmatpush1.msra.mxu0 0.0
        %1376 = vmatprep.subr.mxu0 0.0
        %1377 = vmatpush1.msra.mxu0 0.0
        %1378 = vmatprep.subr.mxu0 0.0
        %1379 = vmatpush1.msra.mxu0 0.0
        %1380 = vmatprep.subr.mxu0 0.0
        %1381 = vmatpush1.msra.mxu0 0.0
        %1382 = vmatprep.subr.mxu0 0.0
        %1383 = vmatpush1.msra.mxu0 0.0
        %1384 = vmatprep.subr.mxu0 0.0
        %1385 = vmatpush1.msra.mxu0 0.0
        %1386 = vmatprep.subr.mxu0 0.0
        %1387 = vmatpush1.msra.mxu0 0.0
        %1388 = vmatprep.subr.mxu0 0.0
        %1389 = vmatpush1.msra.mxu0 0.0
        %1390 = vmatprep.subr.mxu0 0.0
        %1391 = vmatpush1.msra.mxu0 %v1364
        %1392 = vmatprep.subr.mxu0 0.0
        %1393 = vmatpush1.msra.mxu0 %v1363
        %1394 = vmatprep.subr.mxu0 0.0
        %1395 = vmatpush1.msra.mxu0 %v1362
        %1396 = vmatprep.subr.mxu0 0.0
        %1397 = vmatpush1.msra.mxu0 %v1361
        %1398 = vmatprep.subr.mxu0 0.0
        %1399 = vmatpush1.msra.mxu0 %v1360
        %1400 = vmatprep.subr.mxu0 0.0
        %1401 = vmatpush1.msra.mxu0 %v1359
        %1402 = vmatprep.subr.mxu0 0.0
        %1403 = vmatpush1.msra.mxu0 %v1358
        %1404 = vmatprep.subr.mxu0 0.0
        %1405 = vmatpush1.msra.mxu0 %v1357
        %1406 = vmatprep.subr.mxu0 0.0
        %1407 = vmatpush2.msra.mxu0 0.0
        %1408 = vmatprep.subr.mxu0 0.0
        %1409 = vmatpush2.msra.mxu0 0.0
        %1410 = vmatprep.subr.mxu0 0.0
        %1411 = vmatpush2.msra.mxu0 0.0
        %1412 = vmatprep.subr.mxu0 0.0
        %1413 = vmatpush2.msra.mxu0 0.0
        %1414 = vmatprep.subr.mxu0 0.0
        %1415 = vmatpush2.msra.mxu0 0.0
        %1416 = vmatprep.subr.mxu0 0.0
        %1417 = vmatpush2.msra.mxu0 0.0
        %1418 = vmatprep.subr.mxu0 0.0
        %1419 = vmatpush2.msra.mxu0 0.0
        %1420 = vmatprep.subr.mxu0 0.0
        %1421 = vmatpush2.msra.mxu0 0.0
        %1422 = vmatprep.subr.mxu0 0.0
        %1423 = vmatpush2.msra.mxu0 0.0
        %1424 = vmatprep.subr.mxu0 0.0
        %1425 = vmatpush2.msra.mxu0 0.0
        %1426 = vmatprep.subr.mxu0 0.0
        %1427 = vmatpush2.msra.mxu0 0.0
        %1428 = vmatprep.subr.mxu0 0.0
        %1429 = vmatpush2.msra.mxu0 0.0
        %1430 = vmatprep.subr.mxu0 0.0
        %1431 = vmatpush2.msra.mxu0 0.0
        %1432 = vmatprep.subr.mxu0 0.0
        %1433 = vmatpush2.msra.mxu0 0.0
        %1434 = vmatprep.subr.mxu0 0.0
        %1435 = vmatpush2.msra.mxu0 0.0
        %1436 = vmatprep.subr.mxu0 0.0
        %1437 = vmatpush2.msra.mxu0 0.0
        %1438 = vmatprep.mubr.f32.mxu0 0.0
        %1439 = vmatmul.mubr.f32.gmra.mxu0 %v1372
        %v1440 = vpop.f32.mrf.mxu0
        %v1441 = vadd.f32 %v1369, %v1440
        %v1442 = vpop.f32.mrf.mxu0
        %1443 = vdwg.mxu0
        %v1444 = vadd.f32 %v1241, %v1441
        %v1445 = vld [vmem:[%s4 + $0x1e8] sm:$0x1]
        %v1446 = vld [vmem:[%s4 + $0x1f0] sm:$0x1]
        %v1447 = vsel %vm358, %v1444, 0.0
        %1448 = vadd.xlane.f32.xlu0 %v1447
        %v1449 = vpop.xlane.xlu0 %1448
        %v1450 = vmul.f32 %v1449, %v362
        %v1451 = vsub.f32 %v1444, %v1450
        %v1452 = vmul.f32 %v1451, %v1451
        %v1453 = vsel %vm358, %v1452, 0.0
        %1454 = vadd.xlane.f32.xlu0 %v1453
        %v1455 = vpop.xlane.xlu0 %1454
        %v1456 = vmul.f32 %v1455, %v369
        %v1457 = vrsqrt.pop %v1456
        %v1458 = vmul.f32 %v1456, %v1457
        %vm1459 = vcmp.eq.f32.partialorder %v1456, inf
        %v1460 = vsel %vm1459, %v1456, %v1458
        %vm1461 = vcmp.eq.f32.partialorder %v1456, 0.0
        %v1462 = vand.u32 %v1456, 2147483648
        %v1463 = vsel %vm1461, %v1462, %v1460
        %v1464 = vlaneseq
        %v1465 = vshrl.u32 %v1464, 7
        %v1466 = vsub.s32 0, %v1465
        %v1467 = vrot.slane %v1445, %v1466
        %v1468 = vmul.f32 %v1467, %v1451
        %v1469 = vadd.f32 %v1463, 1e-06
        %v1470 = vrcp.pop %v1469
        %v1471 = vmul.f32 %v1468, %v1470
        %v1472 = vlaneseq
        %v1473 = vshrl.u32 %v1472, 7
        %v1474 = vsub.s32 0, %v1473
        %v1475 = vrot.slane %v1446, %v1474
        %v1476 = vadd.f32 %v1471, %v1475
        %v1477 = vld [vmem:[%s4 + $0x128] sm:$0xff]
        %v1478 = vld [vmem:[%s4 + $0x130] sm:$0xff]
        %v1479 = vld [vmem:[%s4 + $0x138] sm:$0xff]
        %v1480 = vld [vmem:[%s4 + $0x140] sm:$0xff]
        %v1481 = vld [vmem:[%s4 + $0x148] sm:$0x1]
        %v1482 = vlaneseq
        %v1483 = vshrl.u32 %v1482, 7
        %v1484 = vsub.s32 0, %v1483
        %v1485 = vrot.slane %v1481, %v1484
        %v1487 = vsel %vm358, %v1476, 0
        %1489 = vmatprep.subr.mxu0 0.0
        %1490 = vmatpush1.msra.mxu0 0.0
        %1491 = vmatprep.subr.mxu0 0.0
        %1492 = vmatpush1.msra.mxu0 0.0
        %1493 = vmatprep.subr.mxu0 0.0
        %1494 = vmatpush1.msra.mxu0 0.0
        %1495 = vmatprep.subr.mxu0 0.0
        %1496 = vmatpush1.msra.mxu0 0.0
        %1497 = vmatprep.subr.mxu0 0.0
        %1498 = vmatpush1.msra.mxu0 0.0
        %1499 = vmatprep.subr.mxu0 0.0
        %1500 = vmatpush1.msra.mxu0 0.0
        %1501 = vmatprep.subr.mxu0 0.0
        %1502 = vmatpush1.msra.mxu0 0.0
        %1503 = vmatprep.subr.mxu0 0.0
        %1504 = vmatpush1.msra.mxu0 0.0
        %1505 = vmatprep.subr.mxu0 0.0
        %1506 = vmatpush1.msra.mxu0 0.0
        %1507 = vmatprep.subr.mxu0 0.0
        %1508 = vmatpush1.msra.mxu0 0.0
        %1509 = vmatprep.subr.mxu0 0.0
        %1510 = vmatpush1.msra.mxu0 0.0
        %1511 = vmatprep.subr.mxu0 0.0
        %1512 = vmatpush1.msra.mxu0 0.0
        %1513 = vmatprep.subr.mxu0 0.0
        %1514 = vmatpush1.msra.mxu0 %v1480
        %1515 = vmatprep.subr.mxu0 0.0
        %1516 = vmatpush1.msra.mxu0 %v1479
        %1517 = vmatprep.subr.mxu0 0.0
        %1518 = vmatpush1.msra.mxu0 %v1478
        %1519 = vmatprep.subr.mxu0 0.0
        %1520 = vmatpush1.msra.mxu0 %v1477
        %1521 = vmatprep.subr.mxu0 0.0
        %1522 = vmatpush2.msra.mxu0 0.0
        %1523 = vmatprep.subr.mxu0 0.0
        %1524 = vmatpush2.msra.mxu0 0.0
        %1525 = vmatprep.subr.mxu0 0.0
        %1526 = vmatpush2.msra.mxu0 0.0
        %1527 = vmatprep.subr.mxu0 0.0
        %1528 = vmatpush2.msra.mxu0 0.0
        %1529 = vmatprep.subr.mxu0 0.0
        %1530 = vmatpush2.msra.mxu0 0.0
        %1531 = vmatprep.subr.mxu0 0.0
        %1532 = vmatpush2.msra.mxu0 0.0
        %1533 = vmatprep.subr.mxu0 0.0
        %1534 = vmatpush2.msra.mxu0 0.0
        %1535 = vmatprep.subr.mxu0 0.0
        %1536 = vmatpush2.msra.mxu0 0.0
        %1537 = vmatprep.subr.mxu0 0.0
        %1538 = vmatpush2.msra.mxu0 0.0
        %1539 = vmatprep.subr.mxu0 0.0
        %1540 = vmatpush2.msra.mxu0 0.0
        %1541 = vmatprep.subr.mxu0 0.0
        %1542 = vmatpush2.msra.mxu0 0.0
        %1543 = vmatprep.subr.mxu0 0.0
        %1544 = vmatpush2.msra.mxu0 0.0
        %1545 = vmatprep.subr.mxu0 0.0
        %1546 = vmatpush2.msra.mxu0 0.0
        %1547 = vmatprep.subr.mxu0 0.0
        %1548 = vmatpush2.msra.mxu0 0.0
        %1549 = vmatprep.subr.mxu0 0.0
        %1550 = vmatpush2.msra.mxu0 0.0
        %1551 = vmatprep.subr.mxu0 0.0
        %1552 = vmatpush2.msra.mxu0 0.0
        %1553 = vmatprep.mubr.f32.mxu0 0.0
        %1554 = vmatmul.mubr.f32.gmra.mxu0 %v1487
        %v1555 = vpop.f32.mrf.mxu0
        %v1556 = vadd.f32 %v1485, %v1555
        %v1557 = vpop.f32.mrf.mxu0
        %1558 = vdwg.mxu0
        %v1559 = vld [vmem:[%s4 + $0x150] sm:$0xff]
        %v1560 = vld [vmem:[%s4 + $0x158] sm:$0xff]
        %v1561 = vld [vmem:[%s4 + $0x160] sm:$0xff]
        %v1562 = vld [vmem:[%s4 + $0x168] sm:$0xff]
        %v1563 = vld [vmem:[%s4 + $0x170] sm:$0x1]
        %1565 = vrot.lane.b32.xlu0 %v1556, 96
        %v1566 = vpop.permute.xlu0 %1565
        %v1567 = vsel %vm481, %v1556, 0
        %v1569 = vsel %vm481, %v1566, 0
        %1571 = vmatprep.subr.mxu0 0.0
        %1572 = vmatpush1.xpose.msra.mxu0 0.0
        %1573 = vmatprep.subr.mxu0 0.0
        %1574 = vmatpush1.xpose.msra.mxu0 0.0
        %1575 = vmatprep.subr.mxu0 0.0
        %1576 = vmatpush1.xpose.msra.mxu0 0.0
        %1577 = vmatprep.subr.mxu0 0.0
        %1578 = vmatpush1.xpose.msra.mxu0 0.0
        %1579 = vmatprep.subr.mxu0 0.0
        %1580 = vmatpush1.xpose.msra.mxu0 0.0
        %1581 = vmatprep.subr.mxu0 0.0
        %1582 = vmatpush1.xpose.msra.mxu0 0.0
        %1583 = vmatprep.subr.mxu0 0.0
        %1584 = vmatpush1.xpose.msra.mxu0 0.0
        %1585 = vmatprep.subr.mxu0 0.0
        %1586 = vmatpush1.xpose.msra.mxu0 0.0
        %1587 = vmatprep.subr.mxu0 0.0
        %1588 = vmatpush1.xpose.msra.mxu0 0.0
        %1589 = vmatprep.subr.mxu0 0.0
        %1590 = vmatpush1.xpose.msra.mxu0 0.0
        %1591 = vmatprep.subr.mxu0 0.0
        %1592 = vmatpush1.xpose.msra.mxu0 0.0
        %1593 = vmatprep.subr.mxu0 0.0
        %1594 = vmatpush1.xpose.msra.mxu0 0.0
        %1595 = vmatprep.subr.mxu0 0.0
        %1596 = vmatpush1.xpose.msra.mxu0 0.0
        %1597 = vmatprep.subr.mxu0 0.0
        %1598 = vmatpush1.xpose.msra.mxu0 0.0
        %1599 = vmatprep.subr.mxu0 0.0
        %1600 = vmatpush1.xpose.msra.mxu0 0.0
        %1601 = vmatprep.subr.mxu0 0.0
        %1602 = vmatpush1.xpose.msra.mxu0 %v1569
        %1603 = vmatprep.subr.mxu0 0.0
        %1604 = vmatpush2.xpose.msra.mxu0 0.0
        %1605 = vmatprep.subr.mxu0 0.0
        %1606 = vmatpush2.xpose.msra.mxu0 0.0
        %1607 = vmatprep.subr.mxu0 0.0
        %1608 = vmatpush2.xpose.msra.mxu0 0.0
        %1609 = vmatprep.subr.mxu0 0.0
        %1610 = vmatpush2.xpose.msra.mxu0 0.0
        %1611 = vmatprep.subr.mxu0 0.0
        %1612 = vmatpush2.xpose.msra.mxu0 0.0
        %1613 = vmatprep.subr.mxu0 0.0
        %1614 = vmatpush2.xpose.msra.mxu0 0.0
        %1615 = vmatprep.subr.mxu0 0.0
        %1616 = vmatpush2.xpose.msra.mxu0 0.0
        %1617 = vmatprep.subr.mxu0 0.0
        %1618 = vmatpush2.xpose.msra.mxu0 0.0
        %1619 = vmatprep.subr.mxu0 0.0
        %1620 = vmatpush2.xpose.msra.mxu0 0.0
        %1621 = vmatprep.subr.mxu0 0.0
        %1622 = vmatpush2.xpose.msra.mxu0 0.0
        %1623 = vmatprep.subr.mxu0 0.0
        %1624 = vmatpush2.xpose.msra.mxu0 0.0
        %1625 = vmatprep.subr.mxu0 0.0
        %1626 = vmatpush2.xpose.msra.mxu0 0.0
        %1627 = vmatprep.subr.mxu0 0.0
        %1628 = vmatpush2.xpose.msra.mxu0 0.0
        %1629 = vmatprep.subr.mxu0 0.0
        %1630 = vmatpush2.xpose.msra.mxu0 0.0
        %1631 = vmatprep.subr.mxu0 0.0
        %1632 = vmatpush2.xpose.msra.mxu0 0.0
        %1633 = vmatprep.subr.mxu0 0.0
        %1634 = vmatpush2.xpose.msra.mxu0 0.0
        %1635 = vmatprep.mubr.f32.mxu0 0.0
        %1636 = vmatmul.mubr.f32.gmra.mxu0 %v1567
        %v1637 = vpop.f32.mrf.mxu0
        %v1638 = vadd.f32 0.0, %v1637
        %v1639 = vpop.f32.mrf.mxu0
        %1640 = vdwg.mxu0
        %1641 = vrot.lane.b32.xlu0 %v1556, 120
        %v1642 = vpop.permute.xlu0 %1641
        %1643 = vrot.lane.b32.xlu0 %v1556, 88
        %v1644 = vpop.permute.xlu0 %1643
        %v1645 = vsel %vm481, %v1642, 0
        %v1647 = vsel %vm481, %v1644, 0
        %1649 = vmatprep.subr.mxu0 0.0
        %1650 = vmatpush1.xpose.msra.mxu0 0.0
        %1651 = vmatprep.subr.mxu0 0.0
        %1652 = vmatpush1.xpose.msra.mxu0 0.0
        %1653 = vmatprep.subr.mxu0 0.0
        %1654 = vmatpush1.xpose.msra.mxu0 0.0
        %1655 = vmatprep.subr.mxu0 0.0
        %1656 = vmatpush1.xpose.msra.mxu0 0.0
        %1657 = vmatprep.subr.mxu0 0.0
        %1658 = vmatpush1.xpose.msra.mxu0 0.0
        %1659 = vmatprep.subr.mxu0 0.0
        %1660 = vmatpush1.xpose.msra.mxu0 0.0
        %1661 = vmatprep.subr.mxu0 0.0
        %1662 = vmatpush1.xpose.msra.mxu0 0.0
        %1663 = vmatprep.subr.mxu0 0.0
        %1664 = vmatpush1.xpose.msra.mxu0 0.0
        %1665 = vmatprep.subr.mxu0 0.0
        %1666 = vmatpush1.xpose.msra.mxu0 0.0
        %1667 = vmatprep.subr.mxu0 0.0
        %1668 = vmatpush1.xpose.msra.mxu0 0.0
        %1669 = vmatprep.subr.mxu0 0.0
        %1670 = vmatpush1.xpose.msra.mxu0 0.0
        %1671 = vmatprep.subr.mxu0 0.0
        %1672 = vmatpush1.xpose.msra.mxu0 0.0
        %1673 = vmatprep.subr.mxu0 0.0
        %1674 = vmatpush1.xpose.msra.mxu0 0.0
        %1675 = vmatprep.subr.mxu0 0.0
        %1676 = vmatpush1.xpose.msra.mxu0 0.0
        %1677 = vmatprep.subr.mxu0 0.0
        %1678 = vmatpush1.xpose.msra.mxu0 0.0
        %1679 = vmatprep.subr.mxu0 0.0
        %1680 = vmatpush1.xpose.msra.mxu0 %v1647
        %1681 = vmatprep.subr.mxu0 0.0
        %1682 = vmatpush2.xpose.msra.mxu0 0.0
        %1683 = vmatprep.subr.mxu0 0.0
        %1684 = vmatpush2.xpose.msra.mxu0 0.0
        %1685 = vmatprep.subr.mxu0 0.0
        %1686 = vmatpush2.xpose.msra.mxu0 0.0
        %1687 = vmatprep.subr.mxu0 0.0
        %1688 = vmatpush2.xpose.msra.mxu0 0.0
        %1689 = vmatprep.subr.mxu0 0.0
        %1690 = vmatpush2.xpose.msra.mxu0 0.0
        %1691 = vmatprep.subr.mxu0 0.0
        %1692 = vmatpush2.xpose.msra.mxu0 0.0
        %1693 = vmatprep.subr.mxu0 0.0
        %1694 = vmatpush2.xpose.msra.mxu0 0.0
        %1695 = vmatprep.subr.mxu0 0.0
        %1696 = vmatpush2.xpose.msra.mxu0 0.0
        %1697 = vmatprep.subr.mxu0 0.0
        %1698 = vmatpush2.xpose.msra.mxu0 0.0
        %1699 = vmatprep.subr.mxu0 0.0
        %1700 = vmatpush2.xpose.msra.mxu0 0.0
        %1701 = vmatprep.subr.mxu0 0.0
        %1702 = vmatpush2.xpose.msra.mxu0 0.0
        %1703 = vmatprep.subr.mxu0 0.0
        %1704 = vmatpush2.xpose.msra.mxu0 0.0
        %1705 = vmatprep.subr.mxu0 0.0
        %1706 = vmatpush2.xpose.msra.mxu0 0.0
        %1707 = vmatprep.subr.mxu0 0.0
        %1708 = vmatpush2.xpose.msra.mxu0 0.0
        %1709 = vmatprep.subr.mxu0 0.0
        %1710 = vmatpush2.xpose.msra.mxu0 0.0
        %1711 = vmatprep.subr.mxu0 0.0
        %1712 = vmatpush2.xpose.msra.mxu0 0.0
        %1713 = vmatprep.mubr.f32.mxu0 0.0
        %1714 = vmatmul.mubr.f32.gmra.mxu0 %v1645
        %v1715 = vpop.f32.mrf.mxu0
        %v1716 = vadd.f32 0.0, %v1715
        %v1717 = vpop.f32.mrf.mxu0
        %1718 = vdwg.mxu0
        %1719 = vrot.lane.b32.xlu0 %v1556, 112
        %v1720 = vpop.permute.xlu0 %1719
        %1721 = vrot.lane.b32.xlu0 %v1556, 80
        %v1722 = vpop.permute.xlu0 %1721
        %v1723 = vsel %vm481, %v1720, 0
        %v1725 = vsel %vm481, %v1722, 0
        %1727 = vmatprep.subr.mxu0 0.0
        %1728 = vmatpush1.xpose.msra.mxu0 0.0
        %1729 = vmatprep.subr.mxu0 0.0
        %1730 = vmatpush1.xpose.msra.mxu0 0.0
        %1731 = vmatprep.subr.mxu0 0.0
        %1732 = vmatpush1.xpose.msra.mxu0 0.0
        %1733 = vmatprep.subr.mxu0 0.0
        %1734 = vmatpush1.xpose.msra.mxu0 0.0
        %1735 = vmatprep.subr.mxu0 0.0
        %1736 = vmatpush1.xpose.msra.mxu0 0.0
        %1737 = vmatprep.subr.mxu0 0.0
        %1738 = vmatpush1.xpose.msra.mxu0 0.0
        %1739 = vmatprep.subr.mxu0 0.0
        %1740 = vmatpush1.xpose.msra.mxu0 0.0
        %1741 = vmatprep.subr.mxu0 0.0
        %1742 = vmatpush1.xpose.msra.mxu0 0.0
        %1743 = vmatprep.subr.mxu0 0.0
        %1744 = vmatpush1.xpose.msra.mxu0 0.0
        %1745 = vmatprep.subr.mxu0 0.0
        %1746 = vmatpush1.xpose.msra.mxu0 0.0
        %1747 = vmatprep.subr.mxu0 0.0
        %1748 = vmatpush1.xpose.msra.mxu0 0.0
        %1749 = vmatprep.subr.mxu0 0.0
        %1750 = vmatpush1.xpose.msra.mxu0 0.0
        %1751 = vmatprep.subr.mxu0 0.0
        %1752 = vmatpush1.xpose.msra.mxu0 0.0
        %1753 = vmatprep.subr.mxu0 0.0
        %1754 = vmatpush1.xpose.msra.mxu0 0.0
        %1755 = vmatprep.subr.mxu0 0.0
        %1756 = vmatpush1.xpose.msra.mxu0 0.0
        %1757 = vmatprep.subr.mxu0 0.0
        %1758 = vmatpush1.xpose.msra.mxu0 %v1725
        %1759 = vmatprep.subr.mxu0 0.0
        %1760 = vmatpush2.xpose.msra.mxu0 0.0
        %1761 = vmatprep.subr.mxu0 0.0
        %1762 = vmatpush2.xpose.msra.mxu0 0.0
        %1763 = vmatprep.subr.mxu0 0.0
        %1764 = vmatpush2.xpose.msra.mxu0 0.0
        %1765 = vmatprep.subr.mxu0 0.0
        %1766 = vmatpush2.xpose.msra.mxu0 0.0
        %1767 = vmatprep.subr.mxu0 0.0
        %1768 = vmatpush2.xpose.msra.mxu0 0.0
        %1769 = vmatprep.subr.mxu0 0.0
        %1770 = vmatpush2.xpose.msra.mxu0 0.0
        %1771 = vmatprep.subr.mxu0 0.0
        %1772 = vmatpush2.xpose.msra.mxu0 0.0
        %1773 = vmatprep.subr.mxu0 0.0
        %1774 = vmatpush2.xpose.msra.mxu0 0.0
        %1775 = vmatprep.subr.mxu0 0.0
        %1776 = vmatpush2.xpose.msra.mxu0 0.0
        %1777 = vmatprep.subr.mxu0 0.0
        %1778 = vmatpush2.xpose.msra.mxu0 0.0
        %1779 = vmatprep.subr.mxu0 0.0
        %1780 = vmatpush2.xpose.msra.mxu0 0.0
        %1781 = vmatprep.subr.mxu0 0.0
        %1782 = vmatpush2.xpose.msra.mxu0 0.0
        %1783 = vmatprep.subr.mxu0 0.0
        %1784 = vmatpush2.xpose.msra.mxu0 0.0
        %1785 = vmatprep.subr.mxu0 0.0
        %1786 = vmatpush2.xpose.msra.mxu0 0.0
        %1787 = vmatprep.subr.mxu0 0.0
        %1788 = vmatpush2.xpose.msra.mxu0 0.0
        %1789 = vmatprep.subr.mxu0 0.0
        %1790 = vmatpush2.xpose.msra.mxu0 0.0
        %1791 = vmatprep.mubr.f32.mxu0 0.0
        %1792 = vmatmul.mubr.f32.gmra.mxu0 %v1723
        %v1793 = vpop.f32.mrf.mxu0
        %v1794 = vadd.f32 0.0, %v1793
        %v1795 = vpop.f32.mrf.mxu0
        %1796 = vdwg.mxu0
        %1797 = vrot.lane.b32.xlu0 %v1556, 104
        %v1798 = vpop.permute.xlu0 %1797
        %1799 = vrot.lane.b32.xlu0 %v1556, 72
        %v1800 = vpop.permute.xlu0 %1799
        %v1801 = vsel %vm481, %v1798, 0
        %v1803 = vsel %vm481, %v1800, 0
        %1805 = vmatprep.subr.mxu0 0.0
        %1806 = vmatpush1.xpose.msra.mxu0 0.0
        %1807 = vmatprep.subr.mxu0 0.0
        %1808 = vmatpush1.xpose.msra.mxu0 0.0
        %1809 = vmatprep.subr.mxu0 0.0
        %1810 = vmatpush1.xpose.msra.mxu0 0.0
        %1811 = vmatprep.subr.mxu0 0.0
        %1812 = vmatpush1.xpose.msra.mxu0 0.0
        %1813 = vmatprep.subr.mxu0 0.0
        %1814 = vmatpush1.xpose.msra.mxu0 0.0
        %1815 = vmatprep.subr.mxu0 0.0
        %1816 = vmatpush1.xpose.msra.mxu0 0.0
        %1817 = vmatprep.subr.mxu0 0.0
        %1818 = vmatpush1.xpose.msra.mxu0 0.0
        %1819 = vmatprep.subr.mxu0 0.0
        %1820 = vmatpush1.xpose.msra.mxu0 0.0
        %1821 = vmatprep.subr.mxu0 0.0
        %1822 = vmatpush1.xpose.msra.mxu0 0.0
        %1823 = vmatprep.subr.mxu0 0.0
        %1824 = vmatpush1.xpose.msra.mxu0 0.0
        %1825 = vmatprep.subr.mxu0 0.0
        %1826 = vmatpush1.xpose.msra.mxu0 0.0
        %1827 = vmatprep.subr.mxu0 0.0
        %1828 = vmatpush1.xpose.msra.mxu0 0.0
        %1829 = vmatprep.subr.mxu0 0.0
        %1830 = vmatpush1.xpose.msra.mxu0 0.0
        %1831 = vmatprep.subr.mxu0 0.0
        %1832 = vmatpush1.xpose.msra.mxu0 0.0
        %1833 = vmatprep.subr.mxu0 0.0
        %1834 = vmatpush1.xpose.msra.mxu0 0.0
        %1835 = vmatprep.subr.mxu0 0.0
        %1836 = vmatpush1.xpose.msra.mxu0 %v1803
        %1837 = vmatprep.subr.mxu0 0.0
        %1838 = vmatpush2.xpose.msra.mxu0 0.0
        %1839 = vmatprep.subr.mxu0 0.0
        %1840 = vmatpush2.xpose.msra.mxu0 0.0
        %1841 = vmatprep.subr.mxu0 0.0
        %1842 = vmatpush2.xpose.msra.mxu0 0.0
        %1843 = vmatprep.subr.mxu0 0.0
        %1844 = vmatpush2.xpose.msra.mxu0 0.0
        %1845 = vmatprep.subr.mxu0 0.0
        %1846 = vmatpush2.xpose.msra.mxu0 0.0
        %1847 = vmatprep.subr.mxu0 0.0
        %1848 = vmatpush2.xpose.msra.mxu0 0.0
        %1849 = vmatprep.subr.mxu0 0.0
        %1850 = vmatpush2.xpose.msra.mxu0 0.0
        %1851 = vmatprep.subr.mxu0 0.0
        %1852 = vmatpush2.xpose.msra.mxu0 0.0
        %1853 = vmatprep.subr.mxu0 0.0
        %1854 = vmatpush2.xpose.msra.mxu0 0.0
        %1855 = vmatprep.subr.mxu0 0.0
        %1856 = vmatpush2.xpose.msra.mxu0 0.0
        %1857 = vmatprep.subr.mxu0 0.0
        %1858 = vmatpush2.xpose.msra.mxu0 0.0
        %1859 = vmatprep.subr.mxu0 0.0
        %1860 = vmatpush2.xpose.msra.mxu0 0.0
        %1861 = vmatprep.subr.mxu0 0.0
        %1862 = vmatpush2.xpose.msra.mxu0 0.0
        %1863 = vmatprep.subr.mxu0 0.0
        %1864 = vmatpush2.xpose.msra.mxu0 0.0
        %1865 = vmatprep.subr.mxu0 0.0
        %1866 = vmatpush2.xpose.msra.mxu0 0.0
        %1867 = vmatprep.subr.mxu0 0.0
        %1868 = vmatpush2.xpose.msra.mxu0 0.0
        %1869 = vmatprep.mubr.f32.mxu0 0.0
        %1870 = vmatmul.mubr.f32.gmra.mxu0 %v1801
        %v1871 = vpop.f32.mrf.mxu0
        %v1872 = vadd.f32 0.0, %v1871
        %v1873 = vpop.f32.mrf.mxu0
        %1874 = vdwg.mxu0
        %v1875 = vadd.f32 %v1638, %v794
        %v1876 = vadd.f32 %v1716, %v794
        %v1877 = vadd.f32 %v1794, %v794
        %v1878 = vadd.f32 %v1872, %v794
        %v1879 = vsel %vm481, %v1875, -inf
        %1880 = vmax.xlane.f32.xlu0 %v1879
        %v1881 = vpop.xlane.xlu0 %1880
        %v1882 = vsel %vm481, %v1876, -inf
        %1883 = vmax.xlane.f32.xlu0 %v1882
        %v1884 = vpop.xlane.xlu0 %1883
        %v1885 = vsel %vm481, %v1877, -inf
        %1886 = vmax.xlane.f32.xlu0 %v1885
        %v1887 = vpop.xlane.xlu0 %1886
        %v1888 = vsel %vm481, %v1878, -inf
        %1889 = vmax.xlane.f32.xlu0 %v1888
        %v1890 = vpop.xlane.xlu0 %1889
        %v1891 = vsub.f32 %v1875, %v1881
        %v1892 = vsub.f32 %v1876, %v1884
        %v1893 = vsub.f32 %v1877, %v1887
        %v1894 = vsub.f32 %v1878, %v1890
        %v1895 = vmul.f32 %v1891, 1.442695
        %v1896 = vpow.pop %v1895
        %v1897 = vmul.f32 %v1892, 1.442695
        %v1898 = vpow.pop %v1897
        %v1899 = vmul.f32 %v1893, 1.442695
        %v1900 = vpow.pop %v1899
        %v1901 = vmul.f32 %v1894, 1.442695
        %v1902 = vpow.pop %v1901
        %v1903 = vsel %vm481, %v1896, 0.0
        %1904 = vadd.xlane.f32.xlu0 %v1903
        %v1905 = vpop.xlane.xlu0 %1904
        %v1906 = vsel %vm481, %v1898, 0.0
        %1907 = vadd.xlane.f32.xlu0 %v1906
        %v1908 = vpop.xlane.xlu0 %1907
        %v1909 = vsel %vm481, %v1900, 0.0
        %1910 = vadd.xlane.f32.xlu0 %v1909
        %v1911 = vpop.xlane.xlu0 %1910
        %v1912 = vsel %vm481, %v1902, 0.0
        %1913 = vadd.xlane.f32.xlu0 %v1912
        %v1914 = vpop.xlane.xlu0 %1913
        %v1915 = vrcp.pop %v1905
        %v1916 = vrcp.pop %v1908
        %v1917 = vrcp.pop %v1911
        %v1918 = vrcp.pop %v1914
        %v1919 = vmul.f32 %v1896, %v1915
        %v1920 = vmul.f32 %v1898, %v1916
        %v1921 = vmul.f32 %v1900, %v1917
        %v1922 = vmul.f32 %v1902, %v1918
        %1923 = vrot.lane.b32.xlu0 %v1556, 64
        %v1924 = vpop.permute.xlu0 %1923
        %v1927 = vsel %vm481, %v1919, 0
        %1929 = vmatprep.subr.mxu0 0.0
        %1930 = vmatpush1.msra.mxu0 0.0
        %1931 = vmatprep.subr.mxu0 0.0
        %1932 = vmatpush1.msra.mxu0 0.0
        %1933 = vmatprep.subr.mxu0 0.0
        %1934 = vmatpush1.msra.mxu0 0.0
        %1935 = vmatprep.subr.mxu0 0.0
        %1936 = vmatpush1.msra.mxu0 0.0
        %1937 = vmatprep.subr.mxu0 0.0
        %1938 = vmatpush1.msra.mxu0 0.0
        %1939 = vmatprep.subr.mxu0 0.0
        %1940 = vmatpush1.msra.mxu0 0.0
        %1941 = vmatprep.subr.mxu0 0.0
        %1942 = vmatpush1.msra.mxu0 0.0
        %1943 = vmatprep.subr.mxu0 0.0
        %1944 = vmatpush1.msra.mxu0 0.0
        %1945 = vmatprep.subr.mxu0 0.0
        %1946 = vmatpush1.msra.mxu0 0.0
        %1947 = vmatprep.subr.mxu0 0.0
        %1948 = vmatpush1.msra.mxu0 0.0
        %1949 = vmatprep.subr.mxu0 0.0
        %1950 = vmatpush1.msra.mxu0 0.0
        %1951 = vmatprep.subr.mxu0 0.0
        %1952 = vmatpush1.msra.mxu0 0.0
        %1953 = vmatprep.subr.mxu0 0.0
        %1954 = vmatpush1.msra.mxu0 0.0
        %1955 = vmatprep.subr.mxu0 0.0
        %1956 = vmatpush1.msra.mxu0 0.0
        %1957 = vmatprep.subr.mxu0 0.0
        %1958 = vmatpush1.msra.mxu0 0.0
        %1959 = vmatprep.subr.mxu0 0.0
        %1960 = vmatpush1.msra.mxu0 %v1924
        %1961 = vmatprep.subr.mxu0 0.0
        %1962 = vmatpush2.msra.mxu0 0.0
        %1963 = vmatprep.subr.mxu0 0.0
        %1964 = vmatpush2.msra.mxu0 0.0
        %1965 = vmatprep.subr.mxu0 0.0
        %1966 = vmatpush2.msra.mxu0 0.0
        %1967 = vmatprep.subr.mxu0 0.0
        %1968 = vmatpush2.msra.mxu0 0.0
        %1969 = vmatprep.subr.mxu0 0.0
        %1970 = vmatpush2.msra.mxu0 0.0
        %1971 = vmatprep.subr.mxu0 0.0
        %1972 = vmatpush2.msra.mxu0 0.0
        %1973 = vmatprep.subr.mxu0 0.0
        %1974 = vmatpush2.msra.mxu0 0.0
        %1975 = vmatprep.subr.mxu0 0.0
        %1976 = vmatpush2.msra.mxu0 0.0
        %1977 = vmatprep.subr.mxu0 0.0
        %1978 = vmatpush2.msra.mxu0 0.0
        %1979 = vmatprep.subr.mxu0 0.0
        %1980 = vmatpush2.msra.mxu0 0.0
        %1981 = vmatprep.subr.mxu0 0.0
        %1982 = vmatpush2.msra.mxu0 0.0
        %1983 = vmatprep.subr.mxu0 0.0
        %1984 = vmatpush2.msra.mxu0 0.0
        %1985 = vmatprep.subr.mxu0 0.0
        %1986 = vmatpush2.msra.mxu0 0.0
        %1987 = vmatprep.subr.mxu0 0.0
        %1988 = vmatpush2.msra.mxu0 0.0
        %1989 = vmatprep.subr.mxu0 0.0
        %1990 = vmatpush2.msra.mxu0 0.0
        %1991 = vmatprep.subr.mxu0 0.0
        %1992 = vmatpush2.msra.mxu0 0.0
        %1993 = vmatprep.mubr.f32.mxu0 0.0
        %1994 = vmatmul.mubr.f32.gmra.mxu0 %v1927
        %v1995 = vpop.f32.mrf.mxu0
        %v1996 = vadd.f32 0.0, %v1995
        %v1997 = vpop.f32.mrf.mxu0
        %1998 = vdwg.mxu0
        %1999 = vrot.lane.b32.xlu0 %v1556, 56
        %v2000 = vpop.permute.xlu0 %1999
        %v2003 = vsel %vm481, %v1920, 0
        %2005 = vmatprep.subr.mxu0 0.0
        %2006 = vmatpush1.msra.mxu0 0.0
        %2007 = vmatprep.subr.mxu0 0.0
        %2008 = vmatpush1.msra.mxu0 0.0
        %2009 = vmatprep.subr.mxu0 0.0
        %2010 = vmatpush1.msra.mxu0 0.0
        %2011 = vmatprep.subr.mxu0 0.0
        %2012 = vmatpush1.msra.mxu0 0.0
        %2013 = vmatprep.subr.mxu0 0.0
        %2014 = vmatpush1.msra.mxu0 0.0
        %2015 = vmatprep.subr.mxu0 0.0
        %2016 = vmatpush1.msra.mxu0 0.0
        %2017 = vmatprep.subr.mxu0 0.0
        %2018 = vmatpush1.msra.mxu0 0.0
        %2019 = vmatprep.subr.mxu0 0.0
        %2020 = vmatpush1.msra.mxu0 0.0
        %2021 = vmatprep.subr.mxu0 0.0
        %2022 = vmatpush1.msra.mxu0 0.0
        %2023 = vmatprep.subr.mxu0 0.0
        %2024 = vmatpush1.msra.mxu0 0.0
        %2025 = vmatprep.subr.mxu0 0.0
        %2026 = vmatpush1.msra.mxu0 0.0
        %2027 = vmatprep.subr.mxu0 0.0
        %2028 = vmatpush1.msra.mxu0 0.0
        %2029 = vmatprep.subr.mxu0 0.0
        %2030 = vmatpush1.msra.mxu0 0.0
        %2031 = vmatprep.subr.mxu0 0.0
        %2032 = vmatpush1.msra.mxu0 0.0
        %2033 = vmatprep.subr.mxu0 0.0
        %2034 = vmatpush1.msra.mxu0 0.0
        %2035 = vmatprep.subr.mxu0 0.0
        %2036 = vmatpush1.msra.mxu0 %v2000
        %2037 = vmatprep.subr.mxu0 0.0
        %2038 = vmatpush2.msra.mxu0 0.0
        %2039 = vmatprep.subr.mxu0 0.0
        %2040 = vmatpush2.msra.mxu0 0.0
        %2041 = vmatprep.subr.mxu0 0.0
        %2042 = vmatpush2.msra.mxu0 0.0
        %2043 = vmatprep.subr.mxu0 0.0
        %2044 = vmatpush2.msra.mxu0 0.0
        %2045 = vmatprep.subr.mxu0 0.0
        %2046 = vmatpush2.msra.mxu0 0.0
        %2047 = vmatprep.subr.mxu0 0.0
        %2048 = vmatpush2.msra.mxu0 0.0
        %2049 = vmatprep.subr.mxu0 0.0
        %2050 = vmatpush2.msra.mxu0 0.0
        %2051 = vmatprep.subr.mxu0 0.0
        %2052 = vmatpush2.msra.mxu0 0.0
        %2053 = vmatprep.subr.mxu0 0.0
        %2054 = vmatpush2.msra.mxu0 0.0
        %2055 = vmatprep.subr.mxu0 0.0
        %2056 = vmatpush2.msra.mxu0 0.0
        %2057 = vmatprep.subr.mxu0 0.0
        %2058 = vmatpush2.msra.mxu0 0.0
        %2059 = vmatprep.subr.mxu0 0.0
        %2060 = vmatpush2.msra.mxu0 0.0
        %2061 = vmatprep.subr.mxu0 0.0
        %2062 = vmatpush2.msra.mxu0 0.0
        %2063 = vmatprep.subr.mxu0 0.0
        %2064 = vmatpush2.msra.mxu0 0.0
        %2065 = vmatprep.subr.mxu0 0.0
        %2066 = vmatpush2.msra.mxu0 0.0
        %2067 = vmatprep.subr.mxu0 0.0
        %2068 = vmatpush2.msra.mxu0 0.0
        %2069 = vmatprep.mubr.f32.mxu0 0.0
        %2070 = vmatmul.mubr.f32.gmra.mxu0 %v2003
        %v2071 = vpop.f32.mrf.mxu0
        %v2072 = vadd.f32 0.0, %v2071
        %v2073 = vpop.f32.mrf.mxu0
        %2074 = vdwg.mxu0
        %2075 = vrot.lane.b32.xlu0 %v1556, 48
        %v2076 = vpop.permute.xlu0 %2075
        %v2079 = vsel %vm481, %v1921, 0
        %2081 = vmatprep.subr.mxu0 0.0
        %2082 = vmatpush1.msra.mxu0 0.0
        %2083 = vmatprep.subr.mxu0 0.0
        %2084 = vmatpush1.msra.mxu0 0.0
        %2085 = vmatprep.subr.mxu0 0.0
        %2086 = vmatpush1.msra.mxu0 0.0
        %2087 = vmatprep.subr.mxu0 0.0
        %2088 = vmatpush1.msra.mxu0 0.0
        %2089 = vmatprep.subr.mxu0 0.0
        %2090 = vmatpush1.msra.mxu0 0.0
        %2091 = vmatprep.subr.mxu0 0.0
        %2092 = vmatpush1.msra.mxu0 0.0
        %2093 = vmatprep.subr.mxu0 0.0
        %2094 = vmatpush1.msra.mxu0 0.0
        %2095 = vmatprep.subr.mxu0 0.0
        %2096 = vmatpush1.msra.mxu0 0.0
        %2097 = vmatprep.subr.mxu0 0.0
        %2098 = vmatpush1.msra.mxu0 0.0
        %2099 = vmatprep.subr.mxu0 0.0
        %2100 = vmatpush1.msra.mxu0 0.0
        %2101 = vmatprep.subr.mxu0 0.0
        %2102 = vmatpush1.msra.mxu0 0.0
        %2103 = vmatprep.subr.mxu0 0.0
        %2104 = vmatpush1.msra.mxu0 0.0
        %2105 = vmatprep.subr.mxu0 0.0
        %2106 = vmatpush1.msra.mxu0 0.0
        %2107 = vmatprep.subr.mxu0 0.0
        %2108 = vmatpush1.msra.mxu0 0.0
        %2109 = vmatprep.subr.mxu0 0.0
        %2110 = vmatpush1.msra.mxu0 0.0
        %2111 = vmatprep.subr.mxu0 0.0
        %2112 = vmatpush1.msra.mxu0 %v2076
        %2113 = vmatprep.subr.mxu0 0.0
        %2114 = vmatpush2.msra.mxu0 0.0
        %2115 = vmatprep.subr.mxu0 0.0
        %2116 = vmatpush2.msra.mxu0 0.0
        %2117 = vmatprep.subr.mxu0 0.0
        %2118 = vmatpush2.msra.mxu0 0.0
        %2119 = vmatprep.subr.mxu0 0.0
        %2120 = vmatpush2.msra.mxu0 0.0
        %2121 = vmatprep.subr.mxu0 0.0
        %2122 = vmatpush2.msra.mxu0 0.0
        %2123 = vmatprep.subr.mxu0 0.0
        %2124 = vmatpush2.msra.mxu0 0.0
        %2125 = vmatprep.subr.mxu0 0.0
        %2126 = vmatpush2.msra.mxu0 0.0
        %2127 = vmatprep.subr.mxu0 0.0
        %2128 = vmatpush2.msra.mxu0 0.0
        %2129 = vmatprep.subr.mxu0 0.0
        %2130 = vmatpush2.msra.mxu0 0.0
        %2131 = vmatprep.subr.mxu0 0.0
        %2132 = vmatpush2.msra.mxu0 0.0
        %2133 = vmatprep.subr.mxu0 0.0
        %2134 = vmatpush2.msra.mxu0 0.0
        %2135 = vmatprep.subr.mxu0 0.0
        %2136 = vmatpush2.msra.mxu0 0.0
        %2137 = vmatprep.subr.mxu0 0.0
        %2138 = vmatpush2.msra.mxu0 0.0
        %2139 = vmatprep.subr.mxu0 0.0
        %2140 = vmatpush2.msra.mxu0 0.0
        %2141 = vmatprep.subr.mxu0 0.0
        %2142 = vmatpush2.msra.mxu0 0.0
        %2143 = vmatprep.subr.mxu0 0.0
        %2144 = vmatpush2.msra.mxu0 0.0
        %2145 = vmatprep.mubr.f32.mxu0 0.0
        %2146 = vmatmul.mubr.f32.gmra.mxu0 %v2079
        %v2147 = vpop.f32.mrf.mxu0
        %v2148 = vadd.f32 0.0, %v2147
        %v2149 = vpop.f32.mrf.mxu0
        %2150 = vdwg.mxu0
        %2151 = vrot.lane.b32.xlu0 %v1556, 40
        %v2152 = vpop.permute.xlu0 %2151
        %v2155 = vsel %vm481, %v1922, 0
        %2157 = vmatprep.subr.mxu0 0.0
        %2158 = vmatpush1.msra.mxu0 0.0
        %2159 = vmatprep.subr.mxu0 0.0
        %2160 = vmatpush1.msra.mxu0 0.0
        %2161 = vmatprep.subr.mxu0 0.0
        %2162 = vmatpush1.msra.mxu0 0.0
        %2163 = vmatprep.subr.mxu0 0.0
        %2164 = vmatpush1.msra.mxu0 0.0
        %2165 = vmatprep.subr.mxu0 0.0
        %2166 = vmatpush1.msra.mxu0 0.0
        %2167 = vmatprep.subr.mxu0 0.0
        %2168 = vmatpush1.msra.mxu0 0.0
        %2169 = vmatprep.subr.mxu0 0.0
        %2170 = vmatpush1.msra.mxu0 0.0
        %2171 = vmatprep.subr.mxu0 0.0
        %2172 = vmatpush1.msra.mxu0 0.0
        %2173 = vmatprep.subr.mxu0 0.0
        %2174 = vmatpush1.msra.mxu0 0.0
        %2175 = vmatprep.subr.mxu0 0.0
        %2176 = vmatpush1.msra.mxu0 0.0
        %2177 = vmatprep.subr.mxu0 0.0
        %2178 = vmatpush1.msra.mxu0 0.0
        %2179 = vmatprep.subr.mxu0 0.0
        %2180 = vmatpush1.msra.mxu0 0.0
        %2181 = vmatprep.subr.mxu0 0.0
        %2182 = vmatpush1.msra.mxu0 0.0
        %2183 = vmatprep.subr.mxu0 0.0
        %2184 = vmatpush1.msra.mxu0 0.0
        %2185 = vmatprep.subr.mxu0 0.0
        %2186 = vmatpush1.msra.mxu0 0.0
        %2187 = vmatprep.subr.mxu0 0.0
        %2188 = vmatpush1.msra.mxu0 %v2152
        %2189 = vmatprep.subr.mxu0 0.0
        %2190 = vmatpush2.msra.mxu0 0.0
        %2191 = vmatprep.subr.mxu0 0.0
        %2192 = vmatpush2.msra.mxu0 0.0
        %2193 = vmatprep.subr.mxu0 0.0
        %2194 = vmatpush2.msra.mxu0 0.0
        %2195 = vmatprep.subr.mxu0 0.0
        %2196 = vmatpush2.msra.mxu0 0.0
        %2197 = vmatprep.subr.mxu0 0.0
        %2198 = vmatpush2.msra.mxu0 0.0
        %2199 = vmatprep.subr.mxu0 0.0
        %2200 = vmatpush2.msra.mxu0 0.0
        %2201 = vmatprep.subr.mxu0 0.0
        %2202 = vmatpush2.msra.mxu0 0.0
        %2203 = vmatprep.subr.mxu0 0.0
        %2204 = vmatpush2.msra.mxu0 0.0
        %2205 = vmatprep.subr.mxu0 0.0
        %2206 = vmatpush2.msra.mxu0 0.0
        %2207 = vmatprep.subr.mxu0 0.0
        %2208 = vmatpush2.msra.mxu0 0.0
        %2209 = vmatprep.subr.mxu0 0.0
        %2210 = vmatpush2.msra.mxu0 0.0
        %2211 = vmatprep.subr.mxu0 0.0
        %2212 = vmatpush2.msra.mxu0 0.0
        %2213 = vmatprep.subr.mxu0 0.0
        %2214 = vmatpush2.msra.mxu0 0.0
        %2215 = vmatprep.subr.mxu0 0.0
        %2216 = vmatpush2.msra.mxu0 0.0
        %2217 = vmatprep.subr.mxu0 0.0
        %2218 = vmatpush2.msra.mxu0 0.0
        %2219 = vmatprep.subr.mxu0 0.0
        %2220 = vmatpush2.msra.mxu0 0.0
        %2221 = vmatprep.mubr.f32.mxu0 0.0
        %2222 = vmatmul.mubr.f32.gmra.mxu0 %v2155
        %v2223 = vpop.f32.mrf.mxu0
        %v2224 = vadd.f32 0.0, %v2223
        %v2225 = vpop.f32.mrf.mxu0
        %2226 = vdwg.mxu0
        %2228 = vrot.lane.b32.xlu0 %v2072, 8
        %v2229 = vpop.permute.xlu0 %2228
        %2232 = vrot.lane.b32.xlu0 %v2148, 16
        %v2233 = vpop.permute.xlu0 %2232
        %2236 = vrot.lane.b32.xlu0 %v2224, 24
        %v2237 = vpop.permute.xlu0 %2236
        %v2239 = vsel %vm481, %v1996, %v2229
        %v2240 = vsel %vm280, %v2239, %v2233
        %v2241 = vsel %vm1162, %v2240, %v2237
        %v2242 = vlaneseq
        %v2243 = vshrl.u32 %v2242, 7
        %v2244 = vsub.s32 0, %v2243
        %v2245 = vrot.slane %v1563, %v2244
        %v2247 = vsel %vm358, %v2241, 0
        %2249 = vmatprep.subr.mxu0 0.0
        %2250 = vmatpush1.msra.mxu0 0.0
        %2251 = vmatprep.subr.mxu0 0.0
        %2252 = vmatpush1.msra.mxu0 0.0
        %2253 = vmatprep.subr.mxu0 0.0
        %2254 = vmatpush1.msra.mxu0 0.0
        %2255 = vmatprep.subr.mxu0 0.0
        %2256 = vmatpush1.msra.mxu0 0.0
        %2257 = vmatprep.subr.mxu0 0.0
        %2258 = vmatpush1.msra.mxu0 0.0
        %2259 = vmatprep.subr.mxu0 0.0
        %2260 = vmatpush1.msra.mxu0 0.0
        %2261 = vmatprep.subr.mxu0 0.0
        %2262 = vmatpush1.msra.mxu0 0.0
        %2263 = vmatprep.subr.mxu0 0.0
        %2264 = vmatpush1.msra.mxu0 0.0
        %2265 = vmatprep.subr.mxu0 0.0
        %2266 = vmatpush1.msra.mxu0 0.0
        %2267 = vmatprep.subr.mxu0 0.0
        %2268 = vmatpush1.msra.mxu0 0.0
        %2269 = vmatprep.subr.mxu0 0.0
        %2270 = vmatpush1.msra.mxu0 0.0
        %2271 = vmatprep.subr.mxu0 0.0
        %2272 = vmatpush1.msra.mxu0 0.0
        %2273 = vmatprep.subr.mxu0 0.0
        %2274 = vmatpush1.msra.mxu0 %v1562
        %2275 = vmatprep.subr.mxu0 0.0
        %2276 = vmatpush1.msra.mxu0 %v1561
        %2277 = vmatprep.subr.mxu0 0.0
        %2278 = vmatpush1.msra.mxu0 %v1560
        %2279 = vmatprep.subr.mxu0 0.0
        %2280 = vmatpush1.msra.mxu0 %v1559
        %2281 = vmatprep.subr.mxu0 0.0
        %2282 = vmatpush2.msra.mxu0 0.0
        %2283 = vmatprep.subr.mxu0 0.0
        %2284 = vmatpush2.msra.mxu0 0.0
        %2285 = vmatprep.subr.mxu0 0.0
        %2286 = vmatpush2.msra.mxu0 0.0
        %2287 = vmatprep.subr.mxu0 0.0
        %2288 = vmatpush2.msra.mxu0 0.0
        %2289 = vmatprep.subr.mxu0 0.0
        %2290 = vmatpush2.msra.mxu0 0.0
        %2291 = vmatprep.subr.mxu0 0.0
        %2292 = vmatpush2.msra.mxu0 0.0
        %2293 = vmatprep.subr.mxu0 0.0
        %2294 = vmatpush2.msra.mxu0 0.0
        %2295 = vmatprep.subr.mxu0 0.0
        %2296 = vmatpush2.msra.mxu0 0.0
        %2297 = vmatprep.subr.mxu0 0.0
        %2298 = vmatpush2.msra.mxu0 0.0
        %2299 = vmatprep.subr.mxu0 0.0
        %2300 = vmatpush2.msra.mxu0 0.0
        %2301 = vmatprep.subr.mxu0 0.0
        %2302 = vmatpush2.msra.mxu0 0.0
        %2303 = vmatprep.subr.mxu0 0.0
        %2304 = vmatpush2.msra.mxu0 0.0
        %2305 = vmatprep.subr.mxu0 0.0
        %2306 = vmatpush2.msra.mxu0 0.0
        %2307 = vmatprep.subr.mxu0 0.0
        %2308 = vmatpush2.msra.mxu0 0.0
        %2309 = vmatprep.subr.mxu0 0.0
        %2310 = vmatpush2.msra.mxu0 0.0
        %2311 = vmatprep.subr.mxu0 0.0
        %2312 = vmatpush2.msra.mxu0 0.0
        %2313 = vmatprep.mubr.f32.mxu0 0.0
        %2314 = vmatmul.mubr.f32.gmra.mxu0 %v2247
        %v2315 = vpop.f32.mrf.mxu0
        %v2316 = vadd.f32 %v2245, %v2315
        %v2317 = vpop.f32.mrf.mxu0
        %2318 = vdwg.mxu0
        %v2319 = vadd.f32 %v1444, %v2316
        %v2320 = vld [vmem:[%s4 + $0x1f8] sm:$0x1]
        %v2321 = vld [vmem:[%s4 + $0x200] sm:$0x1]
        %v2322 = vsel %vm358, %v2319, 0.0
        %2323 = vadd.xlane.f32.xlu0 %v2322
        %v2324 = vpop.xlane.xlu0 %2323
        %v2325 = vmul.f32 %v2324, %v362
        %v2326 = vsub.f32 %v2319, %v2325
        %v2327 = vmul.f32 %v2326, %v2326
        %v2328 = vsel %vm358, %v2327, 0.0
        %2329 = vadd.xlane.f32.xlu0 %v2328
        %v2330 = vpop.xlane.xlu0 %2329
        %v2331 = vmul.f32 %v2330, %v369
        %v2332 = vrsqrt.pop %v2331
        %v2333 = vmul.f32 %v2331, %v2332
        %vm2334 = vcmp.eq.f32.partialorder %v2331, inf
        %v2335 = vsel %vm2334, %v2331, %v2333
        %vm2336 = vcmp.eq.f32.partialorder %v2331, 0.0
        %v2337 = vand.u32 %v2331, 2147483648
        %v2338 = vsel %vm2336, %v2337, %v2335
        %v2339 = vlaneseq
        %v2340 = vshrl.u32 %v2339, 7
        %v2341 = vsub.s32 0, %v2340
        %v2342 = vrot.slane %v2320, %v2341
        %v2343 = vmul.f32 %v2342, %v2326
        %v2344 = vadd.f32 %v2338, 1e-06
        %v2345 = vrcp.pop %v2344
        %v2346 = vmul.f32 %v2343, %v2345
        %v2347 = vlaneseq
        %v2348 = vshrl.u32 %v2347, 7
        %v2349 = vsub.s32 0, %v2348
        %v2350 = vrot.slane %v2321, %v2349
        %v2351 = vadd.f32 %v2346, %v2350
        %v2352 = vld [vmem:[%s4 + $0x178] sm:$0xff]
        %v2353 = vld [vmem:[%s4 + $0x180] sm:$0xff]
        %v2354 = vld [vmem:[%s4 + $0x188] sm:$0xff]
        %v2355 = vld [vmem:[%s4 + $0x190] sm:$0xff]
        %v2356 = vld [vmem:[%s4 + $0x198] sm:$0x1]
        %v2357 = vlaneseq
        %v2358 = vshrl.u32 %v2357, 7
        %v2359 = vsub.s32 0, %v2358
        %v2360 = vrot.slane %v2356, %v2359
        %v2362 = vsel %vm358, %v2351, 0
        %2364 = vmatprep.subr.mxu0 0.0
        %2365 = vmatpush1.msra.mxu0 0.0
        %2366 = vmatprep.subr.mxu0 0.0
        %2367 = vmatpush1.msra.mxu0 0.0
        %2368 = vmatprep.subr.mxu0 0.0
        %2369 = vmatpush1.msra.mxu0 0.0
        %2370 = vmatprep.subr.mxu0 0.0
        %2371 = vmatpush1.msra.mxu0 0.0
        %2372 = vmatprep.subr.mxu0 0.0
        %2373 = vmatpush1.msra.mxu0 0.0
        %2374 = vmatprep.subr.mxu0 0.0
        %2375 = vmatpush1.msra.mxu0 0.0
        %2376 = vmatprep.subr.mxu0 0.0
        %2377 = vmatpush1.msra.mxu0 0.0
        %2378 = vmatprep.subr.mxu0 0.0
        %2379 = vmatpush1.msra.mxu0 0.0
        %2380 = vmatprep.subr.mxu0 0.0
        %2381 = vmatpush1.msra.mxu0 0.0
        %2382 = vmatprep.subr.mxu0 0.0
        %2383 = vmatpush1.msra.mxu0 0.0
        %2384 = vmatprep.subr.mxu0 0.0
        %2385 = vmatpush1.msra.mxu0 0.0
        %2386 = vmatprep.subr.mxu0 0.0
        %2387 = vmatpush1.msra.mxu0 0.0
        %2388 = vmatprep.subr.mxu0 0.0
        %2389 = vmatpush1.msra.mxu0 %v2355
        %2390 = vmatprep.subr.mxu0 0.0
        %2391 = vmatpush1.msra.mxu0 %v2354
        %2392 = vmatprep.subr.mxu0 0.0
        %2393 = vmatpush1.msra.mxu0 %v2353
        %2394 = vmatprep.subr.mxu0 0.0
        %2395 = vmatpush1.msra.mxu0 %v2352
        %2396 = vmatprep.subr.mxu0 0.0
        %2397 = vmatpush2.msra.mxu0 0.0
        %2398 = vmatprep.subr.mxu0 0.0
        %2399 = vmatpush2.msra.mxu0 0.0
        %2400 = vmatprep.subr.mxu0 0.0
        %2401 = vmatpush2.msra.mxu0 0.0
        %2402 = vmatprep.subr.mxu0 0.0
        %2403 = vmatpush2.msra.mxu0 0.0
        %2404 = vmatprep.subr.mxu0 0.0
        %2405 = vmatpush2.msra.mxu0 0.0
        %2406 = vmatprep.subr.mxu0 0.0
        %2407 = vmatpush2.msra.mxu0 0.0
        %2408 = vmatprep.subr.mxu0 0.0
        %2409 = vmatpush2.msra.mxu0 0.0
        %2410 = vmatprep.subr.mxu0 0.0
        %2411 = vmatpush2.msra.mxu0 0.0
        %2412 = vmatprep.subr.mxu0 0.0
        %2413 = vmatpush2.msra.mxu0 0.0
        %2414 = vmatprep.subr.mxu0 0.0
        %2415 = vmatpush2.msra.mxu0 0.0
        %2416 = vmatprep.subr.mxu0 0.0
        %2417 = vmatpush2.msra.mxu0 0.0
        %2418 = vmatprep.subr.mxu0 0.0
        %2419 = vmatpush2.msra.mxu0 0.0
        %2420 = vmatprep.subr.mxu0 0.0
        %2421 = vmatpush2.msra.mxu0 0.0
        %2422 = vmatprep.subr.mxu0 0.0
        %2423 = vmatpush2.msra.mxu0 0.0
        %2424 = vmatprep.subr.mxu0 0.0
        %2425 = vmatpush2.msra.mxu0 0.0
        %2426 = vmatprep.subr.mxu0 0.0
        %2427 = vmatpush2.msra.mxu0 0.0
        %2428 = vmatprep.mubr.f32.mxu0 0.0
        %2429 = vmatmul.mubr.f32.gmra.mxu0 %v2362
        %v2430 = vpop.f32.mrf.mxu0
        %v2431 = vadd.f32 %v2360, %v2430
        %v2432 = vpop.f32.mrf.mxu0
        %2433 = vdwg.mxu0
        %v2434 = vmax.f32 %v2431, 0.0
        %v2435 = vld [vmem:[%s4 + $0x1a0] sm:$0xff]
        %v2436 = vld [vmem:[%s4 + $0x1a8] sm:$0xff]
        %v2437 = vld [vmem:[%s4 + $0x1b0] sm:$0xff]
        %v2438 = vld [vmem:[%s4 + $0x1b8] sm:$0xff]
        %v2439 = vld [vmem:[%s4 + $0x1c0] sm:$0xff]
        %v2440 = vld [vmem:[%s4 + $0x1c8] sm:$0xff]
        %v2441 = vld [vmem:[%s4 + $0x1d0] sm:$0xff]
        %v2442 = vld [vmem:[%s4 + $0x1d8] sm:$0xff]
        %v2443 = vld [vmem:[%s4 + $0x1e0] sm:$0x1]
        %v2444 = vlaneseq
        %v2445 = vshrl.u32 %v2444, 7
        %v2446 = vsub.s32 0, %v2445
        %v2447 = vrot.slane %v2443, %v2446
        %v2449 = vsel %vm1370, %v2434, 0
        %2451 = vmatprep.subr.mxu0 0.0
        %2452 = vmatpush1.msra.mxu0 0.0
        %2453 = vmatprep.subr.mxu0 0.0
        %2454 = vmatpush1.msra.mxu0 0.0
        %2455 = vmatprep.subr.mxu0 0.0
        %2456 = vmatpush1.msra.mxu0 0.0
        %2457 = vmatprep.subr.mxu0 0.0
        %2458 = vmatpush1.msra.mxu0 0.0
        %2459 = vmatprep.subr.mxu0 0.0
        %2460 = vmatpush1.msra.mxu0 0.0
        %2461 = vmatprep.subr.mxu0 0.0
        %2462 = vmatpush1.msra.mxu0 0.0
        %2463 = vmatprep.subr.mxu0 0.0
        %2464 = vmatpush1.msra.mxu0 0.0
        %2465 = vmatprep.subr.mxu0 0.0
        %2466 = vmatpush1.msra.mxu0 0.0
        %2467 = vmatprep.subr.mxu0 0.0
        %2468 = vmatpush1.msra.mxu0 %v2442
        %2469 = vmatprep.subr.mxu0 0.0
        %2470 = vmatpush1.msra.mxu0 %v2441
        %2471 = vmatprep.subr.mxu0 0.0
        %2472 = vmatpush1.msra.mxu0 %v2440
        %2473 = vmatprep.subr.mxu0 0.0
        %2474 = vmatpush1.msra.mxu0 %v2439
        %2475 = vmatprep.subr.mxu0 0.0
        %2476 = vmatpush1.msra.mxu0 %v2438
        %2477 = vmatprep.subr.mxu0 0.0
        %2478 = vmatpush1.msra.mxu0 %v2437
        %2479 = vmatprep.subr.mxu0 0.0
        %2480 = vmatpush1.msra.mxu0 %v2436
        %2481 = vmatprep.subr.mxu0 0.0
        %2482 = vmatpush1.msra.mxu0 %v2435
        %2483 = vmatprep.subr.mxu0 0.0
        %2484 = vmatpush2.msra.mxu0 0.0
        %2485 = vmatprep.subr.mxu0 0.0
        %2486 = vmatpush2.msra.mxu0 0.0
        %2487 = vmatprep.subr.mxu0 0.0
        %2488 = vmatpush2.msra.mxu0 0.0
        %2489 = vmatprep.subr.mxu0 0.0
        %2490 = vmatpush2.msra.mxu0 0.0
        %2491 = vmatprep.subr.mxu0 0.0
        %2492 = vmatpush2.msra.mxu0 0.0
        %2493 = vmatprep.subr.mxu0 0.0
        %2494 = vmatpush2.msra.mxu0 0.0
        %2495 = vmatprep.subr.mxu0 0.0
        %2496 = vmatpush2.msra.mxu0 0.0
        %2497 = vmatprep.subr.mxu0 0.0
        %2498 = vmatpush2.msra.mxu0 0.0
        %2499 = vmatprep.subr.mxu0 0.0
        %2500 = vmatpush2.msra.mxu0 0.0
        %2501 = vmatprep.subr.mxu0 0.0
        %2502 = vmatpush2.msra.mxu0 0.0
        %2503 = vmatprep.subr.mxu0 0.0
        %2504 = vmatpush2.msra.mxu0 0.0
        %2505 = vmatprep.subr.mxu0 0.0
        %2506 = vmatpush2.msra.mxu0 0.0
        %2507 = vmatprep.subr.mxu0 0.0
        %2508 = vmatpush2.msra.mxu0 0.0
        %2509 = vmatprep.subr.mxu0 0.0
        %2510 = vmatpush2.msra.mxu0 0.0
        %2511 = vmatprep.subr.mxu0 0.0
        %2512 = vmatpush2.msra.mxu0 0.0
        %2513 = vmatprep.subr.mxu0 0.0
        %2514 = vmatpush2.msra.mxu0 0.0
        %2515 = vmatprep.mubr.f32.mxu0 0.0
        %2516 = vmatmul.mubr.f32.gmra.mxu0 %v2449
        %v2517 = vpop.f32.mrf.mxu0
        %v2518 = vadd.f32 %v2447, %v2517
        %v2519 = vpop.f32.mrf.mxu0
        %2520 = vdwg.mxu0
        %v2521 = vadd.f32 %v2319, %v2518
        %v2522 = vld [vmem:[%s4 + $0x28] sm:$0x1]
        %v2523 = vld [vmem:[%s4 + $0x30] sm:$0x1]
        %v2524 = vsel %vm358, %v2521, 0.0
        %2525 = vadd.xlane.f32.xlu0 %v2524
        %v2526 = vpop.xlane.xlu0 %2525
        %v2527 = vmul.f32 %v2526, %v362
        %v2528 = vsub.f32 %v2521, %v2527
        %v2529 = vmul.f32 %v2528, %v2528
        %v2530 = vsel %vm358, %v2529, 0.0
        %2531 = vadd.xlane.f32.xlu0 %v2530
        %v2532 = vpop.xlane.xlu0 %2531
        %v2533 = vmul.f32 %v2532, %v369
        %v2534 = vrsqrt.pop %v2533
        %v2535 = vmul.f32 %v2533, %v2534
        %vm2536 = vcmp.eq.f32.partialorder %v2533, inf
        %v2537 = vsel %vm2536, %v2533, %v2535
        %vm2538 = vcmp.eq.f32.partialorder %v2533, 0.0
        %v2539 = vand.u32 %v2533, 2147483648
        %v2540 = vsel %vm2538, %v2539, %v2537
        %v2541 = vlaneseq
        %v2542 = vshrl.u32 %v2541, 7
        %v2543 = vsub.s32 0, %v2542
        %v2544 = vrot.slane %v2522, %v2543
        %v2545 = vmul.f32 %v2544, %v2528
        %v2546 = vadd.f32 %v2540, 1e-06
        %v2547 = vrcp.pop %v2546
        %v2548 = vmul.f32 %v2545, %v2547
        %v2549 = vlaneseq
        %v2550 = vshrl.u32 %v2549, 7
        %v2551 = vsub.s32 0, %v2550
        %v2552 = vrot.slane %v2523, %v2551
        %v2553 = vadd.f32 %v2548, %v2552
        %v2554 = vld [vmem:[%s4 + $0x18] sm:$0xff]
        %v2555 = vld [vmem:[%s4 + $0x20] sm:$0xff]
        %v2556 = vld [vmem:[%s254] sm:$0x1]
        %v2557 = vlaneseq
        %v2558 = vshrl.u32 %v2557, 7
        %v2559 = vsub.s32 0, %v2558
        %v2560 = vrot.slane %v2556, %v2559
        %2562 = vbcast.lane.b32.xlu0 %v2560, 256
        %v2563 = vpop.permute.xlu0 %2562
        %vm2564 = vcmp.eq.s32.totalorder %v276, %v2563
        %v2565 = vsel %vm2564, 1, 0
        %v2566 = vcvt.s32.f32 %v2565
        %v2568 = vsel %vm280, %v2566, 0
        %2570 = vmatprep.subr.mxu0 0.0
        %2571 = vmatpush1.msra.mxu0 0.0
        %2572 = vmatprep.subr.mxu0 0.0
        %2573 = vmatpush1.msra.mxu0 0.0
        %2574 = vmatprep.subr.mxu0 0.0
        %2575 = vmatpush1.msra.mxu0 0.0
        %2576 = vmatprep.subr.mxu0 0.0
        %2577 = vmatpush1.msra.mxu0 0.0
        %2578 = vmatprep.subr.mxu0 0.0
        %2579 = vmatpush1.msra.mxu0 0.0
        %2580 = vmatprep.subr.mxu0 0.0
        %2581 = vmatpush1.msra.mxu0 0.0
        %2582 = vmatprep.subr.mxu0 0.0
        %2583 = vmatpush1.msra.mxu0 0.0
        %2584 = vmatprep.subr.mxu0 0.0
        %2585 = vmatpush1.msra.mxu0 0.0
        %2586 = vmatprep.subr.mxu0 0.0
        %2587 = vmatpush1.msra.mxu0 0.0
        %2588 = vmatprep.subr.mxu0 0.0
        %2589 = vmatpush1.msra.mxu0 0.0
        %2590 = vmatprep.subr.mxu0 0.0
        %2591 = vmatpush1.msra.mxu0 0.0
        %2592 = vmatprep.subr.mxu0 0.0
        %2593 = vmatpush1.msra.mxu0 0.0
        %2594 = vmatprep.subr.mxu0 0.0
        %2595 = vmatpush1.msra.mxu0 0.0
        %2596 = vmatprep.subr.mxu0 0.0
        %2597 = vmatpush1.msra.mxu0 0.0
        %2598 = vmatprep.subr.mxu0 0.0
        %2599 = vmatpush1.msra.mxu0 %v2555
        %2600 = vmatprep.subr.mxu0 0.0
        %2601 = vmatpush1.msra.mxu0 %v2554
        %2602 = vmatprep.subr.mxu0 0.0
        %2603 = vmatpush2.msra.mxu0 0.0
        %2604 = vmatprep.subr.mxu0 0.0
        %2605 = vmatpush2.msra.mxu0 0.0
        %2606 = vmatprep.subr.mxu0 0.0
        %2607 = vmatpush2.msra.mxu0 0.0
        %2608 = vmatprep.subr.mxu0 0.0
        %2609 = vmatpush2.msra.mxu0 0.0
        %2610 = vmatprep.subr.mxu0 0.0
        %2611 = vmatpush2.msra.mxu0 0.0
        %2612 = vmatprep.subr.mxu0 0.0
        %2613 = vmatpush2.msra.mxu0 0.0
        %2614 = vmatprep.subr.mxu0 0.0
        %2615 = vmatpush2.msra.mxu0 0.0
        %2616 = vmatprep.subr.mxu0 0.0
        %2617 = vmatpush2.msra.mxu0 0.0
        %2618 = vmatprep.subr.mxu0 0.0
        %2619 = vmatpush2.msra.mxu0 0.0
        %2620 = vmatprep.subr.mxu0 0.0
        %2621 = vmatpush2.msra.mxu0 0.0
        %2622 = vmatprep.subr.mxu0 0.0
        %2623 = vmatpush2.msra.mxu0 0.0
        %2624 = vmatprep.subr.mxu0 0.0
        %2625 = vmatpush2.msra.mxu0 0.0
        %2626 = vmatprep.subr.mxu0 0.0
        %2627 = vmatpush2.msra.mxu0 0.0
        %2628 = vmatprep.subr.mxu0 0.0
        %2629 = vmatpush2.msra.mxu0 0.0
        %2630 = vmatprep.subr.mxu0 0.0
        %2631 = vmatpush2.msra.mxu0 0.0
        %2632 = vmatprep.subr.mxu0 0.0
        %2633 = vmatpush2.msra.mxu0 0.0
        %2634 = vmatprep.mubr.f32.mxu0 0.0
        %2635 = vmatmul.mubr.f32.gmra.mxu0 %v2568
        %v2636 = vpop.f32.mrf.mxu0
        %v2637 = vadd.f32 0.0, %v2636
        %v2638 = vpop.f32.mrf.mxu0
        %2639 = vdwg.mxu0
        %v2640 = vmul.f32 %v2637, 5.656854
        %v2641 = vadd.f32 %v2640, %v262
        %v2642 = vld [vmem:[%s4 + $0x340] sm:$0x1]
        %v2643 = vld [vmem:[%s4 + $0x348] sm:$0x1]
        %v2644 = vsel %vm358, %v2641, 0.0
        %2645 = vadd.xlane.f32.xlu0 %v2644
        %v2646 = vpop.xlane.xlu0 %2645
        %v2647 = vmul.f32 %v2646, %v362
        %v2648 = vsub.f32 %v2641, %v2647
        %v2649 = vmul.f32 %v2648, %v2648
        %v2650 = vsel %vm358, %v2649, 0.0
        %2651 = vadd.xlane.f32.xlu0 %v2650
        %v2652 = vpop.xlane.xlu0 %2651
        %v2653 = vmul.f32 %v2652, %v369
        %v2654 = vrsqrt.pop %v2653
        %v2655 = vmul.f32 %v2653, %v2654
        %vm2656 = vcmp.eq.f32.partialorder %v2653, inf
        %v2657 = vsel %vm2656, %v2653, %v2655
        %vm2658 = vcmp.eq.f32.partialorder %v2653, 0.0
        %v2659 = vand.u32 %v2653, 2147483648
        %v2660 = vsel %vm2658, %v2659, %v2657
        %v2661 = vlaneseq
        %v2662 = vshrl.u32 %v2661, 7
        %v2663 = vsub.s32 0, %v2662
        %v2664 = vrot.slane %v2642, %v2663
        %v2665 = vmul.f32 %v2664, %v2648
        %v2666 = vadd.f32 %v2660, 1e-06
        %v2667 = vrcp.pop %v2666
        %v2668 = vmul.f32 %v2665, %v2667
        %v2669 = vlaneseq
        %v2670 = vshrl.u32 %v2669, 7
        %v2671 = vsub.s32 0, %v2670
        %v2672 = vrot.slane %v2643, %v2671
        %v2673 = vadd.f32 %v2668, %v2672
        %v2674 = vld [vmem:[%s4 + $0x208] sm:$0xff]
        %v2675 = vld [vmem:[%s4 + $0x210] sm:$0xff]
        %v2676 = vld [vmem:[%s4 + $0x218] sm:$0xff]
        %v2677 = vld [vmem:[%s4 + $0x220] sm:$0xff]
        %v2678 = vld [vmem:[%s4 + $0x228] sm:$0x1]
        %v2679 = vlaneseq
        %v2680 = vshrl.u32 %v2679, 7
        %v2681 = vsub.s32 0, %v2680
        %v2682 = vrot.slane %v2678, %v2681
        %v2684 = vsel %vm358, %v2673, 0
        %2686 = vmatprep.subr.mxu0 0.0
        %2687 = vmatpush1.msra.mxu0 0.0
        %2688 = vmatprep.subr.mxu0 0.0
        %2689 = vmatpush1.msra.mxu0 0.0
        %2690 = vmatprep.subr.mxu0 0.0
        %2691 = vmatpush1.msra.mxu0 0.0
        %2692 = vmatprep.subr.mxu0 0.0
        %2693 = vmatpush1.msra.mxu0 0.0
        %2694 = vmatprep.subr.mxu0 0.0
        %2695 = vmatpush1.msra.mxu0 0.0
        %2696 = vmatprep.subr.mxu0 0.0
        %2697 = vmatpush1.msra.mxu0 0.0
        %2698 = vmatprep.subr.mxu0 0.0
        %2699 = vmatpush1.msra.mxu0 0.0
        %2700 = vmatprep.subr.mxu0 0.0
        %2701 = vmatpush1.msra.mxu0 0.0
        %2702 = vmatprep.subr.mxu0 0.0
        %2703 = vmatpush1.msra.mxu0 0.0
        %2704 = vmatprep.subr.mxu0 0.0
        %2705 = vmatpush1.msra.mxu0 0.0
        %2706 = vmatprep.subr.mxu0 0.0
        %2707 = vmatpush1.msra.mxu0 0.0
        %2708 = vmatprep.subr.mxu0 0.0
        %2709 = vmatpush1.msra.mxu0 0.0
        %2710 = vmatprep.subr.mxu0 0.0
        %2711 = vmatpush1.msra.mxu0 %v2677
        %2712 = vmatprep.subr.mxu0 0.0
        %2713 = vmatpush1.msra.mxu0 %v2676
        %2714 = vmatprep.subr.mxu0 0.0
        %2715 = vmatpush1.msra.mxu0 %v2675
        %2716 = vmatprep.subr.mxu0 0.0
        %2717 = vmatpush1.msra.mxu0 %v2674
        %2718 = vmatprep.subr.mxu0 0.0
        %2719 = vmatpush2.msra.mxu0 0.0
        %2720 = vmatprep.subr.mxu0 0.0
        %2721 = vmatpush2.msra.mxu0 0.0
        %2722 = vmatprep.subr.mxu0 0.0
        %2723 = vmatpush2.msra.mxu0 0.0
        %2724 = vmatprep.subr.mxu0 0.0
        %2725 = vmatpush2.msra.mxu0 0.0
        %2726 = vmatprep.subr.mxu0 0.0
        %2727 = vmatpush2.msra.mxu0 0.0
        %2728 = vmatprep.subr.mxu0 0.0
        %2729 = vmatpush2.msra.mxu0 0.0
        %2730 = vmatprep.subr.mxu0 0.0
        %2731 = vmatpush2.msra.mxu0 0.0
        %2732 = vmatprep.subr.mxu0 0.0
        %2733 = vmatpush2.msra.mxu0 0.0
        %2734 = vmatprep.subr.mxu0 0.0
        %2735 = vmatpush2.msra.mxu0 0.0
        %2736 = vmatprep.subr.mxu0 0.0
        %2737 = vmatpush2.msra.mxu0 0.0
        %2738 = vmatprep.subr.mxu0 0.0
        %2739 = vmatpush2.msra.mxu0 0.0
        %2740 = vmatprep.subr.mxu0 0.0
        %2741 = vmatpush2.msra.mxu0 0.0
        %2742 = vmatprep.subr.mxu0 0.0
        %2743 = vmatpush2.msra.mxu0 0.0
        %2744 = vmatprep.subr.mxu0 0.0
        %2745 = vmatpush2.msra.mxu0 0.0
        %2746 = vmatprep.subr.mxu0 0.0
        %2747 = vmatpush2.msra.mxu0 0.0
        %2748 = vmatprep.subr.mxu0 0.0
        %2749 = vmatpush2.msra.mxu0 0.0
        %2750 = vmatprep.mubr.f32.mxu0 0.0
        %2751 = vmatmul.mubr.f32.gmra.mxu0 %v2684
        %v2752 = vpop.f32.mrf.mxu0
        %v2753 = vadd.f32 %v2682, %v2752
        %v2754 = vpop.f32.mrf.mxu0
        %2755 = vdwg.mxu0
        %v2756 = vld [vmem:[%s4 + $0x230] sm:$0xff]
        %v2757 = vld [vmem:[%s4 + $0x238] sm:$0xff]
        %v2758 = vld [vmem:[%s4 + $0x240] sm:$0xff]
        %v2759 = vld [vmem:[%s4 + $0x248] sm:$0xff]
        %v2760 = vld [vmem:[%s4 + $0x250] sm:$0x1]
        %2762 = vrot.lane.b32.xlu0 %v2753, 96
        %v2763 = vpop.permute.xlu0 %2762
        %v2764 = vsel %vm481, %v2753, 0
        %v2766 = vsel %vm481, %v2763, 0
        %2768 = vmatprep.subr.mxu0 0.0
        %2769 = vmatpush1.xpose.msra.mxu0 0.0
        %2770 = vmatprep.subr.mxu0 0.0
        %2771 = vmatpush1.xpose.msra.mxu0 0.0
        %2772 = vmatprep.subr.mxu0 0.0
        %2773 = vmatpush1.xpose.msra.mxu0 0.0
        %2774 = vmatprep.subr.mxu0 0.0
        %2775 = vmatpush1.xpose.msra.mxu0 0.0
        %2776 = vmatprep.subr.mxu0 0.0
        %2777 = vmatpush1.xpose.msra.mxu0 0.0
        %2778 = vmatprep.subr.mxu0 0.0
        %2779 = vmatpush1.xpose.msra.mxu0 0.0
        %2780 = vmatprep.subr.mxu0 0.0
        %2781 = vmatpush1.xpose.msra.mxu0 0.0
        %2782 = vmatprep.subr.mxu0 0.0
        %2783 = vmatpush1.xpose.msra.mxu0 0.0
        %2784 = vmatprep.subr.mxu0 0.0
        %2785 = vmatpush1.xpose.msra.mxu0 0.0
        %2786 = vmatprep.subr.mxu0 0.0
        %2787 = vmatpush1.xpose.msra.mxu0 0.0
        %2788 = vmatprep.subr.mxu0 0.0
        %2789 = vmatpush1.xpose.msra.mxu0 0.0
        %2790 = vmatprep.subr.mxu0 0.0
        %2791 = vmatpush1.xpose.msra.mxu0 0.0
        %2792 = vmatprep.subr.mxu0 0.0
        %2793 = vmatpush1.xpose.msra.mxu0 0.0
        %2794 = vmatprep.subr.mxu0 0.0
        %2795 = vmatpush1.xpose.msra.mxu0 0.0
        %2796 = vmatprep.subr.mxu0 0.0
        %2797 = vmatpush1.xpose.msra.mxu0 0.0
        %2798 = vmatprep.subr.mxu0 0.0
        %2799 = vmatpush1.xpose.msra.mxu0 %v2766
        %2800 = vmatprep.subr.mxu0 0.0
        %2801 = vmatpush2.xpose.msra.mxu0 0.0
        %2802 = vmatprep.subr.mxu0 0.0
        %2803 = vmatpush2.xpose.msra.mxu0 0.0
        %2804 = vmatprep.subr.mxu0 0.0
        %2805 = vmatpush2.xpose.msra.mxu0 0.0
        %2806 = vmatprep.subr.mxu0 0.0
        %2807 = vmatpush2.xpose.msra.mxu0 0.0
        %2808 = vmatprep.subr.mxu0 0.0
        %2809 = vmatpush2.xpose.msra.mxu0 0.0
        %2810 = vmatprep.subr.mxu0 0.0
        %2811 = vmatpush2.xpose.msra.mxu0 0.0
        %2812 = vmatprep.subr.mxu0 0.0
        %2813 = vmatpush2.xpose.msra.mxu0 0.0
        %2814 = vmatprep.subr.mxu0 0.0
        %2815 = vmatpush2.xpose.msra.mxu0 0.0
        %2816 = vmatprep.subr.mxu0 0.0
        %2817 = vmatpush2.xpose.msra.mxu0 0.0
        %2818 = vmatprep.subr.mxu0 0.0
        %2819 = vmatpush2.xpose.msra.mxu0 0.0
        %2820 = vmatprep.subr.mxu0 0.0
        %2821 = vmatpush2.xpose.msra.mxu0 0.0
        %2822 = vmatprep.subr.mxu0 0.0
        %2823 = vmatpush2.xpose.msra.mxu0 0.0
        %2824 = vmatprep.subr.mxu0 0.0
        %2825 = vmatpush2.xpose.msra.mxu0 0.0
        %2826 = vmatprep.subr.mxu0 0.0
        %2827 = vmatpush2.xpose.msra.mxu0 0.0
        %2828 = vmatprep.subr.mxu0 0.0
        %2829 = vmatpush2.xpose.msra.mxu0 0.0
        %2830 = vmatprep.subr.mxu0 0.0
        %2831 = vmatpush2.xpose.msra.mxu0 0.0
        %2832 = vmatprep.mubr.f32.mxu0 0.0
        %2833 = vmatmul.mubr.f32.gmra.mxu0 %v2764
        %v2834 = vpop.f32.mrf.mxu0
        %v2835 = vadd.f32 0.0, %v2834
        %v2836 = vpop.f32.mrf.mxu0
        %2837 = vdwg.mxu0
        %2838 = vrot.lane.b32.xlu0 %v2753, 120
        %v2839 = vpop.permute.xlu0 %2838
        %2840 = vrot.lane.b32.xlu0 %v2753, 88
        %v2841 = vpop.permute.xlu0 %2840
        %v2842 = vsel %vm481, %v2839, 0
        %v2844 = vsel %vm481, %v2841, 0
        %2846 = vmatprep.subr.mxu0 0.0
        %2847 = vmatpush1.xpose.msra.mxu0 0.0
        %2848 = vmatprep.subr.mxu0 0.0
        %2849 = vmatpush1.xpose.msra.mxu0 0.0
        %2850 = vmatprep.subr.mxu0 0.0
        %2851 = vmatpush1.xpose.msra.mxu0 0.0
        %2852 = vmatprep.subr.mxu0 0.0
        %2853 = vmatpush1.xpose.msra.mxu0 0.0
        %2854 = vmatprep.subr.mxu0 0.0
        %2855 = vmatpush1.xpose.msra.mxu0 0.0
        %2856 = vmatprep.subr.mxu0 0.0
        %2857 = vmatpush1.xpose.msra.mxu0 0.0
        %2858 = vmatprep.subr.mxu0 0.0
        %2859 = vmatpush1.xpose.msra.mxu0 0.0
        %2860 = vmatprep.subr.mxu0 0.0
        %2861 = vmatpush1.xpose.msra.mxu0 0.0
        %2862 = vmatprep.subr.mxu0 0.0
        %2863 = vmatpush1.xpose.msra.mxu0 0.0
        %2864 = vmatprep.subr.mxu0 0.0
        %2865 = vmatpush1.xpose.msra.mxu0 0.0
        %2866 = vmatprep.subr.mxu0 0.0
        %2867 = vmatpush1.xpose.msra.mxu0 0.0
        %2868 = vmatprep.subr.mxu0 0.0
        %2869 = vmatpush1.xpose.msra.mxu0 0.0
        %2870 = vmatprep.subr.mxu0 0.0
        %2871 = vmatpush1.xpose.msra.mxu0 0.0
        %2872 = vmatprep.subr.mxu0 0.0
        %2873 = vmatpush1.xpose.msra.mxu0 0.0
        %2874 = vmatprep.subr.mxu0 0.0
        %2875 = vmatpush1.xpose.msra.mxu0 0.0
        %2876 = vmatprep.subr.mxu0 0.0
        %2877 = vmatpush1.xpose.msra.mxu0 %v2844
        %2878 = vmatprep.subr.mxu0 0.0
        %2879 = vmatpush2.xpose.msra.mxu0 0.0
        %2880 = vmatprep.subr.mxu0 0.0
        %2881 = vmatpush2.xpose.msra.mxu0 0.0
        %2882 = vmatprep.subr.mxu0 0.0
        %2883 = vmatpush2.xpose.msra.mxu0 0.0
        %2884 = vmatprep.subr.mxu0 0.0
        %2885 = vmatpush2.xpose.msra.mxu0 0.0
        %2886 = vmatprep.subr.mxu0 0.0
        %2887 = vmatpush2.xpose.msra.mxu0 0.0
        %2888 = vmatprep.subr.mxu0 0.0
        %2889 = vmatpush2.xpose.msra.mxu0 0.0
        %2890 = vmatprep.subr.mxu0 0.0
        %2891 = vmatpush2.xpose.msra.mxu0 0.0
        %2892 = vmatprep.subr.mxu0 0.0
        %2893 = vmatpush2.xpose.msra.mxu0 0.0
        %2894 = vmatprep.subr.mxu0 0.0
        %2895 = vmatpush2.xpose.msra.mxu0 0.0
        %2896 = vmatprep.subr.mxu0 0.0
        %2897 = vmatpush2.xpose.msra.mxu0 0.0
        %2898 = vmatprep.subr.mxu0 0.0
        %2899 = vmatpush2.xpose.msra.mxu0 0.0
        %2900 = vmatprep.subr.mxu0 0.0
        %2901 = vmatpush2.xpose.msra.mxu0 0.0
        %2902 = vmatprep.subr.mxu0 0.0
        %2903 = vmatpush2.xpose.msra.mxu0 0.0
        %2904 = vmatprep.subr.mxu0 0.0
        %2905 = vmatpush2.xpose.msra.mxu0 0.0
        %2906 = vmatprep.subr.mxu0 0.0
        %2907 = vmatpush2.xpose.msra.mxu0 0.0
        %2908 = vmatprep.subr.mxu0 0.0
        %2909 = vmatpush2.xpose.msra.mxu0 0.0
        %2910 = vmatprep.mubr.f32.mxu0 0.0
        %2911 = vmatmul.mubr.f32.gmra.mxu0 %v2842
        %v2912 = vpop.f32.mrf.mxu0
        %v2913 = vadd.f32 0.0, %v2912
        %v2914 = vpop.f32.mrf.mxu0
        %2915 = vdwg.mxu0
        %2916 = vrot.lane.b32.xlu0 %v2753, 112
        %v2917 = vpop.permute.xlu0 %2916
        %2918 = vrot.lane.b32.xlu0 %v2753, 80
        %v2919 = vpop.permute.xlu0 %2918
        %v2920 = vsel %vm481, %v2917, 0
        %v2922 = vsel %vm481, %v2919, 0
        %2924 = vmatprep.subr.mxu0 0.0
        %2925 = vmatpush1.xpose.msra.mxu0 0.0
        %2926 = vmatprep.subr.mxu0 0.0
        %2927 = vmatpush1.xpose.msra.mxu0 0.0
        %2928 = vmatprep.subr.mxu0 0.0
        %2929 = vmatpush1.xpose.msra.mxu0 0.0
        %2930 = vmatprep.subr.mxu0 0.0
        %2931 = vmatpush1.xpose.msra.mxu0 0.0
        %2932 = vmatprep.subr.mxu0 0.0
        %2933 = vmatpush1.xpose.msra.mxu0 0.0
        %2934 = vmatprep.subr.mxu0 0.0
        %2935 = vmatpush1.xpose.msra.mxu0 0.0
        %2936 = vmatprep.subr.mxu0 0.0
        %2937 = vmatpush1.xpose.msra.mxu0 0.0
        %2938 = vmatprep.subr.mxu0 0.0
        %2939 = vmatpush1.xpose.msra.mxu0 0.0
        %2940 = vmatprep.subr.mxu0 0.0
        %2941 = vmatpush1.xpose.msra.mxu0 0.0
        %2942 = vmatprep.subr.mxu0 0.0
        %2943 = vmatpush1.xpose.msra.mxu0 0.0
        %2944 = vmatprep.subr.mxu0 0.0
        %2945 = vmatpush1.xpose.msra.mxu0 0.0
        %2946 = vmatprep.subr.mxu0 0.0
        %2947 = vmatpush1.xpose.msra.mxu0 0.0
        %2948 = vmatprep.subr.mxu0 0.0
        %2949 = vmatpush1.xpose.msra.mxu0 0.0
        %2950 = vmatprep.subr.mxu0 0.0
        %2951 = vmatpush1.xpose.msra.mxu0 0.0
        %2952 = vmatprep.subr.mxu0 0.0
        %2953 = vmatpush1.xpose.msra.mxu0 0.0
        %2954 = vmatprep.subr.mxu0 0.0
        %2955 = vmatpush1.xpose.msra.mxu0 %v2922
        %2956 = vmatprep.subr.mxu0 0.0
        %2957 = vmatpush2.xpose.msra.mxu0 0.0
        %2958 = vmatprep.subr.mxu0 0.0
        %2959 = vmatpush2.xpose.msra.mxu0 0.0
        %2960 = vmatprep.subr.mxu0 0.0
        %2961 = vmatpush2.xpose.msra.mxu0 0.0
        %2962 = vmatprep.subr.mxu0 0.0
        %2963 = vmatpush2.xpose.msra.mxu0 0.0
        %2964 = vmatprep.subr.mxu0 0.0
        %2965 = vmatpush2.xpose.msra.mxu0 0.0
        %2966 = vmatprep.subr.mxu0 0.0
        %2967 = vmatpush2.xpose.msra.mxu0 0.0
        %2968 = vmatprep.subr.mxu0 0.0
        %2969 = vmatpush2.xpose.msra.mxu0 0.0
        %2970 = vmatprep.subr.mxu0 0.0
        %2971 = vmatpush2.xpose.msra.mxu0 0.0
        %2972 = vmatprep.subr.mxu0 0.0
        %2973 = vmatpush2.xpose.msra.mxu0 0.0
        %2974 = vmatprep.subr.mxu0 0.0
        %2975 = vmatpush2.xpose.msra.mxu0 0.0
        %2976 = vmatprep.subr.mxu0 0.0
        %2977 = vmatpush2.xpose.msra.mxu0 0.0
        %2978 = vmatprep.subr.mxu0 0.0
        %2979 = vmatpush2.xpose.msra.mxu0 0.0
        %2980 = vmatprep.subr.mxu0 0.0
        %2981 = vmatpush2.xpose.msra.mxu0 0.0
        %2982 = vmatprep.subr.mxu0 0.0
        %2983 = vmatpush2.xpose.msra.mxu0 0.0
        %2984 = vmatprep.subr.mxu0 0.0
        %2985 = vmatpush2.xpose.msra.mxu0 0.0
        %2986 = vmatprep.subr.mxu0 0.0
        %2987 = vmatpush2.xpose.msra.mxu0 0.0
        %2988 = vmatprep.mubr.f32.mxu0 0.0
        %2989 = vmatmul.mubr.f32.gmra.mxu0 %v2920
        %v2990 = vpop.f32.mrf.mxu0
        %v2991 = vadd.f32 0.0, %v2990
        %v2992 = vpop.f32.mrf.mxu0
        %2993 = vdwg.mxu0
        %2994 = vrot.lane.b32.xlu0 %v2753, 104
        %v2995 = vpop.permute.xlu0 %2994
        %2996 = vrot.lane.b32.xlu0 %v2753, 72
        %v2997 = vpop.permute.xlu0 %2996
        %v2998 = vsel %vm481, %v2995, 0
        %v3000 = vsel %vm481, %v2997, 0
        %3002 = vmatprep.subr.mxu0 0.0
        %3003 = vmatpush1.xpose.msra.mxu0 0.0
        %3004 = vmatprep.subr.mxu0 0.0
        %3005 = vmatpush1.xpose.msra.mxu0 0.0
        %3006 = vmatprep.subr.mxu0 0.0
        %3007 = vmatpush1.xpose.msra.mxu0 0.0
        %3008 = vmatprep.subr.mxu0 0.0
        %3009 = vmatpush1.xpose.msra.mxu0 0.0
        %3010 = vmatprep.subr.mxu0 0.0
        %3011 = vmatpush1.xpose.msra.mxu0 0.0
        %3012 = vmatprep.subr.mxu0 0.0
        %3013 = vmatpush1.xpose.msra.mxu0 0.0
        %3014 = vmatprep.subr.mxu0 0.0
        %3015 = vmatpush1.xpose.msra.mxu0 0.0
        %3016 = vmatprep.subr.mxu0 0.0
        %3017 = vmatpush1.xpose.msra.mxu0 0.0
        %3018 = vmatprep.subr.mxu0 0.0
        %3019 = vmatpush1.xpose.msra.mxu0 0.0
        %3020 = vmatprep.subr.mxu0 0.0
        %3021 = vmatpush1.xpose.msra.mxu0 0.0
        %3022 = vmatprep.subr.mxu0 0.0
        %3023 = vmatpush1.xpose.msra.mxu0 0.0
        %3024 = vmatprep.subr.mxu0 0.0
        %3025 = vmatpush1.xpose.msra.mxu0 0.0
        %3026 = vmatprep.subr.mxu0 0.0
        %3027 = vmatpush1.xpose.msra.mxu0 0.0
        %3028 = vmatprep.subr.mxu0 0.0
        %3029 = vmatpush1.xpose.msra.mxu0 0.0
        %3030 = vmatprep.subr.mxu0 0.0
        %3031 = vmatpush1.xpose.msra.mxu0 0.0
        %3032 = vmatprep.subr.mxu0 0.0
        %3033 = vmatpush1.xpose.msra.mxu0 %v3000
        %3034 = vmatprep.subr.mxu0 0.0
        %3035 = vmatpush2.xpose.msra.mxu0 0.0
        %3036 = vmatprep.subr.mxu0 0.0
        %3037 = vmatpush2.xpose.msra.mxu0 0.0
        %3038 = vmatprep.subr.mxu0 0.0
        %3039 = vmatpush2.xpose.msra.mxu0 0.0
        %3040 = vmatprep.subr.mxu0 0.0
        %3041 = vmatpush2.xpose.msra.mxu0 0.0
        %3042 = vmatprep.subr.mxu0 0.0
        %3043 = vmatpush2.xpose.msra.mxu0 0.0
        %3044 = vmatprep.subr.mxu0 0.0
        %3045 = vmatpush2.xpose.msra.mxu0 0.0
        %3046 = vmatprep.subr.mxu0 0.0
        %3047 = vmatpush2.xpose.msra.mxu0 0.0
        %3048 = vmatprep.subr.mxu0 0.0
        %3049 = vmatpush2.xpose.msra.mxu0 0.0
        %3050 = vmatprep.subr.mxu0 0.0
        %3051 = vmatpush2.xpose.msra.mxu0 0.0
        %3052 = vmatprep.subr.mxu0 0.0
        %3053 = vmatpush2.xpose.msra.mxu0 0.0
        %3054 = vmatprep.subr.mxu0 0.0
        %3055 = vmatpush2.xpose.msra.mxu0 0.0
        %3056 = vmatprep.subr.mxu0 0.0
        %3057 = vmatpush2.xpose.msra.mxu0 0.0
        %3058 = vmatprep.subr.mxu0 0.0
        %3059 = vmatpush2.xpose.msra.mxu0 0.0
        %3060 = vmatprep.subr.mxu0 0.0
        %3061 = vmatpush2.xpose.msra.mxu0 0.0
        %3062 = vmatprep.subr.mxu0 0.0
        %3063 = vmatpush2.xpose.msra.mxu0 0.0
        %3064 = vmatprep.subr.mxu0 0.0
        %3065 = vmatpush2.xpose.msra.mxu0 0.0
        %3066 = vmatprep.mubr.f32.mxu0 0.0
        %3067 = vmatmul.mubr.f32.gmra.mxu0 %v2998
        %v3068 = vpop.f32.mrf.mxu0
        %v3069 = vadd.f32 0.0, %v3068
        %v3070 = vpop.f32.mrf.mxu0
        %3071 = vdwg.mxu0
        %v3072 = vadd.f32 %v2835, %v264
        %v3073 = vadd.f32 %v2913, %v264
        %v3074 = vadd.f32 %v2991, %v264
        %v3075 = vadd.f32 %v3069, %v264
        %v3076 = vsel %vm481, %v3072, -inf
        %3077 = vmax.xlane.f32.xlu0 %v3076
        %v3078 = vpop.xlane.xlu0 %3077
        %v3079 = vsel %vm481, %v3073, -inf
        %3080 = vmax.xlane.f32.xlu0 %v3079
        %v3081 = vpop.xlane.xlu0 %3080
        %v3082 = vsel %vm481, %v3074, -inf
        %3083 = vmax.xlane.f32.xlu0 %v3082
        %v3084 = vpop.xlane.xlu0 %3083
        %v3085 = vsel %vm481, %v3075, -inf
        %3086 = vmax.xlane.f32.xlu0 %v3085
        %v3087 = vpop.xlane.xlu0 %3086
        %v3088 = vsub.f32 %v3072, %v3078
        %v3089 = vsub.f32 %v3073, %v3081
        %v3090 = vsub.f32 %v3074, %v3084
        %v3091 = vsub.f32 %v3075, %v3087
        %v3092 = vmul.f32 %v3088, 1.442695
        %v3093 = vpow.pop %v3092
        %v3094 = vmul.f32 %v3089, 1.442695
        %v3095 = vpow.pop %v3094
        %v3096 = vmul.f32 %v3090, 1.442695
        %v3097 = vpow.pop %v3096
        %v3098 = vmul.f32 %v3091, 1.442695
        %v3099 = vpow.pop %v3098
        %v3100 = vsel %vm481, %v3093, 0.0
        %3101 = vadd.xlane.f32.xlu0 %v3100
        %v3102 = vpop.xlane.xlu0 %3101
        %v3103 = vsel %vm481, %v3095, 0.0
        %3104 = vadd.xlane.f32.xlu0 %v3103
        %v3105 = vpop.xlane.xlu0 %3104
        %v3106 = vsel %vm481, %v3097, 0.0
        %3107 = vadd.xlane.f32.xlu0 %v3106
        %v3108 = vpop.xlane.xlu0 %3107
        %v3109 = vsel %vm481, %v3099, 0.0
        %3110 = vadd.xlane.f32.xlu0 %v3109
        %v3111 = vpop.xlane.xlu0 %3110
        %v3112 = vrcp.pop %v3102
        %v3113 = vrcp.pop %v3105
        %v3114 = vrcp.pop %v3108
        %v3115 = vrcp.pop %v3111
        %v3116 = vmul.f32 %v3093, %v3112
        %v3117 = vmul.f32 %v3095, %v3113
        %v3118 = vmul.f32 %v3097, %v3114
        %v3119 = vmul.f32 %v3099, %v3115
        %3120 = vrot.lane.b32.xlu0 %v2753, 64
        %v3121 = vpop.permute.xlu0 %3120
        %v3124 = vsel %vm481, %v3116, 0
        %3126 = vmatprep.subr.mxu0 0.0
        %3127 = vmatpush1.msra.mxu0 0.0
        %3128 = vmatprep.subr.mxu0 0.0
        %3129 = vmatpush1.msra.mxu0 0.0
        %3130 = vmatprep.subr.mxu0 0.0
        %3131 = vmatpush1.msra.mxu0 0.0
        %3132 = vmatprep.subr.mxu0 0.0
        %3133 = vmatpush1.msra.mxu0 0.0
        %3134 = vmatprep.subr.mxu0 0.0
        %3135 = vmatpush1.msra.mxu0 0.0
        %3136 = vmatprep.subr.mxu0 0.0
        %3137 = vmatpush1.msra.mxu0 0.0
        %3138 = vmatprep.subr.mxu0 0.0
        %3139 = vmatpush1.msra.mxu0 0.0
        %3140 = vmatprep.subr.mxu0 0.0
        %3141 = vmatpush1.msra.mxu0 0.0
        %3142 = vmatprep.subr.mxu0 0.0
        %3143 = vmatpush1.msra.mxu0 0.0
        %3144 = vmatprep.subr.mxu0 0.0
        %3145 = vmatpush1.msra.mxu0 0.0
        %3146 = vmatprep.subr.mxu0 0.0
        %3147 = vmatpush1.msra.mxu0 0.0
        %3148 = vmatprep.subr.mxu0 0.0
        %3149 = vmatpush1.msra.mxu0 0.0
        %3150 = vmatprep.subr.mxu0 0.0
        %3151 = vmatpush1.msra.mxu0 0.0
        %3152 = vmatprep.subr.mxu0 0.0
        %3153 = vmatpush1.msra.mxu0 0.0
        %3154 = vmatprep.subr.mxu0 0.0
        %3155 = vmatpush1.msra.mxu0 0.0
        %3156 = vmatprep.subr.mxu0 0.0
        %3157 = vmatpush1.msra.mxu0 %v3121
        %3158 = vmatprep.subr.mxu0 0.0
        %3159 = vmatpush2.msra.mxu0 0.0
        %3160 = vmatprep.subr.mxu0 0.0
        %3161 = vmatpush2.msra.mxu0 0.0
        %3162 = vmatprep.subr.mxu0 0.0
        %3163 = vmatpush2.msra.mxu0 0.0
        %3164 = vmatprep.subr.mxu0 0.0
        %3165 = vmatpush2.msra.mxu0 0.0
        %3166 = vmatprep.subr.mxu0 0.0
        %3167 = vmatpush2.msra.mxu0 0.0
        %3168 = vmatprep.subr.mxu0 0.0
        %3169 = vmatpush2.msra.mxu0 0.0
        %3170 = vmatprep.subr.mxu0 0.0
        %3171 = vmatpush2.msra.mxu0 0.0
        %3172 = vmatprep.subr.mxu0 0.0
        %3173 = vmatpush2.msra.mxu0 0.0
        %3174 = vmatprep.subr.mxu0 0.0
        %3175 = vmatpush2.msra.mxu0 0.0
        %3176 = vmatprep.subr.mxu0 0.0
        %3177 = vmatpush2.msra.mxu0 0.0
        %3178 = vmatprep.subr.mxu0 0.0
        %3179 = vmatpush2.msra.mxu0 0.0
        %3180 = vmatprep.subr.mxu0 0.0
        %3181 = vmatpush2.msra.mxu0 0.0
        %3182 = vmatprep.subr.mxu0 0.0
        %3183 = vmatpush2.msra.mxu0 0.0
        %3184 = vmatprep.subr.mxu0 0.0
        %3185 = vmatpush2.msra.mxu0 0.0
        %3186 = vmatprep.subr.mxu0 0.0
        %3187 = vmatpush2.msra.mxu0 0.0
        %3188 = vmatprep.subr.mxu0 0.0
        %3189 = vmatpush2.msra.mxu0 0.0
        %3190 = vmatprep.mubr.f32.mxu0 0.0
        %3191 = vmatmul.mubr.f32.gmra.mxu0 %v3124
        %v3192 = vpop.f32.mrf.mxu0
        %v3193 = vadd.f32 0.0, %v3192
        %v3194 = vpop.f32.mrf.mxu0
        %3195 = vdwg.mxu0
        %3196 = vrot.lane.b32.xlu0 %v2753, 56
        %v3197 = vpop.permute.xlu0 %3196
        %v3200 = vsel %vm481, %v3117, 0
        %3202 = vmatprep.subr.mxu0 0.0
        %3203 = vmatpush1.msra.mxu0 0.0
        %3204 = vmatprep.subr.mxu0 0.0
        %3205 = vmatpush1.msra.mxu0 0.0
        %3206 = vmatprep.subr.mxu0 0.0
        %3207 = vmatpush1.msra.mxu0 0.0
        %3208 = vmatprep.subr.mxu0 0.0
        %3209 = vmatpush1.msra.mxu0 0.0
        %3210 = vmatprep.subr.mxu0 0.0
        %3211 = vmatpush1.msra.mxu0 0.0
        %3212 = vmatprep.subr.mxu0 0.0
        %3213 = vmatpush1.msra.mxu0 0.0
        %3214 = vmatprep.subr.mxu0 0.0
        %3215 = vmatpush1.msra.mxu0 0.0
        %3216 = vmatprep.subr.mxu0 0.0
        %3217 = vmatpush1.msra.mxu0 0.0
        %3218 = vmatprep.subr.mxu0 0.0
        %3219 = vmatpush1.msra.mxu0 0.0
        %3220 = vmatprep.subr.mxu0 0.0
        %3221 = vmatpush1.msra.mxu0 0.0
        %3222 = vmatprep.subr.mxu0 0.0
        %3223 = vmatpush1.msra.mxu0 0.0
        %3224 = vmatprep.subr.mxu0 0.0
        %3225 = vmatpush1.msra.mxu0 0.0
        %3226 = vmatprep.subr.mxu0 0.0
        %3227 = vmatpush1.msra.mxu0 0.0
        %3228 = vmatprep.subr.mxu0 0.0
        %3229 = vmatpush1.msra.mxu0 0.0
        %3230 = vmatprep.subr.mxu0 0.0
        %3231 = vmatpush1.msra.mxu0 0.0
        %3232 = vmatprep.subr.mxu0 0.0
        %3233 = vmatpush1.msra.mxu0 %v3197
        %3234 = vmatprep.subr.mxu0 0.0
        %3235 = vmatpush2.msra.mxu0 0.0
        %3236 = vmatprep.subr.mxu0 0.0
        %3237 = vmatpush2.msra.mxu0 0.0
        %3238 = vmatprep.subr.mxu0 0.0
        %3239 = vmatpush2.msra.mxu0 0.0
        %3240 = vmatprep.subr.mxu0 0.0
        %3241 = vmatpush2.msra.mxu0 0.0
        %3242 = vmatprep.subr.mxu0 0.0
        %3243 = vmatpush2.msra.mxu0 0.0
        %3244 = vmatprep.subr.mxu0 0.0
        %3245 = vmatpush2.msra.mxu0 0.0
        %3246 = vmatprep.subr.mxu0 0.0
        %3247 = vmatpush2.msra.mxu0 0.0
        %3248 = vmatprep.subr.mxu0 0.0
        %3249 = vmatpush2.msra.mxu0 0.0
        %3250 = vmatprep.subr.mxu0 0.0
        %3251 = vmatpush2.msra.mxu0 0.0
        %3252 = vmatprep.subr.mxu0 0.0
        %3253 = vmatpush2.msra.mxu0 0.0
        %3254 = vmatprep.subr.mxu0 0.0
        %3255 = vmatpush2.msra.mxu0 0.0
        %3256 = vmatprep.subr.mxu0 0.0
        %3257 = vmatpush2.msra.mxu0 0.0
        %3258 = vmatprep.subr.mxu0 0.0
        %3259 = vmatpush2.msra.mxu0 0.0
        %3260 = vmatprep.subr.mxu0 0.0
        %3261 = vmatpush2.msra.mxu0 0.0
        %3262 = vmatprep.subr.mxu0 0.0
        %3263 = vmatpush2.msra.mxu0 0.0
        %3264 = vmatprep.subr.mxu0 0.0
        %3265 = vmatpush2.msra.mxu0 0.0
        %3266 = vmatprep.mubr.f32.mxu0 0.0
        %3267 = vmatmul.mubr.f32.gmra.mxu0 %v3200
        %v3268 = vpop.f32.mrf.mxu0
        %v3269 = vadd.f32 0.0, %v3268
        %v3270 = vpop.f32.mrf.mxu0
        %3271 = vdwg.mxu0
        %3272 = vrot.lane.b32.xlu0 %v2753, 48
        %v3273 = vpop.permute.xlu0 %3272
        %v3276 = vsel %vm481, %v3118, 0
        %3278 = vmatprep.subr.mxu0 0.0
        %3279 = vmatpush1.msra.mxu0 0.0
        %3280 = vmatprep.subr.mxu0 0.0
        %3281 = vmatpush1.msra.mxu0 0.0
        %3282 = vmatprep.subr.mxu0 0.0
        %3283 = vmatpush1.msra.mxu0 0.0
        %3284 = vmatprep.subr.mxu0 0.0
        %3285 = vmatpush1.msra.mxu0 0.0
        %3286 = vmatprep.subr.mxu0 0.0
        %3287 = vmatpush1.msra.mxu0 0.0
        %3288 = vmatprep.subr.mxu0 0.0
        %3289 = vmatpush1.msra.mxu0 0.0
        %3290 = vmatprep.subr.mxu0 0.0
        %3291 = vmatpush1.msra.mxu0 0.0
        %3292 = vmatprep.subr.mxu0 0.0
        %3293 = vmatpush1.msra.mxu0 0.0
        %3294 = vmatprep.subr.mxu0 0.0
        %3295 = vmatpush1.msra.mxu0 0.0
        %3296 = vmatprep.subr.mxu0 0.0
        %3297 = vmatpush1.msra.mxu0 0.0
        %3298 = vmatprep.subr.mxu0 0.0
        %3299 = vmatpush1.msra.mxu0 0.0
        %3300 = vmatprep.subr.mxu0 0.0
        %3301 = vmatpush1.msra.mxu0 0.0
        %3302 = vmatprep.subr.mxu0 0.0
        %3303 = vmatpush1.msra.mxu0 0.0
        %3304 = vmatprep.subr.mxu0 0.0
        %3305 = vmatpush1.msra.mxu0 0.0
        %3306 = vmatprep.subr.mxu0 0.0
        %3307 = vmatpush1.msra.mxu0 0.0
        %3308 = vmatprep.subr.mxu0 0.0
        %3309 = vmatpush1.msra.mxu0 %v3273
        %3310 = vmatprep.subr.mxu0 0.0
        %3311 = vmatpush2.msra.mxu0 0.0
        %3312 = vmatprep.subr.mxu0 0.0
        %3313 = vmatpush2.msra.mxu0 0.0
        %3314 = vmatprep.subr.mxu0 0.0
        %3315 = vmatpush2.msra.mxu0 0.0
        %3316 = vmatprep.subr.mxu0 0.0
        %3317 = vmatpush2.msra.mxu0 0.0
        %3318 = vmatprep.subr.mxu0 0.0
        %3319 = vmatpush2.msra.mxu0 0.0
        %3320 = vmatprep.subr.mxu0 0.0
        %3321 = vmatpush2.msra.mxu0 0.0
        %3322 = vmatprep.subr.mxu0 0.0
        %3323 = vmatpush2.msra.mxu0 0.0
        %3324 = vmatprep.subr.mxu0 0.0
        %3325 = vmatpush2.msra.mxu0 0.0
        %3326 = vmatprep.subr.mxu0 0.0
        %3327 = vmatpush2.msra.mxu0 0.0
        %3328 = vmatprep.subr.mxu0 0.0
        %3329 = vmatpush2.msra.mxu0 0.0
        %3330 = vmatprep.subr.mxu0 0.0
        %3331 = vmatpush2.msra.mxu0 0.0
        %3332 = vmatprep.subr.mxu0 0.0
        %3333 = vmatpush2.msra.mxu0 0.0
        %3334 = vmatprep.subr.mxu0 0.0
        %3335 = vmatpush2.msra.mxu0 0.0
        %3336 = vmatprep.subr.mxu0 0.0
        %3337 = vmatpush2.msra.mxu0 0.0
        %3338 = vmatprep.subr.mxu0 0.0
        %3339 = vmatpush2.msra.mxu0 0.0
        %3340 = vmatprep.subr.mxu0 0.0
        %3341 = vmatpush2.msra.mxu0 0.0
        %3342 = vmatprep.mubr.f32.mxu0 0.0
        %3343 = vmatmul.mubr.f32.gmra.mxu0 %v3276
        %v3344 = vpop.f32.mrf.mxu0
        %v3345 = vadd.f32 0.0, %v3344
        %v3346 = vpop.f32.mrf.mxu0
        %3347 = vdwg.mxu0
        %3348 = vrot.lane.b32.xlu0 %v2753, 40
        %v3349 = vpop.permute.xlu0 %3348
        %v3352 = vsel %vm481, %v3119, 0
        %3354 = vmatprep.subr.mxu0 0.0
        %3355 = vmatpush1.msra.mxu0 0.0
        %3356 = vmatprep.subr.mxu0 0.0
        %3357 = vmatpush1.msra.mxu0 0.0
        %3358 = vmatprep.subr.mxu0 0.0
        %3359 = vmatpush1.msra.mxu0 0.0
        %3360 = vmatprep.subr.mxu0 0.0
        %3361 = vmatpush1.msra.mxu0 0.0
        %3362 = vmatprep.subr.mxu0 0.0
        %3363 = vmatpush1.msra.mxu0 0.0
        %3364 = vmatprep.subr.mxu0 0.0
        %3365 = vmatpush1.msra.mxu0 0.0
        %3366 = vmatprep.subr.mxu0 0.0
        %3367 = vmatpush1.msra.mxu0 0.0
        %3368 = vmatprep.subr.mxu0 0.0
        %3369 = vmatpush1.msra.mxu0 0.0
        %3370 = vmatprep.subr.mxu0 0.0
        %3371 = vmatpush1.msra.mxu0 0.0
        %3372 = vmatprep.subr.mxu0 0.0
        %3373 = vmatpush1.msra.mxu0 0.0
        %3374 = vmatprep.subr.mxu0 0.0
        %3375 = vmatpush1.msra.mxu0 0.0
        %3376 = vmatprep.subr.mxu0 0.0
        %3377 = vmatpush1.msra.mxu0 0.0
        %3378 = vmatprep.subr.mxu0 0.0
        %3379 = vmatpush1.msra.mxu0 0.0
        %3380 = vmatprep.subr.mxu0 0.0
        %3381 = vmatpush1.msra.mxu0 0.0
        %3382 = vmatprep.subr.mxu0 0.0
        %3383 = vmatpush1.msra.mxu0 0.0
        %3384 = vmatprep.subr.mxu0 0.0
        %3385 = vmatpush1.msra.mxu0 %v3349
        %3386 = vmatprep.subr.mxu0 0.0
        %3387 = vmatpush2.msra.mxu0 0.0
        %3388 = vmatprep.subr.mxu0 0.0
        %3389 = vmatpush2.msra.mxu0 0.0
        %3390 = vmatprep.subr.mxu0 0.0
        %3391 = vmatpush2.msra.mxu0 0.0
        %3392 = vmatprep.subr.mxu0 0.0
        %3393 = vmatpush2.msra.mxu0 0.0
        %3394 = vmatprep.subr.mxu0 0.0
        %3395 = vmatpush2.msra.mxu0 0.0
        %3396 = vmatprep.subr.mxu0 0.0
        %3397 = vmatpush2.msra.mxu0 0.0
        %3398 = vmatprep.subr.mxu0 0.0
        %3399 = vmatpush2.msra.mxu0 0.0
        %3400 = vmatprep.subr.mxu0 0.0
        %3401 = vmatpush2.msra.mxu0 0.0
        %3402 = vmatprep.subr.mxu0 0.0
        %3403 = vmatpush2.msra.mxu0 0.0
        %3404 = vmatprep.subr.mxu0 0.0
        %3405 = vmatpush2.msra.mxu0 0.0
        %3406 = vmatprep.subr.mxu0 0.0
        %3407 = vmatpush2.msra.mxu0 0.0
        %3408 = vmatprep.subr.mxu0 0.0
        %3409 = vmatpush2.msra.mxu0 0.0
        %3410 = vmatprep.subr.mxu0 0.0
        %3411 = vmatpush2.msra.mxu0 0.0
        %3412 = vmatprep.subr.mxu0 0.0
        %3413 = vmatpush2.msra.mxu0 0.0
        %3414 = vmatprep.subr.mxu0 0.0
        %3415 = vmatpush2.msra.mxu0 0.0
        %3416 = vmatprep.subr.mxu0 0.0
        %3417 = vmatpush2.msra.mxu0 0.0
        %3418 = vmatprep.mubr.f32.mxu0 0.0
        %3419 = vmatmul.mubr.f32.gmra.mxu0 %v3352
        %v3420 = vpop.f32.mrf.mxu0
        %v3421 = vadd.f32 0.0, %v3420
        %v3422 = vpop.f32.mrf.mxu0
        %3423 = vdwg.mxu0
        %3425 = vrot.lane.b32.xlu0 %v3269, 8
        %v3426 = vpop.permute.xlu0 %3425
        %3429 = vrot.lane.b32.xlu0 %v3345, 16
        %v3430 = vpop.permute.xlu0 %3429
        %3433 = vrot.lane.b32.xlu0 %v3421, 24
        %v3434 = vpop.permute.xlu0 %3433
        %v3436 = vsel %vm481, %v3193, %v3426
        %v3437 = vsel %vm280, %v3436, %v3430
        %v3438 = vsel %vm1162, %v3437, %v3434
        %v3439 = vlaneseq
        %v3440 = vshrl.u32 %v3439, 7
        %v3441 = vsub.s32 0, %v3440
        %v3442 = vrot.slane %v2760, %v3441
        %v3444 = vsel %vm358, %v3438, 0
        %3446 = vmatprep.subr.mxu0 0.0
        %3447 = vmatpush1.msra.mxu0 0.0
        %3448 = vmatprep.subr.mxu0 0.0
        %3449 = vmatpush1.msra.mxu0 0.0
        %3450 = vmatprep.subr.mxu0 0.0
        %3451 = vmatpush1.msra.mxu0 0.0
        %3452 = vmatprep.subr.mxu0 0.0
        %3453 = vmatpush1.msra.mxu0 0.0
        %3454 = vmatprep.subr.mxu0 0.0
        %3455 = vmatpush1.msra.mxu0 0.0
        %3456 = vmatprep.subr.mxu0 0.0
        %3457 = vmatpush1.msra.mxu0 0.0
        %3458 = vmatprep.subr.mxu0 0.0
        %3459 = vmatpush1.msra.mxu0 0.0
        %3460 = vmatprep.subr.mxu0 0.0
        %3461 = vmatpush1.msra.mxu0 0.0
        %3462 = vmatprep.subr.mxu0 0.0
        %3463 = vmatpush1.msra.mxu0 0.0
        %3464 = vmatprep.subr.mxu0 0.0
        %3465 = vmatpush1.msra.mxu0 0.0
        %3466 = vmatprep.subr.mxu0 0.0
        %3467 = vmatpush1.msra.mxu0 0.0
        %3468 = vmatprep.subr.mxu0 0.0
        %3469 = vmatpush1.msra.mxu0 0.0
        %3470 = vmatprep.subr.mxu0 0.0
        %3471 = vmatpush1.msra.mxu0 %v2759
        %3472 = vmatprep.subr.mxu0 0.0
        %3473 = vmatpush1.msra.mxu0 %v2758
        %3474 = vmatprep.subr.mxu0 0.0
        %3475 = vmatpush1.msra.mxu0 %v2757
        %3476 = vmatprep.subr.mxu0 0.0
        %3477 = vmatpush1.msra.mxu0 %v2756
        %3478 = vmatprep.subr.mxu0 0.0
        %3479 = vmatpush2.msra.mxu0 0.0
        %3480 = vmatprep.subr.mxu0 0.0
        %3481 = vmatpush2.msra.mxu0 0.0
        %3482 = vmatprep.subr.mxu0 0.0
        %3483 = vmatpush2.msra.mxu0 0.0
        %3484 = vmatprep.subr.mxu0 0.0
        %3485 = vmatpush2.msra.mxu0 0.0
        %3486 = vmatprep.subr.mxu0 0.0
        %3487 = vmatpush2.msra.mxu0 0.0
        %3488 = vmatprep.subr.mxu0 0.0
        %3489 = vmatpush2.msra.mxu0 0.0
        %3490 = vmatprep.subr.mxu0 0.0
        %3491 = vmatpush2.msra.mxu0 0.0
        %3492 = vmatprep.subr.mxu0 0.0
        %3493 = vmatpush2.msra.mxu0 0.0
        %3494 = vmatprep.subr.mxu0 0.0
        %3495 = vmatpush2.msra.mxu0 0.0
        %3496 = vmatprep.subr.mxu0 0.0
        %3497 = vmatpush2.msra.mxu0 0.0
        %3498 = vmatprep.subr.mxu0 0.0
        %3499 = vmatpush2.msra.mxu0 0.0
        %3500 = vmatprep.subr.mxu0 0.0
        %3501 = vmatpush2.msra.mxu0 0.0
        %3502 = vmatprep.subr.mxu0 0.0
        %3503 = vmatpush2.msra.mxu0 0.0
        %3504 = vmatprep.subr.mxu0 0.0
        %3505 = vmatpush2.msra.mxu0 0.0
        %3506 = vmatprep.subr.mxu0 0.0
        %3507 = vmatpush2.msra.mxu0 0.0
        %3508 = vmatprep.subr.mxu0 0.0
        %3509 = vmatpush2.msra.mxu0 0.0
        %3510 = vmatprep.mubr.f32.mxu0 0.0
        %3511 = vmatmul.mubr.f32.gmra.mxu0 %v3444
        %v3512 = vpop.f32.mrf.mxu0
        %v3513 = vadd.f32 %v3442, %v3512
        %v3514 = vpop.f32.mrf.mxu0
        %3515 = vdwg.mxu0
        %v3516 = vadd.f32 %v2641, %v3513
        %v3517 = vld [vmem:[%s4 + $0x350] sm:$0x1]
        %v3518 = vld [vmem:[%s4 + $0x358] sm:$0x1]
        %v3519 = vsel %vm358, %v3516, 0.0
        %3520 = vadd.xlane.f32.xlu0 %v3519
        %v3521 = vpop.xlane.xlu0 %3520
        %v3522 = vmul.f32 %v3521, %v362
        %v3523 = vsub.f32 %v3516, %v3522
        %v3524 = vmul.f32 %v3523, %v3523
        %v3525 = vsel %vm358, %v3524, 0.0
        %3526 = vadd.xlane.f32.xlu0 %v3525
        %v3527 = vpop.xlane.xlu0 %3526
        %v3528 = vmul.f32 %v3527, %v369
        %v3529 = vrsqrt.pop %v3528
        %v3530 = vmul.f32 %v3528, %v3529
        %vm3531 = vcmp.eq.f32.partialorder %v3528, inf
        %v3532 = vsel %vm3531, %v3528, %v3530
        %vm3533 = vcmp.eq.f32.partialorder %v3528, 0.0
        %v3534 = vand.u32 %v3528, 2147483648
        %v3535 = vsel %vm3533, %v3534, %v3532
        %v3536 = vlaneseq
        %v3537 = vshrl.u32 %v3536, 7
        %v3538 = vsub.s32 0, %v3537
        %v3539 = vrot.slane %v3517, %v3538
        %v3540 = vmul.f32 %v3539, %v3523
        %v3541 = vadd.f32 %v3535, 1e-06
        %v3542 = vrcp.pop %v3541
        %v3543 = vmul.f32 %v3540, %v3542
        %v3544 = vlaneseq
        %v3545 = vshrl.u32 %v3544, 7
        %v3546 = vsub.s32 0, %v3545
        %v3547 = vrot.slane %v3518, %v3546
        %v3548 = vadd.f32 %v3543, %v3547
        %v3549 = vld [vmem:[%s4 + $0x258] sm:$0xff]
        %v3550 = vld [vmem:[%s4 + $0x260] sm:$0xff]
        %v3551 = vld [vmem:[%s4 + $0x268] sm:$0xff]
        %v3552 = vld [vmem:[%s4 + $0x270] sm:$0xff]
        %v3553 = vld [vmem:[%s4 + $0x278] sm:$0x1]
        %v3554 = vlaneseq
        %v3555 = vshrl.u32 %v3554, 7
        %v3556 = vsub.s32 0, %v3555
        %v3557 = vrot.slane %v3553, %v3556
        %v3559 = vsel %vm358, %v3548, 0
        %3561 = vmatprep.subr.mxu0 0.0
        %3562 = vmatpush1.msra.mxu0 0.0
        %3563 = vmatprep.subr.mxu0 0.0
        %3564 = vmatpush1.msra.mxu0 0.0
        %3565 = vmatprep.subr.mxu0 0.0
        %3566 = vmatpush1.msra.mxu0 0.0
        %3567 = vmatprep.subr.mxu0 0.0
        %3568 = vmatpush1.msra.mxu0 0.0
        %3569 = vmatprep.subr.mxu0 0.0
        %3570 = vmatpush1.msra.mxu0 0.0
        %3571 = vmatprep.subr.mxu0 0.0
        %3572 = vmatpush1.msra.mxu0 0.0
        %3573 = vmatprep.subr.mxu0 0.0
        %3574 = vmatpush1.msra.mxu0 0.0
        %3575 = vmatprep.subr.mxu0 0.0
        %3576 = vmatpush1.msra.mxu0 0.0
        %3577 = vmatprep.subr.mxu0 0.0
        %3578 = vmatpush1.msra.mxu0 0.0
        %3579 = vmatprep.subr.mxu0 0.0
        %3580 = vmatpush1.msra.mxu0 0.0
        %3581 = vmatprep.subr.mxu0 0.0
        %3582 = vmatpush1.msra.mxu0 0.0
        %3583 = vmatprep.subr.mxu0 0.0
        %3584 = vmatpush1.msra.mxu0 0.0
        %3585 = vmatprep.subr.mxu0 0.0
        %3586 = vmatpush1.msra.mxu0 %v3552
        %3587 = vmatprep.subr.mxu0 0.0
        %3588 = vmatpush1.msra.mxu0 %v3551
        %3589 = vmatprep.subr.mxu0 0.0
        %3590 = vmatpush1.msra.mxu0 %v3550
        %3591 = vmatprep.subr.mxu0 0.0
        %3592 = vmatpush1.msra.mxu0 %v3549
        %3593 = vmatprep.subr.mxu0 0.0
        %3594 = vmatpush2.msra.mxu0 0.0
        %3595 = vmatprep.subr.mxu0 0.0
        %3596 = vmatpush2.msra.mxu0 0.0
        %3597 = vmatprep.subr.mxu0 0.0
        %3598 = vmatpush2.msra.mxu0 0.0
        %3599 = vmatprep.subr.mxu0 0.0
        %3600 = vmatpush2.msra.mxu0 0.0
        %3601 = vmatprep.subr.mxu0 0.0
        %3602 = vmatpush2.msra.mxu0 0.0
        %3603 = vmatprep.subr.mxu0 0.0
        %3604 = vmatpush2.msra.mxu0 0.0
        %3605 = vmatprep.subr.mxu0 0.0
        %3606 = vmatpush2.msra.mxu0 0.0
        %3607 = vmatprep.subr.mxu0 0.0
        %3608 = vmatpush2.msra.mxu0 0.0
        %3609 = vmatprep.subr.mxu0 0.0
        %3610 = vmatpush2.msra.mxu0 0.0
        %3611 = vmatprep.subr.mxu0 0.0
        %3612 = vmatpush2.msra.mxu0 0.0
        %3613 = vmatprep.subr.mxu0 0.0
        %3614 = vmatpush2.msra.mxu0 0.0
        %3615 = vmatprep.subr.mxu0 0.0
        %3616 = vmatpush2.msra.mxu0 0.0
        %3617 = vmatprep.subr.mxu0 0.0
        %3618 = vmatpush2.msra.mxu0 0.0
        %3619 = vmatprep.subr.mxu0 0.0
        %3620 = vmatpush2.msra.mxu0 0.0
        %3621 = vmatprep.subr.mxu0 0.0
        %3622 = vmatpush2.msra.mxu0 0.0
        %3623 = vmatprep.subr.mxu0 0.0
        %3624 = vmatpush2.msra.mxu0 0.0
        %3625 = vmatprep.mubr.f32.mxu0 0.0
        %3626 = vmatmul.mubr.f32.gmra.mxu0 %v3559
        %v3627 = vpop.f32.mrf.mxu0
        %v3628 = vadd.f32 %v3557, %v3627
        %v3629 = vpop.f32.mrf.mxu0
        %3630 = vdwg.mxu0
        %v3631 = vld [vmem:[%s4 + $0x280] sm:$0xff]
        %v3632 = vld [vmem:[%s4 + $0x288] sm:$0xff]
        %v3633 = vld [vmem:[%s4 + $0x290] sm:$0xff]
        %v3634 = vld [vmem:[%s4 + $0x298] sm:$0xff]
        %v3635 = vld [vmem:[%s4 + $0x2a0] sm:$0x1]
        %v3636 = vlaneseq
        %v3637 = vshrl.u32 %v3636, 7
        %v3638 = vsub.s32 0, %v3637
        %v3639 = vrot.slane %v3635, %v3638
        %v3641 = vsel %vm358, %v2553, 0
        %3643 = vmatprep.subr.mxu0 0.0
        %3644 = vmatpush1.msra.mxu0 0.0
        %3645 = vmatprep.subr.mxu0 0.0
        %3646 = vmatpush1.msra.mxu0 0.0
        %3647 = vmatprep.subr.mxu0 0.0
        %3648 = vmatpush1.msra.mxu0 0.0
        %3649 = vmatprep.subr.mxu0 0.0
        %3650 = vmatpush1.msra.mxu0 0.0
        %3651 = vmatprep.subr.mxu0 0.0
        %3652 = vmatpush1.msra.mxu0 0.0
        %3653 = vmatprep.subr.mxu0 0.0
        %3654 = vmatpush1.msra.mxu0 0.0
        %3655 = vmatprep.subr.mxu0 0.0
        %3656 = vmatpush1.msra.mxu0 0.0
        %3657 = vmatprep.subr.mxu0 0.0
        %3658 = vmatpush1.msra.mxu0 0.0
        %3659 = vmatprep.subr.mxu0 0.0
        %3660 = vmatpush1.msra.mxu0 0.0
        %3661 = vmatprep.subr.mxu0 0.0
        %3662 = vmatpush1.msra.mxu0 0.0
        %3663 = vmatprep.subr.mxu0 0.0
        %3664 = vmatpush1.msra.mxu0 0.0
        %3665 = vmatprep.subr.mxu0 0.0
        %3666 = vmatpush1.msra.mxu0 0.0
        %3667 = vmatprep.subr.mxu0 0.0
        %3668 = vmatpush1.msra.mxu0 %v3634
        %3669 = vmatprep.subr.mxu0 0.0
        %3670 = vmatpush1.msra.mxu0 %v3633
        %3671 = vmatprep.subr.mxu0 0.0
        %3672 = vmatpush1.msra.mxu0 %v3632
        %3673 = vmatprep.subr.mxu0 0.0
        %3674 = vmatpush1.msra.mxu0 %v3631
        %3675 = vmatprep.subr.mxu0 0.0
        %3676 = vmatpush2.msra.mxu0 0.0
        %3677 = vmatprep.subr.mxu0 0.0
        %3678 = vmatpush2.msra.mxu0 0.0
        %3679 = vmatprep.subr.mxu0 0.0
        %3680 = vmatpush2.msra.mxu0 0.0
        %3681 = vmatprep.subr.mxu0 0.0
        %3682 = vmatpush2.msra.mxu0 0.0
        %3683 = vmatprep.subr.mxu0 0.0
        %3684 = vmatpush2.msra.mxu0 0.0
        %3685 = vmatprep.subr.mxu0 0.0
        %3686 = vmatpush2.msra.mxu0 0.0
        %3687 = vmatprep.subr.mxu0 0.0
        %3688 = vmatpush2.msra.mxu0 0.0
        %3689 = vmatprep.subr.mxu0 0.0
        %3690 = vmatpush2.msra.mxu0 0.0
        %3691 = vmatprep.subr.mxu0 0.0
        %3692 = vmatpush2.msra.mxu0 0.0
        %3693 = vmatprep.subr.mxu0 0.0
        %3694 = vmatpush2.msra.mxu0 0.0
        %3695 = vmatprep.subr.mxu0 0.0
        %3696 = vmatpush2.msra.mxu0 0.0
        %3697 = vmatprep.subr.mxu0 0.0
        %3698 = vmatpush2.msra.mxu0 0.0
        %3699 = vmatprep.subr.mxu0 0.0
        %3700 = vmatpush2.msra.mxu0 0.0
        %3701 = vmatprep.subr.mxu0 0.0
        %3702 = vmatpush2.msra.mxu0 0.0
        %3703 = vmatprep.subr.mxu0 0.0
        %3704 = vmatpush2.msra.mxu0 0.0
        %3705 = vmatprep.subr.mxu0 0.0
        %3706 = vmatpush2.msra.mxu0 0.0
        %3707 = vmatprep.mubr.f32.mxu0 0.0
        %3708 = vmatmul.mubr.f32.gmra.mxu0 %v3641
        %v3709 = vpop.f32.mrf.mxu0
        %v3710 = vadd.f32 %v3639, %v3709
        %v3711 = vpop.f32.mrf.mxu0
        %3712 = vdwg.mxu0
        %v3713 = vld [vmem:[%s4 + $0x2a8] sm:$0xff]
        %v3714 = vld [vmem:[%s4 + $0x2b0] sm:$0xff]
        %v3715 = vld [vmem:[%s4 + $0x2b8] sm:$0xff]
        %v3716 = vld [vmem:[%s4 + $0x2c0] sm:$0xff]
        %v3717 = vld [vmem:[%s4 + $0x2c8] sm:$0x1]
        %v3719 = vsel %vm481, %v3628, 0
        %v3722 = vsel %vm481, %v3710, 0
        %3724 = vmatprep.subr.mxu0 0.0
        %3725 = vmatpush1.xpose.msra.mxu0 0.0
        %3726 = vmatprep.subr.mxu0 0.0
        %3727 = vmatpush1.xpose.msra.mxu0 0.0
        %3728 = vmatprep.subr.mxu0 0.0
        %3729 = vmatpush1.xpose.msra.mxu0 0.0
        %3730 = vmatprep.subr.mxu0 0.0
        %3731 = vmatpush1.xpose.msra.mxu0 0.0
        %3732 = vmatprep.subr.mxu0 0.0
        %3733 = vmatpush1.xpose.msra.mxu0 0.0
        %3734 = vmatprep.subr.mxu0 0.0
        %3735 = vmatpush1.xpose.msra.mxu0 0.0
        %3736 = vmatprep.subr.mxu0 0.0
        %3737 = vmatpush1.xpose.msra.mxu0 0.0
        %3738 = vmatprep.subr.mxu0 0.0
        %3739 = vmatpush1.xpose.msra.mxu0 0.0
        %3740 = vmatprep.subr.mxu0 0.0
        %3741 = vmatpush1.xpose.msra.mxu0 0.0
        %3742 = vmatprep.subr.mxu0 0.0
        %3743 = vmatpush1.xpose.msra.mxu0 0.0
        %3744 = vmatprep.subr.mxu0 0.0
        %3745 = vmatpush1.xpose.msra.mxu0 0.0
        %3746 = vmatprep.subr.mxu0 0.0
        %3747 = vmatpush1.xpose.msra.mxu0 0.0
        %3748 = vmatprep.subr.mxu0 0.0
        %3749 = vmatpush1.xpose.msra.mxu0 0.0
        %3750 = vmatprep.subr.mxu0 0.0
        %3751 = vmatpush1.xpose.msra.mxu0 0.0
        %3752 = vmatprep.subr.mxu0 0.0
        %3753 = vmatpush1.xpose.msra.mxu0 0.0
        %3754 = vmatprep.subr.mxu0 0.0
        %3755 = vmatpush1.xpose.msra.mxu0 %v3722
        %3756 = vmatprep.subr.mxu0 0.0
        %3757 = vmatpush2.xpose.msra.mxu0 0.0
        %3758 = vmatprep.subr.mxu0 0.0
        %3759 = vmatpush2.xpose.msra.mxu0 0.0
        %3760 = vmatprep.subr.mxu0 0.0
        %3761 = vmatpush2.xpose.msra.mxu0 0.0
        %3762 = vmatprep.subr.mxu0 0.0
        %3763 = vmatpush2.xpose.msra.mxu0 0.0
        %3764 = vmatprep.subr.mxu0 0.0
        %3765 = vmatpush2.xpose.msra.mxu0 0.0
        %3766 = vmatprep.subr.mxu0 0.0
        %3767 = vmatpush2.xpose.msra.mxu0 0.0
        %3768 = vmatprep.subr.mxu0 0.0
        %3769 = vmatpush2.xpose.msra.mxu0 0.0
        %3770 = vmatprep.subr.mxu0 0.0
        %3771 = vmatpush2.xpose.msra.mxu0 0.0
        %3772 = vmatprep.subr.mxu0 0.0
        %3773 = vmatpush2.xpose.msra.mxu0 0.0
        %3774 = vmatprep.subr.mxu0 0.0
        %3775 = vmatpush2.xpose.msra.mxu0 0.0
        %3776 = vmatprep.subr.mxu0 0.0
        %3777 = vmatpush2.xpose.msra.mxu0 0.0
        %3778 = vmatprep.subr.mxu0 0.0
        %3779 = vmatpush2.xpose.msra.mxu0 0.0
        %3780 = vmatprep.subr.mxu0 0.0
        %3781 = vmatpush2.xpose.msra.mxu0 0.0
        %3782 = vmatprep.subr.mxu0 0.0
        %3783 = vmatpush2.xpose.msra.mxu0 0.0
        %3784 = vmatprep.subr.mxu0 0.0
        %3785 = vmatpush2.xpose.msra.mxu0 0.0
        %3786 = vmatprep.subr.mxu0 0.0
        %3787 = vmatpush2.xpose.msra.mxu0 0.0
        %3788 = vmatprep.mubr.f32.mxu0 0.0
        %3789 = vmatmul.mubr.f32.gmra.mxu0 %v3719
        %v3790 = vpop.f32.mrf.mxu0
        %v3791 = vadd.f32 0.0, %v3790
        %v3792 = vpop.f32.mrf.mxu0
        %3793 = vdwg.mxu0
        %3794 = vrot.lane.b32.xlu0 %v3628, 120
        %v3795 = vpop.permute.xlu0 %3794
        %3796 = vrot.lane.b32.xlu0 %v3710, 120
        %v3797 = vpop.permute.xlu0 %3796
        %v3798 = vsel %vm481, %v3795, 0
        %v3800 = vsel %vm481, %v3797, 0
        %3802 = vmatprep.subr.mxu0 0.0
        %3803 = vmatpush1.xpose.msra.mxu0 0.0
        %3804 = vmatprep.subr.mxu0 0.0
        %3805 = vmatpush1.xpose.msra.mxu0 0.0
        %3806 = vmatprep.subr.mxu0 0.0
        %3807 = vmatpush1.xpose.msra.mxu0 0.0
        %3808 = vmatprep.subr.mxu0 0.0
        %3809 = vmatpush1.xpose.msra.mxu0 0.0
        %3810 = vmatprep.subr.mxu0 0.0
        %3811 = vmatpush1.xpose.msra.mxu0 0.0
        %3812 = vmatprep.subr.mxu0 0.0
        %3813 = vmatpush1.xpose.msra.mxu0 0.0
        %3814 = vmatprep.subr.mxu0 0.0
        %3815 = vmatpush1.xpose.msra.mxu0 0.0
        %3816 = vmatprep.subr.mxu0 0.0
        %3817 = vmatpush1.xpose.msra.mxu0 0.0
        %3818 = vmatprep.subr.mxu0 0.0
        %3819 = vmatpush1.xpose.msra.mxu0 0.0
        %3820 = vmatprep.subr.mxu0 0.0
        %3821 = vmatpush1.xpose.msra.mxu0 0.0
        %3822 = vmatprep.subr.mxu0 0.0
        %3823 = vmatpush1.xpose.msra.mxu0 0.0
        %3824 = vmatprep.subr.mxu0 0.0
        %3825 = vmatpush1.xpose.msra.mxu0 0.0
        %3826 = vmatprep.subr.mxu0 0.0
        %3827 = vmatpush1.xpose.msra.mxu0 0.0
        %3828 = vmatprep.subr.mxu0 0.0
        %3829 = vmatpush1.xpose.msra.mxu0 0.0
        %3830 = vmatprep.subr.mxu0 0.0
        %3831 = vmatpush1.xpose.msra.mxu0 0.0
        %3832 = vmatprep.subr.mxu0 0.0
        %3833 = vmatpush1.xpose.msra.mxu0 %v3800
        %3834 = vmatprep.subr.mxu0 0.0
        %3835 = vmatpush2.xpose.msra.mxu0 0.0
        %3836 = vmatprep.subr.mxu0 0.0
        %3837 = vmatpush2.xpose.msra.mxu0 0.0
        %3838 = vmatprep.subr.mxu0 0.0
        %3839 = vmatpush2.xpose.msra.mxu0 0.0
        %3840 = vmatprep.subr.mxu0 0.0
        %3841 = vmatpush2.xpose.msra.mxu0 0.0
        %3842 = vmatprep.subr.mxu0 0.0
        %3843 = vmatpush2.xpose.msra.mxu0 0.0
        %3844 = vmatprep.subr.mxu0 0.0
        %3845 = vmatpush2.xpose.msra.mxu0 0.0
        %3846 = vmatprep.subr.mxu0 0.0
        %3847 = vmatpush2.xpose.msra.mxu0 0.0
        %3848 = vmatprep.subr.mxu0 0.0
        %3849 = vmatpush2.xpose.msra.mxu0 0.0
        %3850 = vmatprep.subr.mxu0 0.0
        %3851 = vmatpush2.xpose.msra.mxu0 0.0
        %3852 = vmatprep.subr.mxu0 0.0
        %3853 = vmatpush2.xpose.msra.mxu0 0.0
        %3854 = vmatprep.subr.mxu0 0.0
        %3855 = vmatpush2.xpose.msra.mxu0 0.0
        %3856 = vmatprep.subr.mxu0 0.0
        %3857 = vmatpush2.xpose.msra.mxu0 0.0
        %3858 = vmatprep.subr.mxu0 0.0
        %3859 = vmatpush2.xpose.msra.mxu0 0.0
        %3860 = vmatprep.subr.mxu0 0.0
        %3861 = vmatpush2.xpose.msra.mxu0 0.0
        %3862 = vmatprep.subr.mxu0 0.0
        %3863 = vmatpush2.xpose.msra.mxu0 0.0
        %3864 = vmatprep.subr.mxu0 0.0
        %3865 = vmatpush2.xpose.msra.mxu0 0.0
        %3866 = vmatprep.mubr.f32.mxu0 0.0
        %3867 = vmatmul.mubr.f32.gmra.mxu0 %v3798
        %v3868 = vpop.f32.mrf.mxu0
        %v3869 = vadd.f32 0.0, %v3868
        %v3870 = vpop.f32.mrf.mxu0
        %3871 = vdwg.mxu0
        %3872 = vrot.lane.b32.xlu0 %v3628, 112
        %v3873 = vpop.permute.xlu0 %3872
        %3874 = vrot.lane.b32.xlu0 %v3710, 112
        %v3875 = vpop.permute.xlu0 %3874
        %v3876 = vsel %vm481, %v3873, 0
        %v3878 = vsel %vm481, %v3875, 0
        %3880 = vmatprep.subr.mxu0 0.0
        %3881 = vmatpush1.xpose.msra.mxu0 0.0
        %3882 = vmatprep.subr.mxu0 0.0
        %3883 = vmatpush1.xpose.msra.mxu0 0.0
        %3884 = vmatprep.subr.mxu0 0.0
        %3885 = vmatpush1.xpose.msra.mxu0 0.0
        %3886 = vmatprep.subr.mxu0 0.0
        %3887 = vmatpush1.xpose.msra.mxu0 0.0
        %3888 = vmatprep.subr.mxu0 0.0
        %3889 = vmatpush1.xpose.msra.mxu0 0.0
        %3890 = vmatprep.subr.mxu0 0.0
        %3891 = vmatpush1.xpose.msra.mxu0 0.0
        %3892 = vmatprep.subr.mxu0 0.0
        %3893 = vmatpush1.xpose.msra.mxu0 0.0
        %3894 = vmatprep.subr.mxu0 0.0
        %3895 = vmatpush1.xpose.msra.mxu0 0.0
        %3896 = vmatprep.subr.mxu0 0.0
        %3897 = vmatpush1.xpose.msra.mxu0 0.0
        %3898 = vmatprep.subr.mxu0 0.0
        %3899 = vmatpush1.xpose.msra.mxu0 0.0
        %3900 = vmatprep.subr.mxu0 0.0
        %3901 = vmatpush1.xpose.msra.mxu0 0.0
        %3902 = vmatprep.subr.mxu0 0.0
        %3903 = vmatpush1.xpose.msra.mxu0 0.0
        %3904 = vmatprep.subr.mxu0 0.0
        %3905 = vmatpush1.xpose.msra.mxu0 0.0
        %3906 = vmatprep.subr.mxu0 0.0
        %3907 = vmatpush1.xpose.msra.mxu0 0.0
        %3908 = vmatprep.subr.mxu0 0.0
        %3909 = vmatpush1.xpose.msra.mxu0 0.0
        %3910 = vmatprep.subr.mxu0 0.0
        %3911 = vmatpush1.xpose.msra.mxu0 %v3878
        %3912 = vmatprep.subr.mxu0 0.0
        %3913 = vmatpush2.xpose.msra.mxu0 0.0
        %3914 = vmatprep.subr.mxu0 0.0
        %3915 = vmatpush2.xpose.msra.mxu0 0.0
        %3916 = vmatprep.subr.mxu0 0.0
        %3917 = vmatpush2.xpose.msra.mxu0 0.0
        %3918 = vmatprep.subr.mxu0 0.0
        %3919 = vmatpush2.xpose.msra.mxu0 0.0
        %3920 = vmatprep.subr.mxu0 0.0
        %3921 = vmatpush2.xpose.msra.mxu0 0.0
        %3922 = vmatprep.subr.mxu0 0.0
        %3923 = vmatpush2.xpose.msra.mxu0 0.0
        %3924 = vmatprep.subr.mxu0 0.0
        %3925 = vmatpush2.xpose.msra.mxu0 0.0
        %3926 = vmatprep.subr.mxu0 0.0
        %3927 = vmatpush2.xpose.msra.mxu0 0.0
        %3928 = vmatprep.subr.mxu0 0.0
        %3929 = vmatpush2.xpose.msra.mxu0 0.0
        %3930 = vmatprep.subr.mxu0 0.0
        %3931 = vmatpush2.xpose.msra.mxu0 0.0
        %3932 = vmatprep.subr.mxu0 0.0
        %3933 = vmatpush2.xpose.msra.mxu0 0.0
        %3934 = vmatprep.subr.mxu0 0.0
        %3935 = vmatpush2.xpose.msra.mxu0 0.0
        %3936 = vmatprep.subr.mxu0 0.0
        %3937 = vmatpush2.xpose.msra.mxu0 0.0
        %3938 = vmatprep.subr.mxu0 0.0
        %3939 = vmatpush2.xpose.msra.mxu0 0.0
        %3940 = vmatprep.subr.mxu0 0.0
        %3941 = vmatpush2.xpose.msra.mxu0 0.0
        %3942 = vmatprep.subr.mxu0 0.0
        %3943 = vmatpush2.xpose.msra.mxu0 0.0
        %3944 = vmatprep.mubr.f32.mxu0 0.0
        %3945 = vmatmul.mubr.f32.gmra.mxu0 %v3876
        %v3946 = vpop.f32.mrf.mxu0
        %v3947 = vadd.f32 0.0, %v3946
        %v3948 = vpop.f32.mrf.mxu0
        %3949 = vdwg.mxu0
        %3950 = vrot.lane.b32.xlu0 %v3628, 104
        %v3951 = vpop.permute.xlu0 %3950
        %3952 = vrot.lane.b32.xlu0 %v3710, 104
        %v3953 = vpop.permute.xlu0 %3952
        %v3954 = vsel %vm481, %v3951, 0
        %v3956 = vsel %vm481, %v3953, 0
        %3958 = vmatprep.subr.mxu0 0.0
        %3959 = vmatpush1.xpose.msra.mxu0 0.0
        %3960 = vmatprep.subr.mxu0 0.0
        %3961 = vmatpush1.xpose.msra.mxu0 0.0
        %3962 = vmatprep.subr.mxu0 0.0
        %3963 = vmatpush1.xpose.msra.mxu0 0.0
        %3964 = vmatprep.subr.mxu0 0.0
        %3965 = vmatpush1.xpose.msra.mxu0 0.0
        %3966 = vmatprep.subr.mxu0 0.0
        %3967 = vmatpush1.xpose.msra.mxu0 0.0
        %3968 = vmatprep.subr.mxu0 0.0
        %3969 = vmatpush1.xpose.msra.mxu0 0.0
        %3970 = vmatprep.subr.mxu0 0.0
        %3971 = vmatpush1.xpose.msra.mxu0 0.0
        %3972 = vmatprep.subr.mxu0 0.0
        %3973 = vmatpush1.xpose.msra.mxu0 0.0
        %3974 = vmatprep.subr.mxu0 0.0
        %3975 = vmatpush1.xpose.msra.mxu0 0.0
        %3976 = vmatprep.subr.mxu0 0.0
        %3977 = vmatpush1.xpose.msra.mxu0 0.0
        %3978 = vmatprep.subr.mxu0 0.0
        %3979 = vmatpush1.xpose.msra.mxu0 0.0
        %3980 = vmatprep.subr.mxu0 0.0
        %3981 = vmatpush1.xpose.msra.mxu0 0.0
        %3982 = vmatprep.subr.mxu0 0.0
        %3983 = vmatpush1.xpose.msra.mxu0 0.0
        %3984 = vmatprep.subr.mxu0 0.0
        %3985 = vmatpush1.xpose.msra.mxu0 0.0
        %3986 = vmatprep.subr.mxu0 0.0
        %3987 = vmatpush1.xpose.msra.mxu0 0.0
        %3988 = vmatprep.subr.mxu0 0.0
        %3989 = vmatpush1.xpose.msra.mxu0 %v3956
        %3990 = vmatprep.subr.mxu0 0.0
        %3991 = vmatpush2.xpose.msra.mxu0 0.0
        %3992 = vmatprep.subr.mxu0 0.0
        %3993 = vmatpush2.xpose.msra.mxu0 0.0
        %3994 = vmatprep.subr.mxu0 0.0
        %3995 = vmatpush2.xpose.msra.mxu0 0.0
        %3996 = vmatprep.subr.mxu0 0.0
        %3997 = vmatpush2.xpose.msra.mxu0 0.0
        %3998 = vmatprep.subr.mxu0 0.0
        %3999 = vmatpush2.xpose.msra.mxu0 0.0
        %4000 = vmatprep.subr.mxu0 0.0
        %4001 = vmatpush2.xpose.msra.mxu0 0.0
        %4002 = vmatprep.subr.mxu0 0.0
        %4003 = vmatpush2.xpose.msra.mxu0 0.0
        %4004 = vmatprep.subr.mxu0 0.0
        %4005 = vmatpush2.xpose.msra.mxu0 0.0
        %4006 = vmatprep.subr.mxu0 0.0
        %4007 = vmatpush2.xpose.msra.mxu0 0.0
        %4008 = vmatprep.subr.mxu0 0.0
        %4009 = vmatpush2.xpose.msra.mxu0 0.0
        %4010 = vmatprep.subr.mxu0 0.0
        %4011 = vmatpush2.xpose.msra.mxu0 0.0
        %4012 = vmatprep.subr.mxu0 0.0
        %4013 = vmatpush2.xpose.msra.mxu0 0.0
        %4014 = vmatprep.subr.mxu0 0.0
        %4015 = vmatpush2.xpose.msra.mxu0 0.0
        %4016 = vmatprep.subr.mxu0 0.0
        %4017 = vmatpush2.xpose.msra.mxu0 0.0
        %4018 = vmatprep.subr.mxu0 0.0
        %4019 = vmatpush2.xpose.msra.mxu0 0.0
        %4020 = vmatprep.subr.mxu0 0.0
        %4021 = vmatpush2.xpose.msra.mxu0 0.0
        %4022 = vmatprep.mubr.f32.mxu0 0.0
        %4023 = vmatmul.mubr.f32.gmra.mxu0 %v3954
        %v4024 = vpop.f32.mrf.mxu0
        %v4025 = vadd.f32 0.0, %v4024
        %v4026 = vpop.f32.mrf.mxu0
        %4027 = vdwg.mxu0
        %v4028 = vadd.f32 %v3791, %v794
        %v4029 = vadd.f32 %v3869, %v794
        %v4030 = vadd.f32 %v3947, %v794
        %v4031 = vadd.f32 %v4025, %v794
        %v4032 = vsel %vm481, %v4028, -inf
        %4033 = vmax.xlane.f32.xlu0 %v4032
        %v4034 = vpop.xlane.xlu0 %4033
        %v4035 = vsel %vm481, %v4029, -inf
        %4036 = vmax.xlane.f32.xlu0 %v4035
        %v4037 = vpop.xlane.xlu0 %4036
        %v4038 = vsel %vm481, %v4030, -inf
        %4039 = vmax.xlane.f32.xlu0 %v4038
        %v4040 = vpop.xlane.xlu0 %4039
        %v4041 = vsel %vm481, %v4031, -inf
        %4042 = vmax.xlane.f32.xlu0 %v4041
        %v4043 = vpop.xlane.xlu0 %4042
        %v4044 = vsub.f32 %v4028, %v4034
        %v4045 = vsub.f32 %v4029, %v4037
        %v4046 = vsub.f32 %v4030, %v4040
        %v4047 = vsub.f32 %v4031, %v4043
        %v4048 = vmul.f32 %v4044, 1.442695
        %v4049 = vpow.pop %v4048
        %v4050 = vmul.f32 %v4045, 1.442695
        %v4051 = vpow.pop %v4050
        %v4052 = vmul.f32 %v4046, 1.442695
        %v4053 = vpow.pop %v4052
        %v4054 = vmul.f32 %v4047, 1.442695
        %v4055 = vpow.pop %v4054
        %v4056 = vsel %vm481, %v4049, 0.0
        %4057 = vadd.xlane.f32.xlu0 %v4056
        %v4058 = vpop.xlane.xlu0 %4057
        %v4059 = vsel %vm481, %v4051, 0.0
        %4060 = vadd.xlane.f32.xlu0 %v4059
        %v4061 = vpop.xlane.xlu0 %4060
        %v4062 = vsel %vm481, %v4053, 0.0
        %4063 = vadd.xlane.f32.xlu0 %v4062
        %v4064 = vpop.xlane.xlu0 %4063
        %v4065 = vsel %vm481, %v4055, 0.0
        %4066 = vadd.xlane.f32.xlu0 %v4065
        %v4067 = vpop.xlane.xlu0 %4066
        %v4068 = vrcp.pop %v4058
        %v4069 = vrcp.pop %v4061
        %v4070 = vrcp.pop %v4064
        %v4071 = vrcp.pop %v4067
        %v4072 = vmul.f32 %v4049, %v4068
        %v4073 = vmul.f32 %v4051, %v4069
        %v4074 = vmul.f32 %v4053, %v4070
        %v4075 = vmul.f32 %v4055, %v4071
        %4076 = vrot.lane.b32.xlu0 %v3710, 96
        %v4077 = vpop.permute.xlu0 %4076
        %v4080 = vsel %vm481, %v4072, 0
        %4082 = vmatprep.subr.mxu0 0.0
        %4083 = vmatpush1.msra.mxu0 0.0
        %4084 = vmatprep.subr.mxu0 0.0
        %4085 = vmatpush1.msra.mxu0 0.0
        %4086 = vmatprep.subr.mxu0 0.0
        %4087 = vmatpush1.msra.mxu0 0.0
        %4088 = vmatprep.subr.mxu0 0.0
        %4089 = vmatpush1.msra.mxu0 0.0
        %4090 = vmatprep.subr.mxu0 0.0
        %4091 = vmatpush1.msra.mxu0 0.0
        %4092 = vmatprep.subr.mxu0 0.0
        %4093 = vmatpush1.msra.mxu0 0.0
        %4094 = vmatprep.subr.mxu0 0.0
        %4095 = vmatpush1.msra.mxu0 0.0
        %4096 = vmatprep.subr.mxu0 0.0
        %4097 = vmatpush1.msra.mxu0 0.0
        %4098 = vmatprep.subr.mxu0 0.0
        %4099 = vmatpush1.msra.mxu0 0.0
        %4100 = vmatprep.subr.mxu0 0.0
        %4101 = vmatpush1.msra.mxu0 0.0
        %4102 = vmatprep.subr.mxu0 0.0
        %4103 = vmatpush1.msra.mxu0 0.0
        %4104 = vmatprep.subr.mxu0 0.0
        %4105 = vmatpush1.msra.mxu0 0.0
        %4106 = vmatprep.subr.mxu0 0.0
        %4107 = vmatpush1.msra.mxu0 0.0
        %4108 = vmatprep.subr.mxu0 0.0
        %4109 = vmatpush1.msra.mxu0 0.0
        %4110 = vmatprep.subr.mxu0 0.0
        %4111 = vmatpush1.msra.mxu0 0.0
        %4112 = vmatprep.subr.mxu0 0.0
        %4113 = vmatpush1.msra.mxu0 %v4077
        %4114 = vmatprep.subr.mxu0 0.0
        %4115 = vmatpush2.msra.mxu0 0.0
        %4116 = vmatprep.subr.mxu0 0.0
        %4117 = vmatpush2.msra.mxu0 0.0
        %4118 = vmatprep.subr.mxu0 0.0
        %4119 = vmatpush2.msra.mxu0 0.0
        %4120 = vmatprep.subr.mxu0 0.0
        %4121 = vmatpush2.msra.mxu0 0.0
        %4122 = vmatprep.subr.mxu0 0.0
        %4123 = vmatpush2.msra.mxu0 0.0
        %4124 = vmatprep.subr.mxu0 0.0
        %4125 = vmatpush2.msra.mxu0 0.0
        %4126 = vmatprep.subr.mxu0 0.0
        %4127 = vmatpush2.msra.mxu0 0.0
        %4128 = vmatprep.subr.mxu0 0.0
        %4129 = vmatpush2.msra.mxu0 0.0
        %4130 = vmatprep.subr.mxu0 0.0
        %4131 = vmatpush2.msra.mxu0 0.0
        %4132 = vmatprep.subr.mxu0 0.0
        %4133 = vmatpush2.msra.mxu0 0.0
        %4134 = vmatprep.subr.mxu0 0.0
        %4135 = vmatpush2.msra.mxu0 0.0
        %4136 = vmatprep.subr.mxu0 0.0
        %4137 = vmatpush2.msra.mxu0 0.0
        %4138 = vmatprep.subr.mxu0 0.0
        %4139 = vmatpush2.msra.mxu0 0.0
        %4140 = vmatprep.subr.mxu0 0.0
        %4141 = vmatpush2.msra.mxu0 0.0
        %4142 = vmatprep.subr.mxu0 0.0
        %4143 = vmatpush2.msra.mxu0 0.0
        %4144 = vmatprep.subr.mxu0 0.0
        %4145 = vmatpush2.msra.mxu0 0.0
        %4146 = vmatprep.mubr.f32.mxu0 0.0
        %4147 = vmatmul.mubr.f32.gmra.mxu0 %v4080
        %v4148 = vpop.f32.mrf.mxu0
        %v4149 = vadd.f32 0.0, %v4148
        %v4150 = vpop.f32.mrf.mxu0
        %4151 = vdwg.mxu0
        %4152 = vrot.lane.b32.xlu0 %v3710, 88
        %v4153 = vpop.permute.xlu0 %4152
        %v4156 = vsel %vm481, %v4073, 0
        %4158 = vmatprep.subr.mxu0 0.0
        %4159 = vmatpush1.msra.mxu0 0.0
        %4160 = vmatprep.subr.mxu0 0.0
        %4161 = vmatpush1.msra.mxu0 0.0
        %4162 = vmatprep.subr.mxu0 0.0
        %4163 = vmatpush1.msra.mxu0 0.0
        %4164 = vmatprep.subr.mxu0 0.0
        %4165 = vmatpush1.msra.mxu0 0.0
        %4166 = vmatprep.subr.mxu0 0.0
        %4167 = vmatpush1.msra.mxu0 0.0
        %4168 = vmatprep.subr.mxu0 0.0
        %4169 = vmatpush1.msra.mxu0 0.0
        %4170 = vmatprep.subr.mxu0 0.0
        %4171 = vmatpush1.msra.mxu0 0.0
        %4172 = vmatprep.subr.mxu0 0.0
        %4173 = vmatpush1.msra.mxu0 0.0
        %4174 = vmatprep.subr.mxu0 0.0
        %4175 = vmatpush1.msra.mxu0 0.0
        %4176 = vmatprep.subr.mxu0 0.0
        %4177 = vmatpush1.msra.mxu0 0.0
        %4178 = vmatprep.subr.mxu0 0.0
        %4179 = vmatpush1.msra.mxu0 0.0
        %4180 = vmatprep.subr.mxu0 0.0
        %4181 = vmatpush1.msra.mxu0 0.0
        %4182 = vmatprep.subr.mxu0 0.0
        %4183 = vmatpush1.msra.mxu0 0.0
        %4184 = vmatprep.subr.mxu0 0.0
        %4185 = vmatpush1.msra.mxu0 0.0
        %4186 = vmatprep.subr.mxu0 0.0
        %4187 = vmatpush1.msra.mxu0 0.0
        %4188 = vmatprep.subr.mxu0 0.0
        %4189 = vmatpush1.msra.mxu0 %v4153
        %4190 = vmatprep.subr.mxu0 0.0
        %4191 = vmatpush2.msra.mxu0 0.0
        %4192 = vmatprep.subr.mxu0 0.0
        %4193 = vmatpush2.msra.mxu0 0.0
        %4194 = vmatprep.subr.mxu0 0.0
        %4195 = vmatpush2.msra.mxu0 0.0
        %4196 = vmatprep.subr.mxu0 0.0
        %4197 = vmatpush2.msra.mxu0 0.0
        %4198 = vmatprep.subr.mxu0 0.0
        %4199 = vmatpush2.msra.mxu0 0.0
        %4200 = vmatprep.subr.mxu0 0.0
        %4201 = vmatpush2.msra.mxu0 0.0
        %4202 = vmatprep.subr.mxu0 0.0
        %4203 = vmatpush2.msra.mxu0 0.0
        %4204 = vmatprep.subr.mxu0 0.0
        %4205 = vmatpush2.msra.mxu0 0.0
        %4206 = vmatprep.subr.mxu0 0.0
        %4207 = vmatpush2.msra.mxu0 0.0
        %4208 = vmatprep.subr.mxu0 0.0
        %4209 = vmatpush2.msra.mxu0 0.0
        %4210 = vmatprep.subr.mxu0 0.0
        %4211 = vmatpush2.msra.mxu0 0.0
        %4212 = vmatprep.subr.mxu0 0.0
        %4213 = vmatpush2.msra.mxu0 0.0
        %4214 = vmatprep.subr.mxu0 0.0
        %4215 = vmatpush2.msra.mxu0 0.0
        %4216 = vmatprep.subr.mxu0 0.0
        %4217 = vmatpush2.msra.mxu0 0.0
        %4218 = vmatprep.subr.mxu0 0.0
        %4219 = vmatpush2.msra.mxu0 0.0
        %4220 = vmatprep.subr.mxu0 0.0
        %4221 = vmatpush2.msra.mxu0 0.0
        %4222 = vmatprep.mubr.f32.mxu0 0.0
        %4223 = vmatmul.mubr.f32.gmra.mxu0 %v4156
        %v4224 = vpop.f32.mrf.mxu0
        %v4225 = vadd.f32 0.0, %v4224
        %v4226 = vpop.f32.mrf.mxu0
        %4227 = vdwg.mxu0
        %4228 = vrot.lane.b32.xlu0 %v3710, 80
        %v4229 = vpop.permute.xlu0 %4228
        %v4232 = vsel %vm481, %v4074, 0
        %4234 = vmatprep.subr.mxu0 0.0
        %4235 = vmatpush1.msra.mxu0 0.0
        %4236 = vmatprep.subr.mxu0 0.0
        %4237 = vmatpush1.msra.mxu0 0.0
        %4238 = vmatprep.subr.mxu0 0.0
        %4239 = vmatpush1.msra.mxu0 0.0
        %4240 = vmatprep.subr.mxu0 0.0
        %4241 = vmatpush1.msra.mxu0 0.0
        %4242 = vmatprep.subr.mxu0 0.0
        %4243 = vmatpush1.msra.mxu0 0.0
        %4244 = vmatprep.subr.mxu0 0.0
        %4245 = vmatpush1.msra.mxu0 0.0
        %4246 = vmatprep.subr.mxu0 0.0
        %4247 = vmatpush1.msra.mxu0 0.0
        %4248 = vmatprep.subr.mxu0 0.0
        %4249 = vmatpush1.msra.mxu0 0.0
        %4250 = vmatprep.subr.mxu0 0.0
        %4251 = vmatpush1.msra.mxu0 0.0
        %4252 = vmatprep.subr.mxu0 0.0
        %4253 = vmatpush1.msra.mxu0 0.0
        %4254 = vmatprep.subr.mxu0 0.0
        %4255 = vmatpush1.msra.mxu0 0.0
        %4256 = vmatprep.subr.mxu0 0.0
        %4257 = vmatpush1.msra.mxu0 0.0
        %4258 = vmatprep.subr.mxu0 0.0
        %4259 = vmatpush1.msra.mxu0 0.0
        %4260 = vmatprep.subr.mxu0 0.0
        %4261 = vmatpush1.msra.mxu0 0.0
        %4262 = vmatprep.subr.mxu0 0.0
        %4263 = vmatpush1.msra.mxu0 0.0
        %4264 = vmatprep.subr.mxu0 0.0
        %4265 = vmatpush1.msra.mxu0 %v4229
        %4266 = vmatprep.subr.mxu0 0.0
        %4267 = vmatpush2.msra.mxu0 0.0
        %4268 = vmatprep.subr.mxu0 0.0
        %4269 = vmatpush2.msra.mxu0 0.0
        %4270 = vmatprep.subr.mxu0 0.0
        %4271 = vmatpush2.msra.mxu0 0.0
        %4272 = vmatprep.subr.mxu0 0.0
        %4273 = vmatpush2.msra.mxu0 0.0
        %4274 = vmatprep.subr.mxu0 0.0
        %4275 = vmatpush2.msra.mxu0 0.0
        %4276 = vmatprep.subr.mxu0 0.0
        %4277 = vmatpush2.msra.mxu0 0.0
        %4278 = vmatprep.subr.mxu0 0.0
        %4279 = vmatpush2.msra.mxu0 0.0
        %4280 = vmatprep.subr.mxu0 0.0
        %4281 = vmatpush2.msra.mxu0 0.0
        %4282 = vmatprep.subr.mxu0 0.0
        %4283 = vmatpush2.msra.mxu0 0.0
        %4284 = vmatprep.subr.mxu0 0.0
        %4285 = vmatpush2.msra.mxu0 0.0
        %4286 = vmatprep.subr.mxu0 0.0
        %4287 = vmatpush2.msra.mxu0 0.0
        %4288 = vmatprep.subr.mxu0 0.0
        %4289 = vmatpush2.msra.mxu0 0.0
        %4290 = vmatprep.subr.mxu0 0.0
        %4291 = vmatpush2.msra.mxu0 0.0
        %4292 = vmatprep.subr.mxu0 0.0
        %4293 = vmatpush2.msra.mxu0 0.0
        %4294 = vmatprep.subr.mxu0 0.0
        %4295 = vmatpush2.msra.mxu0 0.0
        %4296 = vmatprep.subr.mxu0 0.0
        %4297 = vmatpush2.msra.mxu0 0.0
        %4298 = vmatprep.mubr.f32.mxu0 0.0
        %4299 = vmatmul.mubr.f32.gmra.mxu0 %v4232
        %v4300 = vpop.f32.mrf.mxu0
        %v4301 = vadd.f32 0.0, %v4300
        %v4302 = vpop.f32.mrf.mxu0
        %4303 = vdwg.mxu0
        %4304 = vrot.lane.b32.xlu0 %v3710, 72
        %v4305 = vpop.permute.xlu0 %4304
        %v4308 = vsel %vm481, %v4075, 0
        %4310 = vmatprep.subr.mxu0 0.0
        %4311 = vmatpush1.msra.mxu0 0.0
        %4312 = vmatprep.subr.mxu0 0.0
        %4313 = vmatpush1.msra.mxu0 0.0
        %4314 = vmatprep.subr.mxu0 0.0
        %4315 = vmatpush1.msra.mxu0 0.0
        %4316 = vmatprep.subr.mxu0 0.0
        %4317 = vmatpush1.msra.mxu0 0.0
        %4318 = vmatprep.subr.mxu0 0.0
        %4319 = vmatpush1.msra.mxu0 0.0
        %4320 = vmatprep.subr.mxu0 0.0
        %4321 = vmatpush1.msra.mxu0 0.0
        %4322 = vmatprep.subr.mxu0 0.0
        %4323 = vmatpush1.msra.mxu0 0.0
        %4324 = vmatprep.subr.mxu0 0.0
        %4325 = vmatpush1.msra.mxu0 0.0
        %4326 = vmatprep.subr.mxu0 0.0
        %4327 = vmatpush1.msra.mxu0 0.0
        %4328 = vmatprep.subr.mxu0 0.0
        %4329 = vmatpush1.msra.mxu0 0.0
        %4330 = vmatprep.subr.mxu0 0.0
        %4331 = vmatpush1.msra.mxu0 0.0
        %4332 = vmatprep.subr.mxu0 0.0
        %4333 = vmatpush1.msra.mxu0 0.0
        %4334 = vmatprep.subr.mxu0 0.0
        %4335 = vmatpush1.msra.mxu0 0.0
        %4336 = vmatprep.subr.mxu0 0.0
        %4337 = vmatpush1.msra.mxu0 0.0
        %4338 = vmatprep.subr.mxu0 0.0
        %4339 = vmatpush1.msra.mxu0 0.0
        %4340 = vmatprep.subr.mxu0 0.0
        %4341 = vmatpush1.msra.mxu0 %v4305
        %4342 = vmatprep.subr.mxu0 0.0
        %4343 = vmatpush2.msra.mxu0 0.0
        %4344 = vmatprep.subr.mxu0 0.0
        %4345 = vmatpush2.msra.mxu0 0.0
        %4346 = vmatprep.subr.mxu0 0.0
        %4347 = vmatpush2.msra.mxu0 0.0
        %4348 = vmatprep.subr.mxu0 0.0
        %4349 = vmatpush2.msra.mxu0 0.0
        %4350 = vmatprep.subr.mxu0 0.0
        %4351 = vmatpush2.msra.mxu0 0.0
        %4352 = vmatprep.subr.mxu0 0.0
        %4353 = vmatpush2.msra.mxu0 0.0
        %4354 = vmatprep.subr.mxu0 0.0
        %4355 = vmatpush2.msra.mxu0 0.0
        %4356 = vmatprep.subr.mxu0 0.0
        %4357 = vmatpush2.msra.mxu0 0.0
        %4358 = vmatprep.subr.mxu0 0.0
        %4359 = vmatpush2.msra.mxu0 0.0
        %4360 = vmatprep.subr.mxu0 0.0
        %4361 = vmatpush2.msra.mxu0 0.0
        %4362 = vmatprep.subr.mxu0 0.0
        %4363 = vmatpush2.msra.mxu0 0.0
        %4364 = vmatprep.subr.mxu0 0.0
        %4365 = vmatpush2.msra.mxu0 0.0
        %4366 = vmatprep.subr.mxu0 0.0
        %4367 = vmatpush2.msra.mxu0 0.0
        %4368 = vmatprep.subr.mxu0 0.0
        %4369 = vmatpush2.msra.mxu0 0.0
        %4370 = vmatprep.subr.mxu0 0.0
        %4371 = vmatpush2.msra.mxu0 0.0
        %4372 = vmatprep.subr.mxu0 0.0
        %4373 = vmatpush2.msra.mxu0 0.0
        %4374 = vmatprep.mubr.f32.mxu0 0.0
        %4375 = vmatmul.mubr.f32.gmra.mxu0 %v4308
        %v4376 = vpop.f32.mrf.mxu0
        %v4377 = vadd.f32 0.0, %v4376
        %v4378 = vpop.f32.mrf.mxu0
        %4379 = vdwg.mxu0
        %4381 = vrot.lane.b32.xlu0 %v4225, 8
        %v4382 = vpop.permute.xlu0 %4381
        %4385 = vrot.lane.b32.xlu0 %v4301, 16
        %v4386 = vpop.permute.xlu0 %4385
        %4389 = vrot.lane.b32.xlu0 %v4377, 24
        %v4390 = vpop.permute.xlu0 %4389
        %v4392 = vsel %vm481, %v4149, %v4382
        %v4393 = vsel %vm280, %v4392, %v4386
        %v4394 = vsel %vm1162, %v4393, %v4390
        %v4395 = vlaneseq
        %v4396 = vshrl.u32 %v4395, 7
        %v4397 = vsub.s32 0, %v4396
        %v4398 = vrot.slane %v3717, %v4397
        %v4400 = vsel %vm358, %v4394, 0
        %4402 = vmatprep.subr.mxu0 0.0
        %4403 = vmatpush1.msra.mxu0 0.0
        %4404 = vmatprep.subr.mxu0 0.0
        %4405 = vmatpush1.msra.mxu0 0.0
        %4406 = vmatprep.subr.mxu0 0.0
        %4407 = vmatpush1.msra.mxu0 0.0
        %4408 = vmatprep.subr.mxu0 0.0
        %4409 = vmatpush1.msra.mxu0 0.0
        %4410 = vmatprep.subr.mxu0 0.0
        %4411 = vmatpush1.msra.mxu0 0.0
        %4412 = vmatprep.subr.mxu0 0.0
        %4413 = vmatpush1.msra.mxu0 0.0
        %4414 = vmatprep.subr.mxu0 0.0
        %4415 = vmatpush1.msra.mxu0 0.0
        %4416 = vmatprep.subr.mxu0 0.0
        %4417 = vmatpush1.msra.mxu0 0.0
        %4418 = vmatprep.subr.mxu0 0.0
        %4419 = vmatpush1.msra.mxu0 0.0
        %4420 = vmatprep.subr.mxu0 0.0
        %4421 = vmatpush1.msra.mxu0 0.0
        %4422 = vmatprep.subr.mxu0 0.0
        %4423 = vmatpush1.msra.mxu0 0.0
        %4424 = vmatprep.subr.mxu0 0.0
        %4425 = vmatpush1.msra.mxu0 0.0
        %4426 = vmatprep.subr.mxu0 0.0
        %4427 = vmatpush1.msra.mxu0 %v3716
        %4428 = vmatprep.subr.mxu0 0.0
        %4429 = vmatpush1.msra.mxu0 %v3715
        %4430 = vmatprep.subr.mxu0 0.0
        %4431 = vmatpush1.msra.mxu0 %v3714
        %4432 = vmatprep.subr.mxu0 0.0
        %4433 = vmatpush1.msra.mxu0 %v3713
        %4434 = vmatprep.subr.mxu0 0.0
        %4435 = vmatpush2.msra.mxu0 0.0
        %4436 = vmatprep.subr.mxu0 0.0
        %4437 = vmatpush2.msra.mxu0 0.0
        %4438 = vmatprep.subr.mxu0 0.0
        %4439 = vmatpush2.msra.mxu0 0.0
        %4440 = vmatprep.subr.mxu0 0.0
        %4441 = vmatpush2.msra.mxu0 0.0
        %4442 = vmatprep.subr.mxu0 0.0
        %4443 = vmatpush2.msra.mxu0 0.0
        %4444 = vmatprep.subr.mxu0 0.0
        %4445 = vmatpush2.msra.mxu0 0.0
        %4446 = vmatprep.subr.mxu0 0.0
        %4447 = vmatpush2.msra.mxu0 0.0
        %4448 = vmatprep.subr.mxu0 0.0
        %4449 = vmatpush2.msra.mxu0 0.0
        %4450 = vmatprep.subr.mxu0 0.0
        %4451 = vmatpush2.msra.mxu0 0.0
        %4452 = vmatprep.subr.mxu0 0.0
        %4453 = vmatpush2.msra.mxu0 0.0
        %4454 = vmatprep.subr.mxu0 0.0
        %4455 = vmatpush2.msra.mxu0 0.0
        %4456 = vmatprep.subr.mxu0 0.0
        %4457 = vmatpush2.msra.mxu0 0.0
        %4458 = vmatprep.subr.mxu0 0.0
        %4459 = vmatpush2.msra.mxu0 0.0
        %4460 = vmatprep.subr.mxu0 0.0
        %4461 = vmatpush2.msra.mxu0 0.0
        %4462 = vmatprep.subr.mxu0 0.0
        %4463 = vmatpush2.msra.mxu0 0.0
        %4464 = vmatprep.subr.mxu0 0.0
        %4465 = vmatpush2.msra.mxu0 0.0
        %4466 = vmatprep.mubr.f32.mxu0 0.0
        %4467 = vmatmul.mubr.f32.gmra.mxu0 %v4400
        %v4468 = vpop.f32.mrf.mxu0
        %v4469 = vadd.f32 %v4398, %v4468
        %v4470 = vpop.f32.mrf.mxu0
        %4471 = vdwg.mxu0
        %v4472 = vadd.f32 %v3516, %v4469
        %v4473 = vld [vmem:[%s4 + $0x360] sm:$0x1]
        %v4474 = vld [vmem:[%s4 + $0x368] sm:$0x1]
        %v4475 = vsel %vm358, %v4472, 0.0
        %4476 = vadd.xlane.f32.xlu0 %v4475
        %v4477 = vpop.xlane.xlu0 %4476
        %v4478 = vmul.f32 %v4477, %v362
        %v4479 = vsub.f32 %v4472, %v4478
        %v4480 = vmul.f32 %v4479, %v4479
        %v4481 = vsel %vm358, %v4480, 0.0
        %4482 = vadd.xlane.f32.xlu0 %v4481
        %v4483 = vpop.xlane.xlu0 %4482
        %v4484 = vmul.f32 %v4483, %v369
        %v4485 = vrsqrt.pop %v4484
        %v4486 = vmul.f32 %v4484, %v4485
        %vm4487 = vcmp.eq.f32.partialorder %v4484, inf
        %v4488 = vsel %vm4487, %v4484, %v4486
        %vm4489 = vcmp.eq.f32.partialorder %v4484, 0.0
        %v4490 = vand.u32 %v4484, 2147483648
        %v4491 = vsel %vm4489, %v4490, %v4488
        %v4492 = vlaneseq
        %v4493 = vshrl.u32 %v4492, 7
        %v4494 = vsub.s32 0, %v4493
        %v4495 = vrot.slane %v4473, %v4494
        %v4496 = vmul.f32 %v4495, %v4479
        %v4497 = vadd.f32 %v4491, 1e-06
        %v4498 = vrcp.pop %v4497
        %v4499 = vmul.f32 %v4496, %v4498
        %v4500 = vlaneseq
        %v4501 = vshrl.u32 %v4500, 7
        %v4502 = vsub.s32 0, %v4501
        %v4503 = vrot.slane %v4474, %v4502
        %v4504 = vadd.f32 %v4499, %v4503
        %v4505 = vld [vmem:[%s4 + $0x2d0] sm:$0xff]
        %v4506 = vld [vmem:[%s4 + $0x2d8] sm:$0xff]
        %v4507 = vld [vmem:[%s4 + $0x2e0] sm:$0xff]
        %v4508 = vld [vmem:[%s4 + $0x2e8] sm:$0xff]
        %v4509 = vld [vmem:[%s4 + $0x2f0] sm:$0x1]
        %v4510 = vlaneseq
        %v4511 = vshrl.u32 %v4510, 7
        %v4512 = vsub.s32 0, %v4511
        %v4513 = vrot.slane %v4509, %v4512
        %v4515 = vsel %vm358, %v4504, 0
        %4517 = vmatprep.subr.mxu0 0.0
        %4518 = vmatpush1.msra.mxu0 0.0
        %4519 = vmatprep.subr.mxu0 0.0
        %4520 = vmatpush1.msra.mxu0 0.0
        %4521 = vmatprep.subr.mxu0 0.0
        %4522 = vmatpush1.msra.mxu0 0.0
        %4523 = vmatprep.subr.mxu0 0.0
        %4524 = vmatpush1.msra.mxu0 0.0
        %4525 = vmatprep.subr.mxu0 0.0
        %4526 = vmatpush1.msra.mxu0 0.0
        %4527 = vmatprep.subr.mxu0 0.0
        %4528 = vmatpush1.msra.mxu0 0.0
        %4529 = vmatprep.subr.mxu0 0.0
        %4530 = vmatpush1.msra.mxu0 0.0
        %4531 = vmatprep.subr.mxu0 0.0
        %4532 = vmatpush1.msra.mxu0 0.0
        %4533 = vmatprep.subr.mxu0 0.0
        %4534 = vmatpush1.msra.mxu0 0.0
        %4535 = vmatprep.subr.mxu0 0.0
        %4536 = vmatpush1.msra.mxu0 0.0
        %4537 = vmatprep.subr.mxu0 0.0
        %4538 = vmatpush1.msra.mxu0 0.0
        %4539 = vmatprep.subr.mxu0 0.0
        %4540 = vmatpush1.msra.mxu0 0.0
        %4541 = vmatprep.subr.mxu0 0.0
        %4542 = vmatpush1.msra.mxu0 %v4508
        %4543 = vmatprep.subr.mxu0 0.0
        %4544 = vmatpush1.msra.mxu0 %v4507
        %4545 = vmatprep.subr.mxu0 0.0
        %4546 = vmatpush1.msra.mxu0 %v4506
        %4547 = vmatprep.subr.mxu0 0.0
        %4548 = vmatpush1.msra.mxu0 %v4505
        %4549 = vmatprep.subr.mxu0 0.0
        %4550 = vmatpush2.msra.mxu0 0.0
        %4551 = vmatprep.subr.mxu0 0.0
        %4552 = vmatpush2.msra.mxu0 0.0
        %4553 = vmatprep.subr.mxu0 0.0
        %4554 = vmatpush2.msra.mxu0 0.0
        %4555 = vmatprep.subr.mxu0 0.0
        %4556 = vmatpush2.msra.mxu0 0.0
        %4557 = vmatprep.subr.mxu0 0.0
        %4558 = vmatpush2.msra.mxu0 0.0
        %4559 = vmatprep.subr.mxu0 0.0
        %4560 = vmatpush2.msra.mxu0 0.0
        %4561 = vmatprep.subr.mxu0 0.0
        %4562 = vmatpush2.msra.mxu0 0.0
        %4563 = vmatprep.subr.mxu0 0.0
        %4564 = vmatpush2.msra.mxu0 0.0
        %4565 = vmatprep.subr.mxu0 0.0
        %4566 = vmatpush2.msra.mxu0 0.0
        %4567 = vmatprep.subr.mxu0 0.0
        %4568 = vmatpush2.msra.mxu0 0.0
        %4569 = vmatprep.subr.mxu0 0.0
        %4570 = vmatpush2.msra.mxu0 0.0
        %4571 = vmatprep.subr.mxu0 0.0
        %4572 = vmatpush2.msra.mxu0 0.0
        %4573 = vmatprep.subr.mxu0 0.0
        %4574 = vmatpush2.msra.mxu0 0.0
        %4575 = vmatprep.subr.mxu0 0.0
        %4576 = vmatpush2.msra.mxu0 0.0
        %4577 = vmatprep.subr.mxu0 0.0
        %4578 = vmatpush2.msra.mxu0 0.0
        %4579 = vmatprep.subr.mxu0 0.0
        %4580 = vmatpush2.msra.mxu0 0.0
        %4581 = vmatprep.mubr.f32.mxu0 0.0
        %4582 = vmatmul.mubr.f32.gmra.mxu0 %v4515
        %v4583 = vpop.f32.mrf.mxu0
        %v4584 = vadd.f32 %v4513, %v4583
        %v4585 = vpop.f32.mrf.mxu0
        %4586 = vdwg.mxu0
        %v4587 = vmax.f32 %v4584, 0.0
        %v4588 = vld [vmem:[%s4 + $0x2f8] sm:$0xff]
        %v4589 = vld [vmem:[%s4 + $0x300] sm:$0xff]
        %v4590 = vld [vmem:[%s4 + $0x308] sm:$0xff]
        %v4591 = vld [vmem:[%s4 + $0x310] sm:$0xff]
        %v4592 = vld [vmem:[%s4 + $0x318] sm:$0xff]
        %v4593 = vld [vmem:[%s4 + $0x320] sm:$0xff]
        %v4594 = vld [vmem:[%s4 + $0x328] sm:$0xff]
        %v4595 = vld [vmem:[%s4 + $0x330] sm:$0xff]
        %v4596 = vld [vmem:[%s4 + $0x338] sm:$0x1]
        %v4597 = vlaneseq
        %v4598 = vshrl.u32 %v4597, 7
        %v4599 = vsub.s32 0, %v4598
        %v4600 = vrot.slane %v4596, %v4599
        %v4602 = vsel %vm1370, %v4587, 0
        %4604 = vmatprep.subr.mxu0 0.0
        %4605 = vmatpush1.msra.mxu0 0.0
        %4606 = vmatprep.subr.mxu0 0.0
        %4607 = vmatpush1.msra.mxu0 0.0
        %4608 = vmatprep.subr.mxu0 0.0
        %4609 = vmatpush1.msra.mxu0 0.0
        %4610 = vmatprep.subr.mxu0 0.0
        %4611 = vmatpush1.msra.mxu0 0.0
        %4612 = vmatprep.subr.mxu0 0.0
        %4613 = vmatpush1.msra.mxu0 0.0
        %4614 = vmatprep.subr.mxu0 0.0
        %4615 = vmatpush1.msra.mxu0 0.0
        %4616 = vmatprep.subr.mxu0 0.0
        %4617 = vmatpush1.msra.mxu0 0.0
        %4618 = vmatprep.subr.mxu0 0.0
        %4619 = vmatpush1.msra.mxu0 0.0
        %4620 = vmatprep.subr.mxu0 0.0
        %4621 = vmatpush1.msra.mxu0 %v4595
        %4622 = vmatprep.subr.mxu0 0.0
        %4623 = vmatpush1.msra.mxu0 %v4594
        %4624 = vmatprep.subr.mxu0 0.0
        %4625 = vmatpush1.msra.mxu0 %v4593
        %4626 = vmatprep.subr.mxu0 0.0
        %4627 = vmatpush1.msra.mxu0 %v4592
        %4628 = vmatprep.subr.mxu0 0.0
        %4629 = vmatpush1.msra.mxu0 %v4591
        %4630 = vmatprep.subr.mxu0 0.0
        %4631 = vmatpush1.msra.mxu0 %v4590
        %4632 = vmatprep.subr.mxu0 0.0
        %4633 = vmatpush1.msra.mxu0 %v4589
        %4634 = vmatprep.subr.mxu0 0.0
        %4635 = vmatpush1.msra.mxu0 %v4588
        %4636 = vmatprep.subr.mxu0 0.0
        %4637 = vmatpush2.msra.mxu0 0.0
        %4638 = vmatprep.subr.mxu0 0.0
        %4639 = vmatpush2.msra.mxu0 0.0
        %4640 = vmatprep.subr.mxu0 0.0
        %4641 = vmatpush2.msra.mxu0 0.0
        %4642 = vmatprep.subr.mxu0 0.0
        %4643 = vmatpush2.msra.mxu0 0.0
        %4644 = vmatprep.subr.mxu0 0.0
        %4645 = vmatpush2.msra.mxu0 0.0
        %4646 = vmatprep.subr.mxu0 0.0
        %4647 = vmatpush2.msra.mxu0 0.0
        %4648 = vmatprep.subr.mxu0 0.0
        %4649 = vmatpush2.msra.mxu0 0.0
        %4650 = vmatprep.subr.mxu0 0.0
        %4651 = vmatpush2.msra.mxu0 0.0
        %4652 = vmatprep.subr.mxu0 0.0
        %4653 = vmatpush2.msra.mxu0 0.0
        %4654 = vmatprep.subr.mxu0 0.0
        %4655 = vmatpush2.msra.mxu0 0.0
        %4656 = vmatprep.subr.mxu0 0.0
        %4657 = vmatpush2.msra.mxu0 0.0
        %4658 = vmatprep.subr.mxu0 0.0
        %4659 = vmatpush2.msra.mxu0 0.0
        %4660 = vmatprep.subr.mxu0 0.0
        %4661 = vmatpush2.msra.mxu0 0.0
        %4662 = vmatprep.subr.mxu0 0.0
        %4663 = vmatpush2.msra.mxu0 0.0
        %4664 = vmatprep.subr.mxu0 0.0
        %4665 = vmatpush2.msra.mxu0 0.0
        %4666 = vmatprep.subr.mxu0 0.0
        %4667 = vmatpush2.msra.mxu0 0.0
        %4668 = vmatprep.mubr.f32.mxu0 0.0
        %4669 = vmatmul.mubr.f32.gmra.mxu0 %v4602
        %v4670 = vpop.f32.mrf.mxu0
        %v4671 = vadd.f32 %v4600, %v4670
        %v4672 = vpop.f32.mrf.mxu0
        %4673 = vdwg.mxu0
        %v4674 = vadd.f32 %v4472, %v4671
        %v4675 = vld [vmem:[%s4 + $0x4a8] sm:$0x1]
        %v4676 = vld [vmem:[%s4 + $0x4b0] sm:$0x1]
        %v4677 = vsel %vm358, %v4674, 0.0
        %4678 = vadd.xlane.f32.xlu0 %v4677
        %v4679 = vpop.xlane.xlu0 %4678
        %v4680 = vmul.f32 %v4679, %v362
        %v4681 = vsub.f32 %v4674, %v4680
        %v4682 = vmul.f32 %v4681, %v4681
        %v4683 = vsel %vm358, %v4682, 0.0
        %4684 = vadd.xlane.f32.xlu0 %v4683
        %v4685 = vpop.xlane.xlu0 %4684
        %v4686 = vmul.f32 %v4685, %v369
        %v4687 = vrsqrt.pop %v4686
        %v4688 = vmul.f32 %v4686, %v4687
        %vm4689 = vcmp.eq.f32.partialorder %v4686, inf
        %v4690 = vsel %vm4689, %v4686, %v4688
        %vm4691 = vcmp.eq.f32.partialorder %v4686, 0.0
        %v4692 = vand.u32 %v4686, 2147483648
        %v4693 = vsel %vm4691, %v4692, %v4690
        %v4694 = vlaneseq
        %v4695 = vshrl.u32 %v4694, 7
        %v4696 = vsub.s32 0, %v4695
        %v4697 = vrot.slane %v4675, %v4696
        %v4698 = vmul.f32 %v4697, %v4681
        %v4699 = vadd.f32 %v4693, 1e-06
        %v4700 = vrcp.pop %v4699
        %v4701 = vmul.f32 %v4698, %v4700
        %v4702 = vlaneseq
        %v4703 = vshrl.u32 %v4702, 7
        %v4704 = vsub.s32 0, %v4703
        %v4705 = vrot.slane %v4676, %v4704
        %v4706 = vadd.f32 %v4701, %v4705
        %v4707 = vld [vmem:[%s4 + $0x370] sm:$0xff]
        %v4708 = vld [vmem:[%s4 + $0x378] sm:$0xff]
        %v4709 = vld [vmem:[%s4 + $0x380] sm:$0xff]
        %v4710 = vld [vmem:[%s4 + $0x388] sm:$0xff]
        %v4711 = vld [vmem:[%s4 + $0x390] sm:$0x1]
        %v4712 = vlaneseq
        %v4713 = vshrl.u32 %v4712, 7
        %v4714 = vsub.s32 0, %v4713
        %v4715 = vrot.slane %v4711, %v4714
        %v4717 = vsel %vm358, %v4706, 0
        %4719 = vmatprep.subr.mxu0 0.0
        %4720 = vmatpush1.msra.mxu0 0.0
        %4721 = vmatprep.subr.mxu0 0.0
        %4722 = vmatpush1.msra.mxu0 0.0
        %4723 = vmatprep.subr.mxu0 0.0
        %4724 = vmatpush1.msra.mxu0 0.0
        %4725 = vmatprep.subr.mxu0 0.0
        %4726 = vmatpush1.msra.mxu0 0.0
        %4727 = vmatprep.subr.mxu0 0.0
        %4728 = vmatpush1.msra.mxu0 0.0
        %4729 = vmatprep.subr.mxu0 0.0
        %4730 = vmatpush1.msra.mxu0 0.0
        %4731 = vmatprep.subr.mxu0 0.0
        %4732 = vmatpush1.msra.mxu0 0.0
        %4733 = vmatprep.subr.mxu0 0.0
        %4734 = vmatpush1.msra.mxu0 0.0
        %4735 = vmatprep.subr.mxu0 0.0
        %4736 = vmatpush1.msra.mxu0 0.0
        %4737 = vmatprep.subr.mxu0 0.0
        %4738 = vmatpush1.msra.mxu0 0.0
        %4739 = vmatprep.subr.mxu0 0.0
        %4740 = vmatpush1.msra.mxu0 0.0
        %4741 = vmatprep.subr.mxu0 0.0
        %4742 = vmatpush1.msra.mxu0 0.0
        %4743 = vmatprep.subr.mxu0 0.0
        %4744 = vmatpush1.msra.mxu0 %v4710
        %4745 = vmatprep.subr.mxu0 0.0
        %4746 = vmatpush1.msra.mxu0 %v4709
        %4747 = vmatprep.subr.mxu0 0.0
        %4748 = vmatpush1.msra.mxu0 %v4708
        %4749 = vmatprep.subr.mxu0 0.0
        %4750 = vmatpush1.msra.mxu0 %v4707
        %4751 = vmatprep.subr.mxu0 0.0
        %4752 = vmatpush2.msra.mxu0 0.0
        %4753 = vmatprep.subr.mxu0 0.0
        %4754 = vmatpush2.msra.mxu0 0.0
        %4755 = vmatprep.subr.mxu0 0.0
        %4756 = vmatpush2.msra.mxu0 0.0
        %4757 = vmatprep.subr.mxu0 0.0
        %4758 = vmatpush2.msra.mxu0 0.0
        %4759 = vmatprep.subr.mxu0 0.0
        %4760 = vmatpush2.msra.mxu0 0.0
        %4761 = vmatprep.subr.mxu0 0.0
        %4762 = vmatpush2.msra.mxu0 0.0
        %4763 = vmatprep.subr.mxu0 0.0
        %4764 = vmatpush2.msra.mxu0 0.0
        %4765 = vmatprep.subr.mxu0 0.0
        %4766 = vmatpush2.msra.mxu0 0.0
        %4767 = vmatprep.subr.mxu0 0.0
        %4768 = vmatpush2.msra.mxu0 0.0
        %4769 = vmatprep.subr.mxu0 0.0
        %4770 = vmatpush2.msra.mxu0 0.0
        %4771 = vmatprep.subr.mxu0 0.0
        %4772 = vmatpush2.msra.mxu0 0.0
        %4773 = vmatprep.subr.mxu0 0.0
        %4774 = vmatpush2.msra.mxu0 0.0
        %4775 = vmatprep.subr.mxu0 0.0
        %4776 = vmatpush2.msra.mxu0 0.0
        %4777 = vmatprep.subr.mxu0 0.0
        %4778 = vmatpush2.msra.mxu0 0.0
        %4779 = vmatprep.subr.mxu0 0.0
        %4780 = vmatpush2.msra.mxu0 0.0
        %4781 = vmatprep.subr.mxu0 0.0
        %4782 = vmatpush2.msra.mxu0 0.0
        %4783 = vmatprep.mubr.f32.mxu0 0.0
        %4784 = vmatmul.mubr.f32.gmra.mxu0 %v4717
        %v4785 = vpop.f32.mrf.mxu0
        %v4786 = vadd.f32 %v4715, %v4785
        %v4787 = vpop.f32.mrf.mxu0
        %4788 = vdwg.mxu0
        %v4789 = vld [vmem:[%s4 + $0x398] sm:$0xff]
        %v4790 = vld [vmem:[%s4 + $0x3a0] sm:$0xff]
        %v4791 = vld [vmem:[%s4 + $0x3a8] sm:$0xff]
        %v4792 = vld [vmem:[%s4 + $0x3b0] sm:$0xff]
        %v4793 = vld [vmem:[%s4 + $0x3b8] sm:$0x1]
        %4795 = vrot.lane.b32.xlu0 %v4786, 96
        %v4796 = vpop.permute.xlu0 %4795
        %v4797 = vsel %vm481, %v4786, 0
        %v4799 = vsel %vm481, %v4796, 0
        %4801 = vmatprep.subr.mxu0 0.0
        %4802 = vmatpush1.xpose.msra.mxu0 0.0
        %4803 = vmatprep.subr.mxu0 0.0
        %4804 = vmatpush1.xpose.msra.mxu0 0.0
        %4805 = vmatprep.subr.mxu0 0.0
        %4806 = vmatpush1.xpose.msra.mxu0 0.0
        %4807 = vmatprep.subr.mxu0 0.0
        %4808 = vmatpush1.xpose.msra.mxu0 0.0
        %4809 = vmatprep.subr.mxu0 0.0
        %4810 = vmatpush1.xpose.msra.mxu0 0.0
        %4811 = vmatprep.subr.mxu0 0.0
        %4812 = vmatpush1.xpose.msra.mxu0 0.0
        %4813 = vmatprep.subr.mxu0 0.0
        %4814 = vmatpush1.xpose.msra.mxu0 0.0
        %4815 = vmatprep.subr.mxu0 0.0
        %4816 = vmatpush1.xpose.msra.mxu0 0.0
        %4817 = vmatprep.subr.mxu0 0.0
        %4818 = vmatpush1.xpose.msra.mxu0 0.0
        %4819 = vmatprep.subr.mxu0 0.0
        %4820 = vmatpush1.xpose.msra.mxu0 0.0
        %4821 = vmatprep.subr.mxu0 0.0
        %4822 = vmatpush1.xpose.msra.mxu0 0.0
        %4823 = vmatprep.subr.mxu0 0.0
        %4824 = vmatpush1.xpose.msra.mxu0 0.0
        %4825 = vmatprep.subr.mxu0 0.0
        %4826 = vmatpush1.xpose.msra.mxu0 0.0
        %4827 = vmatprep.subr.mxu0 0.0
        %4828 = vmatpush1.xpose.msra.mxu0 0.0
        %4829 = vmatprep.subr.mxu0 0.0
        %4830 = vmatpush1.xpose.msra.mxu0 0.0
        %4831 = vmatprep.subr.mxu0 0.0
        %4832 = vmatpush1.xpose.msra.mxu0 %v4799
        %4833 = vmatprep.subr.mxu0 0.0
        %4834 = vmatpush2.xpose.msra.mxu0 0.0
        %4835 = vmatprep.subr.mxu0 0.0
        %4836 = vmatpush2.xpose.msra.mxu0 0.0
        %4837 = vmatprep.subr.mxu0 0.0
        %4838 = vmatpush2.xpose.msra.mxu0 0.0
        %4839 = vmatprep.subr.mxu0 0.0
        %4840 = vmatpush2.xpose.msra.mxu0 0.0
        %4841 = vmatprep.subr.mxu0 0.0
        %4842 = vmatpush2.xpose.msra.mxu0 0.0
        %4843 = vmatprep.subr.mxu0 0.0
        %4844 = vmatpush2.xpose.msra.mxu0 0.0
        %4845 = vmatprep.subr.mxu0 0.0
        %4846 = vmatpush2.xpose.msra.mxu0 0.0
        %4847 = vmatprep.subr.mxu0 0.0
        %4848 = vmatpush2.xpose.msra.mxu0 0.0
        %4849 = vmatprep.subr.mxu0 0.0
        %4850 = vmatpush2.xpose.msra.mxu0 0.0
        %4851 = vmatprep.subr.mxu0 0.0
        %4852 = vmatpush2.xpose.msra.mxu0 0.0
        %4853 = vmatprep.subr.mxu0 0.0
        %4854 = vmatpush2.xpose.msra.mxu0 0.0
        %4855 = vmatprep.subr.mxu0 0.0
        %4856 = vmatpush2.xpose.msra.mxu0 0.0
        %4857 = vmatprep.subr.mxu0 0.0
        %4858 = vmatpush2.xpose.msra.mxu0 0.0
        %4859 = vmatprep.subr.mxu0 0.0
        %4860 = vmatpush2.xpose.msra.mxu0 0.0
        %4861 = vmatprep.subr.mxu0 0.0
        %4862 = vmatpush2.xpose.msra.mxu0 0.0
        %4863 = vmatprep.subr.mxu0 0.0
        %4864 = vmatpush2.xpose.msra.mxu0 0.0
        %4865 = vmatprep.mubr.f32.mxu0 0.0
        %4866 = vmatmul.mubr.f32.gmra.mxu0 %v4797
        %v4867 = vpop.f32.mrf.mxu0
        %v4868 = vadd.f32 0.0, %v4867
        %v4869 = vpop.f32.mrf.mxu0
        %4870 = vdwg.mxu0
        %4871 = vrot.lane.b32.xlu0 %v4786, 120
        %v4872 = vpop.permute.xlu0 %4871
        %4873 = vrot.lane.b32.xlu0 %v4786, 88
        %v4874 = vpop.permute.xlu0 %4873
        %v4875 = vsel %vm481, %v4872, 0
        %v4877 = vsel %vm481, %v4874, 0
        %4879 = vmatprep.subr.mxu0 0.0
        %4880 = vmatpush1.xpose.msra.mxu0 0.0
        %4881 = vmatprep.subr.mxu0 0.0
        %4882 = vmatpush1.xpose.msra.mxu0 0.0
        %4883 = vmatprep.subr.mxu0 0.0
        %4884 = vmatpush1.xpose.msra.mxu0 0.0
        %4885 = vmatprep.subr.mxu0 0.0
        %4886 = vmatpush1.xpose.msra.mxu0 0.0
        %4887 = vmatprep.subr.mxu0 0.0
        %4888 = vmatpush1.xpose.msra.mxu0 0.0
        %4889 = vmatprep.subr.mxu0 0.0
        %4890 = vmatpush1.xpose.msra.mxu0 0.0
        %4891 = vmatprep.subr.mxu0 0.0
        %4892 = vmatpush1.xpose.msra.mxu0 0.0
        %4893 = vmatprep.subr.mxu0 0.0
        %4894 = vmatpush1.xpose.msra.mxu0 0.0
        %4895 = vmatprep.subr.mxu0 0.0
        %4896 = vmatpush1.xpose.msra.mxu0 0.0
        %4897 = vmatprep.subr.mxu0 0.0
        %4898 = vmatpush1.xpose.msra.mxu0 0.0
        %4899 = vmatprep.subr.mxu0 0.0
        %4900 = vmatpush1.xpose.msra.mxu0 0.0
        %4901 = vmatprep.subr.mxu0 0.0
        %4902 = vmatpush1.xpose.msra.mxu0 0.0
        %4903 = vmatprep.subr.mxu0 0.0
        %4904 = vmatpush1.xpose.msra.mxu0 0.0
        %4905 = vmatprep.subr.mxu0 0.0
        %4906 = vmatpush1.xpose.msra.mxu0 0.0
        %4907 = vmatprep.subr.mxu0 0.0
        %4908 = vmatpush1.xpose.msra.mxu0 0.0
        %4909 = vmatprep.subr.mxu0 0.0
        %4910 = vmatpush1.xpose.msra.mxu0 %v4877
        %4911 = vmatprep.subr.mxu0 0.0
        %4912 = vmatpush2.xpose.msra.mxu0 0.0
        %4913 = vmatprep.subr.mxu0 0.0
        %4914 = vmatpush2.xpose.msra.mxu0 0.0
        %4915 = vmatprep.subr.mxu0 0.0
        %4916 = vmatpush2.xpose.msra.mxu0 0.0
        %4917 = vmatprep.subr.mxu0 0.0
        %4918 = vmatpush2.xpose.msra.mxu0 0.0
        %4919 = vmatprep.subr.mxu0 0.0
        %4920 = vmatpush2.xpose.msra.mxu0 0.0
        %4921 = vmatprep.subr.mxu0 0.0
        %4922 = vmatpush2.xpose.msra.mxu0 0.0
        %4923 = vmatprep.subr.mxu0 0.0
        %4924 = vmatpush2.xpose.msra.mxu0 0.0
        %4925 = vmatprep.subr.mxu0 0.0
        %4926 = vmatpush2.xpose.msra.mxu0 0.0
        %4927 = vmatprep.subr.mxu0 0.0
        %4928 = vmatpush2.xpose.msra.mxu0 0.0
        %4929 = vmatprep.subr.mxu0 0.0
        %4930 = vmatpush2.xpose.msra.mxu0 0.0
        %4931 = vmatprep.subr.mxu0 0.0
        %4932 = vmatpush2.xpose.msra.mxu0 0.0
        %4933 = vmatprep.subr.mxu0 0.0
        %4934 = vmatpush2.xpose.msra.mxu0 0.0
        %4935 = vmatprep.subr.mxu0 0.0
        %4936 = vmatpush2.xpose.msra.mxu0 0.0
        %4937 = vmatprep.subr.mxu0 0.0
        %4938 = vmatpush2.xpose.msra.mxu0 0.0
        %4939 = vmatprep.subr.mxu0 0.0
        %4940 = vmatpush2.xpose.msra.mxu0 0.0
        %4941 = vmatprep.subr.mxu0 0.0
        %4942 = vmatpush2.xpose.msra.mxu0 0.0
        %4943 = vmatprep.mubr.f32.mxu0 0.0
        %4944 = vmatmul.mubr.f32.gmra.mxu0 %v4875
        %v4945 = vpop.f32.mrf.mxu0
        %v4946 = vadd.f32 0.0, %v4945
        %v4947 = vpop.f32.mrf.mxu0
        %4948 = vdwg.mxu0
        %4949 = vrot.lane.b32.xlu0 %v4786, 112
        %v4950 = vpop.permute.xlu0 %4949
        %4951 = vrot.lane.b32.xlu0 %v4786, 80
        %v4952 = vpop.permute.xlu0 %4951
        %v4953 = vsel %vm481, %v4950, 0
        %v4955 = vsel %vm481, %v4952, 0
        %4957 = vmatprep.subr.mxu0 0.0
        %4958 = vmatpush1.xpose.msra.mxu0 0.0
        %4959 = vmatprep.subr.mxu0 0.0
        %4960 = vmatpush1.xpose.msra.mxu0 0.0
        %4961 = vmatprep.subr.mxu0 0.0
        %4962 = vmatpush1.xpose.msra.mxu0 0.0
        %4963 = vmatprep.subr.mxu0 0.0
        %4964 = vmatpush1.xpose.msra.mxu0 0.0
        %4965 = vmatprep.subr.mxu0 0.0
        %4966 = vmatpush1.xpose.msra.mxu0 0.0
        %4967 = vmatprep.subr.mxu0 0.0
        %4968 = vmatpush1.xpose.msra.mxu0 0.0
        %4969 = vmatprep.subr.mxu0 0.0
        %4970 = vmatpush1.xpose.msra.mxu0 0.0
        %4971 = vmatprep.subr.mxu0 0.0
        %4972 = vmatpush1.xpose.msra.mxu0 0.0
        %4973 = vmatprep.subr.mxu0 0.0
        %4974 = vmatpush1.xpose.msra.mxu0 0.0
        %4975 = vmatprep.subr.mxu0 0.0
        %4976 = vmatpush1.xpose.msra.mxu0 0.0
        %4977 = vmatprep.subr.mxu0 0.0
        %4978 = vmatpush1.xpose.msra.mxu0 0.0
        %4979 = vmatprep.subr.mxu0 0.0
        %4980 = vmatpush1.xpose.msra.mxu0 0.0
        %4981 = vmatprep.subr.mxu0 0.0
        %4982 = vmatpush1.xpose.msra.mxu0 0.0
        %4983 = vmatprep.subr.mxu0 0.0
        %4984 = vmatpush1.xpose.msra.mxu0 0.0
        %4985 = vmatprep.subr.mxu0 0.0
        %4986 = vmatpush1.xpose.msra.mxu0 0.0
        %4987 = vmatprep.subr.mxu0 0.0
        %4988 = vmatpush1.xpose.msra.mxu0 %v4955
        %4989 = vmatprep.subr.mxu0 0.0
        %4990 = vmatpush2.xpose.msra.mxu0 0.0
        %4991 = vmatprep.subr.mxu0 0.0
        %4992 = vmatpush2.xpose.msra.mxu0 0.0
        %4993 = vmatprep.subr.mxu0 0.0
        %4994 = vmatpush2.xpose.msra.mxu0 0.0
        %4995 = vmatprep.subr.mxu0 0.0
        %4996 = vmatpush2.xpose.msra.mxu0 0.0
        %4997 = vmatprep.subr.mxu0 0.0
        %4998 = vmatpush2.xpose.msra.mxu0 0.0
        %4999 = vmatprep.subr.mxu0 0.0
        %5000 = vmatpush2.xpose.msra.mxu0 0.0
        %5001 = vmatprep.subr.mxu0 0.0
        %5002 = vmatpush2.xpose.msra.mxu0 0.0
        %5003 = vmatprep.subr.mxu0 0.0
        %5004 = vmatpush2.xpose.msra.mxu0 0.0
        %5005 = vmatprep.subr.mxu0 0.0
        %5006 = vmatpush2.xpose.msra.mxu0 0.0
        %5007 = vmatprep.subr.mxu0 0.0
        %5008 = vmatpush2.xpose.msra.mxu0 0.0
        %5009 = vmatprep.subr.mxu0 0.0
        %5010 = vmatpush2.xpose.msra.mxu0 0.0
        %5011 = vmatprep.subr.mxu0 0.0
        %5012 = vmatpush2.xpose.msra.mxu0 0.0
        %5013 = vmatprep.subr.mxu0 0.0
        %5014 = vmatpush2.xpose.msra.mxu0 0.0
        %5015 = vmatprep.subr.mxu0 0.0
        %5016 = vmatpush2.xpose.msra.mxu0 0.0
        %5017 = vmatprep.subr.mxu0 0.0
        %5018 = vmatpush2.xpose.msra.mxu0 0.0
        %5019 = vmatprep.subr.mxu0 0.0
        %5020 = vmatpush2.xpose.msra.mxu0 0.0
        %5021 = vmatprep.mubr.f32.mxu0 0.0
        %5022 = vmatmul.mubr.f32.gmra.mxu0 %v4953
        %v5023 = vpop.f32.mrf.mxu0
        %v5024 = vadd.f32 0.0, %v5023
        %v5025 = vpop.f32.mrf.mxu0
        %5026 = vdwg.mxu0
        %5027 = vrot.lane.b32.xlu0 %v4786, 104
        %v5028 = vpop.permute.xlu0 %5027
        %5029 = vrot.lane.b32.xlu0 %v4786, 72
        %v5030 = vpop.permute.xlu0 %5029
        %v5031 = vsel %vm481, %v5028, 0
        %v5033 = vsel %vm481, %v5030, 0
        %5035 = vmatprep.subr.mxu0 0.0
        %5036 = vmatpush1.xpose.msra.mxu0 0.0
        %5037 = vmatprep.subr.mxu0 0.0
        %5038 = vmatpush1.xpose.msra.mxu0 0.0
        %5039 = vmatprep.subr.mxu0 0.0
        %5040 = vmatpush1.xpose.msra.mxu0 0.0
        %5041 = vmatprep.subr.mxu0 0.0
        %5042 = vmatpush1.xpose.msra.mxu0 0.0
        %5043 = vmatprep.subr.mxu0 0.0
        %5044 = vmatpush1.xpose.msra.mxu0 0.0
        %5045 = vmatprep.subr.mxu0 0.0
        %5046 = vmatpush1.xpose.msra.mxu0 0.0
        %5047 = vmatprep.subr.mxu0 0.0
        %5048 = vmatpush1.xpose.msra.mxu0 0.0
        %5049 = vmatprep.subr.mxu0 0.0
        %5050 = vmatpush1.xpose.msra.mxu0 0.0
        %5051 = vmatprep.subr.mxu0 0.0
        %5052 = vmatpush1.xpose.msra.mxu0 0.0
        %5053 = vmatprep.subr.mxu0 0.0
        %5054 = vmatpush1.xpose.msra.mxu0 0.0
        %5055 = vmatprep.subr.mxu0 0.0
        %5056 = vmatpush1.xpose.msra.mxu0 0.0
        %5057 = vmatprep.subr.mxu0 0.0
        %5058 = vmatpush1.xpose.msra.mxu0 0.0
        %5059 = vmatprep.subr.mxu0 0.0
        %5060 = vmatpush1.xpose.msra.mxu0 0.0
        %5061 = vmatprep.subr.mxu0 0.0
        %5062 = vmatpush1.xpose.msra.mxu0 0.0
        %5063 = vmatprep.subr.mxu0 0.0
        %5064 = vmatpush1.xpose.msra.mxu0 0.0
        %5065 = vmatprep.subr.mxu0 0.0
        %5066 = vmatpush1.xpose.msra.mxu0 %v5033
        %5067 = vmatprep.subr.mxu0 0.0
        %5068 = vmatpush2.xpose.msra.mxu0 0.0
        %5069 = vmatprep.subr.mxu0 0.0
        %5070 = vmatpush2.xpose.msra.mxu0 0.0
        %5071 = vmatprep.subr.mxu0 0.0
        %5072 = vmatpush2.xpose.msra.mxu0 0.0
        %5073 = vmatprep.subr.mxu0 0.0
        %5074 = vmatpush2.xpose.msra.mxu0 0.0
        %5075 = vmatprep.subr.mxu0 0.0
        %5076 = vmatpush2.xpose.msra.mxu0 0.0
        %5077 = vmatprep.subr.mxu0 0.0
        %5078 = vmatpush2.xpose.msra.mxu0 0.0
        %5079 = vmatprep.subr.mxu0 0.0
        %5080 = vmatpush2.xpose.msra.mxu0 0.0
        %5081 = vmatprep.subr.mxu0 0.0
        %5082 = vmatpush2.xpose.msra.mxu0 0.0
        %5083 = vmatprep.subr.mxu0 0.0
        %5084 = vmatpush2.xpose.msra.mxu0 0.0
        %5085 = vmatprep.subr.mxu0 0.0
        %5086 = vmatpush2.xpose.msra.mxu0 0.0
        %5087 = vmatprep.subr.mxu0 0.0
        %5088 = vmatpush2.xpose.msra.mxu0 0.0
        %5089 = vmatprep.subr.mxu0 0.0
        %5090 = vmatpush2.xpose.msra.mxu0 0.0
        %5091 = vmatprep.subr.mxu0 0.0
        %5092 = vmatpush2.xpose.msra.mxu0 0.0
        %5093 = vmatprep.subr.mxu0 0.0
        %5094 = vmatpush2.xpose.msra.mxu0 0.0
        %5095 = vmatprep.subr.mxu0 0.0
        %5096 = vmatpush2.xpose.msra.mxu0 0.0
        %5097 = vmatprep.subr.mxu0 0.0
        %5098 = vmatpush2.xpose.msra.mxu0 0.0
        %5099 = vmatprep.mubr.f32.mxu0 0.0
        %5100 = vmatmul.mubr.f32.gmra.mxu0 %v5031
        %v5101 = vpop.f32.mrf.mxu0
        %v5102 = vadd.f32 0.0, %v5101
        %v5103 = vpop.f32.mrf.mxu0
        %5104 = vdwg.mxu0
        %v5105 = vadd.f32 %v4868, %v264
        %v5106 = vadd.f32 %v4946, %v264
        %v5107 = vadd.f32 %v5024, %v264
        %v5108 = vadd.f32 %v5102, %v264
        %v5109 = vsel %vm481, %v5105, -inf
        %5110 = vmax.xlane.f32.xlu0 %v5109
        %v5111 = vpop.xlane.xlu0 %5110
        %v5112 = vsel %vm481, %v5106, -inf
        %5113 = vmax.xlane.f32.xlu0 %v5112
        %v5114 = vpop.xlane.xlu0 %5113
        %v5115 = vsel %vm481, %v5107, -inf
        %5116 = vmax.xlane.f32.xlu0 %v5115
        %v5117 = vpop.xlane.xlu0 %5116
        %v5118 = vsel %vm481, %v5108, -inf
        %5119 = vmax.xlane.f32.xlu0 %v5118
        %v5120 = vpop.xlane.xlu0 %5119
        %v5121 = vsub.f32 %v5105, %v5111
        %v5122 = vsub.f32 %v5106, %v5114
        %v5123 = vsub.f32 %v5107, %v5117
        %v5124 = vsub.f32 %v5108, %v5120
        %v5125 = vmul.f32 %v5121, 1.442695
        %v5126 = vpow.pop %v5125
        %v5127 = vmul.f32 %v5122, 1.442695
        %v5128 = vpow.pop %v5127
        %v5129 = vmul.f32 %v5123, 1.442695
        %v5130 = vpow.pop %v5129
        %v5131 = vmul.f32 %v5124, 1.442695
        %v5132 = vpow.pop %v5131
        %v5133 = vsel %vm481, %v5126, 0.0
        %5134 = vadd.xlane.f32.xlu0 %v5133
        %v5135 = vpop.xlane.xlu0 %5134
        %v5136 = vsel %vm481, %v5128, 0.0
        %5137 = vadd.xlane.f32.xlu0 %v5136
        %v5138 = vpop.xlane.xlu0 %5137
        %v5139 = vsel %vm481, %v5130, 0.0
        %5140 = vadd.xlane.f32.xlu0 %v5139
        %v5141 = vpop.xlane.xlu0 %5140
        %v5142 = vsel %vm481, %v5132, 0.0
        %5143 = vadd.xlane.f32.xlu0 %v5142
        %v5144 = vpop.xlane.xlu0 %5143
        %v5145 = vrcp.pop %v5135
        %v5146 = vrcp.pop %v5138
        %v5147 = vrcp.pop %v5141
        %v5148 = vrcp.pop %v5144
        %v5149 = vmul.f32 %v5126, %v5145
        %v5150 = vmul.f32 %v5128, %v5146
        %v5151 = vmul.f32 %v5130, %v5147
        %v5152 = vmul.f32 %v5132, %v5148
        %5153 = vrot.lane.b32.xlu0 %v4786, 64
        %v5154 = vpop.permute.xlu0 %5153
        %v5157 = vsel %vm481, %v5149, 0
        %5159 = vmatprep.subr.mxu0 0.0
        %5160 = vmatpush1.msra.mxu0 0.0
        %5161 = vmatprep.subr.mxu0 0.0
        %5162 = vmatpush1.msra.mxu0 0.0
        %5163 = vmatprep.subr.mxu0 0.0
        %5164 = vmatpush1.msra.mxu0 0.0
        %5165 = vmatprep.subr.mxu0 0.0
        %5166 = vmatpush1.msra.mxu0 0.0
        %5167 = vmatprep.subr.mxu0 0.0
        %5168 = vmatpush1.msra.mxu0 0.0
        %5169 = vmatprep.subr.mxu0 0.0
        %5170 = vmatpush1.msra.mxu0 0.0
        %5171 = vmatprep.subr.mxu0 0.0
        %5172 = vmatpush1.msra.mxu0 0.0
        %5173 = vmatprep.subr.mxu0 0.0
        %5174 = vmatpush1.msra.mxu0 0.0
        %5175 = vmatprep.subr.mxu0 0.0
        %5176 = vmatpush1.msra.mxu0 0.0
        %5177 = vmatprep.subr.mxu0 0.0
        %5178 = vmatpush1.msra.mxu0 0.0
        %5179 = vmatprep.subr.mxu0 0.0
        %5180 = vmatpush1.msra.mxu0 0.0
        %5181 = vmatprep.subr.mxu0 0.0
        %5182 = vmatpush1.msra.mxu0 0.0
        %5183 = vmatprep.subr.mxu0 0.0
        %5184 = vmatpush1.msra.mxu0 0.0
        %5185 = vmatprep.subr.mxu0 0.0
        %5186 = vmatpush1.msra.mxu0 0.0
        %5187 = vmatprep.subr.mxu0 0.0
        %5188 = vmatpush1.msra.mxu0 0.0
        %5189 = vmatprep.subr.mxu0 0.0
        %5190 = vmatpush1.msra.mxu0 %v5154
        %5191 = vmatprep.subr.mxu0 0.0
        %5192 = vmatpush2.msra.mxu0 0.0
        %5193 = vmatprep.subr.mxu0 0.0
        %5194 = vmatpush2.msra.mxu0 0.0
        %5195 = vmatprep.subr.mxu0 0.0
        %5196 = vmatpush2.msra.mxu0 0.0
        %5197 = vmatprep.subr.mxu0 0.0
        %5198 = vmatpush2.msra.mxu0 0.0
        %5199 = vmatprep.subr.mxu0 0.0
        %5200 = vmatpush2.msra.mxu0 0.0
        %5201 = vmatprep.subr.mxu0 0.0
        %5202 = vmatpush2.msra.mxu0 0.0
        %5203 = vmatprep.subr.mxu0 0.0
        %5204 = vmatpush2.msra.mxu0 0.0
        %5205 = vmatprep.subr.mxu0 0.0
        %5206 = vmatpush2.msra.mxu0 0.0
        %5207 = vmatprep.subr.mxu0 0.0
        %5208 = vmatpush2.msra.mxu0 0.0
        %5209 = vmatprep.subr.mxu0 0.0
        %5210 = vmatpush2.msra.mxu0 0.0
        %5211 = vmatprep.subr.mxu0 0.0
        %5212 = vmatpush2.msra.mxu0 0.0
        %5213 = vmatprep.subr.mxu0 0.0
        %5214 = vmatpush2.msra.mxu0 0.0
        %5215 = vmatprep.subr.mxu0 0.0
        %5216 = vmatpush2.msra.mxu0 0.0
        %5217 = vmatprep.subr.mxu0 0.0
        %5218 = vmatpush2.msra.mxu0 0.0
        %5219 = vmatprep.subr.mxu0 0.0
        %5220 = vmatpush2.msra.mxu0 0.0
        %5221 = vmatprep.subr.mxu0 0.0
        %5222 = vmatpush2.msra.mxu0 0.0
        %5223 = vmatprep.mubr.f32.mxu0 0.0
        %5224 = vmatmul.mubr.f32.gmra.mxu0 %v5157
        %v5225 = vpop.f32.mrf.mxu0
        %v5226 = vadd.f32 0.0, %v5225
        %v5227 = vpop.f32.mrf.mxu0
        %5228 = vdwg.mxu0
        %5229 = vrot.lane.b32.xlu0 %v4786, 56
        %v5230 = vpop.permute.xlu0 %5229
        %v5233 = vsel %vm481, %v5150, 0
        %5235 = vmatprep.subr.mxu0 0.0
        %5236 = vmatpush1.msra.mxu0 0.0
        %5237 = vmatprep.subr.mxu0 0.0
        %5238 = vmatpush1.msra.mxu0 0.0
        %5239 = vmatprep.subr.mxu0 0.0
        %5240 = vmatpush1.msra.mxu0 0.0
        %5241 = vmatprep.subr.mxu0 0.0
        %5242 = vmatpush1.msra.mxu0 0.0
        %5243 = vmatprep.subr.mxu0 0.0
        %5244 = vmatpush1.msra.mxu0 0.0
        %5245 = vmatprep.subr.mxu0 0.0
        %5246 = vmatpush1.msra.mxu0 0.0
        %5247 = vmatprep.subr.mxu0 0.0
        %5248 = vmatpush1.msra.mxu0 0.0
        %5249 = vmatprep.subr.mxu0 0.0
        %5250 = vmatpush1.msra.mxu0 0.0
        %5251 = vmatprep.subr.mxu0 0.0
        %5252 = vmatpush1.msra.mxu0 0.0
        %5253 = vmatprep.subr.mxu0 0.0
        %5254 = vmatpush1.msra.mxu0 0.0
        %5255 = vmatprep.subr.mxu0 0.0
        %5256 = vmatpush1.msra.mxu0 0.0
        %5257 = vmatprep.subr.mxu0 0.0
        %5258 = vmatpush1.msra.mxu0 0.0
        %5259 = vmatprep.subr.mxu0 0.0
        %5260 = vmatpush1.msra.mxu0 0.0
        %5261 = vmatprep.subr.mxu0 0.0
        %5262 = vmatpush1.msra.mxu0 0.0
        %5263 = vmatprep.subr.mxu0 0.0
        %5264 = vmatpush1.msra.mxu0 0.0
        %5265 = vmatprep.subr.mxu0 0.0
        %5266 = vmatpush1.msra.mxu0 %v5230
        %5267 = vmatprep.subr.mxu0 0.0
        %5268 = vmatpush2.msra.mxu0 0.0
        %5269 = vmatprep.subr.mxu0 0.0
        %5270 = vmatpush2.msra.mxu0 0.0
        %5271 = vmatprep.subr.mxu0 0.0
        %5272 = vmatpush2.msra.mxu0 0.0
        %5273 = vmatprep.subr.mxu0 0.0
        %5274 = vmatpush2.msra.mxu0 0.0
        %5275 = vmatprep.subr.mxu0 0.0
        %5276 = vmatpush2.msra.mxu0 0.0
        %5277 = vmatprep.subr.mxu0 0.0
        %5278 = vmatpush2.msra.mxu0 0.0
        %5279 = vmatprep.subr.mxu0 0.0
        %5280 = vmatpush2.msra.mxu0 0.0
        %5281 = vmatprep.subr.mxu0 0.0
        %5282 = vmatpush2.msra.mxu0 0.0
        %5283 = vmatprep.subr.mxu0 0.0
        %5284 = vmatpush2.msra.mxu0 0.0
        %5285 = vmatprep.subr.mxu0 0.0
        %5286 = vmatpush2.msra.mxu0 0.0
        %5287 = vmatprep.subr.mxu0 0.0
        %5288 = vmatpush2.msra.mxu0 0.0
        %5289 = vmatprep.subr.mxu0 0.0
        %5290 = vmatpush2.msra.mxu0 0.0
        %5291 = vmatprep.subr.mxu0 0.0
        %5292 = vmatpush2.msra.mxu0 0.0
        %5293 = vmatprep.subr.mxu0 0.0
        %5294 = vmatpush2.msra.mxu0 0.0
        %5295 = vmatprep.subr.mxu0 0.0
        %5296 = vmatpush2.msra.mxu0 0.0
        %5297 = vmatprep.subr.mxu0 0.0
        %5298 = vmatpush2.msra.mxu0 0.0
        %5299 = vmatprep.mubr.f32.mxu0 0.0
        %5300 = vmatmul.mubr.f32.gmra.mxu0 %v5233
        %v5301 = vpop.f32.mrf.mxu0
        %v5302 = vadd.f32 0.0, %v5301
        %v5303 = vpop.f32.mrf.mxu0
        %5304 = vdwg.mxu0
        %5305 = vrot.lane.b32.xlu0 %v4786, 48
        %v5306 = vpop.permute.xlu0 %5305
        %v5309 = vsel %vm481, %v5151, 0
        %5311 = vmatprep.subr.mxu0 0.0
        %5312 = vmatpush1.msra.mxu0 0.0
        %5313 = vmatprep.subr.mxu0 0.0
        %5314 = vmatpush1.msra.mxu0 0.0
        %5315 = vmatprep.subr.mxu0 0.0
        %5316 = vmatpush1.msra.mxu0 0.0
        %5317 = vmatprep.subr.mxu0 0.0
        %5318 = vmatpush1.msra.mxu0 0.0
        %5319 = vmatprep.subr.mxu0 0.0
        %5320 = vmatpush1.msra.mxu0 0.0
        %5321 = vmatprep.subr.mxu0 0.0
        %5322 = vmatpush1.msra.mxu0 0.0
        %5323 = vmatprep.subr.mxu0 0.0
        %5324 = vmatpush1.msra.mxu0 0.0
        %5325 = vmatprep.subr.mxu0 0.0
        %5326 = vmatpush1.msra.mxu0 0.0
        %5327 = vmatprep.subr.mxu0 0.0
        %5328 = vmatpush1.msra.mxu0 0.0
        %5329 = vmatprep.subr.mxu0 0.0
        %5330 = vmatpush1.msra.mxu0 0.0
        %5331 = vmatprep.subr.mxu0 0.0
        %5332 = vmatpush1.msra.mxu0 0.0
        %5333 = vmatprep.subr.mxu0 0.0
        %5334 = vmatpush1.msra.mxu0 0.0
        %5335 = vmatprep.subr.mxu0 0.0
        %5336 = vmatpush1.msra.mxu0 0.0
        %5337 = vmatprep.subr.mxu0 0.0
        %5338 = vmatpush1.msra.mxu0 0.0
        %5339 = vmatprep.subr.mxu0 0.0
        %5340 = vmatpush1.msra.mxu0 0.0
        %5341 = vmatprep.subr.mxu0 0.0
        %5342 = vmatpush1.msra.mxu0 %v5306
        %5343 = vmatprep.subr.mxu0 0.0
        %5344 = vmatpush2.msra.mxu0 0.0
        %5345 = vmatprep.subr.mxu0 0.0
        %5346 = vmatpush2.msra.mxu0 0.0
        %5347 = vmatprep.subr.mxu0 0.0
        %5348 = vmatpush2.msra.mxu0 0.0
        %5349 = vmatprep.subr.mxu0 0.0
        %5350 = vmatpush2.msra.mxu0 0.0
        %5351 = vmatprep.subr.mxu0 0.0
        %5352 = vmatpush2.msra.mxu0 0.0
        %5353 = vmatprep.subr.mxu0 0.0
        %5354 = vmatpush2.msra.mxu0 0.0
        %5355 = vmatprep.subr.mxu0 0.0
        %5356 = vmatpush2.msra.mxu0 0.0
        %5357 = vmatprep.subr.mxu0 0.0
        %5358 = vmatpush2.msra.mxu0 0.0
        %5359 = vmatprep.subr.mxu0 0.0
        %5360 = vmatpush2.msra.mxu0 0.0
        %5361 = vmatprep.subr.mxu0 0.0
        %5362 = vmatpush2.msra.mxu0 0.0
        %5363 = vmatprep.subr.mxu0 0.0
        %5364 = vmatpush2.msra.mxu0 0.0
        %5365 = vmatprep.subr.mxu0 0.0
        %5366 = vmatpush2.msra.mxu0 0.0
        %5367 = vmatprep.subr.mxu0 0.0
        %5368 = vmatpush2.msra.mxu0 0.0
        %5369 = vmatprep.subr.mxu0 0.0
        %5370 = vmatpush2.msra.mxu0 0.0
        %5371 = vmatprep.subr.mxu0 0.0
        %5372 = vmatpush2.msra.mxu0 0.0
        %5373 = vmatprep.subr.mxu0 0.0
        %5374 = vmatpush2.msra.mxu0 0.0
        %5375 = vmatprep.mubr.f32.mxu0 0.0
        %5376 = vmatmul.mubr.f32.gmra.mxu0 %v5309
        %v5377 = vpop.f32.mrf.mxu0
        %v5378 = vadd.f32 0.0, %v5377
        %v5379 = vpop.f32.mrf.mxu0
        %5380 = vdwg.mxu0
        %5381 = vrot.lane.b32.xlu0 %v4786, 40
        %v5382 = vpop.permute.xlu0 %5381
        %v5385 = vsel %vm481, %v5152, 0
        %5387 = vmatprep.subr.mxu0 0.0
        %5388 = vmatpush1.msra.mxu0 0.0
        %5389 = vmatprep.subr.mxu0 0.0
        %5390 = vmatpush1.msra.mxu0 0.0
        %5391 = vmatprep.subr.mxu0 0.0
        %5392 = vmatpush1.msra.mxu0 0.0
        %5393 = vmatprep.subr.mxu0 0.0
        %5394 = vmatpush1.msra.mxu0 0.0
        %5395 = vmatprep.subr.mxu0 0.0
        %5396 = vmatpush1.msra.mxu0 0.0
        %5397 = vmatprep.subr.mxu0 0.0
        %5398 = vmatpush1.msra.mxu0 0.0
        %5399 = vmatprep.subr.mxu0 0.0
        %5400 = vmatpush1.msra.mxu0 0.0
        %5401 = vmatprep.subr.mxu0 0.0
        %5402 = vmatpush1.msra.mxu0 0.0
        %5403 = vmatprep.subr.mxu0 0.0
        %5404 = vmatpush1.msra.mxu0 0.0
        %5405 = vmatprep.subr.mxu0 0.0
        %5406 = vmatpush1.msra.mxu0 0.0
        %5407 = vmatprep.subr.mxu0 0.0
        %5408 = vmatpush1.msra.mxu0 0.0
        %5409 = vmatprep.subr.mxu0 0.0
        %5410 = vmatpush1.msra.mxu0 0.0
        %5411 = vmatprep.subr.mxu0 0.0
        %5412 = vmatpush1.msra.mxu0 0.0
        %5413 = vmatprep.subr.mxu0 0.0
        %5414 = vmatpush1.msra.mxu0 0.0
        %5415 = vmatprep.subr.mxu0 0.0
        %5416 = vmatpush1.msra.mxu0 0.0
        %5417 = vmatprep.subr.mxu0 0.0
        %5418 = vmatpush1.msra.mxu0 %v5382
        %5419 = vmatprep.subr.mxu0 0.0
        %5420 = vmatpush2.msra.mxu0 0.0
        %5421 = vmatprep.subr.mxu0 0.0
        %5422 = vmatpush2.msra.mxu0 0.0
        %5423 = vmatprep.subr.mxu0 0.0
        %5424 = vmatpush2.msra.mxu0 0.0
        %5425 = vmatprep.subr.mxu0 0.0
        %5426 = vmatpush2.msra.mxu0 0.0
        %5427 = vmatprep.subr.mxu0 0.0
        %5428 = vmatpush2.msra.mxu0 0.0
        %5429 = vmatprep.subr.mxu0 0.0
        %5430 = vmatpush2.msra.mxu0 0.0
        %5431 = vmatprep.subr.mxu0 0.0
        %5432 = vmatpush2.msra.mxu0 0.0
        %5433 = vmatprep.subr.mxu0 0.0
        %5434 = vmatpush2.msra.mxu0 0.0
        %5435 = vmatprep.subr.mxu0 0.0
        %5436 = vmatpush2.msra.mxu0 0.0
        %5437 = vmatprep.subr.mxu0 0.0
        %5438 = vmatpush2.msra.mxu0 0.0
        %5439 = vmatprep.subr.mxu0 0.0
        %5440 = vmatpush2.msra.mxu0 0.0
        %5441 = vmatprep.subr.mxu0 0.0
        %5442 = vmatpush2.msra.mxu0 0.0
        %5443 = vmatprep.subr.mxu0 0.0
        %5444 = vmatpush2.msra.mxu0 0.0
        %5445 = vmatprep.subr.mxu0 0.0
        %5446 = vmatpush2.msra.mxu0 0.0
        %5447 = vmatprep.subr.mxu0 0.0
        %5448 = vmatpush2.msra.mxu0 0.0
        %5449 = vmatprep.subr.mxu0 0.0
        %5450 = vmatpush2.msra.mxu0 0.0
        %5451 = vmatprep.mubr.f32.mxu0 0.0
        %5452 = vmatmul.mubr.f32.gmra.mxu0 %v5385
        %v5453 = vpop.f32.mrf.mxu0
        %v5454 = vadd.f32 0.0, %v5453
        %v5455 = vpop.f32.mrf.mxu0
        %5456 = vdwg.mxu0
        %5458 = vrot.lane.b32.xlu0 %v5302, 8
        %v5459 = vpop.permute.xlu0 %5458
        %5462 = vrot.lane.b32.xlu0 %v5378, 16
        %v5463 = vpop.permute.xlu0 %5462
        %5466 = vrot.lane.b32.xlu0 %v5454, 24
        %v5467 = vpop.permute.xlu0 %5466
        %v5469 = vsel %vm481, %v5226, %v5459
        %v5470 = vsel %vm280, %v5469, %v5463
        %v5471 = vsel %vm1162, %v5470, %v5467
        %v5472 = vlaneseq
        %v5473 = vshrl.u32 %v5472, 7
        %v5474 = vsub.s32 0, %v5473
        %v5475 = vrot.slane %v4793, %v5474
        %v5477 = vsel %vm358, %v5471, 0
        %5479 = vmatprep.subr.mxu0 0.0
        %5480 = vmatpush1.msra.mxu0 0.0
        %5481 = vmatprep.subr.mxu0 0.0
        %5482 = vmatpush1.msra.mxu0 0.0
        %5483 = vmatprep.subr.mxu0 0.0
        %5484 = vmatpush1.msra.mxu0 0.0
        %5485 = vmatprep.subr.mxu0 0.0
        %5486 = vmatpush1.msra.mxu0 0.0
        %5487 = vmatprep.subr.mxu0 0.0
        %5488 = vmatpush1.msra.mxu0 0.0
        %5489 = vmatprep.subr.mxu0 0.0
        %5490 = vmatpush1.msra.mxu0 0.0
        %5491 = vmatprep.subr.mxu0 0.0
        %5492 = vmatpush1.msra.mxu0 0.0
        %5493 = vmatprep.subr.mxu0 0.0
        %5494 = vmatpush1.msra.mxu0 0.0
        %5495 = vmatprep.subr.mxu0 0.0
        %5496 = vmatpush1.msra.mxu0 0.0
        %5497 = vmatprep.subr.mxu0 0.0
        %5498 = vmatpush1.msra.mxu0 0.0
        %5499 = vmatprep.subr.mxu0 0.0
        %5500 = vmatpush1.msra.mxu0 0.0
        %5501 = vmatprep.subr.mxu0 0.0
        %5502 = vmatpush1.msra.mxu0 0.0
        %5503 = vmatprep.subr.mxu0 0.0
        %5504 = vmatpush1.msra.mxu0 %v4792
        %5505 = vmatprep.subr.mxu0 0.0
        %5506 = vmatpush1.msra.mxu0 %v4791
        %5507 = vmatprep.subr.mxu0 0.0
        %5508 = vmatpush1.msra.mxu0 %v4790
        %5509 = vmatprep.subr.mxu0 0.0
        %5510 = vmatpush1.msra.mxu0 %v4789
        %5511 = vmatprep.subr.mxu0 0.0
        %5512 = vmatpush2.msra.mxu0 0.0
        %5513 = vmatprep.subr.mxu0 0.0
        %5514 = vmatpush2.msra.mxu0 0.0
        %5515 = vmatprep.subr.mxu0 0.0
        %5516 = vmatpush2.msra.mxu0 0.0
        %5517 = vmatprep.subr.mxu0 0.0
        %5518 = vmatpush2.msra.mxu0 0.0
        %5519 = vmatprep.subr.mxu0 0.0
        %5520 = vmatpush2.msra.mxu0 0.0
        %5521 = vmatprep.subr.mxu0 0.0
        %5522 = vmatpush2.msra.mxu0 0.0
        %5523 = vmatprep.subr.mxu0 0.0
        %5524 = vmatpush2.msra.mxu0 0.0
        %5525 = vmatprep.subr.mxu0 0.0
        %5526 = vmatpush2.msra.mxu0 0.0
        %5527 = vmatprep.subr.mxu0 0.0
        %5528 = vmatpush2.msra.mxu0 0.0
        %5529 = vmatprep.subr.mxu0 0.0
        %5530 = vmatpush2.msra.mxu0 0.0
        %5531 = vmatprep.subr.mxu0 0.0
        %5532 = vmatpush2.msra.mxu0 0.0
        %5533 = vmatprep.subr.mxu0 0.0
        %5534 = vmatpush2.msra.mxu0 0.0
        %5535 = vmatprep.subr.mxu0 0.0
        %5536 = vmatpush2.msra.mxu0 0.0
        %5537 = vmatprep.subr.mxu0 0.0
        %5538 = vmatpush2.msra.mxu0 0.0
        %5539 = vmatprep.subr.mxu0 0.0
        %5540 = vmatpush2.msra.mxu0 0.0
        %5541 = vmatprep.subr.mxu0 0.0
        %5542 = vmatpush2.msra.mxu0 0.0
        %5543 = vmatprep.mubr.f32.mxu0 0.0
        %5544 = vmatmul.mubr.f32.gmra.mxu0 %v5477
        %v5545 = vpop.f32.mrf.mxu0
        %v5546 = vadd.f32 %v5475, %v5545
        %v5547 = vpop.f32.mrf.mxu0
        %5548 = vdwg.mxu0
        %v5549 = vadd.f32 %v4674, %v5546
        %v5550 = vld [vmem:[%s4 + $0x4b8] sm:$0x1]
        %v5551 = vld [vmem:[%s4 + $0x4c0] sm:$0x1]
        %v5552 = vsel %vm358, %v5549, 0.0
        %5553 = vadd.xlane.f32.xlu0 %v5552
        %v5554 = vpop.xlane.xlu0 %5553
        %v5555 = vmul.f32 %v5554, %v362
        %v5556 = vsub.f32 %v5549, %v5555
        %v5557 = vmul.f32 %v5556, %v5556
        %v5558 = vsel %vm358, %v5557, 0.0
        %5559 = vadd.xlane.f32.xlu0 %v5558
        %v5560 = vpop.xlane.xlu0 %5559
        %v5561 = vmul.f32 %v5560, %v369
        %v5562 = vrsqrt.pop %v5561
        %v5563 = vmul.f32 %v5561, %v5562
        %vm5564 = vcmp.eq.f32.partialorder %v5561, inf
        %v5565 = vsel %vm5564, %v5561, %v5563
        %vm5566 = vcmp.eq.f32.partialorder %v5561, 0.0
        %v5567 = vand.u32 %v5561, 2147483648
        %v5568 = vsel %vm5566, %v5567, %v5565
        %v5569 = vlaneseq
        %v5570 = vshrl.u32 %v5569, 7
        %v5571 = vsub.s32 0, %v5570
        %v5572 = vrot.slane %v5550, %v5571
        %v5573 = vmul.f32 %v5572, %v5556
        %v5574 = vadd.f32 %v5568, 1e-06
        %v5575 = vrcp.pop %v5574
        %v5576 = vmul.f32 %v5573, %v5575
        %v5577 = vlaneseq
        %v5578 = vshrl.u32 %v5577, 7
        %v5579 = vsub.s32 0, %v5578
        %v5580 = vrot.slane %v5551, %v5579
        %v5581 = vadd.f32 %v5576, %v5580
        %v5582 = vld [vmem:[%s4 + $0x3c0] sm:$0xff]
        %v5583 = vld [vmem:[%s4 + $0x3c8] sm:$0xff]
        %v5584 = vld [vmem:[%s4 + $0x3d0] sm:$0xff]
        %v5585 = vld [vmem:[%s4 + $0x3d8] sm:$0xff]
        %v5586 = vld [vmem:[%s4 + $0x3e0] sm:$0x1]
        %v5587 = vlaneseq
        %v5588 = vshrl.u32 %v5587, 7
        %v5589 = vsub.s32 0, %v5588
        %v5590 = vrot.slane %v5586, %v5589
        %v5592 = vsel %vm358, %v5581, 0
        %5594 = vmatprep.subr.mxu0 0.0
        %5595 = vmatpush1.msra.mxu0 0.0
        %5596 = vmatprep.subr.mxu0 0.0
        %5597 = vmatpush1.msra.mxu0 0.0
        %5598 = vmatprep.subr.mxu0 0.0
        %5599 = vmatpush1.msra.mxu0 0.0
        %5600 = vmatprep.subr.mxu0 0.0
        %5601 = vmatpush1.msra.mxu0 0.0
        %5602 = vmatprep.subr.mxu0 0.0
        %5603 = vmatpush1.msra.mxu0 0.0
        %5604 = vmatprep.subr.mxu0 0.0
        %5605 = vmatpush1.msra.mxu0 0.0
        %5606 = vmatprep.subr.mxu0 0.0
        %5607 = vmatpush1.msra.mxu0 0.0
        %5608 = vmatprep.subr.mxu0 0.0
        %5609 = vmatpush1.msra.mxu0 0.0
        %5610 = vmatprep.subr.mxu0 0.0
        %5611 = vmatpush1.msra.mxu0 0.0
        %5612 = vmatprep.subr.mxu0 0.0
        %5613 = vmatpush1.msra.mxu0 0.0
        %5614 = vmatprep.subr.mxu0 0.0
        %5615 = vmatpush1.msra.mxu0 0.0
        %5616 = vmatprep.subr.mxu0 0.0
        %5617 = vmatpush1.msra.mxu0 0.0
        %5618 = vmatprep.subr.mxu0 0.0
        %5619 = vmatpush1.msra.mxu0 %v5585
        %5620 = vmatprep.subr.mxu0 0.0
        %5621 = vmatpush1.msra.mxu0 %v5584
        %5622 = vmatprep.subr.mxu0 0.0
        %5623 = vmatpush1.msra.mxu0 %v5583
        %5624 = vmatprep.subr.mxu0 0.0
        %5625 = vmatpush1.msra.mxu0 %v5582
        %5626 = vmatprep.subr.mxu0 0.0
        %5627 = vmatpush2.msra.mxu0 0.0
        %5628 = vmatprep.subr.mxu0 0.0
        %5629 = vmatpush2.msra.mxu0 0.0
        %5630 = vmatprep.subr.mxu0 0.0
        %5631 = vmatpush2.msra.mxu0 0.0
        %5632 = vmatprep.subr.mxu0 0.0
        %5633 = vmatpush2.msra.mxu0 0.0
        %5634 = vmatprep.subr.mxu0 0.0
        %5635 = vmatpush2.msra.mxu0 0.0
        %5636 = vmatprep.subr.mxu0 0.0
        %5637 = vmatpush2.msra.mxu0 0.0
        %5638 = vmatprep.subr.mxu0 0.0
        %5639 = vmatpush2.msra.mxu0 0.0
        %5640 = vmatprep.subr.mxu0 0.0
        %5641 = vmatpush2.msra.mxu0 0.0
        %5642 = vmatprep.subr.mxu0 0.0
        %5643 = vmatpush2.msra.mxu0 0.0
        %5644 = vmatprep.subr.mxu0 0.0
        %5645 = vmatpush2.msra.mxu0 0.0
        %5646 = vmatprep.subr.mxu0 0.0
        %5647 = vmatpush2.msra.mxu0 0.0
        %5648 = vmatprep.subr.mxu0 0.0
        %5649 = vmatpush2.msra.mxu0 0.0
        %5650 = vmatprep.subr.mxu0 0.0
        %5651 = vmatpush2.msra.mxu0 0.0
        %5652 = vmatprep.subr.mxu0 0.0
        %5653 = vmatpush2.msra.mxu0 0.0
        %5654 = vmatprep.subr.mxu0 0.0
        %5655 = vmatpush2.msra.mxu0 0.0
        %5656 = vmatprep.subr.mxu0 0.0
        %5657 = vmatpush2.msra.mxu0 0.0
        %5658 = vmatprep.mubr.f32.mxu0 0.0
        %5659 = vmatmul.mubr.f32.gmra.mxu0 %v5592
        %v5660 = vpop.f32.mrf.mxu0
        %v5661 = vadd.f32 %v5590, %v5660
        %v5662 = vpop.f32.mrf.mxu0
        %5663 = vdwg.mxu0
        %v5664 = vld [vmem:[%s4 + $0x3e8] sm:$0xff]
        %v5665 = vld [vmem:[%s4 + $0x3f0] sm:$0xff]
        %v5666 = vld [vmem:[%s4 + $0x3f8] sm:$0xff]
        %v5667 = vld [vmem:[%s4 + $0x400] sm:$0xff]
        %v5668 = vld [vmem:[%s4 + $0x408] sm:$0x1]
        %v5669 = vlaneseq
        %v5670 = vshrl.u32 %v5669, 7
        %v5671 = vsub.s32 0, %v5670
        %v5672 = vrot.slane %v5668, %v5671
        %5673 = vmatprep.subr.mxu0 0.0
        %5674 = vmatpush1.msra.mxu0 0.0
        %5675 = vmatprep.subr.mxu0 0.0
        %5676 = vmatpush1.msra.mxu0 0.0
        %5677 = vmatprep.subr.mxu0 0.0
        %5678 = vmatpush1.msra.mxu0 0.0
        %5679 = vmatprep.subr.mxu0 0.0
        %5680 = vmatpush1.msra.mxu0 0.0
        %5681 = vmatprep.subr.mxu0 0.0
        %5682 = vmatpush1.msra.mxu0 0.0
        %5683 = vmatprep.subr.mxu0 0.0
        %5684 = vmatpush1.msra.mxu0 0.0
        %5685 = vmatprep.subr.mxu0 0.0
        %5686 = vmatpush1.msra.mxu0 0.0
        %5687 = vmatprep.subr.mxu0 0.0
        %5688 = vmatpush1.msra.mxu0 0.0
        %5689 = vmatprep.subr.mxu0 0.0
        %5690 = vmatpush1.msra.mxu0 0.0
        %5691 = vmatprep.subr.mxu0 0.0
        %5692 = vmatpush1.msra.mxu0 0.0
        %5693 = vmatprep.subr.mxu0 0.0
        %5694 = vmatpush1.msra.mxu0 0.0
        %5695 = vmatprep.subr.mxu0 0.0
        %5696 = vmatpush1.msra.mxu0 0.0
        %5697 = vmatprep.subr.mxu0 0.0
        %5698 = vmatpush1.msra.mxu0 %v5667
        %5699 = vmatprep.subr.mxu0 0.0
        %5700 = vmatpush1.msra.mxu0 %v5666
        %5701 = vmatprep.subr.mxu0 0.0
        %5702 = vmatpush1.msra.mxu0 %v5665
        %5703 = vmatprep.subr.mxu0 0.0
        %5704 = vmatpush1.msra.mxu0 %v5664
        %5705 = vmatprep.subr.mxu0 0.0
        %5706 = vmatpush2.msra.mxu0 0.0
        %5707 = vmatprep.subr.mxu0 0.0
        %5708 = vmatpush2.msra.mxu0 0.0
        %5709 = vmatprep.subr.mxu0 0.0
        %5710 = vmatpush2.msra.mxu0 0.0
        %5711 = vmatprep.subr.mxu0 0.0
        %5712 = vmatpush2.msra.mxu0 0.0
        %5713 = vmatprep.subr.mxu0 0.0
        %5714 = vmatpush2.msra.mxu0 0.0
        %5715 = vmatprep.subr.mxu0 0.0
        %5716 = vmatpush2.msra.mxu0 0.0
        %5717 = vmatprep.subr.mxu0 0.0
        %5718 = vmatpush2.msra.mxu0 0.0
        %5719 = vmatprep.subr.mxu0 0.0
        %5720 = vmatpush2.msra.mxu0 0.0
        %5721 = vmatprep.subr.mxu0 0.0
        %5722 = vmatpush2.msra.mxu0 0.0
        %5723 = vmatprep.subr.mxu0 0.0
        %5724 = vmatpush2.msra.mxu0 0.0
        %5725 = vmatprep.subr.mxu0 0.0
        %5726 = vmatpush2.msra.mxu0 0.0
        %5727 = vmatprep.subr.mxu0 0.0
        %5728 = vmatpush2.msra.mxu0 0.0
        %5729 = vmatprep.subr.mxu0 0.0
        %5730 = vmatpush2.msra.mxu0 0.0
        %5731 = vmatprep.subr.mxu0 0.0
        %5732 = vmatpush2.msra.mxu0 0.0
        %5733 = vmatprep.subr.mxu0 0.0
        %5734 = vmatpush2.msra.mxu0 0.0
        %5735 = vmatprep.subr.mxu0 0.0
        %5736 = vmatpush2.msra.mxu0 0.0
        %5737 = vmatprep.mubr.f32.mxu0 0.0
        %5738 = vmatmul.mubr.f32.gmra.mxu0 %v3641
        %v5739 = vpop.f32.mrf.mxu0
        %v5740 = vadd.f32 %v5672, %v5739
        %v5741 = vpop.f32.mrf.mxu0
        %5742 = vdwg.mxu0
        %v5743 = vld [vmem:[%s4 + $0x410] sm:$0xff]
        %v5744 = vld [vmem:[%s4 + $0x418] sm:$0xff]
        %v5745 = vld [vmem:[%s4 + $0x420] sm:$0xff]
        %v5746 = vld [vmem:[%s4 + $0x428] sm:$0xff]
        %v5747 = vld [vmem:[%s4 + $0x430] sm:$0x1]
        %v5749 = vsel %vm481, %v5661, 0
        %v5752 = vsel %vm481, %v5740, 0
        %5754 = vmatprep.subr.mxu0 0.0
        %5755 = vmatpush1.xpose.msra.mxu0 0.0
        %5756 = vmatprep.subr.mxu0 0.0
        %5757 = vmatpush1.xpose.msra.mxu0 0.0
        %5758 = vmatprep.subr.mxu0 0.0
        %5759 = vmatpush1.xpose.msra.mxu0 0.0
        %5760 = vmatprep.subr.mxu0 0.0
        %5761 = vmatpush1.xpose.msra.mxu0 0.0
        %5762 = vmatprep.subr.mxu0 0.0
        %5763 = vmatpush1.xpose.msra.mxu0 0.0
        %5764 = vmatprep.subr.mxu0 0.0
        %5765 = vmatpush1.xpose.msra.mxu0 0.0
        %5766 = vmatprep.subr.mxu0 0.0
        %5767 = vmatpush1.xpose.msra.mxu0 0.0
        %5768 = vmatprep.subr.mxu0 0.0
        %5769 = vmatpush1.xpose.msra.mxu0 0.0
        %5770 = vmatprep.subr.mxu0 0.0
        %5771 = vmatpush1.xpose.msra.mxu0 0.0
        %5772 = vmatprep.subr.mxu0 0.0
        %5773 = vmatpush1.xpose.msra.mxu0 0.0
        %5774 = vmatprep.subr.mxu0 0.0
        %5775 = vmatpush1.xpose.msra.mxu0 0.0
        %5776 = vmatprep.subr.mxu0 0.0
        %5777 = vmatpush1.xpose.msra.mxu0 0.0
        %5778 = vmatprep.subr.mxu0 0.0
        %5779 = vmatpush1.xpose.msra.mxu0 0.0
        %5780 = vmatprep.subr.mxu0 0.0
        %5781 = vmatpush1.xpose.msra.mxu0 0.0
        %5782 = vmatprep.subr.mxu0 0.0
        %5783 = vmatpush1.xpose.msra.mxu0 0.0
        %5784 = vmatprep.subr.mxu0 0.0
        %5785 = vmatpush1.xpose.msra.mxu0 %v5752
        %5786 = vmatprep.subr.mxu0 0.0
        %5787 = vmatpush2.xpose.msra.mxu0 0.0
        %5788 = vmatprep.subr.mxu0 0.0
        %5789 = vmatpush2.xpose.msra.mxu0 0.0
        %5790 = vmatprep.subr.mxu0 0.0
        %5791 = vmatpush2.xpose.msra.mxu0 0.0
        %5792 = vmatprep.subr.mxu0 0.0
        %5793 = vmatpush2.xpose.msra.mxu0 0.0
        %5794 = vmatprep.subr.mxu0 0.0
        %5795 = vmatpush2.xpose.msra.mxu0 0.0
        %5796 = vmatprep.subr.mxu0 0.0
        %5797 = vmatpush2.xpose.msra.mxu0 0.0
        %5798 = vmatprep.subr.mxu0 0.0
        %5799 = vmatpush2.xpose.msra.mxu0 0.0
        %5800 = vmatprep.subr.mxu0 0.0
        %5801 = vmatpush2.xpose.msra.mxu0 0.0
        %5802 = vmatprep.subr.mxu0 0.0
        %5803 = vmatpush2.xpose.msra.mxu0 0.0
        %5804 = vmatprep.subr.mxu0 0.0
        %5805 = vmatpush2.xpose.msra.mxu0 0.0
        %5806 = vmatprep.subr.mxu0 0.0
        %5807 = vmatpush2.xpose.msra.mxu0 0.0
        %5808 = vmatprep.subr.mxu0 0.0
        %5809 = vmatpush2.xpose.msra.mxu0 0.0
        %5810 = vmatprep.subr.mxu0 0.0
        %5811 = vmatpush2.xpose.msra.mxu0 0.0
        %5812 = vmatprep.subr.mxu0 0.0
        %5813 = vmatpush2.xpose.msra.mxu0 0.0
        %5814 = vmatprep.subr.mxu0 0.0
        %5815 = vmatpush2.xpose.msra.mxu0 0.0
        %5816 = vmatprep.subr.mxu0 0.0
        %5817 = vmatpush2.xpose.msra.mxu0 0.0
        %5818 = vmatprep.mubr.f32.mxu0 0.0
        %5819 = vmatmul.mubr.f32.gmra.mxu0 %v5749
        %v5820 = vpop.f32.mrf.mxu0
        %v5821 = vadd.f32 0.0, %v5820
        %v5822 = vpop.f32.mrf.mxu0
        %5823 = vdwg.mxu0
        %5824 = vrot.lane.b32.xlu0 %v5661, 120
        %v5825 = vpop.permute.xlu0 %5824
        %5826 = vrot.lane.b32.xlu0 %v5740, 120
        %v5827 = vpop.permute.xlu0 %5826
        %v5828 = vsel %vm481, %v5825, 0
        %v5830 = vsel %vm481, %v5827, 0
        %5832 = vmatprep.subr.mxu0 0.0
        %5833 = vmatpush1.xpose.msra.mxu0 0.0
        %5834 = vmatprep.subr.mxu0 0.0
        %5835 = vmatpush1.xpose.msra.mxu0 0.0
        %5836 = vmatprep.subr.mxu0 0.0
        %5837 = vmatpush1.xpose.msra.mxu0 0.0
        %5838 = vmatprep.subr.mxu0 0.0
        %5839 = vmatpush1.xpose.msra.mxu0 0.0
        %5840 = vmatprep.subr.mxu0 0.0
        %5841 = vmatpush1.xpose.msra.mxu0 0.0
        %5842 = vmatprep.subr.mxu0 0.0
        %5843 = vmatpush1.xpose.msra.mxu0 0.0
        %5844 = vmatprep.subr.mxu0 0.0
        %5845 = vmatpush1.xpose.msra.mxu0 0.0
        %5846 = vmatprep.subr.mxu0 0.0
        %5847 = vmatpush1.xpose.msra.mxu0 0.0
        %5848 = vmatprep.subr.mxu0 0.0
        %5849 = vmatpush1.xpose.msra.mxu0 0.0
        %5850 = vmatprep.subr.mxu0 0.0
        %5851 = vmatpush1.xpose.msra.mxu0 0.0
        %5852 = vmatprep.subr.mxu0 0.0
        %5853 = vmatpush1.xpose.msra.mxu0 0.0
        %5854 = vmatprep.subr.mxu0 0.0
        %5855 = vmatpush1.xpose.msra.mxu0 0.0
        %5856 = vmatprep.subr.mxu0 0.0
        %5857 = vmatpush1.xpose.msra.mxu0 0.0
        %5858 = vmatprep.subr.mxu0 0.0
        %5859 = vmatpush1.xpose.msra.mxu0 0.0
        %5860 = vmatprep.subr.mxu0 0.0
        %5861 = vmatpush1.xpose.msra.mxu0 0.0
        %5862 = vmatprep.subr.mxu0 0.0
        %5863 = vmatpush1.xpose.msra.mxu0 %v5830
        %5864 = vmatprep.subr.mxu0 0.0
        %5865 = vmatpush2.xpose.msra.mxu0 0.0
        %5866 = vmatprep.subr.mxu0 0.0
        %5867 = vmatpush2.xpose.msra.mxu0 0.0
        %5868 = vmatprep.subr.mxu0 0.0
        %5869 = vmatpush2.xpose.msra.mxu0 0.0
        %5870 = vmatprep.subr.mxu0 0.0
        %5871 = vmatpush2.xpose.msra.mxu0 0.0
        %5872 = vmatprep.subr.mxu0 0.0
        %5873 = vmatpush2.xpose.msra.mxu0 0.0
        %5874 = vmatprep.subr.mxu0 0.0
        %5875 = vmatpush2.xpose.msra.mxu0 0.0
        %5876 = vmatprep.subr.mxu0 0.0
        %5877 = vmatpush2.xpose.msra.mxu0 0.0
        %5878 = vmatprep.subr.mxu0 0.0
        %5879 = vmatpush2.xpose.msra.mxu0 0.0
        %5880 = vmatprep.subr.mxu0 0.0
        %5881 = vmatpush2.xpose.msra.mxu0 0.0
        %5882 = vmatprep.subr.mxu0 0.0
        %5883 = vmatpush2.xpose.msra.mxu0 0.0
        %5884 = vmatprep.subr.mxu0 0.0
        %5885 = vmatpush2.xpose.msra.mxu0 0.0
        %5886 = vmatprep.subr.mxu0 0.0
        %5887 = vmatpush2.xpose.msra.mxu0 0.0
        %5888 = vmatprep.subr.mxu0 0.0
        %5889 = vmatpush2.xpose.msra.mxu0 0.0
        %5890 = vmatprep.subr.mxu0 0.0
        %5891 = vmatpush2.xpose.msra.mxu0 0.0
        %5892 = vmatprep.subr.mxu0 0.0
        %5893 = vmatpush2.xpose.msra.mxu0 0.0
        %5894 = vmatprep.subr.mxu0 0.0
        %5895 = vmatpush2.xpose.msra.mxu0 0.0
        %5896 = vmatprep.mubr.f32.mxu0 0.0
        %5897 = vmatmul.mubr.f32.gmra.mxu0 %v5828
        %v5898 = vpop.f32.mrf.mxu0
        %v5899 = vadd.f32 0.0, %v5898
        %v5900 = vpop.f32.mrf.mxu0
        %5901 = vdwg.mxu0
        %5902 = vrot.lane.b32.xlu0 %v5661, 112
        %v5903 = vpop.permute.xlu0 %5902
        %5904 = vrot.lane.b32.xlu0 %v5740, 112
        %v5905 = vpop.permute.xlu0 %5904
        %v5906 = vsel %vm481, %v5903, 0
        %v5908 = vsel %vm481, %v5905, 0
        %5910 = vmatprep.subr.mxu0 0.0
        %5911 = vmatpush1.xpose.msra.mxu0 0.0
        %5912 = vmatprep.subr.mxu0 0.0
        %5913 = vmatpush1.xpose.msra.mxu0 0.0
        %5914 = vmatprep.subr.mxu0 0.0
        %5915 = vmatpush1.xpose.msra.mxu0 0.0
        %5916 = vmatprep.subr.mxu0 0.0
        %5917 = vmatpush1.xpose.msra.mxu0 0.0
        %5918 = vmatprep.subr.mxu0 0.0
        %5919 = vmatpush1.xpose.msra.mxu0 0.0
        %5920 = vmatprep.subr.mxu0 0.0
        %5921 = vmatpush1.xpose.msra.mxu0 0.0
        %5922 = vmatprep.subr.mxu0 0.0
        %5923 = vmatpush1.xpose.msra.mxu0 0.0
        %5924 = vmatprep.subr.mxu0 0.0
        %5925 = vmatpush1.xpose.msra.mxu0 0.0
        %5926 = vmatprep.subr.mxu0 0.0
        %5927 = vmatpush1.xpose.msra.mxu0 0.0
        %5928 = vmatprep.subr.mxu0 0.0
        %5929 = vmatpush1.xpose.msra.mxu0 0.0
        %5930 = vmatprep.subr.mxu0 0.0
        %5931 = vmatpush1.xpose.msra.mxu0 0.0
        %5932 = vmatprep.subr.mxu0 0.0
        %5933 = vmatpush1.xpose.msra.mxu0 0.0
        %5934 = vmatprep.subr.mxu0 0.0
        %5935 = vmatpush1.xpose.msra.mxu0 0.0
        %5936 = vmatprep.subr.mxu0 0.0
        %5937 = vmatpush1.xpose.msra.mxu0 0.0
        %5938 = vmatprep.subr.mxu0 0.0
        %5939 = vmatpush1.xpose.msra.mxu0 0.0
        %5940 = vmatprep.subr.mxu0 0.0
        %5941 = vmatpush1.xpose.msra.mxu0 %v5908
        %5942 = vmatprep.subr.mxu0 0.0
        %5943 = vmatpush2.xpose.msra.mxu0 0.0
        %5944 = vmatprep.subr.mxu0 0.0
        %5945 = vmatpush2.xpose.msra.mxu0 0.0
        %5946 = vmatprep.subr.mxu0 0.0
        %5947 = vmatpush2.xpose.msra.mxu0 0.0
        %5948 = vmatprep.subr.mxu0 0.0
        %5949 = vmatpush2.xpose.msra.mxu0 0.0
        %5950 = vmatprep.subr.mxu0 0.0
        %5951 = vmatpush2.xpose.msra.mxu0 0.0
        %5952 = vmatprep.subr.mxu0 0.0
        %5953 = vmatpush2.xpose.msra.mxu0 0.0
        %5954 = vmatprep.subr.mxu0 0.0
        %5955 = vmatpush2.xpose.msra.mxu0 0.0
        %5956 = vmatprep.subr.mxu0 0.0
        %5957 = vmatpush2.xpose.msra.mxu0 0.0
        %5958 = vmatprep.subr.mxu0 0.0
        %5959 = vmatpush2.xpose.msra.mxu0 0.0
        %5960 = vmatprep.subr.mxu0 0.0
        %5961 = vmatpush2.xpose.msra.mxu0 0.0
        %5962 = vmatprep.subr.mxu0 0.0
        %5963 = vmatpush2.xpose.msra.mxu0 0.0
        %5964 = vmatprep.subr.mxu0 0.0
        %5965 = vmatpush2.xpose.msra.mxu0 0.0
        %5966 = vmatprep.subr.mxu0 0.0
        %5967 = vmatpush2.xpose.msra.mxu0 0.0
        %5968 = vmatprep.subr.mxu0 0.0
        %5969 = vmatpush2.xpose.msra.mxu0 0.0
        %5970 = vmatprep.subr.mxu0 0.0
        %5971 = vmatpush2.xpose.msra.mxu0 0.0
        %5972 = vmatprep.subr.mxu0 0.0
        %5973 = vmatpush2.xpose.msra.mxu0 0.0
        %5974 = vmatprep.mubr.f32.mxu0 0.0
        %5975 = vmatmul.mubr.f32.gmra.mxu0 %v5906
        %v5976 = vpop.f32.mrf.mxu0
        %v5977 = vadd.f32 0.0, %v5976
        %v5978 = vpop.f32.mrf.mxu0
        %5979 = vdwg.mxu0
        %5980 = vrot.lane.b32.xlu0 %v5661, 104
        %v5981 = vpop.permute.xlu0 %5980
        %5982 = vrot.lane.b32.xlu0 %v5740, 104
        %v5983 = vpop.permute.xlu0 %5982
        %v5984 = vsel %vm481, %v5981, 0
        %v5986 = vsel %vm481, %v5983, 0
        %5988 = vmatprep.subr.mxu0 0.0
        %5989 = vmatpush1.xpose.msra.mxu0 0.0
        %5990 = vmatprep.subr.mxu0 0.0
        %5991 = vmatpush1.xpose.msra.mxu0 0.0
        %5992 = vmatprep.subr.mxu0 0.0
        %5993 = vmatpush1.xpose.msra.mxu0 0.0
        %5994 = vmatprep.subr.mxu0 0.0
        %5995 = vmatpush1.xpose.msra.mxu0 0.0
        %5996 = vmatprep.subr.mxu0 0.0
        %5997 = vmatpush1.xpose.msra.mxu0 0.0
        %5998 = vmatprep.subr.mxu0 0.0
        %5999 = vmatpush1.xpose.msra.mxu0 0.0
        %6000 = vmatprep.subr.mxu0 0.0
        %6001 = vmatpush1.xpose.msra.mxu0 0.0
        %6002 = vmatprep.subr.mxu0 0.0
        %6003 = vmatpush1.xpose.msra.mxu0 0.0
        %6004 = vmatprep.subr.mxu0 0.0
        %6005 = vmatpush1.xpose.msra.mxu0 0.0
        %6006 = vmatprep.subr.mxu0 0.0
        %6007 = vmatpush1.xpose.msra.mxu0 0.0
        %6008 = vmatprep.subr.mxu0 0.0
        %6009 = vmatpush1.xpose.msra.mxu0 0.0
        %6010 = vmatprep.subr.mxu0 0.0
        %6011 = vmatpush1.xpose.msra.mxu0 0.0
        %6012 = vmatprep.subr.mxu0 0.0
        %6013 = vmatpush1.xpose.msra.mxu0 0.0
        %6014 = vmatprep.subr.mxu0 0.0
        %6015 = vmatpush1.xpose.msra.mxu0 0.0
        %6016 = vmatprep.subr.mxu0 0.0
        %6017 = vmatpush1.xpose.msra.mxu0 0.0
        %6018 = vmatprep.subr.mxu0 0.0
        %6019 = vmatpush1.xpose.msra.mxu0 %v5986
        %6020 = vmatprep.subr.mxu0 0.0
        %6021 = vmatpush2.xpose.msra.mxu0 0.0
        %6022 = vmatprep.subr.mxu0 0.0
        %6023 = vmatpush2.xpose.msra.mxu0 0.0
        %6024 = vmatprep.subr.mxu0 0.0
        %6025 = vmatpush2.xpose.msra.mxu0 0.0
        %6026 = vmatprep.subr.mxu0 0.0
        %6027 = vmatpush2.xpose.msra.mxu0 0.0
        %6028 = vmatprep.subr.mxu0 0.0
        %6029 = vmatpush2.xpose.msra.mxu0 0.0
        %6030 = vmatprep.subr.mxu0 0.0
        %6031 = vmatpush2.xpose.msra.mxu0 0.0
        %6032 = vmatprep.subr.mxu0 0.0
        %6033 = vmatpush2.xpose.msra.mxu0 0.0
        %6034 = vmatprep.subr.mxu0 0.0
        %6035 = vmatpush2.xpose.msra.mxu0 0.0
        %6036 = vmatprep.subr.mxu0 0.0
        %6037 = vmatpush2.xpose.msra.mxu0 0.0
        %6038 = vmatprep.subr.mxu0 0.0
        %6039 = vmatpush2.xpose.msra.mxu0 0.0
        %6040 = vmatprep.subr.mxu0 0.0
        %6041 = vmatpush2.xpose.msra.mxu0 0.0
        %6042 = vmatprep.subr.mxu0 0.0
        %6043 = vmatpush2.xpose.msra.mxu0 0.0
        %6044 = vmatprep.subr.mxu0 0.0
        %6045 = vmatpush2.xpose.msra.mxu0 0.0
        %6046 = vmatprep.subr.mxu0 0.0
        %6047 = vmatpush2.xpose.msra.mxu0 0.0
        %6048 = vmatprep.subr.mxu0 0.0
        %6049 = vmatpush2.xpose.msra.mxu0 0.0
        %6050 = vmatprep.subr.mxu0 0.0
        %6051 = vmatpush2.xpose.msra.mxu0 0.0
        %6052 = vmatprep.mubr.f32.mxu0 0.0
        %6053 = vmatmul.mubr.f32.gmra.mxu0 %v5984
        %v6054 = vpop.f32.mrf.mxu0
        %v6055 = vadd.f32 0.0, %v6054
        %v6056 = vpop.f32.mrf.mxu0
        %6057 = vdwg.mxu0
        %v6058 = vadd.f32 %v5821, %v794
        %v6059 = vadd.f32 %v5899, %v794
        %v6060 = vadd.f32 %v5977, %v794
        %v6061 = vadd.f32 %v6055, %v794
        %v6062 = vsel %vm481, %v6058, -inf
        %6063 = vmax.xlane.f32.xlu0 %v6062
        %v6064 = vpop.xlane.xlu0 %6063
        %v6065 = vsel %vm481, %v6059, -inf
        %6066 = vmax.xlane.f32.xlu0 %v6065
        %v6067 = vpop.xlane.xlu0 %6066
        %v6068 = vsel %vm481, %v6060, -inf
        %6069 = vmax.xlane.f32.xlu0 %v6068
        %v6070 = vpop.xlane.xlu0 %6069
        %v6071 = vsel %vm481, %v6061, -inf
        %6072 = vmax.xlane.f32.xlu0 %v6071
        %v6073 = vpop.xlane.xlu0 %6072
        %v6074 = vsub.f32 %v6058, %v6064
        %v6075 = vsub.f32 %v6059, %v6067
        %v6076 = vsub.f32 %v6060, %v6070
        %v6077 = vsub.f32 %v6061, %v6073
        %v6078 = vmul.f32 %v6074, 1.442695
        %v6079 = vpow.pop %v6078
        %v6080 = vmul.f32 %v6075, 1.442695
        %v6081 = vpow.pop %v6080
        %v6082 = vmul.f32 %v6076, 1.442695
        %v6083 = vpow.pop %v6082
        %v6084 = vmul.f32 %v6077, 1.442695
        %v6085 = vpow.pop %v6084
        %v6086 = vsel %vm481, %v6079, 0.0
        %6087 = vadd.xlane.f32.xlu0 %v6086
        %v6088 = vpop.xlane.xlu0 %6087
        %v6089 = vsel %vm481, %v6081, 0.0
        %6090 = vadd.xlane.f32.xlu0 %v6089
        %v6091 = vpop.xlane.xlu0 %6090
        %v6092 = vsel %vm481, %v6083, 0.0
        %6093 = vadd.xlane.f32.xlu0 %v6092
        %v6094 = vpop.xlane.xlu0 %6093
        %v6095 = vsel %vm481, %v6085, 0.0
        %6096 = vadd.xlane.f32.xlu0 %v6095
        %v6097 = vpop.xlane.xlu0 %6096
        %v6098 = vrcp.pop %v6088
        %v6099 = vrcp.pop %v6091
        %v6100 = vrcp.pop %v6094
        %v6101 = vrcp.pop %v6097
        %v6102 = vmul.f32 %v6079, %v6098
        %v6103 = vmul.f32 %v6081, %v6099
        %v6104 = vmul.f32 %v6083, %v6100
        %v6105 = vmul.f32 %v6085, %v6101
        %6106 = vrot.lane.b32.xlu0 %v5740, 96
        %v6107 = vpop.permute.xlu0 %6106
        %v6110 = vsel %vm481, %v6102, 0
        %6112 = vmatprep.subr.mxu0 0.0
        %6113 = vmatpush1.msra.mxu0 0.0
        %6114 = vmatprep.subr.mxu0 0.0
        %6115 = vmatpush1.msra.mxu0 0.0
        %6116 = vmatprep.subr.mxu0 0.0
        %6117 = vmatpush1.msra.mxu0 0.0
        %6118 = vmatprep.subr.mxu0 0.0
        %6119 = vmatpush1.msra.mxu0 0.0
        %6120 = vmatprep.subr.mxu0 0.0
        %6121 = vmatpush1.msra.mxu0 0.0
        %6122 = vmatprep.subr.mxu0 0.0
        %6123 = vmatpush1.msra.mxu0 0.0
        %6124 = vmatprep.subr.mxu0 0.0
        %6125 = vmatpush1.msra.mxu0 0.0
        %6126 = vmatprep.subr.mxu0 0.0
        %6127 = vmatpush1.msra.mxu0 0.0
        %6128 = vmatprep.subr.mxu0 0.0
        %6129 = vmatpush1.msra.mxu0 0.0
        %6130 = vmatprep.subr.mxu0 0.0
        %6131 = vmatpush1.msra.mxu0 0.0
        %6132 = vmatprep.subr.mxu0 0.0
        %6133 = vmatpush1.msra.mxu0 0.0
        %6134 = vmatprep.subr.mxu0 0.0
        %6135 = vmatpush1.msra.mxu0 0.0
        %6136 = vmatprep.subr.mxu0 0.0
        %6137 = vmatpush1.msra.mxu0 0.0
        %6138 = vmatprep.subr.mxu0 0.0
        %6139 = vmatpush1.msra.mxu0 0.0
        %6140 = vmatprep.subr.mxu0 0.0
        %6141 = vmatpush1.msra.mxu0 0.0
        %6142 = vmatprep.subr.mxu0 0.0
        %6143 = vmatpush1.msra.mxu0 %v6107
        %6144 = vmatprep.subr.mxu0 0.0
        %6145 = vmatpush2.msra.mxu0 0.0
        %6146 = vmatprep.subr.mxu0 0.0
        %6147 = vmatpush2.msra.mxu0 0.0
        %6148 = vmatprep.subr.mxu0 0.0
        %6149 = vmatpush2.msra.mxu0 0.0
        %6150 = vmatprep.subr.mxu0 0.0
        %6151 = vmatpush2.msra.mxu0 0.0
        %6152 = vmatprep.subr.mxu0 0.0
        %6153 = vmatpush2.msra.mxu0 0.0
        %6154 = vmatprep.subr.mxu0 0.0
        %6155 = vmatpush2.msra.mxu0 0.0
        %6156 = vmatprep.subr.mxu0 0.0
        %6157 = vmatpush2.msra.mxu0 0.0
        %6158 = vmatprep.subr.mxu0 0.0
        %6159 = vmatpush2.msra.mxu0 0.0
        %6160 = vmatprep.subr.mxu0 0.0
        %6161 = vmatpush2.msra.mxu0 0.0
        %6162 = vmatprep.subr.mxu0 0.0
        %6163 = vmatpush2.msra.mxu0 0.0
        %6164 = vmatprep.subr.mxu0 0.0
        %6165 = vmatpush2.msra.mxu0 0.0
        %6166 = vmatprep.subr.mxu0 0.0
        %6167 = vmatpush2.msra.mxu0 0.0
        %6168 = vmatprep.subr.mxu0 0.0
        %6169 = vmatpush2.msra.mxu0 0.0
        %6170 = vmatprep.subr.mxu0 0.0
        %6171 = vmatpush2.msra.mxu0 0.0
        %6172 = vmatprep.subr.mxu0 0.0
        %6173 = vmatpush2.msra.mxu0 0.0
        %6174 = vmatprep.subr.mxu0 0.0
        %6175 = vmatpush2.msra.mxu0 0.0
        %6176 = vmatprep.mubr.f32.mxu0 0.0
        %6177 = vmatmul.mubr.f32.gmra.mxu0 %v6110
        %v6178 = vpop.f32.mrf.mxu0
        %v6179 = vadd.f32 0.0, %v6178
        %v6180 = vpop.f32.mrf.mxu0
        %6181 = vdwg.mxu0
        %6182 = vrot.lane.b32.xlu0 %v5740, 88
        %v6183 = vpop.permute.xlu0 %6182
        %v6186 = vsel %vm481, %v6103, 0
        %6188 = vmatprep.subr.mxu0 0.0
        %6189 = vmatpush1.msra.mxu0 0.0
        %6190 = vmatprep.subr.mxu0 0.0
        %6191 = vmatpush1.msra.mxu0 0.0
        %6192 = vmatprep.subr.mxu0 0.0
        %6193 = vmatpush1.msra.mxu0 0.0
        %6194 = vmatprep.subr.mxu0 0.0
        %6195 = vmatpush1.msra.mxu0 0.0
        %6196 = vmatprep.subr.mxu0 0.0
        %6197 = vmatpush1.msra.mxu0 0.0
        %6198 = vmatprep.subr.mxu0 0.0
        %6199 = vmatpush1.msra.mxu0 0.0
        %6200 = vmatprep.subr.mxu0 0.0
        %6201 = vmatpush1.msra.mxu0 0.0
        %6202 = vmatprep.subr.mxu0 0.0
        %6203 = vmatpush1.msra.mxu0 0.0
        %6204 = vmatprep.subr.mxu0 0.0
        %6205 = vmatpush1.msra.mxu0 0.0
        %6206 = vmatprep.subr.mxu0 0.0
        %6207 = vmatpush1.msra.mxu0 0.0
        %6208 = vmatprep.subr.mxu0 0.0
        %6209 = vmatpush1.msra.mxu0 0.0
        %6210 = vmatprep.subr.mxu0 0.0
        %6211 = vmatpush1.msra.mxu0 0.0
        %6212 = vmatprep.subr.mxu0 0.0
        %6213 = vmatpush1.msra.mxu0 0.0
        %6214 = vmatprep.subr.mxu0 0.0
        %6215 = vmatpush1.msra.mxu0 0.0
        %6216 = vmatprep.subr.mxu0 0.0
        %6217 = vmatpush1.msra.mxu0 0.0
        %6218 = vmatprep.subr.mxu0 0.0
        %6219 = vmatpush1.msra.mxu0 %v6183
        %6220 = vmatprep.subr.mxu0 0.0
        %6221 = vmatpush2.msra.mxu0 0.0
        %6222 = vmatprep.subr.mxu0 0.0
        %6223 = vmatpush2.msra.mxu0 0.0
        %6224 = vmatprep.subr.mxu0 0.0
        %6225 = vmatpush2.msra.mxu0 0.0
        %6226 = vmatprep.subr.mxu0 0.0
        %6227 = vmatpush2.msra.mxu0 0.0
        %6228 = vmatprep.subr.mxu0 0.0
        %6229 = vmatpush2.msra.mxu0 0.0
        %6230 = vmatprep.subr.mxu0 0.0
        %6231 = vmatpush2.msra.mxu0 0.0
        %6232 = vmatprep.subr.mxu0 0.0
        %6233 = vmatpush2.msra.mxu0 0.0
        %6234 = vmatprep.subr.mxu0 0.0
        %6235 = vmatpush2.msra.mxu0 0.0
        %6236 = vmatprep.subr.mxu0 0.0
        %6237 = vmatpush2.msra.mxu0 0.0
        %6238 = vmatprep.subr.mxu0 0.0
        %6239 = vmatpush2.msra.mxu0 0.0
        %6240 = vmatprep.subr.mxu0 0.0
        %6241 = vmatpush2.msra.mxu0 0.0
        %6242 = vmatprep.subr.mxu0 0.0
        %6243 = vmatpush2.msra.mxu0 0.0
        %6244 = vmatprep.subr.mxu0 0.0
        %6245 = vmatpush2.msra.mxu0 0.0
        %6246 = vmatprep.subr.mxu0 0.0
        %6247 = vmatpush2.msra.mxu0 0.0
        %6248 = vmatprep.subr.mxu0 0.0
        %6249 = vmatpush2.msra.mxu0 0.0
        %6250 = vmatprep.subr.mxu0 0.0
        %6251 = vmatpush2.msra.mxu0 0.0
        %6252 = vmatprep.mubr.f32.mxu0 0.0
        %6253 = vmatmul.mubr.f32.gmra.mxu0 %v6186
        %v6254 = vpop.f32.mrf.mxu0
        %v6255 = vadd.f32 0.0, %v6254
        %v6256 = vpop.f32.mrf.mxu0
        %6257 = vdwg.mxu0
        %6258 = vrot.lane.b32.xlu0 %v5740, 80
        %v6259 = vpop.permute.xlu0 %6258
        %v6262 = vsel %vm481, %v6104, 0
        %6264 = vmatprep.subr.mxu0 0.0
        %6265 = vmatpush1.msra.mxu0 0.0
        %6266 = vmatprep.subr.mxu0 0.0
        %6267 = vmatpush1.msra.mxu0 0.0
        %6268 = vmatprep.subr.mxu0 0.0
        %6269 = vmatpush1.msra.mxu0 0.0
        %6270 = vmatprep.subr.mxu0 0.0
        %6271 = vmatpush1.msra.mxu0 0.0
        %6272 = vmatprep.subr.mxu0 0.0
        %6273 = vmatpush1.msra.mxu0 0.0
        %6274 = vmatprep.subr.mxu0 0.0
        %6275 = vmatpush1.msra.mxu0 0.0
        %6276 = vmatprep.subr.mxu0 0.0
        %6277 = vmatpush1.msra.mxu0 0.0
        %6278 = vmatprep.subr.mxu0 0.0
        %6279 = vmatpush1.msra.mxu0 0.0
        %6280 = vmatprep.subr.mxu0 0.0
        %6281 = vmatpush1.msra.mxu0 0.0
        %6282 = vmatprep.subr.mxu0 0.0
        %6283 = vmatpush1.msra.mxu0 0.0
        %6284 = vmatprep.subr.mxu0 0.0
        %6285 = vmatpush1.msra.mxu0 0.0
        %6286 = vmatprep.subr.mxu0 0.0
        %6287 = vmatpush1.msra.mxu0 0.0
        %6288 = vmatprep.subr.mxu0 0.0
        %6289 = vmatpush1.msra.mxu0 0.0
        %6290 = vmatprep.subr.mxu0 0.0
        %6291 = vmatpush1.msra.mxu0 0.0
        %6292 = vmatprep.subr.mxu0 0.0
        %6293 = vmatpush1.msra.mxu0 0.0
        %6294 = vmatprep.subr.mxu0 0.0
        %6295 = vmatpush1.msra.mxu0 %v6259
        %6296 = vmatprep.subr.mxu0 0.0
        %6297 = vmatpush2.msra.mxu0 0.0
        %6298 = vmatprep.subr.mxu0 0.0
        %6299 = vmatpush2.msra.mxu0 0.0
        %6300 = vmatprep.subr.mxu0 0.0
        %6301 = vmatpush2.msra.mxu0 0.0
        %6302 = vmatprep.subr.mxu0 0.0
        %6303 = vmatpush2.msra.mxu0 0.0
        %6304 = vmatprep.subr.mxu0 0.0
        %6305 = vmatpush2.msra.mxu0 0.0
        %6306 = vmatprep.subr.mxu0 0.0
        %6307 = vmatpush2.msra.mxu0 0.0
        %6308 = vmatprep.subr.mxu0 0.0
        %6309 = vmatpush2.msra.mxu0 0.0
        %6310 = vmatprep.subr.mxu0 0.0
        %6311 = vmatpush2.msra.mxu0 0.0
        %6312 = vmatprep.subr.mxu0 0.0
        %6313 = vmatpush2.msra.mxu0 0.0
        %6314 = vmatprep.subr.mxu0 0.0
        %6315 = vmatpush2.msra.mxu0 0.0
        %6316 = vmatprep.subr.mxu0 0.0
        %6317 = vmatpush2.msra.mxu0 0.0
        %6318 = vmatprep.subr.mxu0 0.0
        %6319 = vmatpush2.msra.mxu0 0.0
        %6320 = vmatprep.subr.mxu0 0.0
        %6321 = vmatpush2.msra.mxu0 0.0
        %6322 = vmatprep.subr.mxu0 0.0
        %6323 = vmatpush2.msra.mxu0 0.0
        %6324 = vmatprep.subr.mxu0 0.0
        %6325 = vmatpush2.msra.mxu0 0.0
        %6326 = vmatprep.subr.mxu0 0.0
        %6327 = vmatpush2.msra.mxu0 0.0
        %6328 = vmatprep.mubr.f32.mxu0 0.0
        %6329 = vmatmul.mubr.f32.gmra.mxu0 %v6262
        %v6330 = vpop.f32.mrf.mxu0
        %v6331 = vadd.f32 0.0, %v6330
        %v6332 = vpop.f32.mrf.mxu0
        %6333 = vdwg.mxu0
        %6334 = vrot.lane.b32.xlu0 %v5740, 72
        %v6335 = vpop.permute.xlu0 %6334
        %v6338 = vsel %vm481, %v6105, 0
        %6340 = vmatprep.subr.mxu0 0.0
        %6341 = vmatpush1.msra.mxu0 0.0
        %6342 = vmatprep.subr.mxu0 0.0
        %6343 = vmatpush1.msra.mxu0 0.0
        %6344 = vmatprep.subr.mxu0 0.0
        %6345 = vmatpush1.msra.mxu0 0.0
        %6346 = vmatprep.subr.mxu0 0.0
        %6347 = vmatpush1.msra.mxu0 0.0
        %6348 = vmatprep.subr.mxu0 0.0
        %6349 = vmatpush1.msra.mxu0 0.0
        %6350 = vmatprep.subr.mxu0 0.0
        %6351 = vmatpush1.msra.mxu0 0.0
        %6352 = vmatprep.subr.mxu0 0.0
        %6353 = vmatpush1.msra.mxu0 0.0
        %6354 = vmatprep.subr.mxu0 0.0
        %6355 = vmatpush1.msra.mxu0 0.0
        %6356 = vmatprep.subr.mxu0 0.0
        %6357 = vmatpush1.msra.mxu0 0.0
        %6358 = vmatprep.subr.mxu0 0.0
        %6359 = vmatpush1.msra.mxu0 0.0
        %6360 = vmatprep.subr.mxu0 0.0
        %6361 = vmatpush1.msra.mxu0 0.0
        %6362 = vmatprep.subr.mxu0 0.0
        %6363 = vmatpush1.msra.mxu0 0.0
        %6364 = vmatprep.subr.mxu0 0.0
        %6365 = vmatpush1.msra.mxu0 0.0
        %6366 = vmatprep.subr.mxu0 0.0
        %6367 = vmatpush1.msra.mxu0 0.0
        %6368 = vmatprep.subr.mxu0 0.0
        %6369 = vmatpush1.msra.mxu0 0.0
        %6370 = vmatprep.subr.mxu0 0.0
        %6371 = vmatpush1.msra.mxu0 %v6335
        %6372 = vmatprep.subr.mxu0 0.0
        %6373 = vmatpush2.msra.mxu0 0.0
        %6374 = vmatprep.subr.mxu0 0.0
        %6375 = vmatpush2.msra.mxu0 0.0
        %6376 = vmatprep.subr.mxu0 0.0
        %6377 = vmatpush2.msra.mxu0 0.0
        %6378 = vmatprep.subr.mxu0 0.0
        %6379 = vmatpush2.msra.mxu0 0.0
        %6380 = vmatprep.subr.mxu0 0.0
        %6381 = vmatpush2.msra.mxu0 0.0
        %6382 = vmatprep.subr.mxu0 0.0
        %6383 = vmatpush2.msra.mxu0 0.0
        %6384 = vmatprep.subr.mxu0 0.0
        %6385 = vmatpush2.msra.mxu0 0.0
        %6386 = vmatprep.subr.mxu0 0.0
        %6387 = vmatpush2.msra.mxu0 0.0
        %6388 = vmatprep.subr.mxu0 0.0
        %6389 = vmatpush2.msra.mxu0 0.0
        %6390 = vmatprep.subr.mxu0 0.0
        %6391 = vmatpush2.msra.mxu0 0.0
        %6392 = vmatprep.subr.mxu0 0.0
        %6393 = vmatpush2.msra.mxu0 0.0
        %6394 = vmatprep.subr.mxu0 0.0
        %6395 = vmatpush2.msra.mxu0 0.0
        %6396 = vmatprep.subr.mxu0 0.0
        %6397 = vmatpush2.msra.mxu0 0.0
        %6398 = vmatprep.subr.mxu0 0.0
        %6399 = vmatpush2.msra.mxu0 0.0
        %6400 = vmatprep.subr.mxu0 0.0
        %6401 = vmatpush2.msra.mxu0 0.0
        %6402 = vmatprep.subr.mxu0 0.0
        %6403 = vmatpush2.msra.mxu0 0.0
        %6404 = vmatprep.mubr.f32.mxu0 0.0
        %6405 = vmatmul.mubr.f32.gmra.mxu0 %v6338
        %v6406 = vpop.f32.mrf.mxu0
        %v6407 = vadd.f32 0.0, %v6406
        %v6408 = vpop.f32.mrf.mxu0
        %6409 = vdwg.mxu0
        %6411 = vrot.lane.b32.xlu0 %v6255, 8
        %v6412 = vpop.permute.xlu0 %6411
        %6415 = vrot.lane.b32.xlu0 %v6331, 16
        %v6416 = vpop.permute.xlu0 %6415
        %6419 = vrot.lane.b32.xlu0 %v6407, 24
        %v6420 = vpop.permute.xlu0 %6419
        %v6422 = vsel %vm481, %v6179, %v6412
        %v6423 = vsel %vm280, %v6422, %v6416
        %v6424 = vsel %vm1162, %v6423, %v6420
        %v6425 = vlaneseq
        %v6426 = vshrl.u32 %v6425, 7
        %v6427 = vsub.s32 0, %v6426
        %v6428 = vrot.slane %v5747, %v6427
        %v6430 = vsel %vm358, %v6424, 0
        %6432 = vmatprep.subr.mxu0 0.0
        %6433 = vmatpush1.msra.mxu0 0.0
        %6434 = vmatprep.subr.mxu0 0.0
        %6435 = vmatpush1.msra.mxu0 0.0
        %6436 = vmatprep.subr.mxu0 0.0
        %6437 = vmatpush1.msra.mxu0 0.0
        %6438 = vmatprep.subr.mxu0 0.0
        %6439 = vmatpush1.msra.mxu0 0.0
        %6440 = vmatprep.subr.mxu0 0.0
        %6441 = vmatpush1.msra.mxu0 0.0
        %6442 = vmatprep.subr.mxu0 0.0
        %6443 = vmatpush1.msra.mxu0 0.0
        %6444 = vmatprep.subr.mxu0 0.0
        %6445 = vmatpush1.msra.mxu0 0.0
        %6446 = vmatprep.subr.mxu0 0.0
        %6447 = vmatpush1.msra.mxu0 0.0
        %6448 = vmatprep.subr.mxu0 0.0
        %6449 = vmatpush1.msra.mxu0 0.0
        %6450 = vmatprep.subr.mxu0 0.0
        %6451 = vmatpush1.msra.mxu0 0.0
        %6452 = vmatprep.subr.mxu0 0.0
        %6453 = vmatpush1.msra.mxu0 0.0
        %6454 = vmatprep.subr.mxu0 0.0
        %6455 = vmatpush1.msra.mxu0 0.0
        %6456 = vmatprep.subr.mxu0 0.0
        %6457 = vmatpush1.msra.mxu0 %v5746
        %6458 = vmatprep.subr.mxu0 0.0
        %6459 = vmatpush1.msra.mxu0 %v5745
        %6460 = vmatprep.subr.mxu0 0.0
        %6461 = vmatpush1.msra.mxu0 %v5744
        %6462 = vmatprep.subr.mxu0 0.0
        %6463 = vmatpush1.msra.mxu0 %v5743
        %6464 = vmatprep.subr.mxu0 0.0
        %6465 = vmatpush2.msra.mxu0 0.0
        %6466 = vmatprep.subr.mxu0 0.0
        %6467 = vmatpush2.msra.mxu0 0.0
        %6468 = vmatprep.subr.mxu0 0.0
        %6469 = vmatpush2.msra.mxu0 0.0
        %6470 = vmatprep.subr.mxu0 0.0
        %6471 = vmatpush2.msra.mxu0 0.0
        %6472 = vmatprep.subr.mxu0 0.0
        %6473 = vmatpush2.msra.mxu0 0.0
        %6474 = vmatprep.subr.mxu0 0.0
        %6475 = vmatpush2.msra.mxu0 0.0
        %6476 = vmatprep.subr.mxu0 0.0
        %6477 = vmatpush2.msra.mxu0 0.0
        %6478 = vmatprep.subr.mxu0 0.0
        %6479 = vmatpush2.msra.mxu0 0.0
        %6480 = vmatprep.subr.mxu0 0.0
        %6481 = vmatpush2.msra.mxu0 0.0
        %6482 = vmatprep.subr.mxu0 0.0
        %6483 = vmatpush2.msra.mxu0 0.0
        %6484 = vmatprep.subr.mxu0 0.0
        %6485 = vmatpush2.msra.mxu0 0.0
        %6486 = vmatprep.subr.mxu0 0.0
        %6487 = vmatpush2.msra.mxu0 0.0
        %6488 = vmatprep.subr.mxu0 0.0
        %6489 = vmatpush2.msra.mxu0 0.0
        %6490 = vmatprep.subr.mxu0 0.0
        %6491 = vmatpush2.msra.mxu0 0.0
        %6492 = vmatprep.subr.mxu0 0.0
        %6493 = vmatpush2.msra.mxu0 0.0
        %6494 = vmatprep.subr.mxu0 0.0
        %6495 = vmatpush2.msra.mxu0 0.0
        %6496 = vmatprep.mubr.f32.mxu0 0.0
        %6497 = vmatmul.mubr.f32.gmra.mxu0 %v6430
        %v6498 = vpop.f32.mrf.mxu0
        %v6499 = vadd.f32 %v6428, %v6498
        %v6500 = vpop.f32.mrf.mxu0
        %6501 = vdwg.mxu0
        %v6502 = vadd.f32 %v5549, %v6499
        %v6503 = vld [vmem:[%s4 + $0x4c8] sm:$0x1]
        %v6504 = vld [vmem:[%s4 + $0x4d0] sm:$0x1]
        %v6505 = vsel %vm358, %v6502, 0.0
        %6506 = vadd.xlane.f32.xlu0 %v6505
        %v6507 = vpop.xlane.xlu0 %6506
        %v6508 = vmul.f32 %v6507, %v362
        %v6509 = vsub.f32 %v6502, %v6508
        %v6510 = vmul.f32 %v6509, %v6509
        %v6511 = vsel %vm358, %v6510, 0.0
        %6512 = vadd.xlane.f32.xlu0 %v6511
        %v6513 = vpop.xlane.xlu0 %6512
        %v6514 = vmul.f32 %v6513, %v369
        %v6515 = vrsqrt.pop %v6514
        %v6516 = vmul.f32 %v6514, %v6515
        %vm6517 = vcmp.eq.f32.partialorder %v6514, inf
        %v6518 = vsel %vm6517, %v6514, %v6516
        %vm6519 = vcmp.eq.f32.partialorder %v6514, 0.0
        %v6520 = vand.u32 %v6514, 2147483648
        %v6521 = vsel %vm6519, %v6520, %v6518
        %v6522 = vlaneseq
        %v6523 = vshrl.u32 %v6522, 7
        %v6524 = vsub.s32 0, %v6523
        %v6525 = vrot.slane %v6503, %v6524
        %v6526 = vmul.f32 %v6525, %v6509
        %v6527 = vadd.f32 %v6521, 1e-06
        %v6528 = vrcp.pop %v6527
        %v6529 = vmul.f32 %v6526, %v6528
        %v6530 = vlaneseq
        %v6531 = vshrl.u32 %v6530, 7
        %v6532 = vsub.s32 0, %v6531
        %v6533 = vrot.slane %v6504, %v6532
        %v6534 = vadd.f32 %v6529, %v6533
        %v6535 = vld [vmem:[%s4 + $0x438] sm:$0xff]
        %v6536 = vld [vmem:[%s4 + $0x440] sm:$0xff]
        %v6537 = vld [vmem:[%s4 + $0x448] sm:$0xff]
        %v6538 = vld [vmem:[%s4 + $0x450] sm:$0xff]
        %v6539 = vld [vmem:[%s4 + $0x458] sm:$0x1]
        %v6540 = vlaneseq
        %v6541 = vshrl.u32 %v6540, 7
        %v6542 = vsub.s32 0, %v6541
        %v6543 = vrot.slane %v6539, %v6542
        %v6545 = vsel %vm358, %v6534, 0
        %6547 = vmatprep.subr.mxu0 0.0
        %6548 = vmatpush1.msra.mxu0 0.0
        %6549 = vmatprep.subr.mxu0 0.0
        %6550 = vmatpush1.msra.mxu0 0.0
        %6551 = vmatprep.subr.mxu0 0.0
        %6552 = vmatpush1.msra.mxu0 0.0
        %6553 = vmatprep.subr.mxu0 0.0
        %6554 = vmatpush1.msra.mxu0 0.0
        %6555 = vmatprep.subr.mxu0 0.0
        %6556 = vmatpush1.msra.mxu0 0.0
        %6557 = vmatprep.subr.mxu0 0.0
        %6558 = vmatpush1.msra.mxu0 0.0
        %6559 = vmatprep.subr.mxu0 0.0
        %6560 = vmatpush1.msra.mxu0 0.0
        %6561 = vmatprep.subr.mxu0 0.0
        %6562 = vmatpush1.msra.mxu0 0.0
        %6563 = vmatprep.subr.mxu0 0.0
        %6564 = vmatpush1.msra.mxu0 0.0
        %6565 = vmatprep.subr.mxu0 0.0
        %6566 = vmatpush1.msra.mxu0 0.0
        %6567 = vmatprep.subr.mxu0 0.0
        %6568 = vmatpush1.msra.mxu0 0.0
        %6569 = vmatprep.subr.mxu0 0.0
        %6570 = vmatpush1.msra.mxu0 0.0
        %6571 = vmatprep.subr.mxu0 0.0
        %6572 = vmatpush1.msra.mxu0 %v6538
        %6573 = vmatprep.subr.mxu0 0.0
        %6574 = vmatpush1.msra.mxu0 %v6537
        %6575 = vmatprep.subr.mxu0 0.0
        %6576 = vmatpush1.msra.mxu0 %v6536
        %6577 = vmatprep.subr.mxu0 0.0
        %6578 = vmatpush1.msra.mxu0 %v6535
        %6579 = vmatprep.subr.mxu0 0.0
        %6580 = vmatpush2.msra.mxu0 0.0
        %6581 = vmatprep.subr.mxu0 0.0
        %6582 = vmatpush2.msra.mxu0 0.0
        %6583 = vmatprep.subr.mxu0 0.0
        %6584 = vmatpush2.msra.mxu0 0.0
        %6585 = vmatprep.subr.mxu0 0.0
        %6586 = vmatpush2.msra.mxu0 0.0
        %6587 = vmatprep.subr.mxu0 0.0
        %6588 = vmatpush2.msra.mxu0 0.0
        %6589 = vmatprep.subr.mxu0 0.0
        %6590 = vmatpush2.msra.mxu0 0.0
        %6591 = vmatprep.subr.mxu0 0.0
        %6592 = vmatpush2.msra.mxu0 0.0
        %6593 = vmatprep.subr.mxu0 0.0
        %6594 = vmatpush2.msra.mxu0 0.0
        %6595 = vmatprep.subr.mxu0 0.0
        %6596 = vmatpush2.msra.mxu0 0.0
        %6597 = vmatprep.subr.mxu0 0.0
        %6598 = vmatpush2.msra.mxu0 0.0
        %6599 = vmatprep.subr.mxu0 0.0
        %6600 = vmatpush2.msra.mxu0 0.0
        %6601 = vmatprep.subr.mxu0 0.0
        %6602 = vmatpush2.msra.mxu0 0.0
        %6603 = vmatprep.subr.mxu0 0.0
        %6604 = vmatpush2.msra.mxu0 0.0
        %6605 = vmatprep.subr.mxu0 0.0
        %6606 = vmatpush2.msra.mxu0 0.0
        %6607 = vmatprep.subr.mxu0 0.0
        %6608 = vmatpush2.msra.mxu0 0.0
        %6609 = vmatprep.subr.mxu0 0.0
        %6610 = vmatpush2.msra.mxu0 0.0
        %6611 = vmatprep.mubr.f32.mxu0 0.0
        %6612 = vmatmul.mubr.f32.gmra.mxu0 %v6545
        %v6613 = vpop.f32.mrf.mxu0
        %v6614 = vadd.f32 %v6543, %v6613
        %v6615 = vpop.f32.mrf.mxu0
        %6616 = vdwg.mxu0
        %v6617 = vmax.f32 %v6614, 0.0
        %v6618 = vld [vmem:[%s4 + $0x460] sm:$0xff]
        %v6619 = vld [vmem:[%s4 + $0x468] sm:$0xff]
        %v6620 = vld [vmem:[%s4 + $0x470] sm:$0xff]
        %v6621 = vld [vmem:[%s4 + $0x478] sm:$0xff]
        %v6622 = vld [vmem:[%s4 + $0x480] sm:$0xff]
        %v6623 = vld [vmem:[%s4 + $0x488] sm:$0xff]
        %v6624 = vld [vmem:[%s4 + $0x490] sm:$0xff]
        %v6625 = vld [vmem:[%s4 + $0x498] sm:$0xff]
        %v6626 = vld [vmem:[%s4 + $0x4a0] sm:$0x1]
        %v6627 = vlaneseq
        %v6628 = vshrl.u32 %v6627, 7
        %v6629 = vsub.s32 0, %v6628
        %v6630 = vrot.slane %v6626, %v6629
        %v6632 = vsel %vm1370, %v6617, 0
        %6634 = vmatprep.subr.mxu0 0.0
        %6635 = vmatpush1.msra.mxu0 0.0
        %6636 = vmatprep.subr.mxu0 0.0
        %6637 = vmatpush1.msra.mxu0 0.0
        %6638 = vmatprep.subr.mxu0 0.0
        %6639 = vmatpush1.msra.mxu0 0.0
        %6640 = vmatprep.subr.mxu0 0.0
        %6641 = vmatpush1.msra.mxu0 0.0
        %6642 = vmatprep.subr.mxu0 0.0
        %6643 = vmatpush1.msra.mxu0 0.0
        %6644 = vmatprep.subr.mxu0 0.0
        %6645 = vmatpush1.msra.mxu0 0.0
        %6646 = vmatprep.subr.mxu0 0.0
        %6647 = vmatpush1.msra.mxu0 0.0
        %6648 = vmatprep.subr.mxu0 0.0
        %6649 = vmatpush1.msra.mxu0 0.0
        %6650 = vmatprep.subr.mxu0 0.0
        %6651 = vmatpush1.msra.mxu0 %v6625
        %6652 = vmatprep.subr.mxu0 0.0
        %6653 = vmatpush1.msra.mxu0 %v6624
        %6654 = vmatprep.subr.mxu0 0.0
        %6655 = vmatpush1.msra.mxu0 %v6623
        %6656 = vmatprep.subr.mxu0 0.0
        %6657 = vmatpush1.msra.mxu0 %v6622
        %6658 = vmatprep.subr.mxu0 0.0
        %6659 = vmatpush1.msra.mxu0 %v6621
        %6660 = vmatprep.subr.mxu0 0.0
        %6661 = vmatpush1.msra.mxu0 %v6620
        %6662 = vmatprep.subr.mxu0 0.0
        %6663 = vmatpush1.msra.mxu0 %v6619
        %6664 = vmatprep.subr.mxu0 0.0
        %6665 = vmatpush1.msra.mxu0 %v6618
        %6666 = vmatprep.subr.mxu0 0.0
        %6667 = vmatpush2.msra.mxu0 0.0
        %6668 = vmatprep.subr.mxu0 0.0
        %6669 = vmatpush2.msra.mxu0 0.0
        %6670 = vmatprep.subr.mxu0 0.0
        %6671 = vmatpush2.msra.mxu0 0.0
        %6672 = vmatprep.subr.mxu0 0.0
        %6673 = vmatpush2.msra.mxu0 0.0
        %6674 = vmatprep.subr.mxu0 0.0
        %6675 = vmatpush2.msra.mxu0 0.0
        %6676 = vmatprep.subr.mxu0 0.0
        %6677 = vmatpush2.msra.mxu0 0.0
        %6678 = vmatprep.subr.mxu0 0.0
        %6679 = vmatpush2.msra.mxu0 0.0
        %6680 = vmatprep.subr.mxu0 0.0
        %6681 = vmatpush2.msra.mxu0 0.0
        %6682 = vmatprep.subr.mxu0 0.0
        %6683 = vmatpush2.msra.mxu0 0.0
        %6684 = vmatprep.subr.mxu0 0.0
        %6685 = vmatpush2.msra.mxu0 0.0
        %6686 = vmatprep.subr.mxu0 0.0
        %6687 = vmatpush2.msra.mxu0 0.0
        %6688 = vmatprep.subr.mxu0 0.0
        %6689 = vmatpush2.msra.mxu0 0.0
        %6690 = vmatprep.subr.mxu0 0.0
        %6691 = vmatpush2.msra.mxu0 0.0
        %6692 = vmatprep.subr.mxu0 0.0
        %6693 = vmatpush2.msra.mxu0 0.0
        %6694 = vmatprep.subr.mxu0 0.0
        %6695 = vmatpush2.msra.mxu0 0.0
        %6696 = vmatprep.subr.mxu0 0.0
        %6697 = vmatpush2.msra.mxu0 0.0
        %6698 = vmatprep.mubr.f32.mxu0 0.0
        %6699 = vmatmul.mubr.f32.gmra.mxu0 %v6632
        %v6700 = vpop.f32.mrf.mxu0
        %v6701 = vadd.f32 %v6630, %v6700
        %v6702 = vpop.f32.mrf.mxu0
        %6703 = vdwg.mxu0
        %v6704 = vadd.f32 %v6502, %v6701
        %v6705 = vld [vmem:[%s4 + $0x38] sm:$0x1]
        %v6706 = vld [vmem:[%s4 + $0x40] sm:$0x1]
        %v6707 = vsel %vm358, %v6704, 0.0
        %6708 = vadd.xlane.f32.xlu0 %v6707
        %v6709 = vpop.xlane.xlu0 %6708
        %v6710 = vmul.f32 %v6709, %v362
        %v6711 = vsub.f32 %v6704, %v6710
        %v6712 = vmul.f32 %v6711, %v6711
        %v6713 = vsel %vm358, %v6712, 0.0
        %6714 = vadd.xlane.f32.xlu0 %v6713
        %v6715 = vpop.xlane.xlu0 %6714
        %v6716 = vmul.f32 %v6715, %v369
        %v6717 = vrsqrt.pop %v6716
        %v6718 = vmul.f32 %v6716, %v6717
        %vm6719 = vcmp.eq.f32.partialorder %v6716, inf
        %v6720 = vsel %vm6719, %v6716, %v6718
        %vm6721 = vcmp.eq.f32.partialorder %v6716, 0.0
        %v6722 = vand.u32 %v6716, 2147483648
        %v6723 = vsel %vm6721, %v6722, %v6720
        %v6724 = vlaneseq
        %v6725 = vshrl.u32 %v6724, 7
        %v6726 = vsub.s32 0, %v6725
        %v6727 = vrot.slane %v6705, %v6726
        %v6728 = vmul.f32 %v6727, %v6711
        %v6729 = vadd.f32 %v6723, 1e-06
        %v6730 = vrcp.pop %v6729
        %v6731 = vmul.f32 %v6728, %v6730
        %v6732 = vlaneseq
        %v6733 = vshrl.u32 %v6732, 7
        %v6734 = vsub.s32 0, %v6733
        %v6735 = vrot.slane %v6706, %v6734
        %v6736 = vadd.f32 %v6731, %v6735
        %6737 = vst.msk [vmem:[%s248] sm:$0xff] %vm358, %v6736
        %s6738 = sand.u32 %s152, 1
        %s6739 = scalar_lea.sflag [#allocation3], %s6738
        %s6740 = sand.u32 %s152, 1
        %s6741 = smul.addr %s6740, 8
        %s6742 = scalar_lea.vmem [#allocation2], %s6741
        // Predicated region
        $region41: #{encoder_decoder_forward.1} parent=39 // pred_check
          %p6743 = pneg %p162
        $region42: #{encoder_decoder_forward.1} parent=39 // pred_check_branch
          %6745 = sbr.rel (%p6743) target = $region44
        $region43: #{encoder_decoder_forward.1} parent=39 // pred_region
          %s6747 = ssub.s32 128, 128
          %6748 = vsyncadd %s6739, %s6747
          %s6749 = smul.addr %s19, 128
          %s6750 = scalar_lea.hbm %s5, %s6749
          %s6752 = sshll.u32 %s6742, 4
          %s6753 = int_to_ptr.vmem [resolvable:$true] %s6752
          %6755 = dma.vmem_to_hbm [thread:$0]  %s6753, 128, %s6750, %s6739
        $region44: #{encoder_decoder_forward.1} parent=39 // pred_fallthru
          _
      $region40: #{encoder_decoder_forward.1} parent=5 // pred_fallthru
        _
      %p6756 = scmp.le.s32.totalorder 2, %s14
      // Predicated region
      $region45: #{encoder_decoder_forward.1} parent=5 // pred_check
        %p6757 = pneg %p6756
      $region46: #{encoder_decoder_forward.1} parent=5 // pred_check_branch
        %6759 = sbr.rel (%p6757) target = $region48
      $region47: #{encoder_decoder_forward.1} parent=5 // pred_region
        %s6760 = ssub.s32 %s14, 2
        // Predicated region
        $region49: #{encoder_decoder_forward.1} parent=47 // pred_check
          %p6761 = pneg %p168
        $region50: #{encoder_decoder_forward.1} parent=47 // pred_check_branch
          %6763 = sbr.rel (%p6761) target = $region52
        $region51: #{encoder_decoder_forward.1} parent=47 // pred_region
          %s6764 = sand.u32 %s153, 1
          %s6765 = scalar_lea.sflag [#allocation3], %s6764
          %s6766 = sand.u32 %s153, 1
          %s6767 = smul.addr %s6766, 8
          %s6768 = scalar_lea.vmem [#allocation2], %s6767
          %6769 = dma.done %s6765, 128
        $region52: #{encoder_decoder_forward.1} parent=47 // pred_fallthru
          _
      $region48: #{encoder_decoder_forward.1} parent=5 // pred_fallthru
        _
    $region6: #{encoder_decoder_forward.1} parent=1 // loop_footer
      %s18 = sadd.s32 1, %s14
    $region7: #{encoder_decoder_forward.1} parent=1 // loop_footer_branch
      %13 = sbr.rel target = $region3
    $region8: #{encoder_decoder_forward.1} parent=1 // loop_exit
      _
    %6770 = vsyncpa [#allocation3], 1
    %s6771 = scalar_lea.sflag [#allocation3], 1
    %6772 = vsyncpa %s6771, 1

</llo_original>
